<compile_context>
chip_gen: v6e
topology: v6e:2x2x1
jax: 0.10.0
libtpu: 0.0.40
codegen_flags: <defaults>
</compile_context>

<pallas_src>
import functools

import jax
import jax.numpy as jnp
from jax.experimental import pallas as pl
from jax.experimental.pallas import tpu as pltpu

K = 5                      # conv kernel size (5x5, padding=2 -> 'same')
PAD = K // 2
C1 = 16                    # conv1 output channels
C2 = 32                    # conv2 output channels
MXU_DTYPE = jnp.bfloat16   # MXU operand dtype (accumulation stays float32)


# ----------------------------------------------------------------------------
# Fused kernel
# ----------------------------------------------------------------------------
def _cnn_fused_kernel(x_ref, band1_ref, b1_ref, band2_ref, b2_ref,
                      fcw_ref, fcb_ref, o_ref,
                      pad1_ref, pad2_ref, pool2_ref,
                      *, B, H, W, Cin):
    f32 = jnp.float32
    H2, W2 = H // 2, W // 2
    H4, W4 = H // 4, W // 4

    # ---- conv1: vertical-pad the batch tile, 5 accumulated banded GEMMs ----
    # NOTE: only the halo rows are zeroed; the interior [PAD:PAD+H] is fully
    # overwritten every grid step (must stay true if shapes ever change).
    zero1 = jnp.zeros((B, PAD, W * Cin), pad1_ref.dtype)
    pad1_ref[:, :PAD, :] = zero1
    pad1_ref[:, PAD + H:, :] = zero1
    pad1_ref[:, PAD:PAD + H, :] = x_ref[...].astype(pad1_ref.dtype)

    acc1 = jnp.zeros((B * H, W * C1), f32)
    for i in range(K):                                   # 5 vertical taps
        lhs = pad1_ref[:, i:i + H, :].reshape(B * H, W * Cin)
        acc1 = acc1 + jnp.dot(lhs, band1_ref[i], preferred_element_type=f32)
    act1 = jnp.maximum(acc1 + b1_ref[...], 0.0)          # (B*H, W*C1), f32

    # ---- maxpool1 (2x2): vertical pairs via row split, horizontal pairs via
    # static lane-block max written straight into conv2's padded input -------
    a1 = act1.reshape(B, H2, 2, W * C1)                  # free row split
    v1 = jnp.maximum(a1[:, :, 0, :], a1[:, :, 1, :])     # (B, H2, W*C1)

    zero2 = jnp.zeros((B, PAD, W2 * C1), pad2_ref.dtype)
    pad2_ref[:, :PAD, :] = zero2
    pad2_ref[:, PAD + H2:, :] = zero2
    for k in range(W2):
        left = v1[:, :, (2 * k) * C1:(2 * k + 1) * C1]
        right = v1[:, :, (2 * k + 1) * C1:(2 * k + 2) * C1]
        pad2_ref[:, PAD:PAD + H2, k * C1:(k + 1) * C1] = (
            jnp.maximum(left, right).astype(pad2_ref.dtype))

    # ---- conv2: 5 accumulated banded GEMMs (K=128, N=256, lane-dense) ------
    acc2 = jnp.zeros((B * H2, W2 * C2), f32)
    for i in range(K):
        lhs = pad2_ref[:, i:i + H2, :].reshape(B * H2, W2 * C1)
        acc2 = acc2 + jnp.dot(lhs, band2_ref[i], preferred_element_type=f32)
    act2 = jnp.maximum(acc2 + b2_ref[...], 0.0)          # (B*H2, W2*C2)

    # ---- maxpool2 (2x2) into a lane-dense (B, H4, W4*C2) buffer -------------
    a2 = act2.reshape(B, H4, 2, W2 * C2)
    v2 = jnp.maximum(a2[:, :, 0, :], a2[:, :, 1, :])     # (B, H4, W2*C2)
    for k in range(W4):
        left = v2[:, :, (2 * k) * C2:(2 * k + 1) * C2]
        right = v2[:, :, (2 * k + 1) * C2:(2 * k + 2) * C2]
        pool2_ref[:, :, k * C2:(k + 1) * C2] = (
            jnp.maximum(left, right).astype(pool2_ref.dtype))

    # ---- FC: H4 accumulated GEMMs against the row-split FC weight ----------
    ncls = fcb_ref.shape[-1]
    logits = jnp.zeros((B, ncls), f32)
    for r in range(H4):
        lhs = pool2_ref[:, r:r + 1, :].reshape(B, W4 * C2)
        logits = logits + jnp.dot(lhs, fcw_ref[r], preferred_element_type=f32)
    o_ref[...] = (logits + fcb_ref[...]).astype(o_ref.dtype)


def cnn_forward(kparams, x_nchw):
    """Fused forward pass. x_nchw: (batch, channels, H, W) -> (batch, classes)."""
    N, Cin, H, W = x_nchw.shape
    assert H % 4 == 0 and W % 4 == 0, "two 2x2 pools need spatial dims % 4 == 0"
    H2, W2 = H // 2, W // 2
    H4, W4 = H // 4, W // 4
    num_classes = kparams["fc_b"].shape[-1]

    # Batch tile: prefer a multiple of 8 (keeps the (B, classes) output block
    # sublane-aligned); otherwise process the whole batch in one grid step.
    B = 8 if N % 8 == 0 else N

    # NCHW -> (N, H, W*Cin): channels innermost along the lane dim.
    x = jnp.transpose(x_nchw, (0, 2, 3, 1)).reshape(N, H, W * Cin)

    kernel = functools.partial(_cnn_fused_kernel, B=B, H=H, W=W, Cin=Cin)
    out = pl.pallas_call(
        kernel,
        out_shape=jax.ShapeDtypeStruct((N, num_classes), jnp.float32),
        grid=(N // B,),
        in_specs=[
            pl.BlockSpec((B, H, W * Cin), lambda n: (n, 0, 0)),
            pl.BlockSpec((K, W * Cin, W * C1), lambda n: (0, 0, 0)),    # band1
            pl.BlockSpec((1, W * C1), lambda n: (0, 0)),                # b1 row
            pl.BlockSpec((K, W2 * C1, W2 * C2), lambda n: (0, 0, 0)),   # band2
            pl.BlockSpec((1, W2 * C2), lambda n: (0, 0)),               # b2 row
            pl.BlockSpec((H4, W4 * C2, num_classes), lambda n: (0, 0, 0)),
            pl.BlockSpec((1, num_classes), lambda n: (0, 0)),
        ],
        out_specs=pl.BlockSpec((B, num_classes), lambda n: (n, 0)),
        scratch_shapes=[
            pltpu.VMEM((B, H + 2 * PAD, W * Cin), MXU_DTYPE),    # conv1 v-pad
            pltpu.VMEM((B, H2 + 2 * PAD, W2 * C1), MXU_DTYPE),   # conv2 v-pad
            pltpu.VMEM((B, H4, W4 * C2), MXU_DTYPE),             # pooled FC in
        ],
        compiler_params=pltpu.CompilerParams(
            dimension_semantics=("parallel",),   # batch axis shards across TCs
        ),
    )(x, kparams["band1"], kparams["b1_row"], kparams["band2"], kparams["b2_row"],
      kparams["fc_w"], kparams["fc_b"])
    return out


# ----------------------------------------------------------------------------
# Parameters (PyTorch state_dict layout) + one-time kernel-layout conversion
# ----------------------------------------------------------------------------
def init_params(key, in_channels=1, h=16, w=16, num_classes=10):
    """Parameters with the same shapes as the PyTorch CNNModel state_dict."""
    k1, k2, k3, k4, k5, k6 = jax.random.split(key, 6)
    fc_in = C2 * (h // 4) * (w // 4)
    return {
        "conv1_w": 0.1 * jax.random.normal(k1, (C1, in_channels, K, K), jnp.float32),
        "conv1_b": 0.1 * jax.random.normal(k2, (C1,), jnp.float32),
        "conv2_w": 0.1 * jax.random.normal(k3, (C2, C1, K, K), jnp.float32),
        "conv2_b": 0.1 * jax.random.normal(k4, (C2,), jnp.float32),
        "fc_w": 0.1 * jax.random.normal(k5, (num_classes, fc_in), jnp.float32),
        "fc_b": 0.1 * jax.random.normal(k6, (num_classes,), jnp.float32),
    }


def _make_band(w_oihw, width):
    """Conv weight (Cout,Cin,KH,KW) -> (KH, width*Cin, width*Cout) band matrices.

    band[i] maps one full input row (channels innermost, NO horizontal padding)
    to vertical tap i's contribution to one full output row; out-of-range
    horizontal taps are simply omitted, reproducing the 'same' zero padding.
    """
    cout, cin, kh, kw = w_oihw.shape
    w = jnp.transpose(w_oihw, (2, 3, 1, 0))            # (KH, KW, Cin, Cout)
    band = jnp.zeros((kh, width * cin, width * cout), jnp.float32)
    for x in range(width):
        for j in range(kw):
            xin = x + j - PAD
            if 0 <= xin < width:
                band = band.at[:, xin * cin:(xin + 1) * cin,
                               x * cout:(x + 1) * cout].set(w[:, j])
    return band


def prepare_params(torch_params, h, w, mxu_dtype=MXU_DTYPE):
    """One-time conversion: PyTorch layout -> fused-kernel layout."""
    w2 = w // 2
    h4, w4 = h // 4, w // 4
    num_classes = torch_params["fc_w"].shape[0]
    band1 = _make_band(torch_params["conv1_w"], w)       # (K, w*Cin, w*C1)
    band2 = _make_band(torch_params["conv2_w"], w2)      # (K, w2*C1, w2*C2)
    # FC weight: PyTorch CHW-flatten -> per-pooled-row chunks (H4, W4*C2, cls)
    fcw = torch_params["fc_w"].reshape(num_classes, C2, h4, w4)
    fcw = jnp.transpose(fcw, (2, 3, 1, 0)).reshape(h4, w4 * C2, num_classes)
    return {
        "band1": band1.astype(mxu_dtype),
        "b1_row": jnp.tile(torch_params["conv1_b"], (w,)).reshape(1, w * C1)
                     .astype(jnp.float32),
        "band2": band2.astype(mxu_dtype),
        "b2_row": jnp.tile(torch_params["conv2_b"], (w2,)).reshape(1, w2 * C2)
                     .astype(jnp.float32),
        "fc_w": fcw.astype(mxu_dtype),
        "fc_b": torch_params["fc_b"].reshape(1, num_classes).astype(jnp.float32),
    }


# ----------------------------------------------------------------------------
# Pure-JAX/XLA reference of the PyTorch module (correctness check)
# ----------------------------------------------------------------------------
def cnn_reference(torch_params, x_nchw):
    def conv_relu(x, w, b):
        y = jax.lax.conv_general_dilated(
            x, w, window_strides=(1, 1), padding=[(PAD, PAD), (PAD, PAD)],
            dimension_numbers=("NCHW", "OIHW", "NCHW"))
        return jax.nn.relu(y + b.reshape(1, -1, 1, 1))

    def pool(x):
        return jax.lax.reduce_window(x, -jnp.inf, jax.lax.max,
                                     (1, 1, 2, 2), (1, 1, 2, 2), "VALID")

    x = pool(conv_relu(x_nchw, torch_params["conv1_w"], torch_params["conv1_b"]))
    x = pool(conv_relu(x, torch_params["conv2_w"], torch_params["conv2_b"]))
    x = x.reshape(x.shape[0], -1)                        # PyTorch CHW flatten
    return x @ torch_params["fc_w"].T + torch_params["fc_b"]


if __name__ == "__main__":
    key = jax.random.PRNGKey(0)
    pkey, xkey = jax.random.split(key)
    batch, cin, h, w = 16, 1, 16, 16                     # MNIST-style: Cin = 1
    x = jax.random.normal(xkey, (batch, cin, h, w), jnp.float32)

    torch_params = init_params(pkey, in_channels=cin, h=h, w=w, num_classes=10)
    kparams = prepare_params(torch_params, h, w)         # one-time layout conversion

    logits = jax.jit(cnn_forward)(kparams, x)
    logits = jax.block_until_ready(logits)

    assert logits.shape == (batch, 10), logits.shape
    assert bool(jnp.all(jnp.isfinite(logits)))

    # Numerical check vs. the f32 XLA reference (kernel uses bf16 MXU operands
    # with f32 accumulation -> loose tolerance).
    ref = cnn_reference(torch_params, x)
    max_err = float(jnp.max(jnp.abs(logits - ref)))
    assert max_err < 0.3, f"max abs error vs reference: {max_err}"

    print("KERNEL_OK")
</pallas_src>

<mosaic_0001>
module attributes {stable_mosaic.version = 11 : i64} {
  func.func @_cnn_fused_kernel(%arg0: i32, %arg1: memref<8x16x16xf32, #tpu.memory_space<vmem>>, %arg2: memref<5x16x256xbf16, #tpu.memory_space<vmem>>, %arg3: memref<1x256xf32, #tpu.memory_space<vmem>>, %arg4: memref<5x128x256xbf16, #tpu.memory_space<vmem>>, %arg5: memref<1x256xf32, #tpu.memory_space<vmem>>, %arg6: memref<4x128x10xbf16, #tpu.memory_space<vmem>>, %arg7: memref<1x10xf32, #tpu.memory_space<vmem>>, %arg8: memref<8x10xf32, #tpu.memory_space<vmem>>, %arg9: memref<8x20x16xbf16, #tpu.memory_space<vmem>>, %arg10: memref<8x12x128xbf16, #tpu.memory_space<vmem>>, %arg11: memref<8x4x128xbf16, #tpu.memory_space<vmem>>) attributes {dimension_semantics = [#tpu.dimension_semantics<parallel>], iteration_bounds = array<i64: 2>, scalar_prefetch = 0 : i64, scratch_operands = 3 : i64, tpu.core_type = #tpu.core_type<tc>, window_params = [{transform_indices = @transform_0, window_bounds = array<i64: 8, 16, 16>}, {pipeline_mode = #tpu.pipeline_mode<synchronous>, transform_indices = @transform_1, window_bounds = array<i64: 5, 16, 256>}, {pipeline_mode = #tpu.pipeline_mode<synchronous>, transform_indices = @transform_2, window_bounds = array<i64: 1, 256>}, {pipeline_mode = #tpu.pipeline_mode<synchronous>, transform_indices = @transform_3, window_bounds = array<i64: 5, 128, 256>}, {pipeline_mode = #tpu.pipeline_mode<synchronous>, transform_indices = @transform_4, window_bounds = array<i64: 1, 256>}, {pipeline_mode = #tpu.pipeline_mode<synchronous>, transform_indices = @transform_5, window_bounds = array<i64: 4, 128, 10>}, {pipeline_mode = #tpu.pipeline_mode<synchronous>, transform_indices = @transform_6, window_bounds = array<i64: 1, 10>}, {transform_indices = @transform_7, window_bounds = array<i64: 8, 10>}]} {
    %cst = arith.constant 0.000000e+00 : bf16
    %0 = vector.broadcast %cst : bf16 to vector<8x2x16xbf16>
    %c0 = arith.constant 0 : index
    %c0_0 = arith.constant 0 : index
    %c0_1 = arith.constant 0 : index
    %1 = vector.load %arg9[%c0, %c0_0, %c0_1] : memref<8x20x16xbf16, #tpu.memory_space<vmem>>, vector<8x2x16xbf16>
    tpu.vector_store %arg9[%c0, %c0_0, %c0_1], %0 {strides = array<i32>} : memref<8x20x16xbf16, #tpu.memory_space<vmem>>, vector<8x2x16xbf16>,
    %c0_2 = arith.constant 0 : index
    %c18 = arith.constant 18 : index
    %c0_3 = arith.constant 0 : index
    %2 = vector.load %arg9[%c0_2, %c18, %c0_3] : memref<8x20x16xbf16, #tpu.memory_space<vmem>>, vector<8x2x16xbf16>
    tpu.vector_store %arg9[%c0_2, %c18, %c0_3], %0 {strides = array<i32>} : memref<8x20x16xbf16, #tpu.memory_space<vmem>>, vector<8x2x16xbf16>,
    %c0_4 = arith.constant 0 : index
    %c0_5 = arith.constant 0 : index
    %c0_6 = arith.constant 0 : index
    %3 = vector.load %arg1[%c0_4, %c0_5, %c0_6] : memref<8x16x16xf32, #tpu.memory_space<vmem>>, vector<8x16x16xf32>
    %4 = arith.truncf %3 : vector<8x16x16xf32> to vector<8x16x16xbf16>
    %c0_7 = arith.constant 0 : index
    %c2 = arith.constant 2 : index
    %c0_8 = arith.constant 0 : index
    %5 = vector.load %arg9[%c0_7, %c2, %c0_8] : memref<8x20x16xbf16, #tpu.memory_space<vmem>>, vector<8x16x16xbf16>
    tpu.vector_store %arg9[%c0_7, %c2, %c0_8], %4 {strides = array<i32>} : memref<8x20x16xbf16, #tpu.memory_space<vmem>>, vector<8x16x16xbf16>,
    %cst_9 = arith.constant 0.000000e+00 : f32
    %6 = vector.broadcast %cst_9 : f32 to vector<128x256xf32>
    %c0_10 = arith.constant 0 : index
    %c0_11 = arith.constant 0 : index
    %c0_12 = arith.constant 0 : index
    %7 = vector.load %arg9[%c0_10, %c0_11, %c0_12] : memref<8x20x16xbf16, #tpu.memory_space<vmem>>, vector<8x16x16xbf16>
    %8 = vector.shape_cast %7 : vector<8x16x16xbf16> to vector<128x16xbf16>
    %c0_13 = arith.constant 0 : index
    %c0_14 = arith.constant 0 : index
    %c0_15 = arith.constant 0 : index
    %9 = vector.load %arg2[%c0_13, %c0_14, %c0_15] : memref<5x16x256xbf16, #tpu.memory_space<vmem>>, vector<1x16x256xbf16>
    %10 = vector.shape_cast %9 : vector<1x16x256xbf16> to vector<16x256xbf16>
    %cst_16 = arith.constant dense<0.000000e+00> : vector<128x256xf32>
    %11 = tpu.matmul %8, %10, %cst_16 {dimension_numbers = #tpu.dot_dimension_numbers<[1], [0], [0], [1], [0, 0, 1, 1], [], []>} : vector<128x16xbf16>, vector<16x256xbf16>, vector<128x256xf32> -> vector<128x256xf32>
    %12 = arith.addf %6, %11 : vector<128x256xf32>
    %c0_17 = arith.constant 0 : index
    %c1 = arith.constant 1 : index
    %c0_18 = arith.constant 0 : index
    %13 = vector.load %arg9[%c0_17, %c1, %c0_18] : memref<8x20x16xbf16, #tpu.memory_space<vmem>>, vector<8x16x16xbf16>
    %14 = vector.shape_cast %13 : vector<8x16x16xbf16> to vector<128x16xbf16>
    %c1_19 = arith.constant 1 : index
    %c0_20 = arith.constant 0 : index
    %c0_21 = arith.constant 0 : index
    %15 = vector.load %arg2[%c1_19, %c0_20, %c0_21] : memref<5x16x256xbf16, #tpu.memory_space<vmem>>, vector<1x16x256xbf16>
    %16 = vector.shape_cast %15 : vector<1x16x256xbf16> to vector<16x256xbf16>
    %cst_22 = arith.constant dense<0.000000e+00> : vector<128x256xf32>
    %17 = tpu.matmul %14, %16, %cst_22 {dimension_numbers = #tpu.dot_dimension_numbers<[1], [0], [0], [1], [0, 0, 1, 1], [], []>} : vector<128x16xbf16>, vector<16x256xbf16>, vector<128x256xf32> -> vector<128x256xf32>
    %18 = arith.addf %12, %17 : vector<128x256xf32>
    %c0_23 = arith.constant 0 : index
    %c2_24 = arith.constant 2 : index
    %c0_25 = arith.constant 0 : index
    %19 = vector.load %arg9[%c0_23, %c2_24, %c0_25] : memref<8x20x16xbf16, #tpu.memory_space<vmem>>, vector<8x16x16xbf16>
    %20 = vector.shape_cast %19 : vector<8x16x16xbf16> to vector<128x16xbf16>
    %c2_26 = arith.constant 2 : index
    %c0_27 = arith.constant 0 : index
    %c0_28 = arith.constant 0 : index
    %21 = vector.load %arg2[%c2_26, %c0_27, %c0_28] : memref<5x16x256xbf16, #tpu.memory_space<vmem>>, vector<1x16x256xbf16>
    %22 = vector.shape_cast %21 : vector<1x16x256xbf16> to vector<16x256xbf16>
    %cst_29 = arith.constant dense<0.000000e+00> : vector<128x256xf32>
    %23 = tpu.matmul %20, %22, %cst_29 {dimension_numbers = #tpu.dot_dimension_numbers<[1], [0], [0], [1], [0, 0, 1, 1], [], []>} : vector<128x16xbf16>, vector<16x256xbf16>, vector<128x256xf32> -> vector<128x256xf32>
    %24 = arith.addf %18, %23 : vector<128x256xf32>
    %c0_30 = arith.constant 0 : index
    %c3 = arith.constant 3 : index
    %c0_31 = arith.constant 0 : index
    %25 = vector.load %arg9[%c0_30, %c3, %c0_31] : memref<8x20x16xbf16, #tpu.memory_space<vmem>>, vector<8x16x16xbf16>
    %26 = vector.shape_cast %25 : vector<8x16x16xbf16> to vector<128x16xbf16>
    %c3_32 = arith.constant 3 : index
    %c0_33 = arith.constant 0 : index
    %c0_34 = arith.constant 0 : index
    %27 = vector.load %arg2[%c3_32, %c0_33, %c0_34] : memref<5x16x256xbf16, #tpu.memory_space<vmem>>, vector<1x16x256xbf16>
    %28 = vector.shape_cast %27 : vector<1x16x256xbf16> to vector<16x256xbf16>
    %cst_35 = arith.constant dense<0.000000e+00> : vector<128x256xf32>
    %29 = tpu.matmul %26, %28, %cst_35 {dimension_numbers = #tpu.dot_dimension_numbers<[1], [0], [0], [1], [0, 0, 1, 1], [], []>} : vector<128x16xbf16>, vector<16x256xbf16>, vector<128x256xf32> -> vector<128x256xf32>
    %30 = arith.addf %24, %29 : vector<128x256xf32>
    %c0_36 = arith.constant 0 : index
    %c4 = arith.constant 4 : index
    %c0_37 = arith.constant 0 : index
    %31 = vector.load %arg9[%c0_36, %c4, %c0_37] : memref<8x20x16xbf16, #tpu.memory_space<vmem>>, vector<8x16x16xbf16>
    %32 = vector.shape_cast %31 : vector<8x16x16xbf16> to vector<128x16xbf16>
    %c4_38 = arith.constant 4 : index
    %c0_39 = arith.constant 0 : index
    %c0_40 = arith.constant 0 : index
    %33 = vector.load %arg2[%c4_38, %c0_39, %c0_40] : memref<5x16x256xbf16, #tpu.memory_space<vmem>>, vector<1x16x256xbf16>
    %34 = vector.shape_cast %33 : vector<1x16x256xbf16> to vector<16x256xbf16>
    %cst_41 = arith.constant dense<0.000000e+00> : vector<128x256xf32>
    %35 = tpu.matmul %32, %34, %cst_41 {dimension_numbers = #tpu.dot_dimension_numbers<[1], [0], [0], [1], [0, 0, 1, 1], [], []>} : vector<128x16xbf16>, vector<16x256xbf16>, vector<128x256xf32> -> vector<128x256xf32>
    %36 = arith.addf %30, %35 : vector<128x256xf32>
    %c0_42 = arith.constant 0 : index
    %c0_43 = arith.constant 0 : index
    %37 = vector.load %arg3[%c0_42, %c0_43] : memref<1x256xf32, #tpu.memory_space<vmem>>, vector<1x256xf32>
    %38 = vector.broadcast %37 : vector<1x256xf32> to vector<128x256xf32>
    %39 = arith.addf %36, %38 : vector<128x256xf32>
    %cst_44 = arith.constant 0.000000e+00 : f32
    %40 = vector.broadcast %cst_44 : f32 to vector<128x256xf32>
    %41 = arith.maximumf %39, %40 : vector<128x256xf32>
    %42 = vector.shape_cast %41 : vector<128x256xf32> to vector<8x8x2x256xf32>
    %43 = vector.extract_strided_slice %42 {offsets = [0, 0, 0, 0], sizes = [8, 8, 1, 256], strides = [1, 1, 1, 1]} : vector<8x8x2x256xf32> to vector<8x8x1x256xf32>
    %44 = vector.shape_cast %43 : vector<8x8x1x256xf32> to vector<8x8x256xf32>
    %45 = vector.extract_strided_slice %42 {offsets = [0, 0, 1, 0], sizes = [8, 8, 1, 256], strides = [1, 1, 1, 1]} : vector<8x8x2x256xf32> to vector<8x8x1x256xf32>
    %46 = vector.shape_cast %45 : vector<8x8x1x256xf32> to vector<8x8x256xf32>
    %47 = arith.maximumf %44, %46 : vector<8x8x256xf32>
    %cst_45 = arith.constant 0.000000e+00 : bf16
    %48 = vector.broadcast %cst_45 : bf16 to vector<8x2x128xbf16>
    %c0_46 = arith.constant 0 : index
    %c0_47 = arith.constant 0 : index
    %c0_48 = arith.constant 0 : index
    %49 = vector.load %arg10[%c0_46, %c0_47, %c0_48] : memref<8x12x128xbf16, #tpu.memory_space<vmem>>, vector<8x2x128xbf16>
    tpu.vector_store %arg10[%c0_46, %c0_47, %c0_48], %48 {strides = array<i32>} : memref<8x12x128xbf16, #tpu.memory_space<vmem>>, vector<8x2x128xbf16>,
    %c0_49 = arith.constant 0 : index
    %c10 = arith.constant 10 : index
    %c0_50 = arith.constant 0 : index
    %50 = vector.load %arg10[%c0_49, %c10, %c0_50] : memref<8x12x128xbf16, #tpu.memory_space<vmem>>, vector<8x2x128xbf16>
    tpu.vector_store %arg10[%c0_49, %c10, %c0_50], %48 {strides = array<i32>} : memref<8x12x128xbf16, #tpu.memory_space<vmem>>, vector<8x2x128xbf16>,
    %51 = vector.extract_strided_slice %47 {offsets = [0, 0, 0], sizes = [8, 8, 16], strides = [1, 1, 1]} : vector<8x8x256xf32> to vector<8x8x16xf32>
    %52 = vector.extract_strided_slice %47 {offsets = [0, 0, 16], sizes = [8, 8, 16], strides = [1, 1, 1]} : vector<8x8x256xf32> to vector<8x8x16xf32>
    %53 = arith.maximumf %51, %52 : vector<8x8x16xf32>
    %54 = arith.truncf %53 : vector<8x8x16xf32> to vector<8x8x16xbf16>
    %c0_51 = arith.constant 0 : index
    %c2_52 = arith.constant 2 : index
    %c0_53 = arith.constant 0 : index
    %55 = vector.load %arg10[%c0_51, %c2_52, %c0_53] : memref<8x12x128xbf16, #tpu.memory_space<vmem>>, vector<8x8x16xbf16>
    tpu.vector_store %arg10[%c0_51, %c2_52, %c0_53], %54 {strides = array<i32>} : memref<8x12x128xbf16, #tpu.memory_space<vmem>>, vector<8x8x16xbf16>,
    %56 = vector.extract_strided_slice %47 {offsets = [0, 0, 32], sizes = [8, 8, 16], strides = [1, 1, 1]} : vector<8x8x256xf32> to vector<8x8x16xf32>
    %57 = vector.extract_strided_slice %47 {offsets = [0, 0, 48], sizes = [8, 8, 16], strides = [1, 1, 1]} : vector<8x8x256xf32> to vector<8x8x16xf32>
    %58 = arith.maximumf %56, %57 : vector<8x8x16xf32>
    %59 = arith.truncf %58 : vector<8x8x16xf32> to vector<8x8x16xbf16>
    %c0_54 = arith.constant 0 : index
    %c2_55 = arith.constant 2 : index
    %c16 = arith.constant 16 : index
    %60 = vector.load %arg10[%c0_54, %c2_55, %c16] : memref<8x12x128xbf16, #tpu.memory_space<vmem>>, vector<8x8x16xbf16>
    tpu.vector_store %arg10[%c0_54, %c2_55, %c16], %59 {strides = array<i32>} : memref<8x12x128xbf16, #tpu.memory_space<vmem>>, vector<8x8x16xbf16>,
    %61 = vector.extract_strided_slice %47 {offsets = [0, 0, 64], sizes = [8, 8, 16], strides = [1, 1, 1]} : vector<8x8x256xf32> to vector<8x8x16xf32>
    %62 = vector.extract_strided_slice %47 {offsets = [0, 0, 80], sizes = [8, 8, 16], strides = [1, 1, 1]} : vector<8x8x256xf32> to vector<8x8x16xf32>
    %63 = arith.maximumf %61, %62 : vector<8x8x16xf32>
    %64 = arith.truncf %63 : vector<8x8x16xf32> to vector<8x8x16xbf16>
    %c0_56 = arith.constant 0 : index
    %c2_57 = arith.constant 2 : index
    %c32 = arith.constant 32 : index
    %65 = vector.load %arg10[%c0_56, %c2_57, %c32] : memref<8x12x128xbf16, #tpu.memory_space<vmem>>, vector<8x8x16xbf16>
    tpu.vector_store %arg10[%c0_56, %c2_57, %c32], %64 {strides = array<i32>} : memref<8x12x128xbf16, #tpu.memory_space<vmem>>, vector<8x8x16xbf16>,
    %66 = vector.extract_strided_slice %47 {offsets = [0, 0, 96], sizes = [8, 8, 16], strides = [1, 1, 1]} : vector<8x8x256xf32> to vector<8x8x16xf32>
    %67 = vector.extract_strided_slice %47 {offsets = [0, 0, 112], sizes = [8, 8, 16], strides = [1, 1, 1]} : vector<8x8x256xf32> to vector<8x8x16xf32>
    %68 = arith.maximumf %66, %67 : vector<8x8x16xf32>
    %69 = arith.truncf %68 : vector<8x8x16xf32> to vector<8x8x16xbf16>
    %c0_58 = arith.constant 0 : index
    %c2_59 = arith.constant 2 : index
    %c48 = arith.constant 48 : index
    %70 = vector.load %arg10[%c0_58, %c2_59, %c48] : memref<8x12x128xbf16, #tpu.memory_space<vmem>>, vector<8x8x16xbf16>
    tpu.vector_store %arg10[%c0_58, %c2_59, %c48], %69 {strides = array<i32>} : memref<8x12x128xbf16, #tpu.memory_space<vmem>>, vector<8x8x16xbf16>,
    %71 = vector.extract_strided_slice %47 {offsets = [0, 0, 128], sizes = [8, 8, 16], strides = [1, 1, 1]} : vector<8x8x256xf32> to vector<8x8x16xf32>
    %72 = vector.extract_strided_slice %47 {offsets = [0, 0, 144], sizes = [8, 8, 16], strides = [1, 1, 1]} : vector<8x8x256xf32> to vector<8x8x16xf32>
    %73 = arith.maximumf %71, %72 : vector<8x8x16xf32>
    %74 = arith.truncf %73 : vector<8x8x16xf32> to vector<8x8x16xbf16>
    %c0_60 = arith.constant 0 : index
    %c2_61 = arith.constant 2 : index
    %c64 = arith.constant 64 : index
    %75 = vector.load %arg10[%c0_60, %c2_61, %c64] : memref<8x12x128xbf16, #tpu.memory_space<vmem>>, vector<8x8x16xbf16>
    tpu.vector_store %arg10[%c0_60, %c2_61, %c64], %74 {strides = array<i32>} : memref<8x12x128xbf16, #tpu.memory_space<vmem>>, vector<8x8x16xbf16>,
    %76 = vector.extract_strided_slice %47 {offsets = [0, 0, 160], sizes = [8, 8, 16], strides = [1, 1, 1]} : vector<8x8x256xf32> to vector<8x8x16xf32>
    %77 = vector.extract_strided_slice %47 {offsets = [0, 0, 176], sizes = [8, 8, 16], strides = [1, 1, 1]} : vector<8x8x256xf32> to vector<8x8x16xf32>
    %78 = arith.maximumf %76, %77 : vector<8x8x16xf32>
    %79 = arith.truncf %78 : vector<8x8x16xf32> to vector<8x8x16xbf16>
    %c0_62 = arith.constant 0 : index
    %c2_63 = arith.constant 2 : index
    %c80 = arith.constant 80 : index
    %80 = vector.load %arg10[%c0_62, %c2_63, %c80] : memref<8x12x128xbf16, #tpu.memory_space<vmem>>, vector<8x8x16xbf16>
    tpu.vector_store %arg10[%c0_62, %c2_63, %c80], %79 {strides = array<i32>} : memref<8x12x128xbf16, #tpu.memory_space<vmem>>, vector<8x8x16xbf16>,
    %81 = vector.extract_strided_slice %47 {offsets = [0, 0, 192], sizes = [8, 8, 16], strides = [1, 1, 1]} : vector<8x8x256xf32> to vector<8x8x16xf32>
    %82 = vector.extract_strided_slice %47 {offsets = [0, 0, 208], sizes = [8, 8, 16], strides = [1, 1, 1]} : vector<8x8x256xf32> to vector<8x8x16xf32>
    %83 = arith.maximumf %81, %82 : vector<8x8x16xf32>
    %84 = arith.truncf %83 : vector<8x8x16xf32> to vector<8x8x16xbf16>
    %c0_64 = arith.constant 0 : index
    %c2_65 = arith.constant 2 : index
    %c96 = arith.constant 96 : index
    %85 = vector.load %arg10[%c0_64, %c2_65, %c96] : memref<8x12x128xbf16, #tpu.memory_space<vmem>>, vector<8x8x16xbf16>
    tpu.vector_store %arg10[%c0_64, %c2_65, %c96], %84 {strides = array<i32>} : memref<8x12x128xbf16, #tpu.memory_space<vmem>>, vector<8x8x16xbf16>,
    %86 = vector.extract_strided_slice %47 {offsets = [0, 0, 224], sizes = [8, 8, 16], strides = [1, 1, 1]} : vector<8x8x256xf32> to vector<8x8x16xf32>
    %87 = vector.extract_strided_slice %47 {offsets = [0, 0, 240], sizes = [8, 8, 16], strides = [1, 1, 1]} : vector<8x8x256xf32> to vector<8x8x16xf32>
    %88 = arith.maximumf %86, %87 : vector<8x8x16xf32>
    %89 = arith.truncf %88 : vector<8x8x16xf32> to vector<8x8x16xbf16>
    %c0_66 = arith.constant 0 : index
    %c2_67 = arith.constant 2 : index
    %c112 = arith.constant 112 : index
    %90 = vector.load %arg10[%c0_66, %c2_67, %c112] : memref<8x12x128xbf16, #tpu.memory_space<vmem>>, vector<8x8x16xbf16>
    tpu.vector_store %arg10[%c0_66, %c2_67, %c112], %89 {strides = array<i32>} : memref<8x12x128xbf16, #tpu.memory_space<vmem>>, vector<8x8x16xbf16>,
    %cst_68 = arith.constant 0.000000e+00 : f32
    %91 = vector.broadcast %cst_68 : f32 to vector<64x256xf32>
    %c0_69 = arith.constant 0 : index
    %c0_70 = arith.constant 0 : index
    %c0_71 = arith.constant 0 : index
    %92 = vector.load %arg10[%c0_69, %c0_70, %c0_71] : memref<8x12x128xbf16, #tpu.memory_space<vmem>>, vector<8x8x128xbf16>
    %93 = vector.shape_cast %92 : vector<8x8x128xbf16> to vector<64x128xbf16>
    %c0_72 = arith.constant 0 : index
    %c0_73 = arith.constant 0 : index
    %c0_74 = arith.constant 0 : index
    %94 = vector.load %arg4[%c0_72, %c0_73, %c0_74] : memref<5x128x256xbf16, #tpu.memory_space<vmem>>, vector<1x128x256xbf16>
    %95 = vector.shape_cast %94 : vector<1x128x256xbf16> to vector<128x256xbf16>
    %cst_75 = arith.constant dense<0.000000e+00> : vector<64x256xf32>
    %96 = tpu.matmul %93, %95, %cst_75 {dimension_numbers = #tpu.dot_dimension_numbers<[1], [0], [0], [1], [0, 0, 1, 1], [], []>} : vector<64x128xbf16>, vector<128x256xbf16>, vector<64x256xf32> -> vector<64x256xf32>
    %97 = arith.addf %91, %96 : vector<64x256xf32>
    %c0_76 = arith.constant 0 : index
    %c1_77 = arith.constant 1 : index
    %c0_78 = arith.constant 0 : index
    %98 = vector.load %arg10[%c0_76, %c1_77, %c0_78] : memref<8x12x128xbf16, #tpu.memory_space<vmem>>, vector<8x8x128xbf16>
    %99 = vector.shape_cast %98 : vector<8x8x128xbf16> to vector<64x128xbf16>
    %c1_79 = arith.constant 1 : index
    %c0_80 = arith.constant 0 : index
    %c0_81 = arith.constant 0 : index
    %100 = vector.load %arg4[%c1_79, %c0_80, %c0_81] : memref<5x128x256xbf16, #tpu.memory_space<vmem>>, vector<1x128x256xbf16>
    %101 = vector.shape_cast %100 : vector<1x128x256xbf16> to vector<128x256xbf16>
    %cst_82 = arith.constant dense<0.000000e+00> : vector<64x256xf32>
    %102 = tpu.matmul %99, %101, %cst_82 {dimension_numbers = #tpu.dot_dimension_numbers<[1], [0], [0], [1], [0, 0, 1, 1], [], []>} : vector<64x128xbf16>, vector<128x256xbf16>, vector<64x256xf32> -> vector<64x256xf32>
    %103 = arith.addf %97, %102 : vector<64x256xf32>
    %c0_83 = arith.constant 0 : index
    %c2_84 = arith.constant 2 : index
    %c0_85 = arith.constant 0 : index
    %104 = vector.load %arg10[%c0_83, %c2_84, %c0_85] : memref<8x12x128xbf16, #tpu.memory_space<vmem>>, vector<8x8x128xbf16>
    %105 = vector.shape_cast %104 : vector<8x8x128xbf16> to vector<64x128xbf16>
    %c2_86 = arith.constant 2 : index
    %c0_87 = arith.constant 0 : index
    %c0_88 = arith.constant 0 : index
    %106 = vector.load %arg4[%c2_86, %c0_87, %c0_88] : memref<5x128x256xbf16, #tpu.memory_space<vmem>>, vector<1x128x256xbf16>
    %107 = vector.shape_cast %106 : vector<1x128x256xbf16> to vector<128x256xbf16>
    %cst_89 = arith.constant dense<0.000000e+00> : vector<64x256xf32>
    %108 = tpu.matmul %105, %107, %cst_89 {dimension_numbers = #tpu.dot_dimension_numbers<[1], [0], [0], [1], [0, 0, 1, 1], [], []>} : vector<64x128xbf16>, vector<128x256xbf16>, vector<64x256xf32> -> vector<64x256xf32>
    %109 = arith.addf %103, %108 : vector<64x256xf32>
    %c0_90 = arith.constant 0 : index
    %c3_91 = arith.constant 3 : index
    %c0_92 = arith.constant 0 : index
    %110 = vector.load %arg10[%c0_90, %c3_91, %c0_92] : memref<8x12x128xbf16, #tpu.memory_space<vmem>>, vector<8x8x128xbf16>
    %111 = vector.shape_cast %110 : vector<8x8x128xbf16> to vector<64x128xbf16>
    %c3_93 = arith.constant 3 : index
    %c0_94 = arith.constant 0 : index
    %c0_95 = arith.constant 0 : index
    %112 = vector.load %arg4[%c3_93, %c0_94, %c0_95] : memref<5x128x256xbf16, #tpu.memory_space<vmem>>, vector<1x128x256xbf16>
    %113 = vector.shape_cast %112 : vector<1x128x256xbf16> to vector<128x256xbf16>
    %cst_96 = arith.constant dense<0.000000e+00> : vector<64x256xf32>
    %114 = tpu.matmul %111, %113, %cst_96 {dimension_numbers = #tpu.dot_dimension_numbers<[1], [0], [0], [1], [0, 0, 1, 1], [], []>} : vector<64x128xbf16>, vector<128x256xbf16>, vector<64x256xf32> -> vector<64x256xf32>
    %115 = arith.addf %109, %114 : vector<64x256xf32>
    %c0_97 = arith.constant 0 : index
    %c4_98 = arith.constant 4 : index
    %c0_99 = arith.constant 0 : index
    %116 = vector.load %arg10[%c0_97, %c4_98, %c0_99] : memref<8x12x128xbf16, #tpu.memory_space<vmem>>, vector<8x8x128xbf16>
    %117 = vector.shape_cast %116 : vector<8x8x128xbf16> to vector<64x128xbf16>
    %c4_100 = arith.constant 4 : index
    %c0_101 = arith.constant 0 : index
    %c0_102 = arith.constant 0 : index
    %118 = vector.load %arg4[%c4_100, %c0_101, %c0_102] : memref<5x128x256xbf16, #tpu.memory_space<vmem>>, vector<1x128x256xbf16>
    %119 = vector.shape_cast %118 : vector<1x128x256xbf16> to vector<128x256xbf16>
    %cst_103 = arith.constant dense<0.000000e+00> : vector<64x256xf32>
    %120 = tpu.matmul %117, %119, %cst_103 {dimension_numbers = #tpu.dot_dimension_numbers<[1], [0], [0], [1], [0, 0, 1, 1], [], []>} : vector<64x128xbf16>, vector<128x256xbf16>, vector<64x256xf32> -> vector<64x256xf32>
    %121 = arith.addf %115, %120 : vector<64x256xf32>
    %c0_104 = arith.constant 0 : index
    %c0_105 = arith.constant 0 : index
    %122 = vector.load %arg5[%c0_104, %c0_105] : memref<1x256xf32, #tpu.memory_space<vmem>>, vector<1x256xf32>
    %123 = vector.broadcast %122 : vector<1x256xf32> to vector<64x256xf32>
    %124 = arith.addf %121, %123 : vector<64x256xf32>
    %cst_106 = arith.constant 0.000000e+00 : f32
    %125 = vector.broadcast %cst_106 : f32 to vector<64x256xf32>
    %126 = arith.maximumf %124, %125 : vector<64x256xf32>
    %127 = vector.shape_cast %126 : vector<64x256xf32> to vector<8x4x2x256xf32>
    %128 = vector.extract_strided_slice %127 {offsets = [0, 0, 0, 0], sizes = [8, 4, 1, 256], strides = [1, 1, 1, 1]} : vector<8x4x2x256xf32> to vector<8x4x1x256xf32>
    %129 = vector.shape_cast %128 : vector<8x4x1x256xf32> to vector<8x4x256xf32>
    %130 = vector.extract_strided_slice %127 {offsets = [0, 0, 1, 0], sizes = [8, 4, 1, 256], strides = [1, 1, 1, 1]} : vector<8x4x2x256xf32> to vector<8x4x1x256xf32>
    %131 = vector.shape_cast %130 : vector<8x4x1x256xf32> to vector<8x4x256xf32>
    %132 = arith.maximumf %129, %131 : vector<8x4x256xf32>
    %133 = vector.extract_strided_slice %132 {offsets = [0, 0, 0], sizes = [8, 4, 32], strides = [1, 1, 1]} : vector<8x4x256xf32> to vector<8x4x32xf32>
    %134 = vector.extract_strided_slice %132 {offsets = [0, 0, 32], sizes = [8, 4, 32], strides = [1, 1, 1]} : vector<8x4x256xf32> to vector<8x4x32xf32>
    %135 = arith.maximumf %133, %134 : vector<8x4x32xf32>
    %136 = arith.truncf %135 : vector<8x4x32xf32> to vector<8x4x32xbf16>
    %c0_107 = arith.constant 0 : index
    %c0_108 = arith.constant 0 : index
    %c0_109 = arith.constant 0 : index
    %137 = vector.load %arg11[%c0_107, %c0_108, %c0_109] : memref<8x4x128xbf16, #tpu.memory_space<vmem>>, vector<8x4x32xbf16>
    tpu.vector_store %arg11[%c0_107, %c0_108, %c0_109], %136 {strides = array<i32>} : memref<8x4x128xbf16, #tpu.memory_space<vmem>>, vector<8x4x32xbf16>,
    %138 = vector.extract_strided_slice %132 {offsets = [0, 0, 64], sizes = [8, 4, 32], strides = [1, 1, 1]} : vector<8x4x256xf32> to vector<8x4x32xf32>
    %139 = vector.extract_strided_slice %132 {offsets = [0, 0, 96], sizes = [8, 4, 32], strides = [1, 1, 1]} : vector<8x4x256xf32> to vector<8x4x32xf32>
    %140 = arith.maximumf %138, %139 : vector<8x4x32xf32>
    %141 = arith.truncf %140 : vector<8x4x32xf32> to vector<8x4x32xbf16>
    %c0_110 = arith.constant 0 : index
    %c0_111 = arith.constant 0 : index
    %c32_112 = arith.constant 32 : index
    %142 = vector.load %arg11[%c0_110, %c0_111, %c32_112] : memref<8x4x128xbf16, #tpu.memory_space<vmem>>, vector<8x4x32xbf16>
    tpu.vector_store %arg11[%c0_110, %c0_111, %c32_112], %141 {strides = array<i32>} : memref<8x4x128xbf16, #tpu.memory_space<vmem>>, vector<8x4x32xbf16>,
    %143 = vector.extract_strided_slice %132 {offsets = [0, 0, 128], sizes = [8, 4, 32], strides = [1, 1, 1]} : vector<8x4x256xf32> to vector<8x4x32xf32>
    %144 = vector.extract_strided_slice %132 {offsets = [0, 0, 160], sizes = [8, 4, 32], strides = [1, 1, 1]} : vector<8x4x256xf32> to vector<8x4x32xf32>
    %145 = arith.maximumf %143, %144 : vector<8x4x32xf32>
    %146 = arith.truncf %145 : vector<8x4x32xf32> to vector<8x4x32xbf16>
    %c0_113 = arith.constant 0 : index
    %c0_114 = arith.constant 0 : index
    %c64_115 = arith.constant 64 : index
    %147 = vector.load %arg11[%c0_113, %c0_114, %c64_115] : memref<8x4x128xbf16, #tpu.memory_space<vmem>>, vector<8x4x32xbf16>
    tpu.vector_store %arg11[%c0_113, %c0_114, %c64_115], %146 {strides = array<i32>} : memref<8x4x128xbf16, #tpu.memory_space<vmem>>, vector<8x4x32xbf16>,
    %148 = vector.extract_strided_slice %132 {offsets = [0, 0, 192], sizes = [8, 4, 32], strides = [1, 1, 1]} : vector<8x4x256xf32> to vector<8x4x32xf32>
    %149 = vector.extract_strided_slice %132 {offsets = [0, 0, 224], sizes = [8, 4, 32], strides = [1, 1, 1]} : vector<8x4x256xf32> to vector<8x4x32xf32>
    %150 = arith.maximumf %148, %149 : vector<8x4x32xf32>
    %151 = arith.truncf %150 : vector<8x4x32xf32> to vector<8x4x32xbf16>
    %c0_116 = arith.constant 0 : index
    %c0_117 = arith.constant 0 : index
    %c96_118 = arith.constant 96 : index
    %152 = vector.load %arg11[%c0_116, %c0_117, %c96_118] : memref<8x4x128xbf16, #tpu.memory_space<vmem>>, vector<8x4x32xbf16>
    tpu.vector_store %arg11[%c0_116, %c0_117, %c96_118], %151 {strides = array<i32>} : memref<8x4x128xbf16, #tpu.memory_space<vmem>>, vector<8x4x32xbf16>,
    %cst_119 = arith.constant 0.000000e+00 : f32
    %153 = vector.broadcast %cst_119 : f32 to vector<8x10xf32>
    %c0_120 = arith.constant 0 : index
    %c0_121 = arith.constant 0 : index
    %c0_122 = arith.constant 0 : index
    %154 = vector.load %arg11[%c0_120, %c0_121, %c0_122] : memref<8x4x128xbf16, #tpu.memory_space<vmem>>, vector<8x1x128xbf16>
    %155 = vector.shape_cast %154 : vector<8x1x128xbf16> to vector<8x128xbf16>
    %c0_123 = arith.constant 0 : index
    %c0_124 = arith.constant 0 : index
    %c0_125 = arith.constant 0 : index
    %156 = vector.load %arg6[%c0_123, %c0_124, %c0_125] : memref<4x128x10xbf16, #tpu.memory_space<vmem>>, vector<1x128x10xbf16>
    %157 = vector.shape_cast %156 : vector<1x128x10xbf16> to vector<128x10xbf16>
    %cst_126 = arith.constant dense<0.000000e+00> : vector<8x10xf32>
    %158 = tpu.matmul %155, %157, %cst_126 {dimension_numbers = #tpu.dot_dimension_numbers<[1], [0], [0], [1], [0, 0, 1, 1], [], []>} : vector<8x128xbf16>, vector<128x10xbf16>, vector<8x10xf32> -> vector<8x10xf32>
    %159 = arith.addf %153, %158 : vector<8x10xf32>
    %c0_127 = arith.constant 0 : index
    %c1_128 = arith.constant 1 : index
    %c0_129 = arith.constant 0 : index
    %160 = vector.load %arg11[%c0_127, %c1_128, %c0_129] : memref<8x4x128xbf16, #tpu.memory_space<vmem>>, vector<8x1x128xbf16>
    %161 = vector.shape_cast %160 : vector<8x1x128xbf16> to vector<8x128xbf16>
    %c1_130 = arith.constant 1 : index
    %c0_131 = arith.constant 0 : index
    %c0_132 = arith.constant 0 : index
    %162 = vector.load %arg6[%c1_130, %c0_131, %c0_132] : memref<4x128x10xbf16, #tpu.memory_space<vmem>>, vector<1x128x10xbf16>
    %163 = vector.shape_cast %162 : vector<1x128x10xbf16> to vector<128x10xbf16>
    %cst_133 = arith.constant dense<0.000000e+00> : vector<8x10xf32>
    %164 = tpu.matmul %161, %163, %cst_133 {dimension_numbers = #tpu.dot_dimension_numbers<[1], [0], [0], [1], [0, 0, 1, 1], [], []>} : vector<8x128xbf16>, vector<128x10xbf16>, vector<8x10xf32> -> vector<8x10xf32>
    %165 = arith.addf %159, %164 : vector<8x10xf32>
    %c0_134 = arith.constant 0 : index
    %c2_135 = arith.constant 2 : index
    %c0_136 = arith.constant 0 : index
    %166 = vector.load %arg11[%c0_134, %c2_135, %c0_136] : memref<8x4x128xbf16, #tpu.memory_space<vmem>>, vector<8x1x128xbf16>
    %167 = vector.shape_cast %166 : vector<8x1x128xbf16> to vector<8x128xbf16>
    %c2_137 = arith.constant 2 : index
    %c0_138 = arith.constant 0 : index
    %c0_139 = arith.constant 0 : index
    %168 = vector.load %arg6[%c2_137, %c0_138, %c0_139] : memref<4x128x10xbf16, #tpu.memory_space<vmem>>, vector<1x128x10xbf16>
    %169 = vector.shape_cast %168 : vector<1x128x10xbf16> to vector<128x10xbf16>
    %cst_140 = arith.constant dense<0.000000e+00> : vector<8x10xf32>
    %170 = tpu.matmul %167, %169, %cst_140 {dimension_numbers = #tpu.dot_dimension_numbers<[1], [0], [0], [1], [0, 0, 1, 1], [], []>} : vector<8x128xbf16>, vector<128x10xbf16>, vector<8x10xf32> -> vector<8x10xf32>
    %171 = arith.addf %165, %170 : vector<8x10xf32>
    %c0_141 = arith.constant 0 : index
    %c3_142 = arith.constant 3 : index
    %c0_143 = arith.constant 0 : index
    %172 = vector.load %arg11[%c0_141, %c3_142, %c0_143] : memref<8x4x128xbf16, #tpu.memory_space<vmem>>, vector<8x1x128xbf16>
    %173 = vector.shape_cast %172 : vector<8x1x128xbf16> to vector<8x128xbf16>
    %c3_144 = arith.constant 3 : index
    %c0_145 = arith.constant 0 : index
    %c0_146 = arith.constant 0 : index
    %174 = vector.load %arg6[%c3_144, %c0_145, %c0_146] : memref<4x128x10xbf16, #tpu.memory_space<vmem>>, vector<1x128x10xbf16>
    %175 = vector.shape_cast %174 : vector<1x128x10xbf16> to vector<128x10xbf16>
    %cst_147 = arith.constant dense<0.000000e+00> : vector<8x10xf32>
    %176 = tpu.matmul %173, %175, %cst_147 {dimension_numbers = #tpu.dot_dimension_numbers<[1], [0], [0], [1], [0, 0, 1, 1], [], []>} : vector<8x128xbf16>, vector<128x10xbf16>, vector<8x10xf32> -> vector<8x10xf32>
    %177 = arith.addf %171, %176 : vector<8x10xf32>
    %c0_148 = arith.constant 0 : index
    %c0_149 = arith.constant 0 : index
    %178 = vector.load %arg7[%c0_148, %c0_149] : memref<1x10xf32, #tpu.memory_space<vmem>>, vector<1x10xf32>
    %179 = vector.broadcast %178 : vector<1x10xf32> to vector<8x10xf32>
    %180 = arith.addf %177, %179 : vector<8x10xf32>
    %c0_150 = arith.constant 0 : index
    %c0_151 = arith.constant 0 : index
    %181 = vector.load %arg8[%c0_150, %c0_151] : memref<8x10xf32, #tpu.memory_space<vmem>>, vector<8x10xf32>
    tpu.vector_store %arg8[%c0_150, %c0_151], %180 {strides = array<i32>} : memref<8x10xf32, #tpu.memory_space<vmem>>, vector<8x10xf32>,
    return
  }
  func.func @transform_0(%arg0: i32) -> (i32, i32, i32) {
    %c0_i32 = arith.constant 0 : i32
    %c0_i32_0 = arith.constant 0 : i32
    %c0_i32_1 = arith.constant 0 : i32
    return %arg0, %c0_i32, %c0_i32_0 : i32, i32, i32
  }
  func.func @transform_1(%arg0: i32) -> (i32, i32, i32) {
    %c0_i32 = arith.constant 0 : i32
    %c0_i32_0 = arith.constant 0 : i32
    %c0_i32_1 = arith.constant 0 : i32
    %c0_i32_2 = arith.constant 0 : i32
    return %c0_i32, %c0_i32_0, %c0_i32_1 : i32, i32, i32
  }
  func.func @transform_2(%arg0: i32) -> (i32, i32) {
    %c0_i32 = arith.constant 0 : i32
    %c0_i32_0 = arith.constant 0 : i32
    %c0_i32_1 = arith.constant 0 : i32
    return %c0_i32, %c0_i32_0 : i32, i32
  }
  func.func @transform_3(%arg0: i32) -> (i32, i32, i32) {
    %c0_i32 = arith.constant 0 : i32
    %c0_i32_0 = arith.constant 0 : i32
    %c0_i32_1 = arith.constant 0 : i32
    %c0_i32_2 = arith.constant 0 : i32
    return %c0_i32, %c0_i32_0, %c0_i32_1 : i32, i32, i32
  }
  func.func @transform_4(%arg0: i32) -> (i32, i32) {
    %c0_i32 = arith.constant 0 : i32
    %c0_i32_0 = arith.constant 0 : i32
    %c0_i32_1 = arith.constant 0 : i32
    return %c0_i32, %c0_i32_0 : i32, i32
  }
  func.func @transform_5(%arg0: i32) -> (i32, i32, i32) {
    %c0_i32 = arith.constant 0 : i32
    %c0_i32_0 = arith.constant 0 : i32
    %c0_i32_1 = arith.constant 0 : i32
    %c0_i32_2 = arith.constant 0 : i32
    return %c0_i32, %c0_i32_0, %c0_i32_1 : i32, i32, i32
  }
  func.func @transform_6(%arg0: i32) -> (i32, i32) {
    %c0_i32 = arith.constant 0 : i32
    %c0_i32_0 = arith.constant 0 : i32
    %c0_i32_1 = arith.constant 0 : i32
    return %c0_i32, %c0_i32_0 : i32, i32
  }
  func.func @transform_7(%arg0: i32) -> (i32, i32) {
    %c0_i32 = arith.constant 0 : i32
    %c0_i32_0 = arith.constant 0 : i32
    return %arg0, %c0_i32 : i32, i32
  }
}

</mosaic_0001>

<llo_original>
// kernel: cnn_forward.1
$region0: #{cnn_forward.1}
  #allocation0 [shape = 'u32[]', space=smem, size = 0x4, offset = 0x4, fixed_abs, tag = 'smem constant byte address 0x4 - core index']
  #allocation1 [shape = 'u32[144,128]{1,0:T(1,128)}', space=vmem, size = 0x12000, scoped, tag = 'internal scratch']
  #allocation2 [shape = 'bf16[8,20,16]{2,1,0:T(8,128)(2,1)}', space=vmem, size = 0xc000, scoped, tag = 'scratch operand']
  #allocation3 [shape = 'bf16[8,12,128]{2,1,0:T(8,128)(2,1)}', space=vmem, size = 0x8000, scoped, tag = 'scratch operand']
  #allocation4 [shape = 'bf16[8,4,128]{2,1,0:T(4,128)(2,1)}', space=vmem, size = 0x2000, scoped, tag = 'scratch operand']
  %s0 = inlined_call_operand.vmem [shape: f32[16,16,16], index: 0, kind: input, shape index: {}]
  %s1 = inlined_call_operand.hbm [shape: bf16[5,16,256], index: 1, kind: input, shape index: {}]
  %s2 = inlined_call_operand.vmem [shape: f32[1,256], index: 2, kind: input, shape index: {}]
  %s3 = inlined_call_operand.hbm [shape: bf16[5,128,256], index: 3, kind: input, shape index: {}]
  %s4 = inlined_call_operand.vmem [shape: f32[1,256], index: 4, kind: input, shape index: {}]
  %s5 = inlined_call_operand.vmem [shape: bf16[4,128,10], index: 5, kind: input, shape index: {}]
  %s6 = inlined_call_operand.vmem [shape: f32[1,10], index: 6, kind: input, shape index: {}]
  %s7 = inlined_call_operand.hbm [shape: f32[16,10], index: 7, kind: output, shape index: {}]
  %s8 = sld [smem:[#allocation0]]
  $region69: #{cnn_forward.1} parent=0
    _
  %s10 = ssub.s32 1, %s8
  %s11 = scalar_select 0, %s10, %s8
  $region1: #{cnn_forward.1} parent=0
    #allocation5 [shape = 'u8[40960]{0}', space=vmem, size = 0xa000, scoped, tag = 'input window, operand 1, single buffered']
    #allocation6 [shape = 's32[2]{0}', space=sflag, size = 0x8, scoped, tag = 'scoped memory for cnn_forward.1']
    #allocation7 [shape = 's32[2]{0}', space=sflag, size = 0x8, scoped, tag = 'scoped memory for cnn_forward.1']
    #allocation8 [shape = 'u8[327680]{0}', space=vmem, size = 0x50000, scoped, tag = 'input window, operand 3, single buffered']
    #allocation9 [shape = 's32[1]{0}', space=sflag, size = 0x4, scoped, tag = 'scoped memory for cnn_forward.1']
    #allocation10 [shape = 'u8[8192]{0}', space=vmem, size = 0x2000, scoped, tag = 'output window, operand 0']
    %12 = vsyncpa [#allocation6], 0
    %13 = vsyncpa [#allocation9], 0
    %14 = vsyncpa [#allocation7], 0
    %s15 = scalar_lea.sflag [#allocation7], 1
    %16 = vsyncpa %s15, 0
    loop: start=0, step=1, limit=4
    $region2: #{cnn_forward.1} parent=1 // loop_pre_header
      _
    $region3: #{cnn_forward.1} parent=1 // loop_header
      %s18 = sphi 0, %s22
      %p19 = scmp.ge.s32.totalorder %s18, 4
      %s28 = sphi 0, %s30
      %s31 = sphi 0, %s28
      %s32 = sphi 0, %s31
      %s48 = sphi 0, %s32
      %s52 = sphi 0, %s52
      %s54 = sphi 0, %s52
      %s55 = sphi 0, %s54
      %s69 = sphi 0, %s55
      %s73 = sphi 0, %s73
      %s75 = sphi 0, %s73
      %s76 = sphi 0, %s75
      %s90 = sphi 0, %s76
      %s94 = sphi 0, %s94
      %s96 = sphi 0, %s94
      %s97 = sphi 0, %s96
      %s111 = sphi 0, %s97
      %s115 = sphi 0, %s115
      %s117 = sphi 0, %s115
      %s118 = sphi 0, %s117
      %s132 = sphi 0, %s118
      %s136 = sphi 0, %s136
      %s138 = sphi 0, %s136
      %s139 = sphi 0, %s138
      %s153 = sphi 0, %s139
      %s157 = sphi 0, %s157
      %s159 = sphi 0, %s157
      %s160 = sphi 0, %s159
      %s174 = sphi 0, %s160
      %s180 = sphi 0, %s182
      %s183 = sphi 0, %s180
      %s184 = sphi 0, %s183
      %s200 = sphi 0, %s184
    $region4: #{cnn_forward.1} parent=1 // loop_header_branch
      %21 = sbr.rel (%p19) target = $region8
    $region5: #{cnn_forward.1} parent=1 // loop_body
      %s23 = ssub.s32 %s18, 1
      %s24 = ssub.s32 %s18, 2
      %s25 = sadd.s32 %s18, 1
      %s26 = ssub.s32 %s18, %s25
      %p27 = scmp.eq.s32.totalorder %s26, 0
      %s29 = sadd.s32 %s28, 1
      %s30 = scalar_select %p27, %s28, %s29
      %p33 = pneg %p27
      %p34 = scmp.eq.s32.totalorder %s18, 1
      %p35 = por %p33, %p34
      %p36 = scmp.ne.s32.totalorder %s28, %s31
      %p37 = scmp.eq.s32.totalorder %s18, 0
      %p38 = por %p36, %p37
      %p39 = scmp.ne.s32.totalorder %s28, %s31
      %p40 = scmp.eq.s32.totalorder %s23, 1
      %p41 = por %p39, %p40
      %p42 = scmp.ne.s32.totalorder %s31, %s32
      %p43 = scmp.eq.s32.totalorder %s23, 0
      %p44 = por %p42, %p43
      %p45 = scmp.ne.s32.totalorder %s31, %s32
      %p46 = scmp.eq.s32.totalorder %s24, 1
      %p47 = por %p45, %p46
      %p49 = scmp.ne.s32.totalorder %s32, %s48
      %p50 = scmp.eq.s32.totalorder %s24, 0
      %p51 = por %p49, %p50
      %s53 = sadd.s32 %s52, 1
      %p56 = scmp.eq.s32.totalorder %s18, 1
      %p57 = scmp.ne.s32.totalorder %s52, %s54
      %p58 = scmp.eq.s32.totalorder %s18, 0
      %p59 = por %p57, %p58
      %p60 = scmp.ne.s32.totalorder %s52, %s54
      %p61 = scmp.eq.s32.totalorder %s23, 1
      %p62 = por %p60, %p61
      %p63 = scmp.ne.s32.totalorder %s54, %s55
      %p64 = scmp.eq.s32.totalorder %s23, 0
      %p65 = por %p63, %p64
      %p66 = scmp.ne.s32.totalorder %s54, %s55
      %p67 = scmp.eq.s32.totalorder %s24, 1
      %p68 = por %p66, %p67
      %p70 = scmp.ne.s32.totalorder %s55, %s69
      %p71 = scmp.eq.s32.totalorder %s24, 0
      %p72 = por %p70, %p71
      %s74 = sadd.s32 %s73, 1
      %p77 = scmp.eq.s32.totalorder %s18, 1
      %p78 = scmp.ne.s32.totalorder %s73, %s75
      %p79 = scmp.eq.s32.totalorder %s18, 0
      %p80 = por %p78, %p79
      %p81 = scmp.ne.s32.totalorder %s73, %s75
      %p82 = scmp.eq.s32.totalorder %s23, 1
      %p83 = por %p81, %p82
      %p84 = scmp.ne.s32.totalorder %s75, %s76
      %p85 = scmp.eq.s32.totalorder %s23, 0
      %p86 = por %p84, %p85
      %p87 = scmp.ne.s32.totalorder %s75, %s76
      %p88 = scmp.eq.s32.totalorder %s24, 1
      %p89 = por %p87, %p88
      %p91 = scmp.ne.s32.totalorder %s76, %s90
      %p92 = scmp.eq.s32.totalorder %s24, 0
      %p93 = por %p91, %p92
      %s95 = sadd.s32 %s94, 1
      %p98 = scmp.eq.s32.totalorder %s18, 1
      %p99 = scmp.ne.s32.totalorder %s94, %s96
      %p100 = scmp.eq.s32.totalorder %s18, 0
      %p101 = por %p99, %p100
      %p102 = scmp.ne.s32.totalorder %s94, %s96
      %p103 = scmp.eq.s32.totalorder %s23, 1
      %p104 = por %p102, %p103
      %p105 = scmp.ne.s32.totalorder %s96, %s97
      %p106 = scmp.eq.s32.totalorder %s23, 0
      %p107 = por %p105, %p106
      %p108 = scmp.ne.s32.totalorder %s96, %s97
      %p109 = scmp.eq.s32.totalorder %s24, 1
      %p110 = por %p108, %p109
      %p112 = scmp.ne.s32.totalorder %s97, %s111
      %p113 = scmp.eq.s32.totalorder %s24, 0
      %p114 = por %p112, %p113
      %s116 = sadd.s32 %s115, 1
      %p119 = scmp.eq.s32.totalorder %s18, 1
      %p120 = scmp.ne.s32.totalorder %s115, %s117
      %p121 = scmp.eq.s32.totalorder %s18, 0
      %p122 = por %p120, %p121
      %p123 = scmp.ne.s32.totalorder %s115, %s117
      %p124 = scmp.eq.s32.totalorder %s23, 1
      %p125 = por %p123, %p124
      %p126 = scmp.ne.s32.totalorder %s117, %s118
      %p127 = scmp.eq.s32.totalorder %s23, 0
      %p128 = por %p126, %p127
      %p129 = scmp.ne.s32.totalorder %s117, %s118
      %p130 = scmp.eq.s32.totalorder %s24, 1
      %p131 = por %p129, %p130
      %p133 = scmp.ne.s32.totalorder %s118, %s132
      %p134 = scmp.eq.s32.totalorder %s24, 0
      %p135 = por %p133, %p134
      %s137 = sadd.s32 %s136, 1
      %p140 = scmp.eq.s32.totalorder %s18, 1
      %p141 = scmp.ne.s32.totalorder %s136, %s138
      %p142 = scmp.eq.s32.totalorder %s18, 0
      %p143 = por %p141, %p142
      %p144 = scmp.ne.s32.totalorder %s136, %s138
      %p145 = scmp.eq.s32.totalorder %s23, 1
      %p146 = por %p144, %p145
      %p147 = scmp.ne.s32.totalorder %s138, %s139
      %p148 = scmp.eq.s32.totalorder %s23, 0
      %p149 = por %p147, %p148
      %p150 = scmp.ne.s32.totalorder %s138, %s139
      %p151 = scmp.eq.s32.totalorder %s24, 1
      %p152 = por %p150, %p151
      %p154 = scmp.ne.s32.totalorder %s139, %s153
      %p155 = scmp.eq.s32.totalorder %s24, 0
      %p156 = por %p154, %p155
      %s158 = sadd.s32 %s157, 1
      %p161 = scmp.eq.s32.totalorder %s18, 1
      %p162 = scmp.ne.s32.totalorder %s157, %s159
      %p163 = scmp.eq.s32.totalorder %s18, 0
      %p164 = por %p162, %p163
      %p165 = scmp.ne.s32.totalorder %s157, %s159
      %p166 = scmp.eq.s32.totalorder %s23, 1
      %p167 = por %p165, %p166
      %p168 = scmp.ne.s32.totalorder %s159, %s160
      %p169 = scmp.eq.s32.totalorder %s23, 0
      %p170 = por %p168, %p169
      %p171 = scmp.ne.s32.totalorder %s159, %s160
      %p172 = scmp.eq.s32.totalorder %s24, 1
      %p173 = por %p171, %p172
      %p175 = scmp.ne.s32.totalorder %s160, %s174
      %p176 = scmp.eq.s32.totalorder %s24, 0
      %p177 = por %p175, %p176
      %s178 = ssub.s32 %s18, %s25
      %p179 = scmp.eq.s32.totalorder %s178, 0
      %s181 = sadd.s32 %s180, 1
      %s182 = scalar_select %p179, %s180, %s181
      %p185 = pneg %p179
      %p186 = scmp.eq.s32.totalorder %s18, 1
      %p187 = por %p185, %p186
      %p188 = scmp.ne.s32.totalorder %s180, %s183
      %p189 = scmp.eq.s32.totalorder %s18, 0
      %p190 = por %p188, %p189
      %p191 = scmp.ne.s32.totalorder %s180, %s183
      %p192 = scmp.eq.s32.totalorder %s23, 1
      %p193 = por %p191, %p192
      %p194 = scmp.ne.s32.totalorder %s183, %s184
      %p195 = scmp.eq.s32.totalorder %s23, 0
      %p196 = por %p194, %p195
      %p197 = scmp.ne.s32.totalorder %s183, %s184
      %p198 = scmp.eq.s32.totalorder %s24, 1
      %p199 = por %p197, %p198
      %p201 = scmp.ne.s32.totalorder %s184, %s200
      %p202 = scmp.eq.s32.totalorder %s24, 0
      %p203 = por %p201, %p202
      %p204 = scmp.le.s32.totalorder 1, %s18
      %p205 = scmp.lt.s32.totalorder %s18, 3
      %p206 = pnand %p204, %p205
      %p207 = pneg %p206
      // Predicated region
      $region9: #{cnn_forward.1} parent=5 // pred_check
        _
      $region10: #{cnn_forward.1} parent=5 // pred_check_branch
        %209 = sbr.rel (%p206) target = $region12
      $region11: #{cnn_forward.1} parent=5 // pred_region
        %s210 = ssub.s32 %s18, 1
        // Predicated region
        $region13: #{cnn_forward.1} parent=11 // pred_check
          %p211 = pneg %p65
        $region14: #{cnn_forward.1} parent=11 // pred_check_branch
          %213 = sbr.rel (%p211) target = $region16
        $region15: #{cnn_forward.1} parent=11 // pred_region
          %s215 = ssub.s32 1280, 1280
          %216 = vsyncadd [#allocation6], %s215
          %s217 = sshll.u32 [#allocation5], 4
          %s218 = int_to_ptr.vmem [resolvable:$true] %s217
          %223 = dma.hbm_to_vmem [thread:$0]  %s1, 1280, %s218, [#allocation6], 128, 128, 8
        $region16: #{cnn_forward.1} parent=11 // pred_fallthru
          _
        // Predicated region
        $region17: #{cnn_forward.1} parent=11 // pred_check
          %p224 = pneg %p86
        $region18: #{cnn_forward.1} parent=11 // pred_check_branch
          %226 = sbr.rel (%p224) target = $region20
        $region19: #{cnn_forward.1} parent=11 // pred_region
          _
        $region20: #{cnn_forward.1} parent=11 // pred_fallthru
          _
        // Predicated region
        $region21: #{cnn_forward.1} parent=11 // pred_check
          %p227 = pneg %p107
        $region22: #{cnn_forward.1} parent=11 // pred_check_branch
          %229 = sbr.rel (%p227) target = $region24
        $region23: #{cnn_forward.1} parent=11 // pred_region
          %s231 = ssub.s32 10240, 10240
          %232 = vsyncadd [#allocation9], %s231
          %s233 = sshll.u32 [#allocation8], 4
          %s234 = int_to_ptr.vmem [resolvable:$true] %s233
          %239 = dma.hbm_to_vmem [thread:$0]  %s3, 10240, %s234, [#allocation9], 128, 128, 8
        $region24: #{cnn_forward.1} parent=11 // pred_fallthru
          _
        // Predicated region
        $region25: #{cnn_forward.1} parent=11 // pred_check
          %p240 = pneg %p128
        $region26: #{cnn_forward.1} parent=11 // pred_check_branch
          %242 = sbr.rel (%p240) target = $region28
        $region27: #{cnn_forward.1} parent=11 // pred_region
          _
        $region28: #{cnn_forward.1} parent=11 // pred_fallthru
          _
        // Predicated region
        $region29: #{cnn_forward.1} parent=11 // pred_check
          %p243 = pneg %p149
        $region30: #{cnn_forward.1} parent=11 // pred_check_branch
          %245 = sbr.rel (%p243) target = $region32
        $region31: #{cnn_forward.1} parent=11 // pred_region
          _
        $region32: #{cnn_forward.1} parent=11 // pred_fallthru
          _
        // Predicated region
        $region33: #{cnn_forward.1} parent=11 // pred_check
          %p246 = pneg %p170
        $region34: #{cnn_forward.1} parent=11 // pred_check_branch
          %248 = sbr.rel (%p246) target = $region36
        $region35: #{cnn_forward.1} parent=11 // pred_region
          _
        $region36: #{cnn_forward.1} parent=11 // pred_fallthru
          _
      $region12: #{cnn_forward.1} parent=5 // pred_fallthru
        _
      %p249 = scmp.lt.s32.totalorder %s18, 2
      // Predicated region
      $region37: #{cnn_forward.1} parent=5 // pred_check
        %p250 = pneg %p249
      $region38: #{cnn_forward.1} parent=5 // pred_check_branch
        %252 = sbr.rel (%p250) target = $region40
      $region39: #{cnn_forward.1} parent=5 // pred_region
        // Predicated region
        $region41: #{cnn_forward.1} parent=39 // pred_check
          %p253 = pneg %p38
        $region42: #{cnn_forward.1} parent=39 // pred_check_branch
          %255 = sbr.rel (%p253) target = $region44
        $region43: #{cnn_forward.1} parent=39 // pred_region
          %s256 = smul.u32 8, %s18
          %p257 = scmp.lt.s32.totalorder %s256, 15
          %s258 = scalar_select %p257, %s256, 15
          %s259 = smul.addr %s258, 2
          %s260 = smul.addr %s259, 8
          %s261 = scalar_lea.vmem %s0, %s260
          %s262 = smul.u32 8, %s18
        $region44: #{cnn_forward.1} parent=39 // pred_fallthru
          _
      $region40: #{cnn_forward.1} parent=5 // pred_fallthru
        _
      %p263 = scmp.le.s32.totalorder 1, %s18
      %p264 = scmp.lt.s32.totalorder %s18, 3
      %p265 = pnand %p263, %p264
      %p266 = pneg %p265
      // Predicated region
      $region45: #{cnn_forward.1} parent=5 // pred_check
        _
      $region46: #{cnn_forward.1} parent=5 // pred_check_branch
        %268 = sbr.rel (%p265) target = $region48
      $region47: #{cnn_forward.1} parent=5 // pred_region
        %s269 = ssub.s32 %s18, 1
        // Predicated region
        $region49: #{cnn_forward.1} parent=47 // pred_check
          %p270 = pneg %p65
        $region50: #{cnn_forward.1} parent=47 // pred_check_branch
          %272 = sbr.rel (%p270) target = $region52
        $region51: #{cnn_forward.1} parent=47 // pred_region
          %273 = dma.done [#allocation6], 1280
        $region52: #{cnn_forward.1} parent=47 // pred_fallthru
          _
        // Predicated region
        $region53: #{cnn_forward.1} parent=47 // pred_check
          %p274 = pneg %p107
        $region54: #{cnn_forward.1} parent=47 // pred_check_branch
          %276 = sbr.rel (%p274) target = $region56
        $region55: #{cnn_forward.1} parent=47 // pred_region
          %277 = dma.done [#allocation9], 10240
        $region56: #{cnn_forward.1} parent=47 // pred_fallthru
          _
        %s278 = smul.u32 8, %s23
        %p279 = scmp.lt.s32.totalorder %s278, 15
        %s280 = scalar_select %p279, %s278, 15
        %s281 = smul.addr %s280, 2
        %s282 = smul.addr %s281, 8
        %s283 = scalar_lea.vmem %s0, %s282
        %p284 = pneg %p44
        %p285 = pneg %p41
        %p286 = pneg %p65
        %p287 = pneg %p62
        %p288 = pneg %p86
        %p289 = pneg %p83
        %p290 = pneg %p107
        %p291 = pneg %p104
        %p292 = pneg %p128
        %p293 = pneg %p125
        %p294 = pneg %p149
        %p295 = pneg %p146
        %p296 = pneg %p170
        %p297 = pneg %p167
        %p298 = pneg %p196
        %p299 = pneg %p193
        %s300 = sand.u32 %s183, 1
        %s301 = scalar_lea.sflag [#allocation7], %s300
        %s302 = sand.u32 %s183, 1
        %s303 = smul.addr %s302, 8
        %s304 = scalar_lea.vmem [#allocation10], %s303
        %s305 = smul.u32 8, %s23
        %p306 = scmp.lt.s32.totalorder %s305, 15
        %s307 = scalar_select %p306, %s305, 15
        %s308 = smul.addr %s307, 2
        %s309 = smul.addr %s308, 8
        %s310 = scalar_lea.vmem %s0, %s309
        %s311 = smul.u32 8, %s23
        %vm313 = vcmask 122880
        %314 = vst.msk [vmem:[#allocation2] sm:$0x1] %vm313, 0
        %315 = vst.msk [vmem:[#allocation2 + $0xc] sm:$0x1] %vm313, 0
        %316 = vst.msk [vmem:[#allocation2 + $0x18] sm:$0x1] %vm313, 0
        %317 = vst.msk [vmem:[#allocation2 + $0x24] sm:$0x1] %vm313, 0
        %318 = vst.msk [vmem:[#allocation2 + $0x30] sm:$0x1] %vm313, 0
        %319 = vst.msk [vmem:[#allocation2 + $0x3c] sm:$0x1] %vm313, 0
        %320 = vst.msk [vmem:[#allocation2 + $0x48] sm:$0x1] %vm313, 0
        %321 = vst.msk [vmem:[#allocation2 + $0x54] sm:$0x1] %vm313, 0
        %vm322 = vcmask 123905
        %323 = vst.msk [vmem:[#allocation2 + $0x8] sm:$0x2] %vm322, 0
        %324 = vst.msk [vmem:[#allocation2 + $0x14] sm:$0x2] %vm322, 0
        %325 = vst.msk [vmem:[#allocation2 + $0x20] sm:$0x2] %vm322, 0
        %326 = vst.msk [vmem:[#allocation2 + $0x2c] sm:$0x2] %vm322, 0
        %327 = vst.msk [vmem:[#allocation2 + $0x38] sm:$0x2] %vm322, 0
        %328 = vst.msk [vmem:[#allocation2 + $0x44] sm:$0x2] %vm322, 0
        %329 = vst.msk [vmem:[#allocation2 + $0x50] sm:$0x2] %vm322, 0
        %330 = vst.msk [vmem:[#allocation2 + $0x5c] sm:$0x2] %vm322, 0
        %v331 = vld [vmem:[%s310] sm:$0xff]
        %v332 = vld [vmem:[%s310 + $0x8] sm:$0xff]
        %v333 = vld [vmem:[%s310 + $0x10] sm:$0xff]
        %v334 = vld [vmem:[%s310 + $0x18] sm:$0xff]
        %v335 = vld [vmem:[%s310 + $0x20] sm:$0xff]
        %v336 = vld [vmem:[%s310 + $0x28] sm:$0xff]
        %v337 = vld [vmem:[%s310 + $0x30] sm:$0xff]
        %v338 = vld [vmem:[%s310 + $0x38] sm:$0xff]
        %v339 = vld [vmem:[%s310 + $0x40] sm:$0xff]
        %v340 = vld [vmem:[%s310 + $0x48] sm:$0xff]
        %v341 = vld [vmem:[%s310 + $0x50] sm:$0xff]
        %v342 = vld [vmem:[%s310 + $0x58] sm:$0xff]
        %v343 = vld [vmem:[%s310 + $0x60] sm:$0xff]
        %v344 = vld [vmem:[%s310 + $0x68] sm:$0xff]
        %v345 = vld [vmem:[%s310 + $0x70] sm:$0xff]
        %v346 = vld [vmem:[%s310 + $0x78] sm:$0xff]
        %v347 = vpack.c.bf16 %v332, %v331
        %v348 = vpack.c.bf16 %v334, %v333
        %v349 = vpack.c.bf16 %v336, %v335
        %v350 = vpack.c.bf16 %v338, %v337
        %v351 = vpack.c.bf16 %v340, %v339
        %v352 = vpack.c.bf16 %v342, %v341
        %v353 = vpack.c.bf16 %v344, %v343
        %v354 = vpack.c.bf16 %v346, %v345
        %v363 = vunpack.c.l.b16 %v347
        %v364 = vunpack.c.h.b16 %v347
        %v365 = vunpack.c.l.b16 %v348
        %v366 = vunpack.c.h.b16 %v348
        %v367 = vunpack.c.l.b16 %v349
        %v368 = vunpack.c.h.b16 %v349
        %v369 = vunpack.c.l.b16 %v350
        %v370 = vunpack.c.h.b16 %v350
        %v371 = vunpack.c.l.b16 %v351
        %v372 = vunpack.c.h.b16 %v351
        %v373 = vunpack.c.l.b16 %v352
        %v374 = vunpack.c.h.b16 %v352
        %v375 = vunpack.c.l.b16 %v353
        %v376 = vunpack.c.h.b16 %v353
        %v377 = vunpack.c.l.b16 %v354
        %v378 = vunpack.c.h.b16 %v354
        %v379 = vpack.c.b16 %v363, %v363
        %v380 = vpack.c.b16 %v364, %v364
        %v381 = vpack.c.b16 %v365, %v365
        %v382 = vpack.c.b16 %v366, %v366
        %v383 = vpack.c.b16 %v367, %v367
        %v384 = vpack.c.b16 %v368, %v368
        %v385 = vpack.c.b16 %v369, %v369
        %v386 = vpack.c.b16 %v370, %v370
        %v387 = vpack.c.b16 %v371, %v371
        %v388 = vpack.c.b16 %v372, %v372
        %v389 = vpack.c.b16 %v373, %v373
        %v390 = vpack.c.b16 %v374, %v374
        %v391 = vpack.c.b16 %v375, %v375
        %v392 = vpack.c.b16 %v376, %v376
        %v393 = vpack.c.b16 %v377, %v377
        %v394 = vpack.c.b16 %v378, %v378
        %vm395 = vcmask 1040384
        %vm396 = vcmask 1044484
        %vm397 = vmor %vm395, %vm396
        %v398 = vrot.slane %v379, 7
        %v399 = vrot.slane %v398, 4
        %v400 = vrot.slane %v380, 7
        %v401 = vsel %vm397, %v399, %v400
        %v402 = vrot.slane %v400, 4
        %v403 = vrot.slane %v381, 7
        %v404 = vrot.slane %v403, 4
        %v405 = vrot.slane %v382, 7
        %v406 = vsel %vm397, %v404, %v405
        %v407 = vrot.slane %v405, 4
        %v408 = vrot.slane %v383, 7
        %v409 = vrot.slane %v408, 4
        %v410 = vrot.slane %v384, 7
        %v411 = vsel %vm397, %v409, %v410
        %v412 = vrot.slane %v410, 4
        %v413 = vrot.slane %v385, 7
        %v414 = vrot.slane %v413, 4
        %v415 = vrot.slane %v386, 7
        %v416 = vsel %vm397, %v414, %v415
        %v417 = vrot.slane %v415, 4
        %v418 = vrot.slane %v387, 7
        %v419 = vrot.slane %v418, 4
        %v420 = vrot.slane %v388, 7
        %v421 = vsel %vm397, %v419, %v420
        %v422 = vrot.slane %v420, 4
        %v423 = vrot.slane %v389, 7
        %v424 = vrot.slane %v423, 4
        %v425 = vrot.slane %v390, 7
        %v426 = vsel %vm397, %v424, %v425
        %v427 = vrot.slane %v425, 4
        %v428 = vrot.slane %v391, 7
        %v429 = vrot.slane %v428, 4
        %v430 = vrot.slane %v392, 7
        %v431 = vsel %vm397, %v429, %v430
        %v432 = vrot.slane %v430, 4
        %v433 = vrot.slane %v393, 7
        %v434 = vrot.slane %v433, 4
        %v435 = vrot.slane %v394, 7
        %v436 = vsel %vm397, %v434, %v435
        %v437 = vrot.slane %v435, 4
        %vm462 = vcmask 125953
        %463 = vst.msk [vmem:[#allocation2] sm:$0xe] %vm462, %v398
        %vm464 = vcmask 125952
        %465 = vst.msk [vmem:[#allocation2 + $0x4] sm:$0xf] %vm464, %v401
        %466 = vst.msk [vmem:[#allocation2 + $0x8] sm:$0x1] %vm313, %v402
        %467 = vst.msk [vmem:[#allocation2 + $0xc] sm:$0xe] %vm462, %v403
        %468 = vst.msk [vmem:[#allocation2 + $0x10] sm:$0xf] %vm464, %v406
        %469 = vst.msk [vmem:[#allocation2 + $0x14] sm:$0x1] %vm313, %v407
        %470 = vst.msk [vmem:[#allocation2 + $0x18] sm:$0xe] %vm462, %v408
        %471 = vst.msk [vmem:[#allocation2 + $0x1c] sm:$0xf] %vm464, %v411
        %472 = vst.msk [vmem:[#allocation2 + $0x20] sm:$0x1] %vm313, %v412
        %473 = vst.msk [vmem:[#allocation2 + $0x24] sm:$0xe] %vm462, %v413
        %474 = vst.msk [vmem:[#allocation2 + $0x28] sm:$0xf] %vm464, %v416
        %475 = vst.msk [vmem:[#allocation2 + $0x2c] sm:$0x1] %vm313, %v417
        %476 = vst.msk [vmem:[#allocation2 + $0x30] sm:$0xe] %vm462, %v418
        %477 = vst.msk [vmem:[#allocation2 + $0x34] sm:$0xf] %vm464, %v421
        %478 = vst.msk [vmem:[#allocation2 + $0x38] sm:$0x1] %vm313, %v422
        %479 = vst.msk [vmem:[#allocation2 + $0x3c] sm:$0xe] %vm462, %v423
        %480 = vst.msk [vmem:[#allocation2 + $0x40] sm:$0xf] %vm464, %v426
        %481 = vst.msk [vmem:[#allocation2 + $0x44] sm:$0x1] %vm313, %v427
        %482 = vst.msk [vmem:[#allocation2 + $0x48] sm:$0xe] %vm462, %v428
        %483 = vst.msk [vmem:[#allocation2 + $0x4c] sm:$0xf] %vm464, %v431
        %484 = vst.msk [vmem:[#allocation2 + $0x50] sm:$0x1] %vm313, %v432
        %485 = vst.msk [vmem:[#allocation2 + $0x54] sm:$0xe] %vm462, %v433
        %486 = vst.msk [vmem:[#allocation2 + $0x58] sm:$0xf] %vm464, %v436
        %487 = vst.msk [vmem:[#allocation2 + $0x5c] sm:$0x1] %vm313, %v437
        %v488 = vld [vmem:[#allocation2] sm:$0xf]
        %v489 = vld [vmem:[#allocation2 + $0x4] sm:$0xf]
        %v490 = vld [vmem:[#allocation2 + $0xc] sm:$0xf]
        %v491 = vld [vmem:[#allocation2 + $0x10] sm:$0xf]
        %v492 = vld [vmem:[#allocation2 + $0x18] sm:$0xf]
        %v493 = vld [vmem:[#allocation2 + $0x1c] sm:$0xf]
        %v494 = vld [vmem:[#allocation2 + $0x24] sm:$0xf]
        %v495 = vld [vmem:[#allocation2 + $0x28] sm:$0xf]
        %v496 = vld [vmem:[#allocation2 + $0x30] sm:$0xf]
        %v497 = vld [vmem:[#allocation2 + $0x34] sm:$0xf]
        %v498 = vld [vmem:[#allocation2 + $0x3c] sm:$0xf]
        %v499 = vld [vmem:[#allocation2 + $0x40] sm:$0xf]
        %v500 = vld [vmem:[#allocation2 + $0x48] sm:$0xf]
        %v501 = vld [vmem:[#allocation2 + $0x4c] sm:$0xf]
        %v502 = vld [vmem:[#allocation2 + $0x54] sm:$0xf]
        %v503 = vld [vmem:[#allocation2 + $0x58] sm:$0xf]
        %v504 = vld [vmem:[#allocation5] sm:$0xff]
        %v505 = vld [vmem:[#allocation5 + $0x8] sm:$0xff]
        %v506 = vld [vmem:[#allocation2 + $0x8] sm:$0x1]
        %v507 = vld [vmem:[#allocation2 + $0x14] sm:$0x1]
        %v508 = vld [vmem:[#allocation2 + $0x20] sm:$0x1]
        %v509 = vld [vmem:[#allocation2 + $0x2c] sm:$0x1]
        %v510 = vld [vmem:[#allocation2 + $0x38] sm:$0x1]
        %v511 = vld [vmem:[#allocation2 + $0x44] sm:$0x1]
        %v512 = vld [vmem:[#allocation2 + $0x50] sm:$0x1]
        %v513 = vld [vmem:[#allocation2 + $0x5c] sm:$0x1]
        %vm514 = vsmask.f32 3328
        %vm515 = vsmask.f32 7440
        %vm516 = vmor %vm514, %vm515
        %v518 = vshrl.u32 %v488, 16
        %v520 = vrot.slane %v518, 4
        %v521 = vshll.u32 %v488, 16
        %v523 = vrot.slane %v521, 5
        %v524 = vor.u32 %v520, %v523
        %v525 = vrot.slane %v524, 4
        %v527 = vshll.u32 %v489, 16
        %v529 = vrot.slane %v527, 5
        %v530 = vsel %vm516, %v525, %v529
        %v531 = vshrl.u32 %v489, 16
        %v533 = vrot.slane %v531, 4
        %v534 = vor.u32 %v533, %v529
        %v535 = vrot.slane %v534, 4
        %v537 = vshll.u32 %v506, 16
        %v539 = vrot.slane %v537, 5
        %v540 = vsel %vm516, %v535, %v539
        %v542 = vshrl.u32 %v490, 16
        %v544 = vrot.slane %v542, 4
        %v545 = vshll.u32 %v490, 16
        %v547 = vrot.slane %v545, 5
        %v548 = vor.u32 %v544, %v547
        %v549 = vrot.slane %v548, 4
        %v551 = vshll.u32 %v491, 16
        %v553 = vrot.slane %v551, 5
        %v554 = vsel %vm516, %v549, %v553
        %v555 = vshrl.u32 %v491, 16
        %v557 = vrot.slane %v555, 4
        %v558 = vor.u32 %v557, %v553
        %v559 = vrot.slane %v558, 4
        %v561 = vshll.u32 %v507, 16
        %v563 = vrot.slane %v561, 5
        %v564 = vsel %vm516, %v559, %v563
        %v566 = vshrl.u32 %v492, 16
        %v568 = vrot.slane %v566, 4
        %v569 = vshll.u32 %v492, 16
        %v571 = vrot.slane %v569, 5
        %v572 = vor.u32 %v568, %v571
        %v573 = vrot.slane %v572, 4
        %v575 = vshll.u32 %v493, 16
        %v577 = vrot.slane %v575, 5
        %v578 = vsel %vm516, %v573, %v577
        %v579 = vshrl.u32 %v493, 16
        %v581 = vrot.slane %v579, 4
        %v582 = vor.u32 %v581, %v577
        %v583 = vrot.slane %v582, 4
        %v585 = vshll.u32 %v508, 16
        %v587 = vrot.slane %v585, 5
        %v588 = vsel %vm516, %v583, %v587
        %v590 = vshrl.u32 %v494, 16
        %v592 = vrot.slane %v590, 4
        %v593 = vshll.u32 %v494, 16
        %v595 = vrot.slane %v593, 5
        %v596 = vor.u32 %v592, %v595
        %v597 = vrot.slane %v596, 4
        %v599 = vshll.u32 %v495, 16
        %v601 = vrot.slane %v599, 5
        %v602 = vsel %vm516, %v597, %v601
        %v603 = vshrl.u32 %v495, 16
        %v605 = vrot.slane %v603, 4
        %v606 = vor.u32 %v605, %v601
        %v607 = vrot.slane %v606, 4
        %v609 = vshll.u32 %v509, 16
        %v611 = vrot.slane %v609, 5
        %v612 = vsel %vm516, %v607, %v611
        %v614 = vshrl.u32 %v496, 16
        %v616 = vrot.slane %v614, 4
        %v617 = vshll.u32 %v496, 16
        %v619 = vrot.slane %v617, 5
        %v620 = vor.u32 %v616, %v619
        %v621 = vrot.slane %v620, 4
        %v623 = vshll.u32 %v497, 16
        %v625 = vrot.slane %v623, 5
        %v626 = vsel %vm516, %v621, %v625
        %v627 = vshrl.u32 %v497, 16
        %v629 = vrot.slane %v627, 4
        %v630 = vor.u32 %v629, %v625
        %v631 = vrot.slane %v630, 4
        %v633 = vshll.u32 %v510, 16
        %v635 = vrot.slane %v633, 5
        %v636 = vsel %vm516, %v631, %v635
        %v638 = vshrl.u32 %v498, 16
        %v640 = vrot.slane %v638, 4
        %v641 = vshll.u32 %v498, 16
        %v643 = vrot.slane %v641, 5
        %v644 = vor.u32 %v640, %v643
        %v645 = vrot.slane %v644, 4
        %v647 = vshll.u32 %v499, 16
        %v649 = vrot.slane %v647, 5
        %v650 = vsel %vm516, %v645, %v649
        %v651 = vshrl.u32 %v499, 16
        %v653 = vrot.slane %v651, 4
        %v654 = vor.u32 %v653, %v649
        %v655 = vrot.slane %v654, 4
        %v657 = vshll.u32 %v511, 16
        %v659 = vrot.slane %v657, 5
        %v660 = vsel %vm516, %v655, %v659
        %v662 = vshrl.u32 %v500, 16
        %v664 = vrot.slane %v662, 4
        %v665 = vshll.u32 %v500, 16
        %v667 = vrot.slane %v665, 5
        %v668 = vor.u32 %v664, %v667
        %v669 = vrot.slane %v668, 4
        %v671 = vshll.u32 %v501, 16
        %v673 = vrot.slane %v671, 5
        %v674 = vsel %vm516, %v669, %v673
        %v675 = vshrl.u32 %v501, 16
        %v677 = vrot.slane %v675, 4
        %v678 = vor.u32 %v677, %v673
        %v679 = vrot.slane %v678, 4
        %v681 = vshll.u32 %v512, 16
        %v683 = vrot.slane %v681, 5
        %v684 = vsel %vm516, %v679, %v683
        %v686 = vshrl.u32 %v502, 16
        %v688 = vrot.slane %v686, 4
        %v689 = vshll.u32 %v502, 16
        %v691 = vrot.slane %v689, 5
        %v692 = vor.u32 %v688, %v691
        %v693 = vrot.slane %v692, 4
        %v695 = vshll.u32 %v503, 16
        %v697 = vrot.slane %v695, 5
        %v698 = vsel %vm516, %v693, %v697
        %v699 = vshrl.u32 %v503, 16
        %v701 = vrot.slane %v699, 4
        %v702 = vor.u32 %v701, %v697
        %v703 = vrot.slane %v702, 4
        %v705 = vshll.u32 %v513, 16
        %v707 = vrot.slane %v705, 5
        %v708 = vsel %vm516, %v703, %v707
        %s709 = scalar_lea.vmem [#allocation5], 16
        %v710 = vld [vmem:[%s709] sm:$0xff]
        %v711 = vld [vmem:[%s709 + $0x8] sm:$0xff]
        %v712 = vunpack.c.l.b16 %v530
        %v713 = vunpack.c.l.b16 %v540
        %v714 = vunpack.c.l.b16 %v554
        %v715 = vunpack.c.l.b16 %v564
        %v716 = vunpack.c.l.b16 %v578
        %v717 = vunpack.c.l.b16 %v588
        %v718 = vunpack.c.l.b16 %v602
        %v719 = vunpack.c.l.b16 %v612
        %v720 = vunpack.c.l.b16 %v626
        %v721 = vunpack.c.l.b16 %v636
        %v722 = vunpack.c.l.b16 %v650
        %v723 = vunpack.c.l.b16 %v660
        %v724 = vunpack.c.l.b16 %v674
        %v725 = vunpack.c.l.b16 %v684
        %v726 = vunpack.c.l.b16 %v698
        %v727 = vunpack.c.l.b16 %v708
        %v728 = vpack.c.b16 %v713, %v712
        %v729 = vpack.c.b16 %v715, %v714
        %v730 = vpack.c.b16 %v717, %v716
        %v731 = vpack.c.b16 %v719, %v718
        %v732 = vpack.c.b16 %v721, %v720
        %v733 = vpack.c.b16 %v723, %v722
        %v734 = vpack.c.b16 %v725, %v724
        %v735 = vpack.c.b16 %v727, %v726
        %v738 = vunpack.c.l.b16 %v710
        %v739 = vunpack.c.h.b16 %v710
        %v740 = vunpack.c.l.b16 %v711
        %v741 = vunpack.c.h.b16 %v711
        %v742 = vpack.c.b16 %v740, %v738
        %v743 = vpack.c.b16 %v741, %v739
        %vm746 = vcmask 130048
        %v748 = vsel %vm746, %v728, 0
        %v751 = vsel %vm746, %v729, 0
        %v754 = vsel %vm746, %v730, 0
        %v757 = vsel %vm746, %v731, 0
        %v760 = vsel %vm746, %v732, 0
        %v763 = vsel %vm746, %v733, 0
        %v766 = vsel %vm746, %v734, 0
        %v769 = vsel %vm746, %v735, 0
        %771 = vmatprep.subr.bf16.mxu0 0
        %772 = vmatpush1.bf16.msra.mxu0 0
        %773 = vmatprep.subr.bf16.mxu0 0
        %774 = vmatpush1.bf16.msra.mxu0 0
        %775 = vmatprep.subr.bf16.mxu0 0
        %776 = vmatpush1.bf16.msra.mxu0 0
        %777 = vmatprep.subr.bf16.mxu0 0
        %778 = vmatpush1.bf16.msra.mxu0 0
        %779 = vmatprep.subr.bf16.mxu0 0
        %780 = vmatpush1.bf16.msra.mxu0 0
        %781 = vmatprep.subr.bf16.mxu0 0
        %782 = vmatpush1.bf16.msra.mxu0 0
        %783 = vmatprep.subr.bf16.mxu0 0
        %784 = vmatpush1.bf16.msra.mxu0 0
        %785 = vmatprep.subr.bf16.mxu0 %v743
        %786 = vmatpush1.bf16.msra.mxu0 %v742
        %787 = vmatprep.subr.bf16.mxu0 0
        %788 = vmatpush2.bf16.msra.mxu0 0
        %789 = vmatprep.subr.bf16.mxu0 0
        %790 = vmatpush2.bf16.msra.mxu0 0
        %791 = vmatprep.subr.bf16.mxu0 0
        %792 = vmatpush2.bf16.msra.mxu0 0
        %793 = vmatprep.subr.bf16.mxu0 0
        %794 = vmatpush2.bf16.msra.mxu0 0
        %795 = vmatprep.subr.bf16.mxu0 0
        %796 = vmatpush2.bf16.msra.mxu0 0
        %797 = vmatprep.subr.bf16.mxu0 0
        %798 = vmatpush2.bf16.msra.mxu0 0
        %799 = vmatprep.subr.bf16.mxu0 0
        %800 = vmatpush2.bf16.msra.mxu0 0
        %801 = vmatprep.subr.bf16.mxu0 0
        %802 = vmatpush2.bf16.msra.mxu0 0
        %803 = vmatprep.mubr.bf16.mxu0 0
        %804 = vmatmul.mubr.bf16.gmra.mxu0 %v748
        %v805 = vpop.f32.mrf.mxu0
        %v806 = vadd.f32 0.0, %v805
        %v807 = vpop.f32.mrf.mxu0
        %v808 = vadd.f32 0.0, %v807
        %v809 = vpop.f32.mrf.mxu0
        %v810 = vadd.f32 0.0, %v809
        %v811 = vpop.f32.mrf.mxu0
        %v812 = vadd.f32 0.0, %v811
        %813 = vmatprep.mubr.bf16.mxu0 0
        %814 = vmatmul.mubr.bf16.gmra.mxu0 %v751
        %v815 = vpop.f32.mrf.mxu0
        %v816 = vadd.f32 0.0, %v815
        %v817 = vpop.f32.mrf.mxu0
        %v818 = vadd.f32 0.0, %v817
        %v819 = vpop.f32.mrf.mxu0
        %v820 = vadd.f32 0.0, %v819
        %v821 = vpop.f32.mrf.mxu0
        %v822 = vadd.f32 0.0, %v821
        %823 = vmatprep.mubr.bf16.mxu0 0
        %824 = vmatmul.mubr.bf16.gmra.mxu0 %v754
        %v825 = vpop.f32.mrf.mxu0
        %v826 = vadd.f32 0.0, %v825
        %v827 = vpop.f32.mrf.mxu0
        %v828 = vadd.f32 0.0, %v827
        %v829 = vpop.f32.mrf.mxu0
        %v830 = vadd.f32 0.0, %v829
        %v831 = vpop.f32.mrf.mxu0
        %v832 = vadd.f32 0.0, %v831
        %833 = vmatprep.mubr.bf16.mxu0 0
        %834 = vmatmul.mubr.bf16.gmra.mxu0 %v757
        %v835 = vpop.f32.mrf.mxu0
        %v836 = vadd.f32 0.0, %v835
        %v837 = vpop.f32.mrf.mxu0
        %v838 = vadd.f32 0.0, %v837
        %v839 = vpop.f32.mrf.mxu0
        %v840 = vadd.f32 0.0, %v839
        %v841 = vpop.f32.mrf.mxu0
        %v842 = vadd.f32 0.0, %v841
        %843 = vmatprep.mubr.bf16.mxu0 0
        %844 = vmatmul.mubr.bf16.gmra.mxu0 %v760
        %v845 = vpop.f32.mrf.mxu0
        %v846 = vadd.f32 0.0, %v845
        %v847 = vpop.f32.mrf.mxu0
        %v848 = vadd.f32 0.0, %v847
        %v849 = vpop.f32.mrf.mxu0
        %v850 = vadd.f32 0.0, %v849
        %v851 = vpop.f32.mrf.mxu0
        %v852 = vadd.f32 0.0, %v851
        %853 = vmatprep.mubr.bf16.mxu0 0
        %854 = vmatmul.mubr.bf16.gmra.mxu0 %v763
        %v855 = vpop.f32.mrf.mxu0
        %v856 = vadd.f32 0.0, %v855
        %v857 = vpop.f32.mrf.mxu0
        %v858 = vadd.f32 0.0, %v857
        %v859 = vpop.f32.mrf.mxu0
        %v860 = vadd.f32 0.0, %v859
        %v861 = vpop.f32.mrf.mxu0
        %v862 = vadd.f32 0.0, %v861
        %863 = vmatprep.mubr.bf16.mxu0 0
        %864 = vmatmul.mubr.bf16.gmra.mxu0 %v766
        %v865 = vpop.f32.mrf.mxu0
        %v866 = vadd.f32 0.0, %v865
        %v867 = vpop.f32.mrf.mxu0
        %v868 = vadd.f32 0.0, %v867
        %v869 = vpop.f32.mrf.mxu0
        %v870 = vadd.f32 0.0, %v869
        %v871 = vpop.f32.mrf.mxu0
        %v872 = vadd.f32 0.0, %v871
        %873 = vmatprep.mubr.bf16.mxu0 0
        %874 = vmatmul.mubr.bf16.gmra.mxu0 %v769
        %v875 = vpop.f32.mrf.mxu0
        %v876 = vadd.f32 0.0, %v875
        %v877 = vpop.f32.mrf.mxu0
        %v878 = vadd.f32 0.0, %v877
        %v879 = vpop.f32.mrf.mxu0
        %v880 = vadd.f32 0.0, %v879
        %v881 = vpop.f32.mrf.mxu0
        %v882 = vadd.f32 0.0, %v881
        %883 = vdwg.mxu0
        %v900 = vunpack.c.l.b16 %v488
        %v901 = vunpack.c.l.b16 %v489
        %v902 = vunpack.c.l.b16 %v490
        %v903 = vunpack.c.l.b16 %v491
        %v904 = vunpack.c.l.b16 %v492
        %v905 = vunpack.c.l.b16 %v493
        %v906 = vunpack.c.l.b16 %v494
        %v907 = vunpack.c.l.b16 %v495
        %v908 = vunpack.c.l.b16 %v496
        %v909 = vunpack.c.l.b16 %v497
        %v910 = vunpack.c.l.b16 %v498
        %v911 = vunpack.c.l.b16 %v499
        %v912 = vunpack.c.l.b16 %v500
        %v913 = vunpack.c.l.b16 %v501
        %v914 = vunpack.c.l.b16 %v502
        %v915 = vunpack.c.l.b16 %v503
        %v916 = vpack.c.b16 %v901, %v900
        %v917 = vpack.c.b16 %v903, %v902
        %v918 = vpack.c.b16 %v905, %v904
        %v919 = vpack.c.b16 %v907, %v906
        %v920 = vpack.c.b16 %v909, %v908
        %v921 = vpack.c.b16 %v911, %v910
        %v922 = vpack.c.b16 %v913, %v912
        %v923 = vpack.c.b16 %v915, %v914
        %v926 = vunpack.c.l.b16 %v504
        %v927 = vunpack.c.h.b16 %v504
        %v928 = vunpack.c.l.b16 %v505
        %v929 = vunpack.c.h.b16 %v505
        %v930 = vpack.c.b16 %v928, %v926
        %v931 = vpack.c.b16 %v929, %v927
        %v935 = vsel %vm746, %v916, 0
        %v938 = vsel %vm746, %v917, 0
        %v941 = vsel %vm746, %v918, 0
        %v944 = vsel %vm746, %v919, 0
        %v947 = vsel %vm746, %v920, 0
        %v950 = vsel %vm746, %v921, 0
        %v953 = vsel %vm746, %v922, 0
        %v956 = vsel %vm746, %v923, 0
        %958 = vmatprep.subr.bf16.mxu0 0
        %959 = vmatpush1.bf16.msra.mxu0 0
        %960 = vmatprep.subr.bf16.mxu0 0
        %961 = vmatpush1.bf16.msra.mxu0 0
        %962 = vmatprep.subr.bf16.mxu0 0
        %963 = vmatpush1.bf16.msra.mxu0 0
        %964 = vmatprep.subr.bf16.mxu0 0
        %965 = vmatpush1.bf16.msra.mxu0 0
        %966 = vmatprep.subr.bf16.mxu0 0
        %967 = vmatpush1.bf16.msra.mxu0 0
        %968 = vmatprep.subr.bf16.mxu0 0
        %969 = vmatpush1.bf16.msra.mxu0 0
        %970 = vmatprep.subr.bf16.mxu0 0
        %971 = vmatpush1.bf16.msra.mxu0 0
        %972 = vmatprep.subr.bf16.mxu0 %v931
        %973 = vmatpush1.bf16.msra.mxu0 %v930
        %974 = vmatprep.subr.bf16.mxu0 0
        %975 = vmatpush2.bf16.msra.mxu0 0
        %976 = vmatprep.subr.bf16.mxu0 0
        %977 = vmatpush2.bf16.msra.mxu0 0
        %978 = vmatprep.subr.bf16.mxu0 0
        %979 = vmatpush2.bf16.msra.mxu0 0
        %980 = vmatprep.subr.bf16.mxu0 0
        %981 = vmatpush2.bf16.msra.mxu0 0
        %982 = vmatprep.subr.bf16.mxu0 0
        %983 = vmatpush2.bf16.msra.mxu0 0
        %984 = vmatprep.subr.bf16.mxu0 0
        %985 = vmatpush2.bf16.msra.mxu0 0
        %986 = vmatprep.subr.bf16.mxu0 0
        %987 = vmatpush2.bf16.msra.mxu0 0
        %988 = vmatprep.subr.bf16.mxu0 0
        %989 = vmatpush2.bf16.msra.mxu0 0
        %990 = vmatprep.mubr.bf16.mxu0 0
        %991 = vmatmul.mubr.bf16.gmra.mxu0 %v935
        %v992 = vpop.f32.mrf.mxu0
        %v993 = vadd.f32 %v806, %v992
        %v994 = vpop.f32.mrf.mxu0
        %v995 = vadd.f32 %v808, %v994
        %v996 = vpop.f32.mrf.mxu0
        %v997 = vadd.f32 %v810, %v996
        %v998 = vpop.f32.mrf.mxu0
        %v999 = vadd.f32 %v812, %v998
        %1000 = vmatprep.mubr.bf16.mxu0 0
        %1001 = vmatmul.mubr.bf16.gmra.mxu0 %v938
        %v1002 = vpop.f32.mrf.mxu0
        %v1003 = vadd.f32 %v816, %v1002
        %v1004 = vpop.f32.mrf.mxu0
        %v1005 = vadd.f32 %v818, %v1004
        %v1006 = vpop.f32.mrf.mxu0
        %v1007 = vadd.f32 %v820, %v1006
        %v1008 = vpop.f32.mrf.mxu0
        %v1009 = vadd.f32 %v822, %v1008
        %1010 = vmatprep.mubr.bf16.mxu0 0
        %1011 = vmatmul.mubr.bf16.gmra.mxu0 %v941
        %v1012 = vpop.f32.mrf.mxu0
        %v1013 = vadd.f32 %v826, %v1012
        %v1014 = vpop.f32.mrf.mxu0
        %v1015 = vadd.f32 %v828, %v1014
        %v1016 = vpop.f32.mrf.mxu0
        %v1017 = vadd.f32 %v830, %v1016
        %v1018 = vpop.f32.mrf.mxu0
        %v1019 = vadd.f32 %v832, %v1018
        %1020 = vmatprep.mubr.bf16.mxu0 0
        %1021 = vmatmul.mubr.bf16.gmra.mxu0 %v944
        %v1022 = vpop.f32.mrf.mxu0
        %v1023 = vadd.f32 %v836, %v1022
        %v1024 = vpop.f32.mrf.mxu0
        %v1025 = vadd.f32 %v838, %v1024
        %v1026 = vpop.f32.mrf.mxu0
        %v1027 = vadd.f32 %v840, %v1026
        %v1028 = vpop.f32.mrf.mxu0
        %v1029 = vadd.f32 %v842, %v1028
        %1030 = vmatprep.mubr.bf16.mxu0 0
        %1031 = vmatmul.mubr.bf16.gmra.mxu0 %v947
        %v1032 = vpop.f32.mrf.mxu0
        %v1033 = vadd.f32 %v846, %v1032
        %v1034 = vpop.f32.mrf.mxu0
        %v1035 = vadd.f32 %v848, %v1034
        %v1036 = vpop.f32.mrf.mxu0
        %v1037 = vadd.f32 %v850, %v1036
        %v1038 = vpop.f32.mrf.mxu0
        %v1039 = vadd.f32 %v852, %v1038
        %1040 = vmatprep.mubr.bf16.mxu0 0
        %1041 = vmatmul.mubr.bf16.gmra.mxu0 %v950
        %v1042 = vpop.f32.mrf.mxu0
        %v1043 = vadd.f32 %v856, %v1042
        %v1044 = vpop.f32.mrf.mxu0
        %v1045 = vadd.f32 %v858, %v1044
        %v1046 = vpop.f32.mrf.mxu0
        %v1047 = vadd.f32 %v860, %v1046
        %v1048 = vpop.f32.mrf.mxu0
        %v1049 = vadd.f32 %v862, %v1048
        %1050 = vmatprep.mubr.bf16.mxu0 0
        %1051 = vmatmul.mubr.bf16.gmra.mxu0 %v953
        %v1052 = vpop.f32.mrf.mxu0
        %v1053 = vadd.f32 %v866, %v1052
        %v1054 = vpop.f32.mrf.mxu0
        %v1055 = vadd.f32 %v868, %v1054
        %v1056 = vpop.f32.mrf.mxu0
        %v1057 = vadd.f32 %v870, %v1056
        %v1058 = vpop.f32.mrf.mxu0
        %v1059 = vadd.f32 %v872, %v1058
        %1060 = vmatprep.mubr.bf16.mxu0 0
        %1061 = vmatmul.mubr.bf16.gmra.mxu0 %v956
        %v1062 = vpop.f32.mrf.mxu0
        %v1063 = vadd.f32 %v876, %v1062
        %v1064 = vpop.f32.mrf.mxu0
        %v1065 = vadd.f32 %v878, %v1064
        %v1066 = vpop.f32.mrf.mxu0
        %v1067 = vadd.f32 %v880, %v1066
        %v1068 = vpop.f32.mrf.mxu0
        %v1069 = vadd.f32 %v882, %v1068
        %1070 = vdwg.mxu0
        %v1071 = vld [vmem:[#allocation2] sm:$0xe]
        %v1072 = vld [vmem:[#allocation2 + $0xc] sm:$0xe]
        %v1073 = vld [vmem:[#allocation2 + $0x18] sm:$0xe]
        %v1074 = vld [vmem:[#allocation2 + $0x24] sm:$0xe]
        %v1075 = vld [vmem:[#allocation2 + $0x30] sm:$0xe]
        %v1076 = vld [vmem:[#allocation2 + $0x3c] sm:$0xe]
        %v1077 = vld [vmem:[#allocation2 + $0x48] sm:$0xe]
        %v1078 = vld [vmem:[#allocation2 + $0x54] sm:$0xe]
        %vm1095 = vcmask 1042432
        %vm1096 = vcmask 1046532
        %vm1097 = vmor %vm1095, %vm1096
        %v1098 = vrot.slane %v1071, 5
        %v1099 = vrot.slane %v1098, 4
        %v1100 = vrot.slane %v489, 5
        %v1101 = vsel %vm1097, %v1099, %v1100
        %v1102 = vrot.slane %v1100, 4
        %v1103 = vrot.slane %v506, 5
        %v1104 = vsel %vm1097, %v1102, %v1103
        %v1105 = vrot.slane %v1072, 5
        %v1106 = vrot.slane %v1105, 4
        %v1107 = vrot.slane %v491, 5
        %v1108 = vsel %vm1097, %v1106, %v1107
        %v1109 = vrot.slane %v1107, 4
        %v1110 = vrot.slane %v507, 5
        %v1111 = vsel %vm1097, %v1109, %v1110
        %v1112 = vrot.slane %v1073, 5
        %v1113 = vrot.slane %v1112, 4
        %v1114 = vrot.slane %v493, 5
        %v1115 = vsel %vm1097, %v1113, %v1114
        %v1116 = vrot.slane %v1114, 4
        %v1117 = vrot.slane %v508, 5
        %v1118 = vsel %vm1097, %v1116, %v1117
        %v1119 = vrot.slane %v1074, 5
        %v1120 = vrot.slane %v1119, 4
        %v1121 = vrot.slane %v495, 5
        %v1122 = vsel %vm1097, %v1120, %v1121
        %v1123 = vrot.slane %v1121, 4
        %v1124 = vrot.slane %v509, 5
        %v1125 = vsel %vm1097, %v1123, %v1124
        %v1126 = vrot.slane %v1075, 5
        %v1127 = vrot.slane %v1126, 4
        %v1128 = vrot.slane %v497, 5
        %v1129 = vsel %vm1097, %v1127, %v1128
        %v1130 = vrot.slane %v1128, 4
        %v1131 = vrot.slane %v510, 5
        %v1132 = vsel %vm1097, %v1130, %v1131
        %v1133 = vrot.slane %v1076, 5
        %v1134 = vrot.slane %v1133, 4
        %v1135 = vrot.slane %v499, 5
        %v1136 = vsel %vm1097, %v1134, %v1135
        %v1137 = vrot.slane %v1135, 4
        %v1138 = vrot.slane %v511, 5
        %v1139 = vsel %vm1097, %v1137, %v1138
        %v1140 = vrot.slane %v1077, 5
        %v1141 = vrot.slane %v1140, 4
        %v1142 = vrot.slane %v501, 5
        %v1143 = vsel %vm1097, %v1141, %v1142
        %v1144 = vrot.slane %v1142, 4
        %v1145 = vrot.slane %v512, 5
        %v1146 = vsel %vm1097, %v1144, %v1145
        %v1147 = vrot.slane %v1078, 5
        %v1148 = vrot.slane %v1147, 4
        %v1149 = vrot.slane %v503, 5
        %v1150 = vsel %vm1097, %v1148, %v1149
        %v1151 = vrot.slane %v1149, 4
        %v1152 = vrot.slane %v513, 5
        %v1153 = vsel %vm1097, %v1151, %v1152
        %s1154 = scalar_lea.vmem [#allocation5], 32
        %v1155 = vld [vmem:[%s1154] sm:$0xff]
        %v1156 = vld [vmem:[%s1154 + $0x8] sm:$0xff]
        %v1157 = vunpack.c.l.b16 %v1101
        %v1158 = vunpack.c.l.b16 %v1104
        %v1159 = vunpack.c.l.b16 %v1108
        %v1160 = vunpack.c.l.b16 %v1111
        %v1161 = vunpack.c.l.b16 %v1115
        %v1162 = vunpack.c.l.b16 %v1118
        %v1163 = vunpack.c.l.b16 %v1122
        %v1164 = vunpack.c.l.b16 %v1125
        %v1165 = vunpack.c.l.b16 %v1129
        %v1166 = vunpack.c.l.b16 %v1132
        %v1167 = vunpack.c.l.b16 %v1136
        %v1168 = vunpack.c.l.b16 %v1139
        %v1169 = vunpack.c.l.b16 %v1143
        %v1170 = vunpack.c.l.b16 %v1146
        %v1171 = vunpack.c.l.b16 %v1150
        %v1172 = vunpack.c.l.b16 %v1153
        %v1173 = vpack.c.b16 %v1158, %v1157
        %v1174 = vpack.c.b16 %v1160, %v1159
        %v1175 = vpack.c.b16 %v1162, %v1161
        %v1176 = vpack.c.b16 %v1164, %v1163
        %v1177 = vpack.c.b16 %v1166, %v1165
        %v1178 = vpack.c.b16 %v1168, %v1167
        %v1179 = vpack.c.b16 %v1170, %v1169
        %v1180 = vpack.c.b16 %v1172, %v1171
        %v1183 = vunpack.c.l.b16 %v1155
        %v1184 = vunpack.c.h.b16 %v1155
        %v1185 = vunpack.c.l.b16 %v1156
        %v1186 = vunpack.c.h.b16 %v1156
        %v1187 = vpack.c.b16 %v1185, %v1183
        %v1188 = vpack.c.b16 %v1186, %v1184
        %v1192 = vsel %vm746, %v1173, 0
        %v1195 = vsel %vm746, %v1174, 0
        %v1198 = vsel %vm746, %v1175, 0
        %v1201 = vsel %vm746, %v1176, 0
        %v1204 = vsel %vm746, %v1177, 0
        %v1207 = vsel %vm746, %v1178, 0
        %v1210 = vsel %vm746, %v1179, 0
        %v1213 = vsel %vm746, %v1180, 0
        %1215 = vmatprep.subr.bf16.mxu0 0
        %1216 = vmatpush1.bf16.msra.mxu0 0
        %1217 = vmatprep.subr.bf16.mxu0 0
        %1218 = vmatpush1.bf16.msra.mxu0 0
        %1219 = vmatprep.subr.bf16.mxu0 0
        %1220 = vmatpush1.bf16.msra.mxu0 0
        %1221 = vmatprep.subr.bf16.mxu0 0
        %1222 = vmatpush1.bf16.msra.mxu0 0
        %1223 = vmatprep.subr.bf16.mxu0 0
        %1224 = vmatpush1.bf16.msra.mxu0 0
        %1225 = vmatprep.subr.bf16.mxu0 0
        %1226 = vmatpush1.bf16.msra.mxu0 0
        %1227 = vmatprep.subr.bf16.mxu0 0
        %1228 = vmatpush1.bf16.msra.mxu0 0
        %1229 = vmatprep.subr.bf16.mxu0 %v1188
        %1230 = vmatpush1.bf16.msra.mxu0 %v1187
        %1231 = vmatprep.subr.bf16.mxu0 0
        %1232 = vmatpush2.bf16.msra.mxu0 0
        %1233 = vmatprep.subr.bf16.mxu0 0
        %1234 = vmatpush2.bf16.msra.mxu0 0
        %1235 = vmatprep.subr.bf16.mxu0 0
        %1236 = vmatpush2.bf16.msra.mxu0 0
        %1237 = vmatprep.subr.bf16.mxu0 0
        %1238 = vmatpush2.bf16.msra.mxu0 0
        %1239 = vmatprep.subr.bf16.mxu0 0
        %1240 = vmatpush2.bf16.msra.mxu0 0
        %1241 = vmatprep.subr.bf16.mxu0 0
        %1242 = vmatpush2.bf16.msra.mxu0 0
        %1243 = vmatprep.subr.bf16.mxu0 0
        %1244 = vmatpush2.bf16.msra.mxu0 0
        %1245 = vmatprep.subr.bf16.mxu0 0
        %1246 = vmatpush2.bf16.msra.mxu0 0
        %1247 = vmatprep.mubr.bf16.mxu0 0
        %1248 = vmatmul.mubr.bf16.gmra.mxu0 %v1192
        %v1249 = vpop.f32.mrf.mxu0
        %v1250 = vadd.f32 0.0, %v1249
        %v1251 = vpop.f32.mrf.mxu0
        %v1252 = vadd.f32 0.0, %v1251
        %v1253 = vpop.f32.mrf.mxu0
        %v1254 = vadd.f32 0.0, %v1253
        %v1255 = vpop.f32.mrf.mxu0
        %v1256 = vadd.f32 0.0, %v1255
        %1257 = vmatprep.mubr.bf16.mxu0 0
        %1258 = vmatmul.mubr.bf16.gmra.mxu0 %v1195
        %v1259 = vpop.f32.mrf.mxu0
        %v1260 = vadd.f32 0.0, %v1259
        %v1261 = vpop.f32.mrf.mxu0
        %v1262 = vadd.f32 0.0, %v1261
        %v1263 = vpop.f32.mrf.mxu0
        %v1264 = vadd.f32 0.0, %v1263
        %v1265 = vpop.f32.mrf.mxu0
        %v1266 = vadd.f32 0.0, %v1265
        %1267 = vmatprep.mubr.bf16.mxu0 0
        %1268 = vmatmul.mubr.bf16.gmra.mxu0 %v1198
        %v1269 = vpop.f32.mrf.mxu0
        %v1270 = vadd.f32 0.0, %v1269
        %v1271 = vpop.f32.mrf.mxu0
        %v1272 = vadd.f32 0.0, %v1271
        %v1273 = vpop.f32.mrf.mxu0
        %v1274 = vadd.f32 0.0, %v1273
        %v1275 = vpop.f32.mrf.mxu0
        %v1276 = vadd.f32 0.0, %v1275
        %1277 = vmatprep.mubr.bf16.mxu0 0
        %1278 = vmatmul.mubr.bf16.gmra.mxu0 %v1201
        %v1279 = vpop.f32.mrf.mxu0
        %v1280 = vadd.f32 0.0, %v1279
        %v1281 = vpop.f32.mrf.mxu0
        %v1282 = vadd.f32 0.0, %v1281
        %v1283 = vpop.f32.mrf.mxu0
        %v1284 = vadd.f32 0.0, %v1283
        %v1285 = vpop.f32.mrf.mxu0
        %v1286 = vadd.f32 0.0, %v1285
        %1287 = vmatprep.mubr.bf16.mxu0 0
        %1288 = vmatmul.mubr.bf16.gmra.mxu0 %v1204
        %v1289 = vpop.f32.mrf.mxu0
        %v1290 = vadd.f32 0.0, %v1289
        %v1291 = vpop.f32.mrf.mxu0
        %v1292 = vadd.f32 0.0, %v1291
        %v1293 = vpop.f32.mrf.mxu0
        %v1294 = vadd.f32 0.0, %v1293
        %v1295 = vpop.f32.mrf.mxu0
        %v1296 = vadd.f32 0.0, %v1295
        %1297 = vmatprep.mubr.bf16.mxu0 0
        %1298 = vmatmul.mubr.bf16.gmra.mxu0 %v1207
        %v1299 = vpop.f32.mrf.mxu0
        %v1300 = vadd.f32 0.0, %v1299
        %v1301 = vpop.f32.mrf.mxu0
        %v1302 = vadd.f32 0.0, %v1301
        %v1303 = vpop.f32.mrf.mxu0
        %v1304 = vadd.f32 0.0, %v1303
        %v1305 = vpop.f32.mrf.mxu0
        %v1306 = vadd.f32 0.0, %v1305
        %1307 = vmatprep.mubr.bf16.mxu0 0
        %1308 = vmatmul.mubr.bf16.gmra.mxu0 %v1210
        %v1309 = vpop.f32.mrf.mxu0
        %v1310 = vadd.f32 0.0, %v1309
        %v1311 = vpop.f32.mrf.mxu0
        %v1312 = vadd.f32 0.0, %v1311
        %v1313 = vpop.f32.mrf.mxu0
        %v1314 = vadd.f32 0.0, %v1313
        %v1315 = vpop.f32.mrf.mxu0
        %v1316 = vadd.f32 0.0, %v1315
        %1317 = vmatprep.mubr.bf16.mxu0 0
        %1318 = vmatmul.mubr.bf16.gmra.mxu0 %v1213
        %v1319 = vpop.f32.mrf.mxu0
        %v1320 = vadd.f32 0.0, %v1319
        %v1321 = vpop.f32.mrf.mxu0
        %v1322 = vadd.f32 0.0, %v1321
        %v1323 = vpop.f32.mrf.mxu0
        %v1324 = vadd.f32 0.0, %v1323
        %v1325 = vpop.f32.mrf.mxu0
        %v1326 = vadd.f32 0.0, %v1325
        %1327 = vdwg.mxu0
        %v1328 = vadd.f32 %v993, %v1250
        %v1329 = vadd.f32 %v995, %v1252
        %v1330 = vadd.f32 %v997, %v1254
        %v1331 = vadd.f32 %v999, %v1256
        %v1332 = vadd.f32 %v1003, %v1260
        %v1333 = vadd.f32 %v1005, %v1262
        %v1334 = vadd.f32 %v1007, %v1264
        %v1335 = vadd.f32 %v1009, %v1266
        %v1336 = vadd.f32 %v1013, %v1270
        %v1337 = vadd.f32 %v1015, %v1272
        %v1338 = vadd.f32 %v1017, %v1274
        %v1339 = vadd.f32 %v1019, %v1276
        %v1340 = vadd.f32 %v1023, %v1280
        %v1341 = vadd.f32 %v1025, %v1282
        %v1342 = vadd.f32 %v1027, %v1284
        %v1343 = vadd.f32 %v1029, %v1286
        %v1344 = vadd.f32 %v1033, %v1290
        %v1345 = vadd.f32 %v1035, %v1292
        %v1346 = vadd.f32 %v1037, %v1294
        %v1347 = vadd.f32 %v1039, %v1296
        %v1348 = vadd.f32 %v1043, %v1300
        %v1349 = vadd.f32 %v1045, %v1302
        %v1350 = vadd.f32 %v1047, %v1304
        %v1351 = vadd.f32 %v1049, %v1306
        %v1352 = vadd.f32 %v1053, %v1310
        %v1353 = vadd.f32 %v1055, %v1312
        %v1354 = vadd.f32 %v1057, %v1314
        %v1355 = vadd.f32 %v1059, %v1316
        %v1356 = vadd.f32 %v1063, %v1320
        %v1357 = vadd.f32 %v1065, %v1322
        %v1358 = vadd.f32 %v1067, %v1324
        %v1359 = vadd.f32 %v1069, %v1326
        %v1360 = vld [vmem:[#allocation2 + $0x8] sm:$0x3]
        %v1361 = vld [vmem:[#allocation2 + $0x14] sm:$0x3]
        %v1362 = vld [vmem:[#allocation2 + $0x20] sm:$0x3]
        %v1363 = vld [vmem:[#allocation2 + $0x2c] sm:$0x3]
        %v1364 = vld [vmem:[#allocation2 + $0x38] sm:$0x3]
        %v1365 = vld [vmem:[#allocation2 + $0x44] sm:$0x3]
        %v1366 = vld [vmem:[#allocation2 + $0x50] sm:$0x3]
        %v1367 = vld [vmem:[#allocation2 + $0x5c] sm:$0x3]
        %vm1368 = vsmask.f32 2304
        %vm1369 = vsmask.f32 6416
        %vm1370 = vmor %vm1368, %vm1369
        %v1372 = vshrl.u32 %v1071, 16
        %v1374 = vrot.slane %v1372, 5
        %v1375 = vshll.u32 %v1071, 16
        %v1377 = vrot.slane %v1375, 6
        %v1378 = vor.u32 %v1374, %v1377
        %v1379 = vrot.slane %v1378, 4
        %v1380 = vrot.slane %v531, 5
        %v1381 = vrot.slane %v527, 6
        %v1382 = vor.u32 %v1380, %v1381
        %v1383 = vsel %vm1370, %v1379, %v1382
        %v1384 = vrot.slane %v1382, 4
        %v1386 = vshrl.u32 %v1360, 16
        %v1388 = vrot.slane %v1386, 5
        %v1389 = vshll.u32 %v1360, 16
        %v1391 = vrot.slane %v1389, 6
        %v1392 = vor.u32 %v1388, %v1391
        %v1393 = vsel %vm1370, %v1384, %v1392
        %v1395 = vshrl.u32 %v1072, 16
        %v1397 = vrot.slane %v1395, 5
        %v1398 = vshll.u32 %v1072, 16
        %v1400 = vrot.slane %v1398, 6
        %v1401 = vor.u32 %v1397, %v1400
        %v1402 = vrot.slane %v1401, 4
        %v1403 = vrot.slane %v555, 5
        %v1404 = vrot.slane %v551, 6
        %v1405 = vor.u32 %v1403, %v1404
        %v1406 = vsel %vm1370, %v1402, %v1405
        %v1407 = vrot.slane %v1405, 4
        %v1409 = vshrl.u32 %v1361, 16
        %v1411 = vrot.slane %v1409, 5
        %v1412 = vshll.u32 %v1361, 16
        %v1414 = vrot.slane %v1412, 6
        %v1415 = vor.u32 %v1411, %v1414
        %v1416 = vsel %vm1370, %v1407, %v1415
        %v1418 = vshrl.u32 %v1073, 16
        %v1420 = vrot.slane %v1418, 5
        %v1421 = vshll.u32 %v1073, 16
        %v1423 = vrot.slane %v1421, 6
        %v1424 = vor.u32 %v1420, %v1423
        %v1425 = vrot.slane %v1424, 4
        %v1426 = vrot.slane %v579, 5
        %v1427 = vrot.slane %v575, 6
        %v1428 = vor.u32 %v1426, %v1427
        %v1429 = vsel %vm1370, %v1425, %v1428
        %v1430 = vrot.slane %v1428, 4
        %v1432 = vshrl.u32 %v1362, 16
        %v1434 = vrot.slane %v1432, 5
        %v1435 = vshll.u32 %v1362, 16
        %v1437 = vrot.slane %v1435, 6
        %v1438 = vor.u32 %v1434, %v1437
        %v1439 = vsel %vm1370, %v1430, %v1438
        %v1441 = vshrl.u32 %v1074, 16
        %v1443 = vrot.slane %v1441, 5
        %v1444 = vshll.u32 %v1074, 16
        %v1446 = vrot.slane %v1444, 6
        %v1447 = vor.u32 %v1443, %v1446
        %v1448 = vrot.slane %v1447, 4
        %v1449 = vrot.slane %v603, 5
        %v1450 = vrot.slane %v599, 6
        %v1451 = vor.u32 %v1449, %v1450
        %v1452 = vsel %vm1370, %v1448, %v1451
        %v1453 = vrot.slane %v1451, 4
        %v1455 = vshrl.u32 %v1363, 16
        %v1457 = vrot.slane %v1455, 5
        %v1458 = vshll.u32 %v1363, 16
        %v1460 = vrot.slane %v1458, 6
        %v1461 = vor.u32 %v1457, %v1460
        %v1462 = vsel %vm1370, %v1453, %v1461
        %v1464 = vshrl.u32 %v1075, 16
        %v1466 = vrot.slane %v1464, 5
        %v1467 = vshll.u32 %v1075, 16
        %v1469 = vrot.slane %v1467, 6
        %v1470 = vor.u32 %v1466, %v1469
        %v1471 = vrot.slane %v1470, 4
        %v1472 = vrot.slane %v627, 5
        %v1473 = vrot.slane %v623, 6
        %v1474 = vor.u32 %v1472, %v1473
        %v1475 = vsel %vm1370, %v1471, %v1474
        %v1476 = vrot.slane %v1474, 4
        %v1478 = vshrl.u32 %v1364, 16
        %v1480 = vrot.slane %v1478, 5
        %v1481 = vshll.u32 %v1364, 16
        %v1483 = vrot.slane %v1481, 6
        %v1484 = vor.u32 %v1480, %v1483
        %v1485 = vsel %vm1370, %v1476, %v1484
        %v1487 = vshrl.u32 %v1076, 16
        %v1489 = vrot.slane %v1487, 5
        %v1490 = vshll.u32 %v1076, 16
        %v1492 = vrot.slane %v1490, 6
        %v1493 = vor.u32 %v1489, %v1492
        %v1494 = vrot.slane %v1493, 4
        %v1495 = vrot.slane %v651, 5
        %v1496 = vrot.slane %v647, 6
        %v1497 = vor.u32 %v1495, %v1496
        %v1498 = vsel %vm1370, %v1494, %v1497
        %v1499 = vrot.slane %v1497, 4
        %v1501 = vshrl.u32 %v1365, 16
        %v1503 = vrot.slane %v1501, 5
        %v1504 = vshll.u32 %v1365, 16
        %v1506 = vrot.slane %v1504, 6
        %v1507 = vor.u32 %v1503, %v1506
        %v1508 = vsel %vm1370, %v1499, %v1507
        %v1510 = vshrl.u32 %v1077, 16
        %v1512 = vrot.slane %v1510, 5
        %v1513 = vshll.u32 %v1077, 16
        %v1515 = vrot.slane %v1513, 6
        %v1516 = vor.u32 %v1512, %v1515
        %v1517 = vrot.slane %v1516, 4
        %v1518 = vrot.slane %v675, 5
        %v1519 = vrot.slane %v671, 6
        %v1520 = vor.u32 %v1518, %v1519
        %v1521 = vsel %vm1370, %v1517, %v1520
        %v1522 = vrot.slane %v1520, 4
        %v1524 = vshrl.u32 %v1366, 16
        %v1526 = vrot.slane %v1524, 5
        %v1527 = vshll.u32 %v1366, 16
        %v1529 = vrot.slane %v1527, 6
        %v1530 = vor.u32 %v1526, %v1529
        %v1531 = vsel %vm1370, %v1522, %v1530
        %v1533 = vshrl.u32 %v1078, 16
        %v1535 = vrot.slane %v1533, 5
        %v1536 = vshll.u32 %v1078, 16
        %v1538 = vrot.slane %v1536, 6
        %v1539 = vor.u32 %v1535, %v1538
        %v1540 = vrot.slane %v1539, 4
        %v1541 = vrot.slane %v699, 5
        %v1542 = vrot.slane %v695, 6
        %v1543 = vor.u32 %v1541, %v1542
        %v1544 = vsel %vm1370, %v1540, %v1543
        %v1545 = vrot.slane %v1543, 4
        %v1547 = vshrl.u32 %v1367, 16
        %v1549 = vrot.slane %v1547, 5
        %v1550 = vshll.u32 %v1367, 16
        %v1552 = vrot.slane %v1550, 6
        %v1553 = vor.u32 %v1549, %v1552
        %v1554 = vsel %vm1370, %v1545, %v1553
        %s1555 = scalar_lea.vmem [#allocation5], 48
        %v1556 = vld [vmem:[%s1555] sm:$0xff]
        %v1557 = vld [vmem:[%s1555 + $0x8] sm:$0xff]
        %v1558 = vunpack.c.l.b16 %v1383
        %v1559 = vunpack.c.l.b16 %v1393
        %v1560 = vunpack.c.l.b16 %v1406
        %v1561 = vunpack.c.l.b16 %v1416
        %v1562 = vunpack.c.l.b16 %v1429
        %v1563 = vunpack.c.l.b16 %v1439
        %v1564 = vunpack.c.l.b16 %v1452
        %v1565 = vunpack.c.l.b16 %v1462
        %v1566 = vunpack.c.l.b16 %v1475
        %v1567 = vunpack.c.l.b16 %v1485
        %v1568 = vunpack.c.l.b16 %v1498
        %v1569 = vunpack.c.l.b16 %v1508
        %v1570 = vunpack.c.l.b16 %v1521
        %v1571 = vunpack.c.l.b16 %v1531
        %v1572 = vunpack.c.l.b16 %v1544
        %v1573 = vunpack.c.l.b16 %v1554
        %v1574 = vpack.c.b16 %v1559, %v1558
        %v1575 = vpack.c.b16 %v1561, %v1560
        %v1576 = vpack.c.b16 %v1563, %v1562
        %v1577 = vpack.c.b16 %v1565, %v1564
        %v1578 = vpack.c.b16 %v1567, %v1566
        %v1579 = vpack.c.b16 %v1569, %v1568
        %v1580 = vpack.c.b16 %v1571, %v1570
        %v1581 = vpack.c.b16 %v1573, %v1572
        %v1584 = vunpack.c.l.b16 %v1556
        %v1585 = vunpack.c.h.b16 %v1556
        %v1586 = vunpack.c.l.b16 %v1557
        %v1587 = vunpack.c.h.b16 %v1557
        %v1588 = vpack.c.b16 %v1586, %v1584
        %v1589 = vpack.c.b16 %v1587, %v1585
        %v1593 = vsel %vm746, %v1574, 0
        %v1596 = vsel %vm746, %v1575, 0
        %v1599 = vsel %vm746, %v1576, 0
        %v1602 = vsel %vm746, %v1577, 0
        %v1605 = vsel %vm746, %v1578, 0
        %v1608 = vsel %vm746, %v1579, 0
        %v1611 = vsel %vm746, %v1580, 0
        %v1614 = vsel %vm746, %v1581, 0
        %1616 = vmatprep.subr.bf16.mxu0 0
        %1617 = vmatpush1.bf16.msra.mxu0 0
        %1618 = vmatprep.subr.bf16.mxu0 0
        %1619 = vmatpush1.bf16.msra.mxu0 0
        %1620 = vmatprep.subr.bf16.mxu0 0
        %1621 = vmatpush1.bf16.msra.mxu0 0
        %1622 = vmatprep.subr.bf16.mxu0 0
        %1623 = vmatpush1.bf16.msra.mxu0 0
        %1624 = vmatprep.subr.bf16.mxu0 0
        %1625 = vmatpush1.bf16.msra.mxu0 0
        %1626 = vmatprep.subr.bf16.mxu0 0
        %1627 = vmatpush1.bf16.msra.mxu0 0
        %1628 = vmatprep.subr.bf16.mxu0 0
        %1629 = vmatpush1.bf16.msra.mxu0 0
        %1630 = vmatprep.subr.bf16.mxu0 %v1589
        %1631 = vmatpush1.bf16.msra.mxu0 %v1588
        %1632 = vmatprep.subr.bf16.mxu0 0
        %1633 = vmatpush2.bf16.msra.mxu0 0
        %1634 = vmatprep.subr.bf16.mxu0 0
        %1635 = vmatpush2.bf16.msra.mxu0 0
        %1636 = vmatprep.subr.bf16.mxu0 0
        %1637 = vmatpush2.bf16.msra.mxu0 0
        %1638 = vmatprep.subr.bf16.mxu0 0
        %1639 = vmatpush2.bf16.msra.mxu0 0
        %1640 = vmatprep.subr.bf16.mxu0 0
        %1641 = vmatpush2.bf16.msra.mxu0 0
        %1642 = vmatprep.subr.bf16.mxu0 0
        %1643 = vmatpush2.bf16.msra.mxu0 0
        %1644 = vmatprep.subr.bf16.mxu0 0
        %1645 = vmatpush2.bf16.msra.mxu0 0
        %1646 = vmatprep.subr.bf16.mxu0 0
        %1647 = vmatpush2.bf16.msra.mxu0 0
        %1648 = vmatprep.mubr.bf16.mxu0 0
        %1649 = vmatmul.mubr.bf16.gmra.mxu0 %v1593
        %v1650 = vpop.f32.mrf.mxu0
        %v1651 = vadd.f32 0.0, %v1650
        %v1652 = vpop.f32.mrf.mxu0
        %v1653 = vadd.f32 0.0, %v1652
        %v1654 = vpop.f32.mrf.mxu0
        %v1655 = vadd.f32 0.0, %v1654
        %v1656 = vpop.f32.mrf.mxu0
        %v1657 = vadd.f32 0.0, %v1656
        %1658 = vmatprep.mubr.bf16.mxu0 0
        %1659 = vmatmul.mubr.bf16.gmra.mxu0 %v1596
        %v1660 = vpop.f32.mrf.mxu0
        %v1661 = vadd.f32 0.0, %v1660
        %v1662 = vpop.f32.mrf.mxu0
        %v1663 = vadd.f32 0.0, %v1662
        %v1664 = vpop.f32.mrf.mxu0
        %v1665 = vadd.f32 0.0, %v1664
        %v1666 = vpop.f32.mrf.mxu0
        %v1667 = vadd.f32 0.0, %v1666
        %1668 = vmatprep.mubr.bf16.mxu0 0
        %1669 = vmatmul.mubr.bf16.gmra.mxu0 %v1599
        %v1670 = vpop.f32.mrf.mxu0
        %v1671 = vadd.f32 0.0, %v1670
        %v1672 = vpop.f32.mrf.mxu0
        %v1673 = vadd.f32 0.0, %v1672
        %v1674 = vpop.f32.mrf.mxu0
        %v1675 = vadd.f32 0.0, %v1674
        %v1676 = vpop.f32.mrf.mxu0
        %v1677 = vadd.f32 0.0, %v1676
        %1678 = vmatprep.mubr.bf16.mxu0 0
        %1679 = vmatmul.mubr.bf16.gmra.mxu0 %v1602
        %v1680 = vpop.f32.mrf.mxu0
        %v1681 = vadd.f32 0.0, %v1680
        %v1682 = vpop.f32.mrf.mxu0
        %v1683 = vadd.f32 0.0, %v1682
        %v1684 = vpop.f32.mrf.mxu0
        %v1685 = vadd.f32 0.0, %v1684
        %v1686 = vpop.f32.mrf.mxu0
        %v1687 = vadd.f32 0.0, %v1686
        %1688 = vmatprep.mubr.bf16.mxu0 0
        %1689 = vmatmul.mubr.bf16.gmra.mxu0 %v1605
        %v1690 = vpop.f32.mrf.mxu0
        %v1691 = vadd.f32 0.0, %v1690
        %v1692 = vpop.f32.mrf.mxu0
        %v1693 = vadd.f32 0.0, %v1692
        %v1694 = vpop.f32.mrf.mxu0
        %v1695 = vadd.f32 0.0, %v1694
        %v1696 = vpop.f32.mrf.mxu0
        %v1697 = vadd.f32 0.0, %v1696
        %1698 = vmatprep.mubr.bf16.mxu0 0
        %1699 = vmatmul.mubr.bf16.gmra.mxu0 %v1608
        %v1700 = vpop.f32.mrf.mxu0
        %v1701 = vadd.f32 0.0, %v1700
        %v1702 = vpop.f32.mrf.mxu0
        %v1703 = vadd.f32 0.0, %v1702
        %v1704 = vpop.f32.mrf.mxu0
        %v1705 = vadd.f32 0.0, %v1704
        %v1706 = vpop.f32.mrf.mxu0
        %v1707 = vadd.f32 0.0, %v1706
        %1708 = vmatprep.mubr.bf16.mxu0 0
        %1709 = vmatmul.mubr.bf16.gmra.mxu0 %v1611
        %v1710 = vpop.f32.mrf.mxu0
        %v1711 = vadd.f32 0.0, %v1710
        %v1712 = vpop.f32.mrf.mxu0
        %v1713 = vadd.f32 0.0, %v1712
        %v1714 = vpop.f32.mrf.mxu0
        %v1715 = vadd.f32 0.0, %v1714
        %v1716 = vpop.f32.mrf.mxu0
        %v1717 = vadd.f32 0.0, %v1716
        %1718 = vmatprep.mubr.bf16.mxu0 0
        %1719 = vmatmul.mubr.bf16.gmra.mxu0 %v1614
        %v1720 = vpop.f32.mrf.mxu0
        %v1721 = vadd.f32 0.0, %v1720
        %v1722 = vpop.f32.mrf.mxu0
        %v1723 = vadd.f32 0.0, %v1722
        %v1724 = vpop.f32.mrf.mxu0
        %v1725 = vadd.f32 0.0, %v1724
        %v1726 = vpop.f32.mrf.mxu0
        %v1727 = vadd.f32 0.0, %v1726
        %1728 = vdwg.mxu0
        %v1729 = vadd.f32 %v1328, %v1651
        %v1730 = vadd.f32 %v1329, %v1653
        %v1731 = vadd.f32 %v1330, %v1655
        %v1732 = vadd.f32 %v1331, %v1657
        %v1733 = vadd.f32 %v1332, %v1661
        %v1734 = vadd.f32 %v1333, %v1663
        %v1735 = vadd.f32 %v1334, %v1665
        %v1736 = vadd.f32 %v1335, %v1667
        %v1737 = vadd.f32 %v1336, %v1671
        %v1738 = vadd.f32 %v1337, %v1673
        %v1739 = vadd.f32 %v1338, %v1675
        %v1740 = vadd.f32 %v1339, %v1677
        %v1741 = vadd.f32 %v1340, %v1681
        %v1742 = vadd.f32 %v1341, %v1683
        %v1743 = vadd.f32 %v1342, %v1685
        %v1744 = vadd.f32 %v1343, %v1687
        %v1745 = vadd.f32 %v1344, %v1691
        %v1746 = vadd.f32 %v1345, %v1693
        %v1747 = vadd.f32 %v1346, %v1695
        %v1748 = vadd.f32 %v1347, %v1697
        %v1749 = vadd.f32 %v1348, %v1701
        %v1750 = vadd.f32 %v1349, %v1703
        %v1751 = vadd.f32 %v1350, %v1705
        %v1752 = vadd.f32 %v1351, %v1707
        %v1753 = vadd.f32 %v1352, %v1711
        %v1754 = vadd.f32 %v1353, %v1713
        %v1755 = vadd.f32 %v1354, %v1715
        %v1756 = vadd.f32 %v1355, %v1717
        %v1757 = vadd.f32 %v1356, %v1721
        %v1758 = vadd.f32 %v1357, %v1723
        %v1759 = vadd.f32 %v1358, %v1725
        %v1760 = vadd.f32 %v1359, %v1727
        %v1761 = vld [vmem:[#allocation2] sm:$0xc]
        %v1762 = vld [vmem:[#allocation2 + $0xc] sm:$0xc]
        %v1763 = vld [vmem:[#allocation2 + $0x18] sm:$0xc]
        %v1764 = vld [vmem:[#allocation2 + $0x24] sm:$0xc]
        %v1765 = vld [vmem:[#allocation2 + $0x30] sm:$0xc]
        %v1766 = vld [vmem:[#allocation2 + $0x3c] sm:$0xc]
        %v1767 = vld [vmem:[#allocation2 + $0x48] sm:$0xc]
        %v1768 = vld [vmem:[#allocation2 + $0x54] sm:$0xc]
        %vm1785 = vcmask 1041408
        %vm1786 = vcmask 1045508
        %vm1787 = vmor %vm1785, %vm1786
        %v1788 = vrot.slane %v1761, 6
        %v1789 = vrot.slane %v1788, 4
        %v1790 = vrot.slane %v489, 6
        %v1791 = vsel %vm1787, %v1789, %v1790
        %v1792 = vrot.slane %v1790, 4
        %v1793 = vrot.slane %v1360, 6
        %v1794 = vsel %vm1787, %v1792, %v1793
        %v1795 = vrot.slane %v1762, 6
        %v1796 = vrot.slane %v1795, 4
        %v1797 = vrot.slane %v491, 6
        %v1798 = vsel %vm1787, %v1796, %v1797
        %v1799 = vrot.slane %v1797, 4
        %v1800 = vrot.slane %v1361, 6
        %v1801 = vsel %vm1787, %v1799, %v1800
        %v1802 = vrot.slane %v1763, 6
        %v1803 = vrot.slane %v1802, 4
        %v1804 = vrot.slane %v493, 6
        %v1805 = vsel %vm1787, %v1803, %v1804
        %v1806 = vrot.slane %v1804, 4
        %v1807 = vrot.slane %v1362, 6
        %v1808 = vsel %vm1787, %v1806, %v1807
        %v1809 = vrot.slane %v1764, 6
        %v1810 = vrot.slane %v1809, 4
        %v1811 = vrot.slane %v495, 6
        %v1812 = vsel %vm1787, %v1810, %v1811
        %v1813 = vrot.slane %v1811, 4
        %v1814 = vrot.slane %v1363, 6
        %v1815 = vsel %vm1787, %v1813, %v1814
        %v1816 = vrot.slane %v1765, 6
        %v1817 = vrot.slane %v1816, 4
        %v1818 = vrot.slane %v497, 6
        %v1819 = vsel %vm1787, %v1817, %v1818
        %v1820 = vrot.slane %v1818, 4
        %v1821 = vrot.slane %v1364, 6
        %v1822 = vsel %vm1787, %v1820, %v1821
        %v1823 = vrot.slane %v1766, 6
        %v1824 = vrot.slane %v1823, 4
        %v1825 = vrot.slane %v499, 6
        %v1826 = vsel %vm1787, %v1824, %v1825
        %v1827 = vrot.slane %v1825, 4
        %v1828 = vrot.slane %v1365, 6
        %v1829 = vsel %vm1787, %v1827, %v1828
        %v1830 = vrot.slane %v1767, 6
        %v1831 = vrot.slane %v1830, 4
        %v1832 = vrot.slane %v501, 6
        %v1833 = vsel %vm1787, %v1831, %v1832
        %v1834 = vrot.slane %v1832, 4
        %v1835 = vrot.slane %v1366, 6
        %v1836 = vsel %vm1787, %v1834, %v1835
        %v1837 = vrot.slane %v1768, 6
        %v1838 = vrot.slane %v1837, 4
        %v1839 = vrot.slane %v503, 6
        %v1840 = vsel %vm1787, %v1838, %v1839
        %v1841 = vrot.slane %v1839, 4
        %v1842 = vrot.slane %v1367, 6
        %v1843 = vsel %vm1787, %v1841, %v1842
        %s1844 = scalar_lea.vmem [#allocation5], 64
        %v1845 = vld [vmem:[%s1844] sm:$0xff]
        %v1846 = vld [vmem:[%s1844 + $0x8] sm:$0xff]
        %v1847 = vunpack.c.l.b16 %v1791
        %v1848 = vunpack.c.l.b16 %v1794
        %v1849 = vunpack.c.l.b16 %v1798
        %v1850 = vunpack.c.l.b16 %v1801
        %v1851 = vunpack.c.l.b16 %v1805
        %v1852 = vunpack.c.l.b16 %v1808
        %v1853 = vunpack.c.l.b16 %v1812
        %v1854 = vunpack.c.l.b16 %v1815
        %v1855 = vunpack.c.l.b16 %v1819
        %v1856 = vunpack.c.l.b16 %v1822
        %v1857 = vunpack.c.l.b16 %v1826
        %v1858 = vunpack.c.l.b16 %v1829
        %v1859 = vunpack.c.l.b16 %v1833
        %v1860 = vunpack.c.l.b16 %v1836
        %v1861 = vunpack.c.l.b16 %v1840
        %v1862 = vunpack.c.l.b16 %v1843
        %v1863 = vpack.c.b16 %v1848, %v1847
        %v1864 = vpack.c.b16 %v1850, %v1849
        %v1865 = vpack.c.b16 %v1852, %v1851
        %v1866 = vpack.c.b16 %v1854, %v1853
        %v1867 = vpack.c.b16 %v1856, %v1855
        %v1868 = vpack.c.b16 %v1858, %v1857
        %v1869 = vpack.c.b16 %v1860, %v1859
        %v1870 = vpack.c.b16 %v1862, %v1861
        %v1873 = vunpack.c.l.b16 %v1845
        %v1874 = vunpack.c.h.b16 %v1845
        %v1875 = vunpack.c.l.b16 %v1846
        %v1876 = vunpack.c.h.b16 %v1846
        %v1877 = vpack.c.b16 %v1875, %v1873
        %v1878 = vpack.c.b16 %v1876, %v1874
        %v1882 = vsel %vm746, %v1863, 0
        %v1885 = vsel %vm746, %v1864, 0
        %v1888 = vsel %vm746, %v1865, 0
        %v1891 = vsel %vm746, %v1866, 0
        %v1894 = vsel %vm746, %v1867, 0
        %v1897 = vsel %vm746, %v1868, 0
        %v1900 = vsel %vm746, %v1869, 0
        %v1903 = vsel %vm746, %v1870, 0
        %1905 = vmatprep.subr.bf16.mxu0 0
        %1906 = vmatpush1.bf16.msra.mxu0 0
        %1907 = vmatprep.subr.bf16.mxu0 0
        %1908 = vmatpush1.bf16.msra.mxu0 0
        %1909 = vmatprep.subr.bf16.mxu0 0
        %1910 = vmatpush1.bf16.msra.mxu0 0
        %1911 = vmatprep.subr.bf16.mxu0 0
        %1912 = vmatpush1.bf16.msra.mxu0 0
        %1913 = vmatprep.subr.bf16.mxu0 0
        %1914 = vmatpush1.bf16.msra.mxu0 0
        %1915 = vmatprep.subr.bf16.mxu0 0
        %1916 = vmatpush1.bf16.msra.mxu0 0
        %1917 = vmatprep.subr.bf16.mxu0 0
        %1918 = vmatpush1.bf16.msra.mxu0 0
        %1919 = vmatprep.subr.bf16.mxu0 %v1878
        %1920 = vmatpush1.bf16.msra.mxu0 %v1877
        %1921 = vmatprep.subr.bf16.mxu0 0
        %1922 = vmatpush2.bf16.msra.mxu0 0
        %1923 = vmatprep.subr.bf16.mxu0 0
        %1924 = vmatpush2.bf16.msra.mxu0 0
        %1925 = vmatprep.subr.bf16.mxu0 0
        %1926 = vmatpush2.bf16.msra.mxu0 0
        %1927 = vmatprep.subr.bf16.mxu0 0
        %1928 = vmatpush2.bf16.msra.mxu0 0
        %1929 = vmatprep.subr.bf16.mxu0 0
        %1930 = vmatpush2.bf16.msra.mxu0 0
        %1931 = vmatprep.subr.bf16.mxu0 0
        %1932 = vmatpush2.bf16.msra.mxu0 0
        %1933 = vmatprep.subr.bf16.mxu0 0
        %1934 = vmatpush2.bf16.msra.mxu0 0
        %1935 = vmatprep.subr.bf16.mxu0 0
        %1936 = vmatpush2.bf16.msra.mxu0 0
        %1937 = vmatprep.mubr.bf16.mxu0 0
        %1938 = vmatmul.mubr.bf16.gmra.mxu0 %v1882
        %v1939 = vpop.f32.mrf.mxu0
        %v1940 = vadd.f32 0.0, %v1939
        %v1941 = vpop.f32.mrf.mxu0
        %v1942 = vadd.f32 0.0, %v1941
        %v1943 = vpop.f32.mrf.mxu0
        %v1944 = vadd.f32 0.0, %v1943
        %v1945 = vpop.f32.mrf.mxu0
        %v1946 = vadd.f32 0.0, %v1945
        %1947 = vmatprep.mubr.bf16.mxu0 0
        %1948 = vmatmul.mubr.bf16.gmra.mxu0 %v1885
        %v1949 = vpop.f32.mrf.mxu0
        %v1950 = vadd.f32 0.0, %v1949
        %v1951 = vpop.f32.mrf.mxu0
        %v1952 = vadd.f32 0.0, %v1951
        %v1953 = vpop.f32.mrf.mxu0
        %v1954 = vadd.f32 0.0, %v1953
        %v1955 = vpop.f32.mrf.mxu0
        %v1956 = vadd.f32 0.0, %v1955
        %1957 = vmatprep.mubr.bf16.mxu0 0
        %1958 = vmatmul.mubr.bf16.gmra.mxu0 %v1888
        %v1959 = vpop.f32.mrf.mxu0
        %v1960 = vadd.f32 0.0, %v1959
        %v1961 = vpop.f32.mrf.mxu0
        %v1962 = vadd.f32 0.0, %v1961
        %v1963 = vpop.f32.mrf.mxu0
        %v1964 = vadd.f32 0.0, %v1963
        %v1965 = vpop.f32.mrf.mxu0
        %v1966 = vadd.f32 0.0, %v1965
        %1967 = vmatprep.mubr.bf16.mxu0 0
        %1968 = vmatmul.mubr.bf16.gmra.mxu0 %v1891
        %v1969 = vpop.f32.mrf.mxu0
        %v1970 = vadd.f32 0.0, %v1969
        %v1971 = vpop.f32.mrf.mxu0
        %v1972 = vadd.f32 0.0, %v1971
        %v1973 = vpop.f32.mrf.mxu0
        %v1974 = vadd.f32 0.0, %v1973
        %v1975 = vpop.f32.mrf.mxu0
        %v1976 = vadd.f32 0.0, %v1975
        %1977 = vmatprep.mubr.bf16.mxu0 0
        %1978 = vmatmul.mubr.bf16.gmra.mxu0 %v1894
        %v1979 = vpop.f32.mrf.mxu0
        %v1980 = vadd.f32 0.0, %v1979
        %v1981 = vpop.f32.mrf.mxu0
        %v1982 = vadd.f32 0.0, %v1981
        %v1983 = vpop.f32.mrf.mxu0
        %v1984 = vadd.f32 0.0, %v1983
        %v1985 = vpop.f32.mrf.mxu0
        %v1986 = vadd.f32 0.0, %v1985
        %1987 = vmatprep.mubr.bf16.mxu0 0
        %1988 = vmatmul.mubr.bf16.gmra.mxu0 %v1897
        %v1989 = vpop.f32.mrf.mxu0
        %v1990 = vadd.f32 0.0, %v1989
        %v1991 = vpop.f32.mrf.mxu0
        %v1992 = vadd.f32 0.0, %v1991
        %v1993 = vpop.f32.mrf.mxu0
        %v1994 = vadd.f32 0.0, %v1993
        %v1995 = vpop.f32.mrf.mxu0
        %v1996 = vadd.f32 0.0, %v1995
        %1997 = vmatprep.mubr.bf16.mxu0 0
        %1998 = vmatmul.mubr.bf16.gmra.mxu0 %v1900
        %v1999 = vpop.f32.mrf.mxu0
        %v2000 = vadd.f32 0.0, %v1999
        %v2001 = vpop.f32.mrf.mxu0
        %v2002 = vadd.f32 0.0, %v2001
        %v2003 = vpop.f32.mrf.mxu0
        %v2004 = vadd.f32 0.0, %v2003
        %v2005 = vpop.f32.mrf.mxu0
        %v2006 = vadd.f32 0.0, %v2005
        %2007 = vmatprep.mubr.bf16.mxu0 0
        %2008 = vmatmul.mubr.bf16.gmra.mxu0 %v1903
        %v2009 = vpop.f32.mrf.mxu0
        %v2010 = vadd.f32 0.0, %v2009
        %v2011 = vpop.f32.mrf.mxu0
        %v2012 = vadd.f32 0.0, %v2011
        %v2013 = vpop.f32.mrf.mxu0
        %v2014 = vadd.f32 0.0, %v2013
        %v2015 = vpop.f32.mrf.mxu0
        %v2016 = vadd.f32 0.0, %v2015
        %2017 = vdwg.mxu0
        %v2018 = vadd.f32 %v1729, %v1940
        %v2019 = vadd.f32 %v1730, %v1942
        %v2020 = vadd.f32 %v1731, %v1944
        %v2021 = vadd.f32 %v1732, %v1946
        %v2022 = vadd.f32 %v1733, %v1950
        %v2023 = vadd.f32 %v1734, %v1952
        %v2024 = vadd.f32 %v1735, %v1954
        %v2025 = vadd.f32 %v1736, %v1956
        %v2026 = vadd.f32 %v1737, %v1960
        %v2027 = vadd.f32 %v1738, %v1962
        %v2028 = vadd.f32 %v1739, %v1964
        %v2029 = vadd.f32 %v1740, %v1966
        %v2030 = vadd.f32 %v1741, %v1970
        %v2031 = vadd.f32 %v1742, %v1972
        %v2032 = vadd.f32 %v1743, %v1974
        %v2033 = vadd.f32 %v1744, %v1976
        %v2034 = vadd.f32 %v1745, %v1980
        %v2035 = vadd.f32 %v1746, %v1982
        %v2036 = vadd.f32 %v1747, %v1984
        %v2037 = vadd.f32 %v1748, %v1986
        %v2038 = vadd.f32 %v1749, %v1990
        %v2039 = vadd.f32 %v1750, %v1992
        %v2040 = vadd.f32 %v1751, %v1994
        %v2041 = vadd.f32 %v1752, %v1996
        %v2042 = vadd.f32 %v1753, %v2000
        %v2043 = vadd.f32 %v1754, %v2002
        %v2044 = vadd.f32 %v1755, %v2004
        %v2045 = vadd.f32 %v1756, %v2006
        %v2046 = vadd.f32 %v1757, %v2010
        %v2047 = vadd.f32 %v1758, %v2012
        %v2048 = vadd.f32 %v1759, %v2014
        %v2049 = vadd.f32 %v1760, %v2016
        %v2050 = vld [vmem:[%s2] sm:$0x3]
        %v2052 = vlaneseq
        %v2053 = vshrl.u32 %v2052, 7
        %v2054 = vsub.s32 0, %v2053
        %v2055 = vrot.slane %v2050, %v2054
        %v2056 = vlaneseq
        %v2057 = vshrl.u32 %v2056, 7
        %v2058 = vsub.s32 1, %v2057
        %v2059 = vrot.slane %v2050, %v2058
        %v2062 = vadd.f32 %v2018, %v2055
        %v2063 = vadd.f32 %v2019, %v2059
        %v2064 = vadd.f32 %v2020, %v2055
        %v2065 = vadd.f32 %v2021, %v2059
        %v2066 = vadd.f32 %v2022, %v2055
        %v2067 = vadd.f32 %v2023, %v2059
        %v2068 = vadd.f32 %v2024, %v2055
        %v2069 = vadd.f32 %v2025, %v2059
        %v2070 = vadd.f32 %v2026, %v2055
        %v2071 = vadd.f32 %v2027, %v2059
        %v2072 = vadd.f32 %v2028, %v2055
        %v2073 = vadd.f32 %v2029, %v2059
        %v2074 = vadd.f32 %v2030, %v2055
        %v2075 = vadd.f32 %v2031, %v2059
        %v2076 = vadd.f32 %v2032, %v2055
        %v2077 = vadd.f32 %v2033, %v2059
        %v2078 = vadd.f32 %v2034, %v2055
        %v2079 = vadd.f32 %v2035, %v2059
        %v2080 = vadd.f32 %v2036, %v2055
        %v2081 = vadd.f32 %v2037, %v2059
        %v2082 = vadd.f32 %v2038, %v2055
        %v2083 = vadd.f32 %v2039, %v2059
        %v2084 = vadd.f32 %v2040, %v2055
        %v2085 = vadd.f32 %v2041, %v2059
        %v2086 = vadd.f32 %v2042, %v2055
        %v2087 = vadd.f32 %v2043, %v2059
        %v2088 = vadd.f32 %v2044, %v2055
        %v2089 = vadd.f32 %v2045, %v2059
        %v2090 = vadd.f32 %v2046, %v2055
        %v2091 = vadd.f32 %v2047, %v2059
        %v2092 = vadd.f32 %v2048, %v2055
        %v2093 = vadd.f32 %v2049, %v2059
        %v2094 = vmax.f32 %v2062, 0.0
        %v2095 = vmax.f32 %v2063, 0.0
        %v2096 = vmax.f32 %v2064, 0.0
        %v2097 = vmax.f32 %v2065, 0.0
        %v2098 = vmax.f32 %v2066, 0.0
        %v2099 = vmax.f32 %v2067, 0.0
        %v2100 = vmax.f32 %v2068, 0.0
        %v2101 = vmax.f32 %v2069, 0.0
        %v2102 = vmax.f32 %v2070, 0.0
        %v2103 = vmax.f32 %v2071, 0.0
        %v2104 = vmax.f32 %v2072, 0.0
        %v2105 = vmax.f32 %v2073, 0.0
        %v2106 = vmax.f32 %v2074, 0.0
        %v2107 = vmax.f32 %v2075, 0.0
        %v2108 = vmax.f32 %v2076, 0.0
        %v2109 = vmax.f32 %v2077, 0.0
        %v2110 = vmax.f32 %v2078, 0.0
        %v2111 = vmax.f32 %v2079, 0.0
        %v2112 = vmax.f32 %v2080, 0.0
        %v2113 = vmax.f32 %v2081, 0.0
        %v2114 = vmax.f32 %v2082, 0.0
        %v2115 = vmax.f32 %v2083, 0.0
        %v2116 = vmax.f32 %v2084, 0.0
        %v2117 = vmax.f32 %v2085, 0.0
        %v2118 = vmax.f32 %v2086, 0.0
        %v2119 = vmax.f32 %v2087, 0.0
        %v2120 = vmax.f32 %v2088, 0.0
        %v2121 = vmax.f32 %v2089, 0.0
        %v2122 = vmax.f32 %v2090, 0.0
        %v2123 = vmax.f32 %v2091, 0.0
        %v2124 = vmax.f32 %v2092, 0.0
        %v2125 = vmax.f32 %v2093, 0.0
        %v2158 = vcombine.low %v2094, %v2095
        %v2159 = vcombine.high %v2094, %v2095
        %v2161 = vunpack.c.l.s4 1983009808
        %v2162 = vunpack.c.0.s8 %v2161
        %v2163 = vlaneseq
        %v2164 = vshrl.u32 %v2163, 7
        %v2165 = vsub.s32 %v2162, %v2164
        %v2166 = vrot.slane %v2158, %v2165
        %v2168 = vunpack.c.l.s4 1983009808
        %v2169 = vunpack.c.0.s8 %v2168
        %v2170 = vlaneseq
        %v2171 = vshrl.u32 %v2170, 7
        %v2172 = vsub.s32 %v2169, %v2171
        %v2173 = vrot.slane %v2159, %v2172
        %v2174 = vcombine.high %v2166, %v2166
        %v2175 = vcombine.high %v2173, %v2173
        %v2176 = vcombine.low %v2096, %v2097
        %v2177 = vcombine.high %v2096, %v2097
        %v2179 = vunpack.c.l.s4 1983009808
        %v2180 = vunpack.c.0.s8 %v2179
        %v2181 = vlaneseq
        %v2182 = vshrl.u32 %v2181, 7
        %v2183 = vsub.s32 %v2180, %v2182
        %v2184 = vrot.slane %v2176, %v2183
        %v2186 = vunpack.c.l.s4 1983009808
        %v2187 = vunpack.c.0.s8 %v2186
        %v2188 = vlaneseq
        %v2189 = vshrl.u32 %v2188, 7
        %v2190 = vsub.s32 %v2187, %v2189
        %v2191 = vrot.slane %v2177, %v2190
        %v2192 = vcombine.high %v2184, %v2184
        %v2193 = vcombine.high %v2191, %v2191
        %v2194 = vcombine.low %v2098, %v2099
        %v2195 = vcombine.high %v2098, %v2099
        %v2197 = vunpack.c.l.s4 1983009808
        %v2198 = vunpack.c.0.s8 %v2197
        %v2199 = vlaneseq
        %v2200 = vshrl.u32 %v2199, 7
        %v2201 = vsub.s32 %v2198, %v2200
        %v2202 = vrot.slane %v2194, %v2201
        %v2204 = vunpack.c.l.s4 1983009808
        %v2205 = vunpack.c.0.s8 %v2204
        %v2206 = vlaneseq
        %v2207 = vshrl.u32 %v2206, 7
        %v2208 = vsub.s32 %v2205, %v2207
        %v2209 = vrot.slane %v2195, %v2208
        %v2210 = vcombine.high %v2202, %v2202
        %v2211 = vcombine.high %v2209, %v2209
        %v2212 = vcombine.low %v2100, %v2101
        %v2213 = vcombine.high %v2100, %v2101
        %v2215 = vunpack.c.l.s4 1983009808
        %v2216 = vunpack.c.0.s8 %v2215
        %v2217 = vlaneseq
        %v2218 = vshrl.u32 %v2217, 7
        %v2219 = vsub.s32 %v2216, %v2218
        %v2220 = vrot.slane %v2212, %v2219
        %v2222 = vunpack.c.l.s4 1983009808
        %v2223 = vunpack.c.0.s8 %v2222
        %v2224 = vlaneseq
        %v2225 = vshrl.u32 %v2224, 7
        %v2226 = vsub.s32 %v2223, %v2225
        %v2227 = vrot.slane %v2213, %v2226
        %v2228 = vcombine.high %v2220, %v2220
        %v2229 = vcombine.high %v2227, %v2227
        %v2230 = vcombine.low %v2102, %v2103
        %v2231 = vcombine.high %v2102, %v2103
        %v2233 = vunpack.c.l.s4 1983009808
        %v2234 = vunpack.c.0.s8 %v2233
        %v2235 = vlaneseq
        %v2236 = vshrl.u32 %v2235, 7
        %v2237 = vsub.s32 %v2234, %v2236
        %v2238 = vrot.slane %v2230, %v2237
        %v2240 = vunpack.c.l.s4 1983009808
        %v2241 = vunpack.c.0.s8 %v2240
        %v2242 = vlaneseq
        %v2243 = vshrl.u32 %v2242, 7
        %v2244 = vsub.s32 %v2241, %v2243
        %v2245 = vrot.slane %v2231, %v2244
        %v2246 = vcombine.high %v2238, %v2238
        %v2247 = vcombine.high %v2245, %v2245
        %v2248 = vcombine.low %v2104, %v2105
        %v2249 = vcombine.high %v2104, %v2105
        %v2251 = vunpack.c.l.s4 1983009808
        %v2252 = vunpack.c.0.s8 %v2251
        %v2253 = vlaneseq
        %v2254 = vshrl.u32 %v2253, 7
        %v2255 = vsub.s32 %v2252, %v2254
        %v2256 = vrot.slane %v2248, %v2255
        %v2258 = vunpack.c.l.s4 1983009808
        %v2259 = vunpack.c.0.s8 %v2258
        %v2260 = vlaneseq
        %v2261 = vshrl.u32 %v2260, 7
        %v2262 = vsub.s32 %v2259, %v2261
        %v2263 = vrot.slane %v2249, %v2262
        %v2264 = vcombine.high %v2256, %v2256
        %v2265 = vcombine.high %v2263, %v2263
        %v2266 = vcombine.low %v2106, %v2107
        %v2267 = vcombine.high %v2106, %v2107
        %v2269 = vunpack.c.l.s4 1983009808
        %v2270 = vunpack.c.0.s8 %v2269
        %v2271 = vlaneseq
        %v2272 = vshrl.u32 %v2271, 7
        %v2273 = vsub.s32 %v2270, %v2272
        %v2274 = vrot.slane %v2266, %v2273
        %v2276 = vunpack.c.l.s4 1983009808
        %v2277 = vunpack.c.0.s8 %v2276
        %v2278 = vlaneseq
        %v2279 = vshrl.u32 %v2278, 7
        %v2280 = vsub.s32 %v2277, %v2279
        %v2281 = vrot.slane %v2267, %v2280
        %v2282 = vcombine.high %v2274, %v2274
        %v2283 = vcombine.high %v2281, %v2281
        %v2284 = vcombine.low %v2108, %v2109
        %v2285 = vcombine.high %v2108, %v2109
        %v2287 = vunpack.c.l.s4 1983009808
        %v2288 = vunpack.c.0.s8 %v2287
        %v2289 = vlaneseq
        %v2290 = vshrl.u32 %v2289, 7
        %v2291 = vsub.s32 %v2288, %v2290
        %v2292 = vrot.slane %v2284, %v2291
        %v2294 = vunpack.c.l.s4 1983009808
        %v2295 = vunpack.c.0.s8 %v2294
        %v2296 = vlaneseq
        %v2297 = vshrl.u32 %v2296, 7
        %v2298 = vsub.s32 %v2295, %v2297
        %v2299 = vrot.slane %v2285, %v2298
        %v2300 = vcombine.high %v2292, %v2292
        %v2301 = vcombine.high %v2299, %v2299
        %v2302 = vcombine.low %v2110, %v2111
        %v2303 = vcombine.high %v2110, %v2111
        %v2305 = vunpack.c.l.s4 1983009808
        %v2306 = vunpack.c.0.s8 %v2305
        %v2307 = vlaneseq
        %v2308 = vshrl.u32 %v2307, 7
        %v2309 = vsub.s32 %v2306, %v2308
        %v2310 = vrot.slane %v2302, %v2309
        %v2312 = vunpack.c.l.s4 1983009808
        %v2313 = vunpack.c.0.s8 %v2312
        %v2314 = vlaneseq
        %v2315 = vshrl.u32 %v2314, 7
        %v2316 = vsub.s32 %v2313, %v2315
        %v2317 = vrot.slane %v2303, %v2316
        %v2318 = vcombine.high %v2310, %v2310
        %v2319 = vcombine.high %v2317, %v2317
        %v2320 = vcombine.low %v2112, %v2113
        %v2321 = vcombine.high %v2112, %v2113
        %v2323 = vunpack.c.l.s4 1983009808
        %v2324 = vunpack.c.0.s8 %v2323
        %v2325 = vlaneseq
        %v2326 = vshrl.u32 %v2325, 7
        %v2327 = vsub.s32 %v2324, %v2326
        %v2328 = vrot.slane %v2320, %v2327
        %v2330 = vunpack.c.l.s4 1983009808
        %v2331 = vunpack.c.0.s8 %v2330
        %v2332 = vlaneseq
        %v2333 = vshrl.u32 %v2332, 7
        %v2334 = vsub.s32 %v2331, %v2333
        %v2335 = vrot.slane %v2321, %v2334
        %v2336 = vcombine.high %v2328, %v2328
        %v2337 = vcombine.high %v2335, %v2335
        %v2338 = vcombine.low %v2114, %v2115
        %v2339 = vcombine.high %v2114, %v2115
        %v2341 = vunpack.c.l.s4 1983009808
        %v2342 = vunpack.c.0.s8 %v2341
        %v2343 = vlaneseq
        %v2344 = vshrl.u32 %v2343, 7
        %v2345 = vsub.s32 %v2342, %v2344
        %v2346 = vrot.slane %v2338, %v2345
        %v2348 = vunpack.c.l.s4 1983009808
        %v2349 = vunpack.c.0.s8 %v2348
        %v2350 = vlaneseq
        %v2351 = vshrl.u32 %v2350, 7
        %v2352 = vsub.s32 %v2349, %v2351
        %v2353 = vrot.slane %v2339, %v2352
        %v2354 = vcombine.high %v2346, %v2346
        %v2355 = vcombine.high %v2353, %v2353
        %v2356 = vcombine.low %v2116, %v2117
        %v2357 = vcombine.high %v2116, %v2117
        %v2359 = vunpack.c.l.s4 1983009808
        %v2360 = vunpack.c.0.s8 %v2359
        %v2361 = vlaneseq
        %v2362 = vshrl.u32 %v2361, 7
        %v2363 = vsub.s32 %v2360, %v2362
        %v2364 = vrot.slane %v2356, %v2363
        %v2366 = vunpack.c.l.s4 1983009808
        %v2367 = vunpack.c.0.s8 %v2366
        %v2368 = vlaneseq
        %v2369 = vshrl.u32 %v2368, 7
        %v2370 = vsub.s32 %v2367, %v2369
        %v2371 = vrot.slane %v2357, %v2370
        %v2372 = vcombine.high %v2364, %v2364
        %v2373 = vcombine.high %v2371, %v2371
        %v2374 = vcombine.low %v2118, %v2119
        %v2375 = vcombine.high %v2118, %v2119
        %v2377 = vunpack.c.l.s4 1983009808
        %v2378 = vunpack.c.0.s8 %v2377
        %v2379 = vlaneseq
        %v2380 = vshrl.u32 %v2379, 7
        %v2381 = vsub.s32 %v2378, %v2380
        %v2382 = vrot.slane %v2374, %v2381
        %v2384 = vunpack.c.l.s4 1983009808
        %v2385 = vunpack.c.0.s8 %v2384
        %v2386 = vlaneseq
        %v2387 = vshrl.u32 %v2386, 7
        %v2388 = vsub.s32 %v2385, %v2387
        %v2389 = vrot.slane %v2375, %v2388
        %v2390 = vcombine.high %v2382, %v2382
        %v2391 = vcombine.high %v2389, %v2389
        %v2392 = vcombine.low %v2120, %v2121
        %v2393 = vcombine.high %v2120, %v2121
        %v2395 = vunpack.c.l.s4 1983009808
        %v2396 = vunpack.c.0.s8 %v2395
        %v2397 = vlaneseq
        %v2398 = vshrl.u32 %v2397, 7
        %v2399 = vsub.s32 %v2396, %v2398
        %v2400 = vrot.slane %v2392, %v2399
        %v2402 = vunpack.c.l.s4 1983009808
        %v2403 = vunpack.c.0.s8 %v2402
        %v2404 = vlaneseq
        %v2405 = vshrl.u32 %v2404, 7
        %v2406 = vsub.s32 %v2403, %v2405
        %v2407 = vrot.slane %v2393, %v2406
        %v2408 = vcombine.high %v2400, %v2400
        %v2409 = vcombine.high %v2407, %v2407
        %v2410 = vcombine.low %v2122, %v2123
        %v2411 = vcombine.high %v2122, %v2123
        %v2413 = vunpack.c.l.s4 1983009808
        %v2414 = vunpack.c.0.s8 %v2413
        %v2415 = vlaneseq
        %v2416 = vshrl.u32 %v2415, 7
        %v2417 = vsub.s32 %v2414, %v2416
        %v2418 = vrot.slane %v2410, %v2417
        %v2420 = vunpack.c.l.s4 1983009808
        %v2421 = vunpack.c.0.s8 %v2420
        %v2422 = vlaneseq
        %v2423 = vshrl.u32 %v2422, 7
        %v2424 = vsub.s32 %v2421, %v2423
        %v2425 = vrot.slane %v2411, %v2424
        %v2426 = vcombine.high %v2418, %v2418
        %v2427 = vcombine.high %v2425, %v2425
        %v2428 = vcombine.low %v2124, %v2125
        %v2429 = vcombine.high %v2124, %v2125
        %v2431 = vunpack.c.l.s4 1983009808
        %v2432 = vunpack.c.0.s8 %v2431
        %v2433 = vlaneseq
        %v2434 = vshrl.u32 %v2433, 7
        %v2435 = vsub.s32 %v2432, %v2434
        %v2436 = vrot.slane %v2428, %v2435
        %v2438 = vunpack.c.l.s4 1983009808
        %v2439 = vunpack.c.0.s8 %v2438
        %v2440 = vlaneseq
        %v2441 = vshrl.u32 %v2440, 7
        %v2442 = vsub.s32 %v2439, %v2441
        %v2443 = vrot.slane %v2429, %v2442
        %v2444 = vcombine.high %v2436, %v2436
        %v2445 = vcombine.high %v2443, %v2443
        %v2510 = vrot.slane %v2166, 7
        %v2511 = vrot.slane %v2510, 2
        %v2512 = vrot.slane %v2174, 7
        %v2513 = vrot.slane %v2512, 2
        %v2514 = vrot.slane %v2173, 7
        %v2515 = vrot.slane %v2514, 2
        %v2516 = vrot.slane %v2175, 7
        %v2517 = vrot.slane %v2516, 2
        %v2518 = vrot.slane %v2184, 7
        %v2519 = vrot.slane %v2518, 2
        %v2520 = vrot.slane %v2192, 7
        %v2521 = vrot.slane %v2520, 2
        %v2522 = vrot.slane %v2191, 7
        %v2523 = vrot.slane %v2522, 2
        %v2524 = vrot.slane %v2193, 7
        %v2525 = vrot.slane %v2524, 2
        %v2526 = vrot.slane %v2202, 7
        %v2527 = vrot.slane %v2526, 2
        %v2528 = vrot.slane %v2210, 7
        %v2529 = vrot.slane %v2528, 2
        %v2530 = vrot.slane %v2209, 7
        %v2531 = vrot.slane %v2530, 2
        %v2532 = vrot.slane %v2211, 7
        %v2533 = vrot.slane %v2532, 2
        %v2534 = vrot.slane %v2220, 7
        %v2535 = vrot.slane %v2534, 2
        %v2536 = vrot.slane %v2228, 7
        %v2537 = vrot.slane %v2536, 2
        %v2538 = vrot.slane %v2227, 7
        %v2539 = vrot.slane %v2538, 2
        %v2540 = vrot.slane %v2229, 7
        %v2541 = vrot.slane %v2540, 2
        %v2542 = vrot.slane %v2238, 7
        %v2543 = vrot.slane %v2542, 2
        %v2544 = vrot.slane %v2246, 7
        %v2545 = vrot.slane %v2544, 2
        %v2546 = vrot.slane %v2245, 7
        %v2547 = vrot.slane %v2546, 2
        %v2548 = vrot.slane %v2247, 7
        %v2549 = vrot.slane %v2548, 2
        %v2550 = vrot.slane %v2256, 7
        %v2551 = vrot.slane %v2550, 2
        %v2552 = vrot.slane %v2264, 7
        %v2553 = vrot.slane %v2552, 2
        %v2554 = vrot.slane %v2263, 7
        %v2555 = vrot.slane %v2554, 2
        %v2556 = vrot.slane %v2265, 7
        %v2557 = vrot.slane %v2556, 2
        %v2558 = vrot.slane %v2274, 7
        %v2559 = vrot.slane %v2558, 2
        %v2560 = vrot.slane %v2282, 7
        %v2561 = vrot.slane %v2560, 2
        %v2562 = vrot.slane %v2281, 7
        %v2563 = vrot.slane %v2562, 2
        %v2564 = vrot.slane %v2283, 7
        %v2565 = vrot.slane %v2564, 2
        %v2566 = vrot.slane %v2292, 7
        %v2567 = vrot.slane %v2566, 2
        %v2568 = vrot.slane %v2300, 7
        %v2569 = vrot.slane %v2568, 2
        %v2570 = vrot.slane %v2299, 7
        %v2571 = vrot.slane %v2570, 2
        %v2572 = vrot.slane %v2301, 7
        %v2573 = vrot.slane %v2572, 2
        %v2574 = vrot.slane %v2310, 7
        %v2575 = vrot.slane %v2574, 2
        %v2576 = vrot.slane %v2318, 7
        %v2577 = vrot.slane %v2576, 2
        %v2578 = vrot.slane %v2317, 7
        %v2579 = vrot.slane %v2578, 2
        %v2580 = vrot.slane %v2319, 7
        %v2581 = vrot.slane %v2580, 2
        %v2582 = vrot.slane %v2328, 7
        %v2583 = vrot.slane %v2582, 2
        %v2584 = vrot.slane %v2336, 7
        %v2585 = vrot.slane %v2584, 2
        %v2586 = vrot.slane %v2335, 7
        %v2587 = vrot.slane %v2586, 2
        %v2588 = vrot.slane %v2337, 7
        %v2589 = vrot.slane %v2588, 2
        %v2590 = vrot.slane %v2346, 7
        %v2591 = vrot.slane %v2590, 2
        %v2592 = vrot.slane %v2354, 7
        %v2593 = vrot.slane %v2592, 2
        %v2594 = vrot.slane %v2353, 7
        %v2595 = vrot.slane %v2594, 2
        %v2596 = vrot.slane %v2355, 7
        %v2597 = vrot.slane %v2596, 2
        %v2598 = vrot.slane %v2364, 7
        %v2599 = vrot.slane %v2598, 2
        %v2600 = vrot.slane %v2372, 7
        %v2601 = vrot.slane %v2600, 2
        %v2602 = vrot.slane %v2371, 7
        %v2603 = vrot.slane %v2602, 2
        %v2604 = vrot.slane %v2373, 7
        %v2605 = vrot.slane %v2604, 2
        %v2606 = vrot.slane %v2382, 7
        %v2607 = vrot.slane %v2606, 2
        %v2608 = vrot.slane %v2390, 7
        %v2609 = vrot.slane %v2608, 2
        %v2610 = vrot.slane %v2389, 7
        %v2611 = vrot.slane %v2610, 2
        %v2612 = vrot.slane %v2391, 7
        %v2613 = vrot.slane %v2612, 2
        %v2614 = vrot.slane %v2400, 7
        %v2615 = vrot.slane %v2614, 2
        %v2616 = vrot.slane %v2408, 7
        %v2617 = vrot.slane %v2616, 2
        %v2618 = vrot.slane %v2407, 7
        %v2619 = vrot.slane %v2618, 2
        %v2620 = vrot.slane %v2409, 7
        %v2621 = vrot.slane %v2620, 2
        %v2622 = vrot.slane %v2418, 7
        %v2623 = vrot.slane %v2622, 2
        %v2624 = vrot.slane %v2426, 7
        %v2625 = vrot.slane %v2624, 2
        %v2626 = vrot.slane %v2425, 7
        %v2627 = vrot.slane %v2626, 2
        %v2628 = vrot.slane %v2427, 7
        %v2629 = vrot.slane %v2628, 2
        %v2630 = vrot.slane %v2436, 7
        %v2631 = vrot.slane %v2630, 2
        %v2632 = vrot.slane %v2444, 7
        %v2633 = vrot.slane %v2632, 2
        %v2634 = vrot.slane %v2443, 7
        %v2635 = vrot.slane %v2634, 2
        %v2636 = vrot.slane %v2445, 7
        %v2637 = vrot.slane %v2636, 2
        %v2702 = vmax.f32 %v2166, %v2511
        %v2703 = vmax.f32 %v2174, %v2513
        %v2704 = vmax.f32 %v2173, %v2515
        %v2705 = vmax.f32 %v2175, %v2517
        %v2706 = vmax.f32 %v2184, %v2519
        %v2707 = vmax.f32 %v2192, %v2521
        %v2708 = vmax.f32 %v2191, %v2523
        %v2709 = vmax.f32 %v2193, %v2525
        %v2710 = vmax.f32 %v2202, %v2527
        %v2711 = vmax.f32 %v2210, %v2529
        %v2712 = vmax.f32 %v2209, %v2531
        %v2713 = vmax.f32 %v2211, %v2533
        %v2714 = vmax.f32 %v2220, %v2535
        %v2715 = vmax.f32 %v2228, %v2537
        %v2716 = vmax.f32 %v2227, %v2539
        %v2717 = vmax.f32 %v2229, %v2541
        %v2718 = vmax.f32 %v2238, %v2543
        %v2719 = vmax.f32 %v2246, %v2545
        %v2720 = vmax.f32 %v2245, %v2547
        %v2721 = vmax.f32 %v2247, %v2549
        %v2722 = vmax.f32 %v2256, %v2551
        %v2723 = vmax.f32 %v2264, %v2553
        %v2724 = vmax.f32 %v2263, %v2555
        %v2725 = vmax.f32 %v2265, %v2557
        %v2726 = vmax.f32 %v2274, %v2559
        %v2727 = vmax.f32 %v2282, %v2561
        %v2728 = vmax.f32 %v2281, %v2563
        %v2729 = vmax.f32 %v2283, %v2565
        %v2730 = vmax.f32 %v2292, %v2567
        %v2731 = vmax.f32 %v2300, %v2569
        %v2732 = vmax.f32 %v2299, %v2571
        %v2733 = vmax.f32 %v2301, %v2573
        %v2734 = vmax.f32 %v2310, %v2575
        %v2735 = vmax.f32 %v2318, %v2577
        %v2736 = vmax.f32 %v2317, %v2579
        %v2737 = vmax.f32 %v2319, %v2581
        %v2738 = vmax.f32 %v2328, %v2583
        %v2739 = vmax.f32 %v2336, %v2585
        %v2740 = vmax.f32 %v2335, %v2587
        %v2741 = vmax.f32 %v2337, %v2589
        %v2742 = vmax.f32 %v2346, %v2591
        %v2743 = vmax.f32 %v2354, %v2593
        %v2744 = vmax.f32 %v2353, %v2595
        %v2745 = vmax.f32 %v2355, %v2597
        %v2746 = vmax.f32 %v2364, %v2599
        %v2747 = vmax.f32 %v2372, %v2601
        %v2748 = vmax.f32 %v2371, %v2603
        %v2749 = vmax.f32 %v2373, %v2605
        %v2750 = vmax.f32 %v2382, %v2607
        %v2751 = vmax.f32 %v2390, %v2609
        %v2752 = vmax.f32 %v2389, %v2611
        %v2753 = vmax.f32 %v2391, %v2613
        %v2754 = vmax.f32 %v2400, %v2615
        %v2755 = vmax.f32 %v2408, %v2617
        %v2756 = vmax.f32 %v2407, %v2619
        %v2757 = vmax.f32 %v2409, %v2621
        %v2758 = vmax.f32 %v2418, %v2623
        %v2759 = vmax.f32 %v2426, %v2625
        %v2760 = vmax.f32 %v2425, %v2627
        %v2761 = vmax.f32 %v2427, %v2629
        %v2762 = vmax.f32 %v2436, %v2631
        %v2763 = vmax.f32 %v2444, %v2633
        %v2764 = vmax.f32 %v2443, %v2635
        %v2765 = vmax.f32 %v2445, %v2637
        %2766 = vst [vmem:[#allocation3] sm:$0x1] 0
        %2767 = vst [vmem:[#allocation3 + $0x8] sm:$0x1] 0
        %2768 = vst [vmem:[#allocation3 + $0x10] sm:$0x1] 0
        %2769 = vst [vmem:[#allocation3 + $0x18] sm:$0x1] 0
        %2770 = vst [vmem:[#allocation3 + $0x20] sm:$0x1] 0
        %2771 = vst [vmem:[#allocation3 + $0x28] sm:$0x1] 0
        %2772 = vst [vmem:[#allocation3 + $0x30] sm:$0x1] 0
        %2773 = vst [vmem:[#allocation3 + $0x38] sm:$0x1] 0
        %2774 = vst [vmem:[#allocation3 + $0x4] sm:$0x2] 0
        %2775 = vst [vmem:[#allocation3 + $0xc] sm:$0x2] 0
        %2776 = vst [vmem:[#allocation3 + $0x14] sm:$0x2] 0
        %2777 = vst [vmem:[#allocation3 + $0x1c] sm:$0x2] 0
        %2778 = vst [vmem:[#allocation3 + $0x24] sm:$0x2] 0
        %2779 = vst [vmem:[#allocation3 + $0x2c] sm:$0x2] 0
        %2780 = vst [vmem:[#allocation3 + $0x34] sm:$0x2] 0
        %2781 = vst [vmem:[#allocation3 + $0x3c] sm:$0x2] 0
        %2846 = vrot.lane.b32.xlu0 %v2702, 112
        %v2847 = vpop.permute.xlu0 %2846
        %2848 = vrot.lane.b32.xlu0 %v2703, 112
        %v2849 = vpop.permute.xlu0 %2848
        %2850 = vrot.lane.b32.xlu0 %v2704, 112
        %v2851 = vpop.permute.xlu0 %2850
        %2852 = vrot.lane.b32.xlu0 %v2705, 112
        %v2853 = vpop.permute.xlu0 %2852
        %2854 = vrot.lane.b32.xlu0 %v2706, 112
        %v2855 = vpop.permute.xlu0 %2854
        %2856 = vrot.lane.b32.xlu0 %v2707, 112
        %v2857 = vpop.permute.xlu0 %2856
        %2858 = vrot.lane.b32.xlu0 %v2708, 112
        %v2859 = vpop.permute.xlu0 %2858
        %2860 = vrot.lane.b32.xlu0 %v2709, 112
        %v2861 = vpop.permute.xlu0 %2860
        %2862 = vrot.lane.b32.xlu0 %v2710, 112
        %v2863 = vpop.permute.xlu0 %2862
        %2864 = vrot.lane.b32.xlu0 %v2711, 112
        %v2865 = vpop.permute.xlu0 %2864
        %2866 = vrot.lane.b32.xlu0 %v2712, 112
        %v2867 = vpop.permute.xlu0 %2866
        %2868 = vrot.lane.b32.xlu0 %v2713, 112
        %v2869 = vpop.permute.xlu0 %2868
        %2870 = vrot.lane.b32.xlu0 %v2714, 112
        %v2871 = vpop.permute.xlu0 %2870
        %2872 = vrot.lane.b32.xlu0 %v2715, 112
        %v2873 = vpop.permute.xlu0 %2872
        %2874 = vrot.lane.b32.xlu0 %v2716, 112
        %v2875 = vpop.permute.xlu0 %2874
        %2876 = vrot.lane.b32.xlu0 %v2717, 112
        %v2877 = vpop.permute.xlu0 %2876
        %2878 = vrot.lane.b32.xlu0 %v2718, 112
        %v2879 = vpop.permute.xlu0 %2878
        %2880 = vrot.lane.b32.xlu0 %v2719, 112
        %v2881 = vpop.permute.xlu0 %2880
        %2882 = vrot.lane.b32.xlu0 %v2720, 112
        %v2883 = vpop.permute.xlu0 %2882
        %2884 = vrot.lane.b32.xlu0 %v2721, 112
        %v2885 = vpop.permute.xlu0 %2884
        %2886 = vrot.lane.b32.xlu0 %v2722, 112
        %v2887 = vpop.permute.xlu0 %2886
        %2888 = vrot.lane.b32.xlu0 %v2723, 112
        %v2889 = vpop.permute.xlu0 %2888
        %2890 = vrot.lane.b32.xlu0 %v2724, 112
        %v2891 = vpop.permute.xlu0 %2890
        %2892 = vrot.lane.b32.xlu0 %v2725, 112
        %v2893 = vpop.permute.xlu0 %2892
        %2894 = vrot.lane.b32.xlu0 %v2726, 112
        %v2895 = vpop.permute.xlu0 %2894
        %2896 = vrot.lane.b32.xlu0 %v2727, 112
        %v2897 = vpop.permute.xlu0 %2896
        %2898 = vrot.lane.b32.xlu0 %v2728, 112
        %v2899 = vpop.permute.xlu0 %2898
        %2900 = vrot.lane.b32.xlu0 %v2729, 112
        %v2901 = vpop.permute.xlu0 %2900
        %2902 = vrot.lane.b32.xlu0 %v2730, 112
        %v2903 = vpop.permute.xlu0 %2902
        %2904 = vrot.lane.b32.xlu0 %v2731, 112
        %v2905 = vpop.permute.xlu0 %2904
        %2906 = vrot.lane.b32.xlu0 %v2732, 112
        %v2907 = vpop.permute.xlu0 %2906
        %2908 = vrot.lane.b32.xlu0 %v2733, 112
        %v2909 = vpop.permute.xlu0 %2908
        %2910 = vrot.lane.b32.xlu0 %v2734, 112
        %v2911 = vpop.permute.xlu0 %2910
        %2912 = vrot.lane.b32.xlu0 %v2735, 112
        %v2913 = vpop.permute.xlu0 %2912
        %2914 = vrot.lane.b32.xlu0 %v2736, 112
        %v2915 = vpop.permute.xlu0 %2914
        %2916 = vrot.lane.b32.xlu0 %v2737, 112
        %v2917 = vpop.permute.xlu0 %2916
        %2918 = vrot.lane.b32.xlu0 %v2738, 112
        %v2919 = vpop.permute.xlu0 %2918
        %2920 = vrot.lane.b32.xlu0 %v2739, 112
        %v2921 = vpop.permute.xlu0 %2920
        %2922 = vrot.lane.b32.xlu0 %v2740, 112
        %v2923 = vpop.permute.xlu0 %2922
        %2924 = vrot.lane.b32.xlu0 %v2741, 112
        %v2925 = vpop.permute.xlu0 %2924
        %2926 = vrot.lane.b32.xlu0 %v2742, 112
        %v2927 = vpop.permute.xlu0 %2926
        %2928 = vrot.lane.b32.xlu0 %v2743, 112
        %v2929 = vpop.permute.xlu0 %2928
        %2930 = vrot.lane.b32.xlu0 %v2744, 112
        %v2931 = vpop.permute.xlu0 %2930
        %2932 = vrot.lane.b32.xlu0 %v2745, 112
        %v2933 = vpop.permute.xlu0 %2932
        %2934 = vrot.lane.b32.xlu0 %v2746, 112
        %v2935 = vpop.permute.xlu0 %2934
        %2936 = vrot.lane.b32.xlu0 %v2747, 112
        %v2937 = vpop.permute.xlu0 %2936
        %2938 = vrot.lane.b32.xlu0 %v2748, 112
        %v2939 = vpop.permute.xlu0 %2938
        %2940 = vrot.lane.b32.xlu0 %v2749, 112
        %v2941 = vpop.permute.xlu0 %2940
        %2942 = vrot.lane.b32.xlu0 %v2750, 112
        %v2943 = vpop.permute.xlu0 %2942
        %2944 = vrot.lane.b32.xlu0 %v2751, 112
        %v2945 = vpop.permute.xlu0 %2944
        %2946 = vrot.lane.b32.xlu0 %v2752, 112
        %v2947 = vpop.permute.xlu0 %2946
        %2948 = vrot.lane.b32.xlu0 %v2753, 112
        %v2949 = vpop.permute.xlu0 %2948
        %2950 = vrot.lane.b32.xlu0 %v2754, 112
        %v2951 = vpop.permute.xlu0 %2950
        %2952 = vrot.lane.b32.xlu0 %v2755, 112
        %v2953 = vpop.permute.xlu0 %2952
        %2954 = vrot.lane.b32.xlu0 %v2756, 112
        %v2955 = vpop.permute.xlu0 %2954
        %2956 = vrot.lane.b32.xlu0 %v2757, 112
        %v2957 = vpop.permute.xlu0 %2956
        %2958 = vrot.lane.b32.xlu0 %v2758, 112
        %v2959 = vpop.permute.xlu0 %2958
        %2960 = vrot.lane.b32.xlu0 %v2759, 112
        %v2961 = vpop.permute.xlu0 %2960
        %2962 = vrot.lane.b32.xlu0 %v2760, 112
        %v2963 = vpop.permute.xlu0 %2962
        %2964 = vrot.lane.b32.xlu0 %v2761, 112
        %v2965 = vpop.permute.xlu0 %2964
        %2966 = vrot.lane.b32.xlu0 %v2762, 112
        %v2967 = vpop.permute.xlu0 %2966
        %2968 = vrot.lane.b32.xlu0 %v2763, 112
        %v2969 = vpop.permute.xlu0 %2968
        %2970 = vrot.lane.b32.xlu0 %v2764, 112
        %v2971 = vpop.permute.xlu0 %2970
        %2972 = vrot.lane.b32.xlu0 %v2765, 112
        %v2973 = vpop.permute.xlu0 %2972
        %v3038 = vmax.f32 %v2702, %v2847
        %v3039 = vmax.f32 %v2703, %v2849
        %v3040 = vmax.f32 %v2704, %v2851
        %v3041 = vmax.f32 %v2705, %v2853
        %v3042 = vmax.f32 %v2706, %v2855
        %v3043 = vmax.f32 %v2707, %v2857
        %v3044 = vmax.f32 %v2708, %v2859
        %v3045 = vmax.f32 %v2709, %v2861
        %v3046 = vmax.f32 %v2710, %v2863
        %v3047 = vmax.f32 %v2711, %v2865
        %v3048 = vmax.f32 %v2712, %v2867
        %v3049 = vmax.f32 %v2713, %v2869
        %v3050 = vmax.f32 %v2714, %v2871
        %v3051 = vmax.f32 %v2715, %v2873
        %v3052 = vmax.f32 %v2716, %v2875
        %v3053 = vmax.f32 %v2717, %v2877
        %v3054 = vmax.f32 %v2718, %v2879
        %v3055 = vmax.f32 %v2719, %v2881
        %v3056 = vmax.f32 %v2720, %v2883
        %v3057 = vmax.f32 %v2721, %v2885
        %v3058 = vmax.f32 %v2722, %v2887
        %v3059 = vmax.f32 %v2723, %v2889
        %v3060 = vmax.f32 %v2724, %v2891
        %v3061 = vmax.f32 %v2725, %v2893
        %v3062 = vmax.f32 %v2726, %v2895
        %v3063 = vmax.f32 %v2727, %v2897
        %v3064 = vmax.f32 %v2728, %v2899
        %v3065 = vmax.f32 %v2729, %v2901
        %v3066 = vmax.f32 %v2730, %v2903
        %v3067 = vmax.f32 %v2731, %v2905
        %v3068 = vmax.f32 %v2732, %v2907
        %v3069 = vmax.f32 %v2733, %v2909
        %v3070 = vmax.f32 %v2734, %v2911
        %v3071 = vmax.f32 %v2735, %v2913
        %v3072 = vmax.f32 %v2736, %v2915
        %v3073 = vmax.f32 %v2737, %v2917
        %v3074 = vmax.f32 %v2738, %v2919
        %v3075 = vmax.f32 %v2739, %v2921
        %v3076 = vmax.f32 %v2740, %v2923
        %v3077 = vmax.f32 %v2741, %v2925
        %v3078 = vmax.f32 %v2742, %v2927
        %v3079 = vmax.f32 %v2743, %v2929
        %v3080 = vmax.f32 %v2744, %v2931
        %v3081 = vmax.f32 %v2745, %v2933
        %v3082 = vmax.f32 %v2746, %v2935
        %v3083 = vmax.f32 %v2747, %v2937
        %v3084 = vmax.f32 %v2748, %v2939
        %v3085 = vmax.f32 %v2749, %v2941
        %v3086 = vmax.f32 %v2750, %v2943
        %v3087 = vmax.f32 %v2751, %v2945
        %v3088 = vmax.f32 %v2752, %v2947
        %v3089 = vmax.f32 %v2753, %v2949
        %v3090 = vmax.f32 %v2754, %v2951
        %v3091 = vmax.f32 %v2755, %v2953
        %v3092 = vmax.f32 %v2756, %v2955
        %v3093 = vmax.f32 %v2757, %v2957
        %v3094 = vmax.f32 %v2758, %v2959
        %v3095 = vmax.f32 %v2759, %v2961
        %v3096 = vmax.f32 %v2760, %v2963
        %v3097 = vmax.f32 %v2761, %v2965
        %v3098 = vmax.f32 %v2762, %v2967
        %v3099 = vmax.f32 %v2763, %v2969
        %v3100 = vmax.f32 %v2764, %v2971
        %v3101 = vmax.f32 %v2765, %v2973
        %v3102 = vpack.c.bf16 %v3038, %v3038
        %v3103 = vpack.c.bf16 %v3039, %v3039
        %v3104 = vpack.c.bf16 %v3040, %v3040
        %v3105 = vpack.c.bf16 %v3041, %v3041
        %v3106 = vpack.c.bf16 %v3042, %v3042
        %v3107 = vpack.c.bf16 %v3043, %v3043
        %v3108 = vpack.c.bf16 %v3044, %v3044
        %v3109 = vpack.c.bf16 %v3045, %v3045
        %v3110 = vpack.c.bf16 %v3046, %v3046
        %v3111 = vpack.c.bf16 %v3047, %v3047
        %v3112 = vpack.c.bf16 %v3048, %v3048
        %v3113 = vpack.c.bf16 %v3049, %v3049
        %v3114 = vpack.c.bf16 %v3050, %v3050
        %v3115 = vpack.c.bf16 %v3051, %v3051
        %v3116 = vpack.c.bf16 %v3052, %v3052
        %v3117 = vpack.c.bf16 %v3053, %v3053
        %v3118 = vpack.c.bf16 %v3054, %v3054
        %v3119 = vpack.c.bf16 %v3055, %v3055
        %v3120 = vpack.c.bf16 %v3056, %v3056
        %v3121 = vpack.c.bf16 %v3057, %v3057
        %v3122 = vpack.c.bf16 %v3058, %v3058
        %v3123 = vpack.c.bf16 %v3059, %v3059
        %v3124 = vpack.c.bf16 %v3060, %v3060
        %v3125 = vpack.c.bf16 %v3061, %v3061
        %v3126 = vpack.c.bf16 %v3062, %v3062
        %v3127 = vpack.c.bf16 %v3063, %v3063
        %v3128 = vpack.c.bf16 %v3064, %v3064
        %v3129 = vpack.c.bf16 %v3065, %v3065
        %v3130 = vpack.c.bf16 %v3066, %v3066
        %v3131 = vpack.c.bf16 %v3067, %v3067
        %v3132 = vpack.c.bf16 %v3068, %v3068
        %v3133 = vpack.c.bf16 %v3069, %v3069
        %v3134 = vpack.c.bf16 %v3070, %v3070
        %v3135 = vpack.c.bf16 %v3071, %v3071
        %v3136 = vpack.c.bf16 %v3072, %v3072
        %v3137 = vpack.c.bf16 %v3073, %v3073
        %v3138 = vpack.c.bf16 %v3074, %v3074
        %v3139 = vpack.c.bf16 %v3075, %v3075
        %v3140 = vpack.c.bf16 %v3076, %v3076
        %v3141 = vpack.c.bf16 %v3077, %v3077
        %v3142 = vpack.c.bf16 %v3078, %v3078
        %v3143 = vpack.c.bf16 %v3079, %v3079
        %v3144 = vpack.c.bf16 %v3080, %v3080
        %v3145 = vpack.c.bf16 %v3081, %v3081
        %v3146 = vpack.c.bf16 %v3082, %v3082
        %v3147 = vpack.c.bf16 %v3083, %v3083
        %v3148 = vpack.c.bf16 %v3084, %v3084
        %v3149 = vpack.c.bf16 %v3085, %v3085
        %v3150 = vpack.c.bf16 %v3086, %v3086
        %v3151 = vpack.c.bf16 %v3087, %v3087
        %v3152 = vpack.c.bf16 %v3088, %v3088
        %v3153 = vpack.c.bf16 %v3089, %v3089
        %v3154 = vpack.c.bf16 %v3090, %v3090
        %v3155 = vpack.c.bf16 %v3091, %v3091
        %v3156 = vpack.c.bf16 %v3092, %v3092
        %v3157 = vpack.c.bf16 %v3093, %v3093
        %v3158 = vpack.c.bf16 %v3094, %v3094
        %v3159 = vpack.c.bf16 %v3095, %v3095
        %v3160 = vpack.c.bf16 %v3096, %v3096
        %v3161 = vpack.c.bf16 %v3097, %v3097
        %v3162 = vpack.c.bf16 %v3098, %v3098
        %v3163 = vpack.c.bf16 %v3099, %v3099
        %v3164 = vpack.c.bf16 %v3100, %v3100
        %v3165 = vpack.c.bf16 %v3101, %v3101
        %v3230 = vunpack.c.l.b16 %v3102
        %v3231 = vunpack.c.l.b16 %v3103
        %v3232 = vunpack.c.l.b16 %v3104
        %v3233 = vunpack.c.l.b16 %v3105
        %v3234 = vunpack.c.l.b16 %v3106
        %v3235 = vunpack.c.l.b16 %v3107
        %v3236 = vunpack.c.l.b16 %v3108
        %v3237 = vunpack.c.l.b16 %v3109
        %v3238 = vunpack.c.l.b16 %v3110
        %v3239 = vunpack.c.l.b16 %v3111
        %v3240 = vunpack.c.l.b16 %v3112
        %v3241 = vunpack.c.l.b16 %v3113
        %v3242 = vunpack.c.l.b16 %v3114
        %v3243 = vunpack.c.l.b16 %v3115
        %v3244 = vunpack.c.l.b16 %v3116
        %v3245 = vunpack.c.l.b16 %v3117
        %v3246 = vunpack.c.l.b16 %v3118
        %v3247 = vunpack.c.l.b16 %v3119
        %v3248 = vunpack.c.l.b16 %v3120
        %v3249 = vunpack.c.l.b16 %v3121
        %v3250 = vunpack.c.l.b16 %v3122
        %v3251 = vunpack.c.l.b16 %v3123
        %v3252 = vunpack.c.l.b16 %v3124
        %v3253 = vunpack.c.l.b16 %v3125
        %v3254 = vunpack.c.l.b16 %v3126
        %v3255 = vunpack.c.l.b16 %v3127
        %v3256 = vunpack.c.l.b16 %v3128
        %v3257 = vunpack.c.l.b16 %v3129
        %v3258 = vunpack.c.l.b16 %v3130
        %v3259 = vunpack.c.l.b16 %v3131
        %v3260 = vunpack.c.l.b16 %v3132
        %v3261 = vunpack.c.l.b16 %v3133
        %v3262 = vunpack.c.l.b16 %v3134
        %v3263 = vunpack.c.l.b16 %v3135
        %v3264 = vunpack.c.l.b16 %v3136
        %v3265 = vunpack.c.l.b16 %v3137
        %v3266 = vunpack.c.l.b16 %v3138
        %v3267 = vunpack.c.l.b16 %v3139
        %v3268 = vunpack.c.l.b16 %v3140
        %v3269 = vunpack.c.l.b16 %v3141
        %v3270 = vunpack.c.l.b16 %v3142
        %v3271 = vunpack.c.l.b16 %v3143
        %v3272 = vunpack.c.l.b16 %v3144
        %v3273 = vunpack.c.l.b16 %v3145
        %v3274 = vunpack.c.l.b16 %v3146
        %v3275 = vunpack.c.l.b16 %v3147
        %v3276 = vunpack.c.l.b16 %v3148
        %v3277 = vunpack.c.l.b16 %v3149
        %v3278 = vunpack.c.l.b16 %v3150
        %v3279 = vunpack.c.l.b16 %v3151
        %v3280 = vunpack.c.l.b16 %v3152
        %v3281 = vunpack.c.l.b16 %v3153
        %v3282 = vunpack.c.l.b16 %v3154
        %v3283 = vunpack.c.l.b16 %v3155
        %v3284 = vunpack.c.l.b16 %v3156
        %v3285 = vunpack.c.l.b16 %v3157
        %v3286 = vunpack.c.l.b16 %v3158
        %v3287 = vunpack.c.l.b16 %v3159
        %v3288 = vunpack.c.l.b16 %v3160
        %v3289 = vunpack.c.l.b16 %v3161
        %v3290 = vunpack.c.l.b16 %v3162
        %v3291 = vunpack.c.l.b16 %v3163
        %v3292 = vunpack.c.l.b16 %v3164
        %v3293 = vunpack.c.l.b16 %v3165
        %v3294 = vpack.c.b16 %v3230, %v3230
        %v3295 = vpack.c.b16 %v3231, %v3231
        %v3296 = vpack.c.b16 %v3232, %v3232
        %v3297 = vpack.c.b16 %v3233, %v3233
        %v3298 = vpack.c.b16 %v3234, %v3234
        %v3299 = vpack.c.b16 %v3235, %v3235
        %v3300 = vpack.c.b16 %v3236, %v3236
        %v3301 = vpack.c.b16 %v3237, %v3237
        %v3302 = vpack.c.b16 %v3238, %v3238
        %v3303 = vpack.c.b16 %v3239, %v3239
        %v3304 = vpack.c.b16 %v3240, %v3240
        %v3305 = vpack.c.b16 %v3241, %v3241
        %v3306 = vpack.c.b16 %v3242, %v3242
        %v3307 = vpack.c.b16 %v3243, %v3243
        %v3308 = vpack.c.b16 %v3244, %v3244
        %v3309 = vpack.c.b16 %v3245, %v3245
        %v3310 = vpack.c.b16 %v3246, %v3246
        %v3311 = vpack.c.b16 %v3247, %v3247
        %v3312 = vpack.c.b16 %v3248, %v3248
        %v3313 = vpack.c.b16 %v3249, %v3249
        %v3314 = vpack.c.b16 %v3250, %v3250
        %v3315 = vpack.c.b16 %v3251, %v3251
        %v3316 = vpack.c.b16 %v3252, %v3252
        %v3317 = vpack.c.b16 %v3253, %v3253
        %v3318 = vpack.c.b16 %v3254, %v3254
        %v3319 = vpack.c.b16 %v3255, %v3255
        %v3320 = vpack.c.b16 %v3256, %v3256
        %v3321 = vpack.c.b16 %v3257, %v3257
        %v3322 = vpack.c.b16 %v3258, %v3258
        %v3323 = vpack.c.b16 %v3259, %v3259
        %v3324 = vpack.c.b16 %v3260, %v3260
        %v3325 = vpack.c.b16 %v3261, %v3261
        %v3326 = vpack.c.b16 %v3262, %v3262
        %v3327 = vpack.c.b16 %v3263, %v3263
        %v3328 = vpack.c.b16 %v3264, %v3264
        %v3329 = vpack.c.b16 %v3265, %v3265
        %v3330 = vpack.c.b16 %v3266, %v3266
        %v3331 = vpack.c.b16 %v3267, %v3267
        %v3332 = vpack.c.b16 %v3268, %v3268
        %v3333 = vpack.c.b16 %v3269, %v3269
        %v3334 = vpack.c.b16 %v3270, %v3270
        %v3335 = vpack.c.b16 %v3271, %v3271
        %v3336 = vpack.c.b16 %v3272, %v3272
        %v3337 = vpack.c.b16 %v3273, %v3273
        %v3338 = vpack.c.b16 %v3274, %v3274
        %v3339 = vpack.c.b16 %v3275, %v3275
        %v3340 = vpack.c.b16 %v3276, %v3276
        %v3341 = vpack.c.b16 %v3277, %v3277
        %v3342 = vpack.c.b16 %v3278, %v3278
        %v3343 = vpack.c.b16 %v3279, %v3279
        %v3344 = vpack.c.b16 %v3280, %v3280
        %v3345 = vpack.c.b16 %v3281, %v3281
        %v3346 = vpack.c.b16 %v3282, %v3282
        %v3347 = vpack.c.b16 %v3283, %v3283
        %v3348 = vpack.c.b16 %v3284, %v3284
        %v3349 = vpack.c.b16 %v3285, %v3285
        %v3350 = vpack.c.b16 %v3286, %v3286
        %v3351 = vpack.c.b16 %v3287, %v3287
        %v3352 = vpack.c.b16 %v3288, %v3288
        %v3353 = vpack.c.b16 %v3289, %v3289
        %v3354 = vpack.c.b16 %v3290, %v3290
        %v3355 = vpack.c.b16 %v3291, %v3291
        %v3356 = vpack.c.b16 %v3292, %v3292
        %v3357 = vpack.c.b16 %v3293, %v3293
        %v3358 = vunpack.c.l.b16 %v3294
        %v3359 = vunpack.c.l.b16 %v3295
        %v3360 = vunpack.c.l.b16 %v3296
        %v3361 = vunpack.c.l.b16 %v3297
        %v3362 = vunpack.c.l.b16 %v3298
        %v3363 = vunpack.c.l.b16 %v3299
        %v3364 = vunpack.c.l.b16 %v3300
        %v3365 = vunpack.c.l.b16 %v3301
        %v3366 = vunpack.c.l.b16 %v3302
        %v3367 = vunpack.c.l.b16 %v3303
        %v3368 = vunpack.c.l.b16 %v3304
        %v3369 = vunpack.c.l.b16 %v3305
        %v3370 = vunpack.c.l.b16 %v3306
        %v3371 = vunpack.c.l.b16 %v3307
        %v3372 = vunpack.c.l.b16 %v3308
        %v3373 = vunpack.c.l.b16 %v3309
        %v3374 = vunpack.c.l.b16 %v3310
        %v3375 = vunpack.c.l.b16 %v3311
        %v3376 = vunpack.c.l.b16 %v3312
        %v3377 = vunpack.c.l.b16 %v3313
        %v3378 = vunpack.c.l.b16 %v3314
        %v3379 = vunpack.c.l.b16 %v3315
        %v3380 = vunpack.c.l.b16 %v3316
        %v3381 = vunpack.c.l.b16 %v3317
        %v3382 = vunpack.c.l.b16 %v3318
        %v3383 = vunpack.c.l.b16 %v3319
        %v3384 = vunpack.c.l.b16 %v3320
        %v3385 = vunpack.c.l.b16 %v3321
        %v3386 = vunpack.c.l.b16 %v3322
        %v3387 = vunpack.c.l.b16 %v3323
        %v3388 = vunpack.c.l.b16 %v3324
        %v3389 = vunpack.c.l.b16 %v3325
        %v3390 = vunpack.c.l.b16 %v3326
        %v3391 = vunpack.c.l.b16 %v3327
        %v3392 = vunpack.c.l.b16 %v3328
        %v3393 = vunpack.c.l.b16 %v3329
        %v3394 = vunpack.c.l.b16 %v3330
        %v3395 = vunpack.c.l.b16 %v3331
        %v3396 = vunpack.c.l.b16 %v3332
        %v3397 = vunpack.c.l.b16 %v3333
        %v3398 = vunpack.c.l.b16 %v3334
        %v3399 = vunpack.c.l.b16 %v3335
        %v3400 = vunpack.c.l.b16 %v3336
        %v3401 = vunpack.c.l.b16 %v3337
        %v3402 = vunpack.c.l.b16 %v3338
        %v3403 = vunpack.c.l.b16 %v3339
        %v3404 = vunpack.c.l.b16 %v3340
        %v3405 = vunpack.c.l.b16 %v3341
        %v3406 = vunpack.c.l.b16 %v3342
        %v3407 = vunpack.c.l.b16 %v3343
        %v3408 = vunpack.c.l.b16 %v3344
        %v3409 = vunpack.c.l.b16 %v3345
        %v3410 = vunpack.c.l.b16 %v3346
        %v3411 = vunpack.c.l.b16 %v3347
        %v3412 = vunpack.c.l.b16 %v3348
        %v3413 = vunpack.c.l.b16 %v3349
        %v3414 = vunpack.c.l.b16 %v3350
        %v3415 = vunpack.c.l.b16 %v3351
        %v3416 = vunpack.c.l.b16 %v3352
        %v3417 = vunpack.c.l.b16 %v3353
        %v3418 = vunpack.c.l.b16 %v3354
        %v3419 = vunpack.c.l.b16 %v3355
        %v3420 = vunpack.c.l.b16 %v3356
        %v3421 = vunpack.c.l.b16 %v3357
        %v3422 = vrot.slane %v3358, 6
        %v3423 = vrot.slane %v3359, 5
        %vm3424 = vcmask 1043459
        %v3425 = vsel %vm3424, %v3423, %v3422
        %v3426 = vrot.slane %v3360, 4
        %vm3427 = vcmask 1044484
        %v3428 = vsel %vm3427, %v3426, %v3425
        %v3429 = vrot.slane %v3361, 3
        %vm3430 = vcmask 1045509
        %v3431 = vsel %vm3430, %v3429, %v3428
        %v3432 = vrot.slane %v3362, 2
        %vm3433 = vcmask 1046534
        %v3434 = vsel %vm3433, %v3432, %v3431
        %v3435 = vrot.slane %v3363, 1
        %vm3436 = vcmask 1047559
        %v3437 = vsel %vm3436, %v3435, %v3434
        %v3438 = vrot.slane %v3365, 7
        %vm3439 = vcmask 1041409
        %v3440 = vsel %vm3439, %v3438, %v3364
        %v3441 = vrot.slane %v3366, 6
        %v3442 = vrot.slane %v3367, 5
        %v3443 = vsel %vm3424, %v3442, %v3441
        %v3444 = vrot.slane %v3368, 4
        %v3445 = vsel %vm3427, %v3444, %v3443
        %v3446 = vrot.slane %v3369, 3
        %v3447 = vsel %vm3430, %v3446, %v3445
        %v3448 = vrot.slane %v3370, 2
        %v3449 = vsel %vm3433, %v3448, %v3447
        %v3450 = vrot.slane %v3371, 1
        %v3451 = vsel %vm3436, %v3450, %v3449
        %v3452 = vrot.slane %v3373, 7
        %v3453 = vsel %vm3439, %v3452, %v3372
        %v3454 = vrot.slane %v3374, 6
        %v3455 = vrot.slane %v3375, 5
        %v3456 = vsel %vm3424, %v3455, %v3454
        %v3457 = vrot.slane %v3376, 4
        %v3458 = vsel %vm3427, %v3457, %v3456
        %v3459 = vrot.slane %v3377, 3
        %v3460 = vsel %vm3430, %v3459, %v3458
        %v3461 = vrot.slane %v3378, 2
        %v3462 = vsel %vm3433, %v3461, %v3460
        %v3463 = vrot.slane %v3379, 1
        %v3464 = vsel %vm3436, %v3463, %v3462
        %v3465 = vrot.slane %v3381, 7
        %v3466 = vsel %vm3439, %v3465, %v3380
        %v3467 = vrot.slane %v3382, 6
        %v3468 = vrot.slane %v3383, 5
        %v3469 = vsel %vm3424, %v3468, %v3467
        %v3470 = vrot.slane %v3384, 4
        %v3471 = vsel %vm3427, %v3470, %v3469
        %v3472 = vrot.slane %v3385, 3
        %v3473 = vsel %vm3430, %v3472, %v3471
        %v3474 = vrot.slane %v3386, 2
        %v3475 = vsel %vm3433, %v3474, %v3473
        %v3476 = vrot.slane %v3387, 1
        %v3477 = vsel %vm3436, %v3476, %v3475
        %v3478 = vrot.slane %v3389, 7
        %v3479 = vsel %vm3439, %v3478, %v3388
        %v3480 = vrot.slane %v3390, 6
        %v3481 = vrot.slane %v3391, 5
        %v3482 = vsel %vm3424, %v3481, %v3480
        %v3483 = vrot.slane %v3392, 4
        %v3484 = vsel %vm3427, %v3483, %v3482
        %v3485 = vrot.slane %v3393, 3
        %v3486 = vsel %vm3430, %v3485, %v3484
        %v3487 = vrot.slane %v3394, 2
        %v3488 = vsel %vm3433, %v3487, %v3486
        %v3489 = vrot.slane %v3395, 1
        %v3490 = vsel %vm3436, %v3489, %v3488
        %v3491 = vrot.slane %v3397, 7
        %v3492 = vsel %vm3439, %v3491, %v3396
        %v3493 = vrot.slane %v3398, 6
        %v3494 = vrot.slane %v3399, 5
        %v3495 = vsel %vm3424, %v3494, %v3493
        %v3496 = vrot.slane %v3400, 4
        %v3497 = vsel %vm3427, %v3496, %v3495
        %v3498 = vrot.slane %v3401, 3
        %v3499 = vsel %vm3430, %v3498, %v3497
        %v3500 = vrot.slane %v3402, 2
        %v3501 = vsel %vm3433, %v3500, %v3499
        %v3502 = vrot.slane %v3403, 1
        %v3503 = vsel %vm3436, %v3502, %v3501
        %v3504 = vrot.slane %v3405, 7
        %v3505 = vsel %vm3439, %v3504, %v3404
        %v3506 = vrot.slane %v3406, 6
        %v3507 = vrot.slane %v3407, 5
        %v3508 = vsel %vm3424, %v3507, %v3506
        %v3509 = vrot.slane %v3408, 4
        %v3510 = vsel %vm3427, %v3509, %v3508
        %v3511 = vrot.slane %v3409, 3
        %v3512 = vsel %vm3430, %v3511, %v3510
        %v3513 = vrot.slane %v3410, 2
        %v3514 = vsel %vm3433, %v3513, %v3512
        %v3515 = vrot.slane %v3411, 1
        %v3516 = vsel %vm3436, %v3515, %v3514
        %v3517 = vrot.slane %v3413, 7
        %v3518 = vsel %vm3439, %v3517, %v3412
        %v3519 = vrot.slane %v3414, 6
        %v3520 = vrot.slane %v3415, 5
        %v3521 = vsel %vm3424, %v3520, %v3519
        %v3522 = vrot.slane %v3416, 4
        %v3523 = vsel %vm3427, %v3522, %v3521
        %v3524 = vrot.slane %v3417, 3
        %v3525 = vsel %vm3430, %v3524, %v3523
        %v3526 = vrot.slane %v3418, 2
        %v3527 = vsel %vm3433, %v3526, %v3525
        %v3528 = vrot.slane %v3419, 1
        %v3529 = vsel %vm3436, %v3528, %v3527
        %v3530 = vrot.slane %v3421, 7
        %v3531 = vsel %vm3439, %v3530, %v3420
        %v3532 = vpack.c.b16 %v3437, %v3437
        %v3533 = vpack.c.b16 %v3440, %v3440
        %v3534 = vpack.c.b16 %v3451, %v3451
        %v3535 = vpack.c.b16 %v3453, %v3453
        %v3536 = vpack.c.b16 %v3464, %v3464
        %v3537 = vpack.c.b16 %v3466, %v3466
        %v3538 = vpack.c.b16 %v3477, %v3477
        %v3539 = vpack.c.b16 %v3479, %v3479
        %v3540 = vpack.c.b16 %v3490, %v3490
        %v3541 = vpack.c.b16 %v3492, %v3492
        %v3542 = vpack.c.b16 %v3503, %v3503
        %v3543 = vpack.c.b16 %v3505, %v3505
        %v3544 = vpack.c.b16 %v3516, %v3516
        %v3545 = vpack.c.b16 %v3518, %v3518
        %v3546 = vpack.c.b16 %v3529, %v3529
        %v3547 = vpack.c.b16 %v3531, %v3531
        %3564 = vst.msk [vmem:[#allocation3] sm:$0xe] %vm462, %v3532
        %3565 = vst.msk [vmem:[#allocation3 + $0x4] sm:$0x1] %vm313, %v3533
        %3566 = vst.msk [vmem:[#allocation3 + $0x8] sm:$0xe] %vm462, %v3534
        %3567 = vst.msk [vmem:[#allocation3 + $0xc] sm:$0x1] %vm313, %v3535
        %3568 = vst.msk [vmem:[#allocation3 + $0x10] sm:$0xe] %vm462, %v3536
        %3569 = vst.msk [vmem:[#allocation3 + $0x14] sm:$0x1] %vm313, %v3537
        %3570 = vst.msk [vmem:[#allocation3 + $0x18] sm:$0xe] %vm462, %v3538
        %3571 = vst.msk [vmem:[#allocation3 + $0x1c] sm:$0x1] %vm313, %v3539
        %3572 = vst.msk [vmem:[#allocation3 + $0x20] sm:$0xe] %vm462, %v3540
        %3573 = vst.msk [vmem:[#allocation3 + $0x24] sm:$0x1] %vm313, %v3541
        %3574 = vst.msk [vmem:[#allocation3 + $0x28] sm:$0xe] %vm462, %v3542
        %3575 = vst.msk [vmem:[#allocation3 + $0x2c] sm:$0x1] %vm313, %v3543
        %3576 = vst.msk [vmem:[#allocation3 + $0x30] sm:$0xe] %vm462, %v3544
        %3577 = vst.msk [vmem:[#allocation3 + $0x34] sm:$0x1] %vm313, %v3545
        %3578 = vst.msk [vmem:[#allocation3 + $0x38] sm:$0xe] %vm462, %v3546
        %3579 = vst.msk [vmem:[#allocation3 + $0x3c] sm:$0x1] %vm313, %v3547
        %3580 = vrot.lane.b32.xlu0 %v3532, 112
        %v3581 = vpop.permute.xlu0 %3580
        %3582 = vrot.lane.b32.xlu0 %v3533, 112
        %v3583 = vpop.permute.xlu0 %3582
        %3584 = vrot.lane.b32.xlu0 %v3534, 112
        %v3585 = vpop.permute.xlu0 %3584
        %3586 = vrot.lane.b32.xlu0 %v3535, 112
        %v3587 = vpop.permute.xlu0 %3586
        %3588 = vrot.lane.b32.xlu0 %v3536, 112
        %v3589 = vpop.permute.xlu0 %3588
        %3590 = vrot.lane.b32.xlu0 %v3537, 112
        %v3591 = vpop.permute.xlu0 %3590
        %3592 = vrot.lane.b32.xlu0 %v3538, 112
        %v3593 = vpop.permute.xlu0 %3592
        %3594 = vrot.lane.b32.xlu0 %v3539, 112
        %v3595 = vpop.permute.xlu0 %3594
        %3596 = vrot.lane.b32.xlu0 %v3540, 112
        %v3597 = vpop.permute.xlu0 %3596
        %3598 = vrot.lane.b32.xlu0 %v3541, 112
        %v3599 = vpop.permute.xlu0 %3598
        %3600 = vrot.lane.b32.xlu0 %v3542, 112
        %v3601 = vpop.permute.xlu0 %3600
        %3602 = vrot.lane.b32.xlu0 %v3543, 112
        %v3603 = vpop.permute.xlu0 %3602
        %3604 = vrot.lane.b32.xlu0 %v3544, 112
        %v3605 = vpop.permute.xlu0 %3604
        %3606 = vrot.lane.b32.xlu0 %v3545, 112
        %v3607 = vpop.permute.xlu0 %3606
        %3608 = vrot.lane.b32.xlu0 %v3546, 112
        %v3609 = vpop.permute.xlu0 %3608
        %3610 = vrot.lane.b32.xlu0 %v3547, 112
        %v3611 = vpop.permute.xlu0 %3610
        %vm3628 = vcmask 257153
        %3629 = vst.msk [vmem:[#allocation3] sm:$0xe] %vm3628, %v3581
        %vm3630 = vcmask 254080
        %3631 = vst.msk [vmem:[#allocation3 + $0x4] sm:$0x1] %vm3630, %v3583
        %3632 = vst.msk [vmem:[#allocation3 + $0x8] sm:$0xe] %vm3628, %v3585
        %3633 = vst.msk [vmem:[#allocation3 + $0xc] sm:$0x1] %vm3630, %v3587
        %3634 = vst.msk [vmem:[#allocation3 + $0x10] sm:$0xe] %vm3628, %v3589
        %3635 = vst.msk [vmem:[#allocation3 + $0x14] sm:$0x1] %vm3630, %v3591
        %3636 = vst.msk [vmem:[#allocation3 + $0x18] sm:$0xe] %vm3628, %v3593
        %3637 = vst.msk [vmem:[#allocation3 + $0x1c] sm:$0x1] %vm3630, %v3595
        %3638 = vst.msk [vmem:[#allocation3 + $0x20] sm:$0xe] %vm3628, %v3597
        %3639 = vst.msk [vmem:[#allocation3 + $0x24] sm:$0x1] %vm3630, %v3599
        %3640 = vst.msk [vmem:[#allocation3 + $0x28] sm:$0xe] %vm3628, %v3601
        %3641 = vst.msk [vmem:[#allocation3 + $0x2c] sm:$0x1] %vm3630, %v3603
        %3642 = vst.msk [vmem:[#allocation3 + $0x30] sm:$0xe] %vm3628, %v3605
        %3643 = vst.msk [vmem:[#allocation3 + $0x34] sm:$0x1] %vm3630, %v3607
        %3644 = vst.msk [vmem:[#allocation3 + $0x38] sm:$0xe] %vm3628, %v3609
        %3645 = vst.msk [vmem:[#allocation3 + $0x3c] sm:$0x1] %vm3630, %v3611
        %3646 = vrot.lane.b32.xlu0 %v3532, 96
        %v3647 = vpop.permute.xlu0 %3646
        %3648 = vrot.lane.b32.xlu0 %v3533, 96
        %v3649 = vpop.permute.xlu0 %3648
        %3650 = vrot.lane.b32.xlu0 %v3534, 96
        %v3651 = vpop.permute.xlu0 %3650
        %3652 = vrot.lane.b32.xlu0 %v3535, 96
        %v3653 = vpop.permute.xlu0 %3652
        %3654 = vrot.lane.b32.xlu0 %v3536, 96
        %v3655 = vpop.permute.xlu0 %3654
        %3656 = vrot.lane.b32.xlu0 %v3537, 96
        %v3657 = vpop.permute.xlu0 %3656
        %3658 = vrot.lane.b32.xlu0 %v3538, 96
        %v3659 = vpop.permute.xlu0 %3658
        %3660 = vrot.lane.b32.xlu0 %v3539, 96
        %v3661 = vpop.permute.xlu0 %3660
        %3662 = vrot.lane.b32.xlu0 %v3540, 96
        %v3663 = vpop.permute.xlu0 %3662
        %3664 = vrot.lane.b32.xlu0 %v3541, 96
        %v3665 = vpop.permute.xlu0 %3664
        %3666 = vrot.lane.b32.xlu0 %v3542, 96
        %v3667 = vpop.permute.xlu0 %3666
        %3668 = vrot.lane.b32.xlu0 %v3543, 96
        %v3669 = vpop.permute.xlu0 %3668
        %3670 = vrot.lane.b32.xlu0 %v3544, 96
        %v3671 = vpop.permute.xlu0 %3670
        %3672 = vrot.lane.b32.xlu0 %v3545, 96
        %v3673 = vpop.permute.xlu0 %3672
        %3674 = vrot.lane.b32.xlu0 %v3546, 96
        %v3675 = vpop.permute.xlu0 %3674
        %3676 = vrot.lane.b32.xlu0 %v3547, 96
        %v3677 = vpop.permute.xlu0 %3676
        %vm3694 = vcmask 388353
        %3695 = vst.msk [vmem:[#allocation3] sm:$0xe] %vm3694, %v3647
        %vm3696 = vcmask 385280
        %3697 = vst.msk [vmem:[#allocation3 + $0x4] sm:$0x1] %vm3696, %v3649
        %3698 = vst.msk [vmem:[#allocation3 + $0x8] sm:$0xe] %vm3694, %v3651
        %3699 = vst.msk [vmem:[#allocation3 + $0xc] sm:$0x1] %vm3696, %v3653
        %3700 = vst.msk [vmem:[#allocation3 + $0x10] sm:$0xe] %vm3694, %v3655
        %3701 = vst.msk [vmem:[#allocation3 + $0x14] sm:$0x1] %vm3696, %v3657
        %3702 = vst.msk [vmem:[#allocation3 + $0x18] sm:$0xe] %vm3694, %v3659
        %3703 = vst.msk [vmem:[#allocation3 + $0x1c] sm:$0x1] %vm3696, %v3661
        %3704 = vst.msk [vmem:[#allocation3 + $0x20] sm:$0xe] %vm3694, %v3663
        %3705 = vst.msk [vmem:[#allocation3 + $0x24] sm:$0x1] %vm3696, %v3665
        %3706 = vst.msk [vmem:[#allocation3 + $0x28] sm:$0xe] %vm3694, %v3667
        %3707 = vst.msk [vmem:[#allocation3 + $0x2c] sm:$0x1] %vm3696, %v3669
        %3708 = vst.msk [vmem:[#allocation3 + $0x30] sm:$0xe] %vm3694, %v3671
        %3709 = vst.msk [vmem:[#allocation3 + $0x34] sm:$0x1] %vm3696, %v3673
        %3710 = vst.msk [vmem:[#allocation3 + $0x38] sm:$0xe] %vm3694, %v3675
        %3711 = vst.msk [vmem:[#allocation3 + $0x3c] sm:$0x1] %vm3696, %v3677
        %3712 = vrot.lane.b32.xlu0 %v3532, 80
        %v3713 = vpop.permute.xlu0 %3712
        %3714 = vrot.lane.b32.xlu0 %v3533, 80
        %v3715 = vpop.permute.xlu0 %3714
        %3716 = vrot.lane.b32.xlu0 %v3534, 80
        %v3717 = vpop.permute.xlu0 %3716
        %3718 = vrot.lane.b32.xlu0 %v3535, 80
        %v3719 = vpop.permute.xlu0 %3718
        %3720 = vrot.lane.b32.xlu0 %v3536, 80
        %v3721 = vpop.permute.xlu0 %3720
        %3722 = vrot.lane.b32.xlu0 %v3537, 80
        %v3723 = vpop.permute.xlu0 %3722
        %3724 = vrot.lane.b32.xlu0 %v3538, 80
        %v3725 = vpop.permute.xlu0 %3724
        %3726 = vrot.lane.b32.xlu0 %v3539, 80
        %v3727 = vpop.permute.xlu0 %3726
        %3728 = vrot.lane.b32.xlu0 %v3540, 80
        %v3729 = vpop.permute.xlu0 %3728
        %3730 = vrot.lane.b32.xlu0 %v3541, 80
        %v3731 = vpop.permute.xlu0 %3730
        %3732 = vrot.lane.b32.xlu0 %v3542, 80
        %v3733 = vpop.permute.xlu0 %3732
        %3734 = vrot.lane.b32.xlu0 %v3543, 80
        %v3735 = vpop.permute.xlu0 %3734
        %3736 = vrot.lane.b32.xlu0 %v3544, 80
        %v3737 = vpop.permute.xlu0 %3736
        %3738 = vrot.lane.b32.xlu0 %v3545, 80
        %v3739 = vpop.permute.xlu0 %3738
        %3740 = vrot.lane.b32.xlu0 %v3546, 80
        %v3741 = vpop.permute.xlu0 %3740
        %3742 = vrot.lane.b32.xlu0 %v3547, 80
        %v3743 = vpop.permute.xlu0 %3742
        %vm3760 = vcmask 519553
        %3761 = vst.msk [vmem:[#allocation3] sm:$0xe] %vm3760, %v3713
        %vm3762 = vcmask 516480
        %3763 = vst.msk [vmem:[#allocation3 + $0x4] sm:$0x1] %vm3762, %v3715
        %3764 = vst.msk [vmem:[#allocation3 + $0x8] sm:$0xe] %vm3760, %v3717
        %3765 = vst.msk [vmem:[#allocation3 + $0xc] sm:$0x1] %vm3762, %v3719
        %3766 = vst.msk [vmem:[#allocation3 + $0x10] sm:$0xe] %vm3760, %v3721
        %3767 = vst.msk [vmem:[#allocation3 + $0x14] sm:$0x1] %vm3762, %v3723
        %3768 = vst.msk [vmem:[#allocation3 + $0x18] sm:$0xe] %vm3760, %v3725
        %3769 = vst.msk [vmem:[#allocation3 + $0x1c] sm:$0x1] %vm3762, %v3727
        %3770 = vst.msk [vmem:[#allocation3 + $0x20] sm:$0xe] %vm3760, %v3729
        %3771 = vst.msk [vmem:[#allocation3 + $0x24] sm:$0x1] %vm3762, %v3731
        %3772 = vst.msk [vmem:[#allocation3 + $0x28] sm:$0xe] %vm3760, %v3733
        %3773 = vst.msk [vmem:[#allocation3 + $0x2c] sm:$0x1] %vm3762, %v3735
        %3774 = vst.msk [vmem:[#allocation3 + $0x30] sm:$0xe] %vm3760, %v3737
        %3775 = vst.msk [vmem:[#allocation3 + $0x34] sm:$0x1] %vm3762, %v3739
        %3776 = vst.msk [vmem:[#allocation3 + $0x38] sm:$0xe] %vm3760, %v3741
        %3777 = vst.msk [vmem:[#allocation3 + $0x3c] sm:$0x1] %vm3762, %v3743
        %v3778 = vrot.slane %v2702, 2
        %v3779 = vrot.slane %v2703, 2
        %v3780 = vrot.slane %v2704, 2
        %v3781 = vrot.slane %v2705, 2
        %v3782 = vrot.slane %v2706, 2
        %v3783 = vrot.slane %v2707, 2
        %v3784 = vrot.slane %v2708, 2
        %v3785 = vrot.slane %v2709, 2
        %v3786 = vrot.slane %v2710, 2
        %v3787 = vrot.slane %v2711, 2
        %v3788 = vrot.slane %v2712, 2
        %v3789 = vrot.slane %v2713, 2
        %v3790 = vrot.slane %v2714, 2
        %v3791 = vrot.slane %v2715, 2
        %v3792 = vrot.slane %v2716, 2
        %v3793 = vrot.slane %v2717, 2
        %v3794 = vrot.slane %v2718, 2
        %v3795 = vrot.slane %v2719, 2
        %v3796 = vrot.slane %v2720, 2
        %v3797 = vrot.slane %v2721, 2
        %v3798 = vrot.slane %v2722, 2
        %v3799 = vrot.slane %v2723, 2
        %v3800 = vrot.slane %v2724, 2
        %v3801 = vrot.slane %v2725, 2
        %v3802 = vrot.slane %v2726, 2
        %v3803 = vrot.slane %v2727, 2
        %v3804 = vrot.slane %v2728, 2
        %v3805 = vrot.slane %v2729, 2
        %v3806 = vrot.slane %v2730, 2
        %v3807 = vrot.slane %v2731, 2
        %v3808 = vrot.slane %v2732, 2
        %v3809 = vrot.slane %v2733, 2
        %v3810 = vrot.slane %v2734, 2
        %v3811 = vrot.slane %v2735, 2
        %v3812 = vrot.slane %v2736, 2
        %v3813 = vrot.slane %v2737, 2
        %v3814 = vrot.slane %v2738, 2
        %v3815 = vrot.slane %v2739, 2
        %v3816 = vrot.slane %v2740, 2
        %v3817 = vrot.slane %v2741, 2
        %v3818 = vrot.slane %v2742, 2
        %v3819 = vrot.slane %v2743, 2
        %v3820 = vrot.slane %v2744, 2
        %v3821 = vrot.slane %v2745, 2
        %v3822 = vrot.slane %v2746, 2
        %v3823 = vrot.slane %v2747, 2
        %v3824 = vrot.slane %v2748, 2
        %v3825 = vrot.slane %v2749, 2
        %v3826 = vrot.slane %v2750, 2
        %v3827 = vrot.slane %v2751, 2
        %v3828 = vrot.slane %v2752, 2
        %v3829 = vrot.slane %v2753, 2
        %v3830 = vrot.slane %v2754, 2
        %v3831 = vrot.slane %v2755, 2
        %v3832 = vrot.slane %v2756, 2
        %v3833 = vrot.slane %v2757, 2
        %v3834 = vrot.slane %v2758, 2
        %v3835 = vrot.slane %v2759, 2
        %v3836 = vrot.slane %v2760, 2
        %v3837 = vrot.slane %v2761, 2
        %v3838 = vrot.slane %v2762, 2
        %v3839 = vrot.slane %v2763, 2
        %v3840 = vrot.slane %v2764, 2
        %v3841 = vrot.slane %v2765, 2
        %v3906 = vrot.slane %v2847, 2
        %v3907 = vrot.slane %v2849, 2
        %v3908 = vrot.slane %v2851, 2
        %v3909 = vrot.slane %v2853, 2
        %v3910 = vrot.slane %v2855, 2
        %v3911 = vrot.slane %v2857, 2
        %v3912 = vrot.slane %v2859, 2
        %v3913 = vrot.slane %v2861, 2
        %v3914 = vrot.slane %v2863, 2
        %v3915 = vrot.slane %v2865, 2
        %v3916 = vrot.slane %v2867, 2
        %v3917 = vrot.slane %v2869, 2
        %v3918 = vrot.slane %v2871, 2
        %v3919 = vrot.slane %v2873, 2
        %v3920 = vrot.slane %v2875, 2
        %v3921 = vrot.slane %v2877, 2
        %v3922 = vrot.slane %v2879, 2
        %v3923 = vrot.slane %v2881, 2
        %v3924 = vrot.slane %v2883, 2
        %v3925 = vrot.slane %v2885, 2
        %v3926 = vrot.slane %v2887, 2
        %v3927 = vrot.slane %v2889, 2
        %v3928 = vrot.slane %v2891, 2
        %v3929 = vrot.slane %v2893, 2
        %v3930 = vrot.slane %v2895, 2
        %v3931 = vrot.slane %v2897, 2
        %v3932 = vrot.slane %v2899, 2
        %v3933 = vrot.slane %v2901, 2
        %v3934 = vrot.slane %v2903, 2
        %v3935 = vrot.slane %v2905, 2
        %v3936 = vrot.slane %v2907, 2
        %v3937 = vrot.slane %v2909, 2
        %v3938 = vrot.slane %v2911, 2
        %v3939 = vrot.slane %v2913, 2
        %v3940 = vrot.slane %v2915, 2
        %v3941 = vrot.slane %v2917, 2
        %v3942 = vrot.slane %v2919, 2
        %v3943 = vrot.slane %v2921, 2
        %v3944 = vrot.slane %v2923, 2
        %v3945 = vrot.slane %v2925, 2
        %v3946 = vrot.slane %v2927, 2
        %v3947 = vrot.slane %v2929, 2
        %v3948 = vrot.slane %v2931, 2
        %v3949 = vrot.slane %v2933, 2
        %v3950 = vrot.slane %v2935, 2
        %v3951 = vrot.slane %v2937, 2
        %v3952 = vrot.slane %v2939, 2
        %v3953 = vrot.slane %v2941, 2
        %v3954 = vrot.slane %v2943, 2
        %v3955 = vrot.slane %v2945, 2
        %v3956 = vrot.slane %v2947, 2
        %v3957 = vrot.slane %v2949, 2
        %v3958 = vrot.slane %v2951, 2
        %v3959 = vrot.slane %v2953, 2
        %v3960 = vrot.slane %v2955, 2
        %v3961 = vrot.slane %v2957, 2
        %v3962 = vrot.slane %v2959, 2
        %v3963 = vrot.slane %v2961, 2
        %v3964 = vrot.slane %v2963, 2
        %v3965 = vrot.slane %v2965, 2
        %v3966 = vrot.slane %v2967, 2
        %v3967 = vrot.slane %v2969, 2
        %v3968 = vrot.slane %v2971, 2
        %v3969 = vrot.slane %v2973, 2
        %v4034 = vmax.f32 %v3778, %v3906
        %v4035 = vmax.f32 %v3779, %v3907
        %v4036 = vmax.f32 %v3780, %v3908
        %v4037 = vmax.f32 %v3781, %v3909
        %v4038 = vmax.f32 %v3782, %v3910
        %v4039 = vmax.f32 %v3783, %v3911
        %v4040 = vmax.f32 %v3784, %v3912
        %v4041 = vmax.f32 %v3785, %v3913
        %v4042 = vmax.f32 %v3786, %v3914
        %v4043 = vmax.f32 %v3787, %v3915
        %v4044 = vmax.f32 %v3788, %v3916
        %v4045 = vmax.f32 %v3789, %v3917
        %v4046 = vmax.f32 %v3790, %v3918
        %v4047 = vmax.f32 %v3791, %v3919
        %v4048 = vmax.f32 %v3792, %v3920
        %v4049 = vmax.f32 %v3793, %v3921
        %v4050 = vmax.f32 %v3794, %v3922
        %v4051 = vmax.f32 %v3795, %v3923
        %v4052 = vmax.f32 %v3796, %v3924
        %v4053 = vmax.f32 %v3797, %v3925
        %v4054 = vmax.f32 %v3798, %v3926
        %v4055 = vmax.f32 %v3799, %v3927
        %v4056 = vmax.f32 %v3800, %v3928
        %v4057 = vmax.f32 %v3801, %v3929
        %v4058 = vmax.f32 %v3802, %v3930
        %v4059 = vmax.f32 %v3803, %v3931
        %v4060 = vmax.f32 %v3804, %v3932
        %v4061 = vmax.f32 %v3805, %v3933
        %v4062 = vmax.f32 %v3806, %v3934
        %v4063 = vmax.f32 %v3807, %v3935
        %v4064 = vmax.f32 %v3808, %v3936
        %v4065 = vmax.f32 %v3809, %v3937
        %v4066 = vmax.f32 %v3810, %v3938
        %v4067 = vmax.f32 %v3811, %v3939
        %v4068 = vmax.f32 %v3812, %v3940
        %v4069 = vmax.f32 %v3813, %v3941
        %v4070 = vmax.f32 %v3814, %v3942
        %v4071 = vmax.f32 %v3815, %v3943
        %v4072 = vmax.f32 %v3816, %v3944
        %v4073 = vmax.f32 %v3817, %v3945
        %v4074 = vmax.f32 %v3818, %v3946
        %v4075 = vmax.f32 %v3819, %v3947
        %v4076 = vmax.f32 %v3820, %v3948
        %v4077 = vmax.f32 %v3821, %v3949
        %v4078 = vmax.f32 %v3822, %v3950
        %v4079 = vmax.f32 %v3823, %v3951
        %v4080 = vmax.f32 %v3824, %v3952
        %v4081 = vmax.f32 %v3825, %v3953
        %v4082 = vmax.f32 %v3826, %v3954
        %v4083 = vmax.f32 %v3827, %v3955
        %v4084 = vmax.f32 %v3828, %v3956
        %v4085 = vmax.f32 %v3829, %v3957
        %v4086 = vmax.f32 %v3830, %v3958
        %v4087 = vmax.f32 %v3831, %v3959
        %v4088 = vmax.f32 %v3832, %v3960
        %v4089 = vmax.f32 %v3833, %v3961
        %v4090 = vmax.f32 %v3834, %v3962
        %v4091 = vmax.f32 %v3835, %v3963
        %v4092 = vmax.f32 %v3836, %v3964
        %v4093 = vmax.f32 %v3837, %v3965
        %v4094 = vmax.f32 %v3838, %v3966
        %v4095 = vmax.f32 %v3839, %v3967
        %v4096 = vmax.f32 %v3840, %v3968
        %v4097 = vmax.f32 %v3841, %v3969
        %v4098 = vpack.c.bf16 %v4034, %v4034
        %v4099 = vpack.c.bf16 %v4035, %v4035
        %v4100 = vpack.c.bf16 %v4036, %v4036
        %v4101 = vpack.c.bf16 %v4037, %v4037
        %v4102 = vpack.c.bf16 %v4038, %v4038
        %v4103 = vpack.c.bf16 %v4039, %v4039
        %v4104 = vpack.c.bf16 %v4040, %v4040
        %v4105 = vpack.c.bf16 %v4041, %v4041
        %v4106 = vpack.c.bf16 %v4042, %v4042
        %v4107 = vpack.c.bf16 %v4043, %v4043
        %v4108 = vpack.c.bf16 %v4044, %v4044
        %v4109 = vpack.c.bf16 %v4045, %v4045
        %v4110 = vpack.c.bf16 %v4046, %v4046
        %v4111 = vpack.c.bf16 %v4047, %v4047
        %v4112 = vpack.c.bf16 %v4048, %v4048
        %v4113 = vpack.c.bf16 %v4049, %v4049
        %v4114 = vpack.c.bf16 %v4050, %v4050
        %v4115 = vpack.c.bf16 %v4051, %v4051
        %v4116 = vpack.c.bf16 %v4052, %v4052
        %v4117 = vpack.c.bf16 %v4053, %v4053
        %v4118 = vpack.c.bf16 %v4054, %v4054
        %v4119 = vpack.c.bf16 %v4055, %v4055
        %v4120 = vpack.c.bf16 %v4056, %v4056
        %v4121 = vpack.c.bf16 %v4057, %v4057
        %v4122 = vpack.c.bf16 %v4058, %v4058
        %v4123 = vpack.c.bf16 %v4059, %v4059
        %v4124 = vpack.c.bf16 %v4060, %v4060
        %v4125 = vpack.c.bf16 %v4061, %v4061
        %v4126 = vpack.c.bf16 %v4062, %v4062
        %v4127 = vpack.c.bf16 %v4063, %v4063
        %v4128 = vpack.c.bf16 %v4064, %v4064
        %v4129 = vpack.c.bf16 %v4065, %v4065
        %v4130 = vpack.c.bf16 %v4066, %v4066
        %v4131 = vpack.c.bf16 %v4067, %v4067
        %v4132 = vpack.c.bf16 %v4068, %v4068
        %v4133 = vpack.c.bf16 %v4069, %v4069
        %v4134 = vpack.c.bf16 %v4070, %v4070
        %v4135 = vpack.c.bf16 %v4071, %v4071
        %v4136 = vpack.c.bf16 %v4072, %v4072
        %v4137 = vpack.c.bf16 %v4073, %v4073
        %v4138 = vpack.c.bf16 %v4074, %v4074
        %v4139 = vpack.c.bf16 %v4075, %v4075
        %v4140 = vpack.c.bf16 %v4076, %v4076
        %v4141 = vpack.c.bf16 %v4077, %v4077
        %v4142 = vpack.c.bf16 %v4078, %v4078
        %v4143 = vpack.c.bf16 %v4079, %v4079
        %v4144 = vpack.c.bf16 %v4080, %v4080
        %v4145 = vpack.c.bf16 %v4081, %v4081
        %v4146 = vpack.c.bf16 %v4082, %v4082
        %v4147 = vpack.c.bf16 %v4083, %v4083
        %v4148 = vpack.c.bf16 %v4084, %v4084
        %v4149 = vpack.c.bf16 %v4085, %v4085
        %v4150 = vpack.c.bf16 %v4086, %v4086
        %v4151 = vpack.c.bf16 %v4087, %v4087
        %v4152 = vpack.c.bf16 %v4088, %v4088
        %v4153 = vpack.c.bf16 %v4089, %v4089
        %v4154 = vpack.c.bf16 %v4090, %v4090
        %v4155 = vpack.c.bf16 %v4091, %v4091
        %v4156 = vpack.c.bf16 %v4092, %v4092
        %v4157 = vpack.c.bf16 %v4093, %v4093
        %v4158 = vpack.c.bf16 %v4094, %v4094
        %v4159 = vpack.c.bf16 %v4095, %v4095
        %v4160 = vpack.c.bf16 %v4096, %v4096
        %v4161 = vpack.c.bf16 %v4097, %v4097
        %v4226 = vunpack.c.l.b16 %v4098
        %v4227 = vunpack.c.l.b16 %v4099
        %v4228 = vunpack.c.l.b16 %v4100
        %v4229 = vunpack.c.l.b16 %v4101
        %v4230 = vunpack.c.l.b16 %v4102
        %v4231 = vunpack.c.l.b16 %v4103
        %v4232 = vunpack.c.l.b16 %v4104
        %v4233 = vunpack.c.l.b16 %v4105
        %v4234 = vunpack.c.l.b16 %v4106
        %v4235 = vunpack.c.l.b16 %v4107
        %v4236 = vunpack.c.l.b16 %v4108
        %v4237 = vunpack.c.l.b16 %v4109
        %v4238 = vunpack.c.l.b16 %v4110
        %v4239 = vunpack.c.l.b16 %v4111
        %v4240 = vunpack.c.l.b16 %v4112
        %v4241 = vunpack.c.l.b16 %v4113
        %v4242 = vunpack.c.l.b16 %v4114
        %v4243 = vunpack.c.l.b16 %v4115
        %v4244 = vunpack.c.l.b16 %v4116
        %v4245 = vunpack.c.l.b16 %v4117
        %v4246 = vunpack.c.l.b16 %v4118
        %v4247 = vunpack.c.l.b16 %v4119
        %v4248 = vunpack.c.l.b16 %v4120
        %v4249 = vunpack.c.l.b16 %v4121
        %v4250 = vunpack.c.l.b16 %v4122
        %v4251 = vunpack.c.l.b16 %v4123
        %v4252 = vunpack.c.l.b16 %v4124
        %v4253 = vunpack.c.l.b16 %v4125
        %v4254 = vunpack.c.l.b16 %v4126
        %v4255 = vunpack.c.l.b16 %v4127
        %v4256 = vunpack.c.l.b16 %v4128
        %v4257 = vunpack.c.l.b16 %v4129
        %v4258 = vunpack.c.l.b16 %v4130
        %v4259 = vunpack.c.l.b16 %v4131
        %v4260 = vunpack.c.l.b16 %v4132
        %v4261 = vunpack.c.l.b16 %v4133
        %v4262 = vunpack.c.l.b16 %v4134
        %v4263 = vunpack.c.l.b16 %v4135
        %v4264 = vunpack.c.l.b16 %v4136
        %v4265 = vunpack.c.l.b16 %v4137
        %v4266 = vunpack.c.l.b16 %v4138
        %v4267 = vunpack.c.l.b16 %v4139
        %v4268 = vunpack.c.l.b16 %v4140
        %v4269 = vunpack.c.l.b16 %v4141
        %v4270 = vunpack.c.l.b16 %v4142
        %v4271 = vunpack.c.l.b16 %v4143
        %v4272 = vunpack.c.l.b16 %v4144
        %v4273 = vunpack.c.l.b16 %v4145
        %v4274 = vunpack.c.l.b16 %v4146
        %v4275 = vunpack.c.l.b16 %v4147
        %v4276 = vunpack.c.l.b16 %v4148
        %v4277 = vunpack.c.l.b16 %v4149
        %v4278 = vunpack.c.l.b16 %v4150
        %v4279 = vunpack.c.l.b16 %v4151
        %v4280 = vunpack.c.l.b16 %v4152
        %v4281 = vunpack.c.l.b16 %v4153
        %v4282 = vunpack.c.l.b16 %v4154
        %v4283 = vunpack.c.l.b16 %v4155
        %v4284 = vunpack.c.l.b16 %v4156
        %v4285 = vunpack.c.l.b16 %v4157
        %v4286 = vunpack.c.l.b16 %v4158
        %v4287 = vunpack.c.l.b16 %v4159
        %v4288 = vunpack.c.l.b16 %v4160
        %v4289 = vunpack.c.l.b16 %v4161
        %v4290 = vpack.c.b16 %v4226, %v4226
        %v4291 = vpack.c.b16 %v4227, %v4227
        %v4292 = vpack.c.b16 %v4228, %v4228
        %v4293 = vpack.c.b16 %v4229, %v4229
        %v4294 = vpack.c.b16 %v4230, %v4230
        %v4295 = vpack.c.b16 %v4231, %v4231
        %v4296 = vpack.c.b16 %v4232, %v4232
        %v4297 = vpack.c.b16 %v4233, %v4233
        %v4298 = vpack.c.b16 %v4234, %v4234
        %v4299 = vpack.c.b16 %v4235, %v4235
        %v4300 = vpack.c.b16 %v4236, %v4236
        %v4301 = vpack.c.b16 %v4237, %v4237
        %v4302 = vpack.c.b16 %v4238, %v4238
        %v4303 = vpack.c.b16 %v4239, %v4239
        %v4304 = vpack.c.b16 %v4240, %v4240
        %v4305 = vpack.c.b16 %v4241, %v4241
        %v4306 = vpack.c.b16 %v4242, %v4242
        %v4307 = vpack.c.b16 %v4243, %v4243
        %v4308 = vpack.c.b16 %v4244, %v4244
        %v4309 = vpack.c.b16 %v4245, %v4245
        %v4310 = vpack.c.b16 %v4246, %v4246
        %v4311 = vpack.c.b16 %v4247, %v4247
        %v4312 = vpack.c.b16 %v4248, %v4248
        %v4313 = vpack.c.b16 %v4249, %v4249
        %v4314 = vpack.c.b16 %v4250, %v4250
        %v4315 = vpack.c.b16 %v4251, %v4251
        %v4316 = vpack.c.b16 %v4252, %v4252
        %v4317 = vpack.c.b16 %v4253, %v4253
        %v4318 = vpack.c.b16 %v4254, %v4254
        %v4319 = vpack.c.b16 %v4255, %v4255
        %v4320 = vpack.c.b16 %v4256, %v4256
        %v4321 = vpack.c.b16 %v4257, %v4257
        %v4322 = vpack.c.b16 %v4258, %v4258
        %v4323 = vpack.c.b16 %v4259, %v4259
        %v4324 = vpack.c.b16 %v4260, %v4260
        %v4325 = vpack.c.b16 %v4261, %v4261
        %v4326 = vpack.c.b16 %v4262, %v4262
        %v4327 = vpack.c.b16 %v4263, %v4263
        %v4328 = vpack.c.b16 %v4264, %v4264
        %v4329 = vpack.c.b16 %v4265, %v4265
        %v4330 = vpack.c.b16 %v4266, %v4266
        %v4331 = vpack.c.b16 %v4267, %v4267
        %v4332 = vpack.c.b16 %v4268, %v4268
        %v4333 = vpack.c.b16 %v4269, %v4269
        %v4334 = vpack.c.b16 %v4270, %v4270
        %v4335 = vpack.c.b16 %v4271, %v4271
        %v4336 = vpack.c.b16 %v4272, %v4272
        %v4337 = vpack.c.b16 %v4273, %v4273
        %v4338 = vpack.c.b16 %v4274, %v4274
        %v4339 = vpack.c.b16 %v4275, %v4275
        %v4340 = vpack.c.b16 %v4276, %v4276
        %v4341 = vpack.c.b16 %v4277, %v4277
        %v4342 = vpack.c.b16 %v4278, %v4278
        %v4343 = vpack.c.b16 %v4279, %v4279
        %v4344 = vpack.c.b16 %v4280, %v4280
        %v4345 = vpack.c.b16 %v4281, %v4281
        %v4346 = vpack.c.b16 %v4282, %v4282
        %v4347 = vpack.c.b16 %v4283, %v4283
        %v4348 = vpack.c.b16 %v4284, %v4284
        %v4349 = vpack.c.b16 %v4285, %v4285
        %v4350 = vpack.c.b16 %v4286, %v4286
        %v4351 = vpack.c.b16 %v4287, %v4287
        %v4352 = vpack.c.b16 %v4288, %v4288
        %v4353 = vpack.c.b16 %v4289, %v4289
        %v4354 = vunpack.c.l.b16 %v4290
        %v4355 = vunpack.c.l.b16 %v4291
        %v4356 = vunpack.c.l.b16 %v4292
        %v4357 = vunpack.c.l.b16 %v4293
        %v4358 = vunpack.c.l.b16 %v4294
        %v4359 = vunpack.c.l.b16 %v4295
        %v4360 = vunpack.c.l.b16 %v4296
        %v4361 = vunpack.c.l.b16 %v4297
        %v4362 = vunpack.c.l.b16 %v4298
        %v4363 = vunpack.c.l.b16 %v4299
        %v4364 = vunpack.c.l.b16 %v4300
        %v4365 = vunpack.c.l.b16 %v4301
        %v4366 = vunpack.c.l.b16 %v4302
        %v4367 = vunpack.c.l.b16 %v4303
        %v4368 = vunpack.c.l.b16 %v4304
        %v4369 = vunpack.c.l.b16 %v4305
        %v4370 = vunpack.c.l.b16 %v4306
        %v4371 = vunpack.c.l.b16 %v4307
        %v4372 = vunpack.c.l.b16 %v4308
        %v4373 = vunpack.c.l.b16 %v4309
        %v4374 = vunpack.c.l.b16 %v4310
        %v4375 = vunpack.c.l.b16 %v4311
        %v4376 = vunpack.c.l.b16 %v4312
        %v4377 = vunpack.c.l.b16 %v4313
        %v4378 = vunpack.c.l.b16 %v4314
        %v4379 = vunpack.c.l.b16 %v4315
        %v4380 = vunpack.c.l.b16 %v4316
        %v4381 = vunpack.c.l.b16 %v4317
        %v4382 = vunpack.c.l.b16 %v4318
        %v4383 = vunpack.c.l.b16 %v4319
        %v4384 = vunpack.c.l.b16 %v4320
        %v4385 = vunpack.c.l.b16 %v4321
        %v4386 = vunpack.c.l.b16 %v4322
        %v4387 = vunpack.c.l.b16 %v4323
        %v4388 = vunpack.c.l.b16 %v4324
        %v4389 = vunpack.c.l.b16 %v4325
        %v4390 = vunpack.c.l.b16 %v4326
        %v4391 = vunpack.c.l.b16 %v4327
        %v4392 = vunpack.c.l.b16 %v4328
        %v4393 = vunpack.c.l.b16 %v4329
        %v4394 = vunpack.c.l.b16 %v4330
        %v4395 = vunpack.c.l.b16 %v4331
        %v4396 = vunpack.c.l.b16 %v4332
        %v4397 = vunpack.c.l.b16 %v4333
        %v4398 = vunpack.c.l.b16 %v4334
        %v4399 = vunpack.c.l.b16 %v4335
        %v4400 = vunpack.c.l.b16 %v4336
        %v4401 = vunpack.c.l.b16 %v4337
        %v4402 = vunpack.c.l.b16 %v4338
        %v4403 = vunpack.c.l.b16 %v4339
        %v4404 = vunpack.c.l.b16 %v4340
        %v4405 = vunpack.c.l.b16 %v4341
        %v4406 = vunpack.c.l.b16 %v4342
        %v4407 = vunpack.c.l.b16 %v4343
        %v4408 = vunpack.c.l.b16 %v4344
        %v4409 = vunpack.c.l.b16 %v4345
        %v4410 = vunpack.c.l.b16 %v4346
        %v4411 = vunpack.c.l.b16 %v4347
        %v4412 = vunpack.c.l.b16 %v4348
        %v4413 = vunpack.c.l.b16 %v4349
        %v4414 = vunpack.c.l.b16 %v4350
        %v4415 = vunpack.c.l.b16 %v4351
        %v4416 = vunpack.c.l.b16 %v4352
        %v4417 = vunpack.c.l.b16 %v4353
        %v4418 = vrot.slane %v4354, 6
        %v4419 = vrot.slane %v4355, 5
        %v4420 = vsel %vm3424, %v4419, %v4418
        %v4421 = vrot.slane %v4356, 4
        %v4422 = vsel %vm3427, %v4421, %v4420
        %v4423 = vrot.slane %v4357, 3
        %v4424 = vsel %vm3430, %v4423, %v4422
        %v4425 = vrot.slane %v4358, 2
        %v4426 = vsel %vm3433, %v4425, %v4424
        %v4427 = vrot.slane %v4359, 1
        %v4428 = vsel %vm3436, %v4427, %v4426
        %v4429 = vrot.slane %v4361, 7
        %v4430 = vsel %vm3439, %v4429, %v4360
        %v4431 = vrot.slane %v4362, 6
        %v4432 = vrot.slane %v4363, 5
        %v4433 = vsel %vm3424, %v4432, %v4431
        %v4434 = vrot.slane %v4364, 4
        %v4435 = vsel %vm3427, %v4434, %v4433
        %v4436 = vrot.slane %v4365, 3
        %v4437 = vsel %vm3430, %v4436, %v4435
        %v4438 = vrot.slane %v4366, 2
        %v4439 = vsel %vm3433, %v4438, %v4437
        %v4440 = vrot.slane %v4367, 1
        %v4441 = vsel %vm3436, %v4440, %v4439
        %v4442 = vrot.slane %v4369, 7
        %v4443 = vsel %vm3439, %v4442, %v4368
        %v4444 = vrot.slane %v4370, 6
        %v4445 = vrot.slane %v4371, 5
        %v4446 = vsel %vm3424, %v4445, %v4444
        %v4447 = vrot.slane %v4372, 4
        %v4448 = vsel %vm3427, %v4447, %v4446
        %v4449 = vrot.slane %v4373, 3
        %v4450 = vsel %vm3430, %v4449, %v4448
        %v4451 = vrot.slane %v4374, 2
        %v4452 = vsel %vm3433, %v4451, %v4450
        %v4453 = vrot.slane %v4375, 1
        %v4454 = vsel %vm3436, %v4453, %v4452
        %v4455 = vrot.slane %v4377, 7
        %v4456 = vsel %vm3439, %v4455, %v4376
        %v4457 = vrot.slane %v4378, 6
        %v4458 = vrot.slane %v4379, 5
        %v4459 = vsel %vm3424, %v4458, %v4457
        %v4460 = vrot.slane %v4380, 4
        %v4461 = vsel %vm3427, %v4460, %v4459
        %v4462 = vrot.slane %v4381, 3
        %v4463 = vsel %vm3430, %v4462, %v4461
        %v4464 = vrot.slane %v4382, 2
        %v4465 = vsel %vm3433, %v4464, %v4463
        %v4466 = vrot.slane %v4383, 1
        %v4467 = vsel %vm3436, %v4466, %v4465
        %v4468 = vrot.slane %v4385, 7
        %v4469 = vsel %vm3439, %v4468, %v4384
        %v4470 = vrot.slane %v4386, 6
        %v4471 = vrot.slane %v4387, 5
        %v4472 = vsel %vm3424, %v4471, %v4470
        %v4473 = vrot.slane %v4388, 4
        %v4474 = vsel %vm3427, %v4473, %v4472
        %v4475 = vrot.slane %v4389, 3
        %v4476 = vsel %vm3430, %v4475, %v4474
        %v4477 = vrot.slane %v4390, 2
        %v4478 = vsel %vm3433, %v4477, %v4476
        %v4479 = vrot.slane %v4391, 1
        %v4480 = vsel %vm3436, %v4479, %v4478
        %v4481 = vrot.slane %v4393, 7
        %v4482 = vsel %vm3439, %v4481, %v4392
        %v4483 = vrot.slane %v4394, 6
        %v4484 = vrot.slane %v4395, 5
        %v4485 = vsel %vm3424, %v4484, %v4483
        %v4486 = vrot.slane %v4396, 4
        %v4487 = vsel %vm3427, %v4486, %v4485
        %v4488 = vrot.slane %v4397, 3
        %v4489 = vsel %vm3430, %v4488, %v4487
        %v4490 = vrot.slane %v4398, 2
        %v4491 = vsel %vm3433, %v4490, %v4489
        %v4492 = vrot.slane %v4399, 1
        %v4493 = vsel %vm3436, %v4492, %v4491
        %v4494 = vrot.slane %v4401, 7
        %v4495 = vsel %vm3439, %v4494, %v4400
        %v4496 = vrot.slane %v4402, 6
        %v4497 = vrot.slane %v4403, 5
        %v4498 = vsel %vm3424, %v4497, %v4496
        %v4499 = vrot.slane %v4404, 4
        %v4500 = vsel %vm3427, %v4499, %v4498
        %v4501 = vrot.slane %v4405, 3
        %v4502 = vsel %vm3430, %v4501, %v4500
        %v4503 = vrot.slane %v4406, 2
        %v4504 = vsel %vm3433, %v4503, %v4502
        %v4505 = vrot.slane %v4407, 1
        %v4506 = vsel %vm3436, %v4505, %v4504
        %v4507 = vrot.slane %v4409, 7
        %v4508 = vsel %vm3439, %v4507, %v4408
        %v4509 = vrot.slane %v4410, 6
        %v4510 = vrot.slane %v4411, 5
        %v4511 = vsel %vm3424, %v4510, %v4509
        %v4512 = vrot.slane %v4412, 4
        %v4513 = vsel %vm3427, %v4512, %v4511
        %v4514 = vrot.slane %v4413, 3
        %v4515 = vsel %vm3430, %v4514, %v4513
        %v4516 = vrot.slane %v4414, 2
        %v4517 = vsel %vm3433, %v4516, %v4515
        %v4518 = vrot.slane %v4415, 1
        %v4519 = vsel %vm3436, %v4518, %v4517
        %v4520 = vrot.slane %v4417, 7
        %v4521 = vsel %vm3439, %v4520, %v4416
        %v4522 = vpack.c.b16 %v4428, %v4428
        %v4523 = vpack.c.b16 %v4430, %v4430
        %v4524 = vpack.c.b16 %v4441, %v4441
        %v4525 = vpack.c.b16 %v4443, %v4443
        %v4526 = vpack.c.b16 %v4454, %v4454
        %v4527 = vpack.c.b16 %v4456, %v4456
        %v4528 = vpack.c.b16 %v4467, %v4467
        %v4529 = vpack.c.b16 %v4469, %v4469
        %v4530 = vpack.c.b16 %v4480, %v4480
        %v4531 = vpack.c.b16 %v4482, %v4482
        %v4532 = vpack.c.b16 %v4493, %v4493
        %v4533 = vpack.c.b16 %v4495, %v4495
        %v4534 = vpack.c.b16 %v4506, %v4506
        %v4535 = vpack.c.b16 %v4508, %v4508
        %v4536 = vpack.c.b16 %v4519, %v4519
        %v4537 = vpack.c.b16 %v4521, %v4521
        %4538 = vrot.lane.b32.xlu0 %v4522, 64
        %v4539 = vpop.permute.xlu0 %4538
        %4540 = vrot.lane.b32.xlu0 %v4523, 64
        %v4541 = vpop.permute.xlu0 %4540
        %4542 = vrot.lane.b32.xlu0 %v4524, 64
        %v4543 = vpop.permute.xlu0 %4542
        %4544 = vrot.lane.b32.xlu0 %v4525, 64
        %v4545 = vpop.permute.xlu0 %4544
        %4546 = vrot.lane.b32.xlu0 %v4526, 64
        %v4547 = vpop.permute.xlu0 %4546
        %4548 = vrot.lane.b32.xlu0 %v4527, 64
        %v4549 = vpop.permute.xlu0 %4548
        %4550 = vrot.lane.b32.xlu0 %v4528, 64
        %v4551 = vpop.permute.xlu0 %4550
        %4552 = vrot.lane.b32.xlu0 %v4529, 64
        %v4553 = vpop.permute.xlu0 %4552
        %4554 = vrot.lane.b32.xlu0 %v4530, 64
        %v4555 = vpop.permute.xlu0 %4554
        %4556 = vrot.lane.b32.xlu0 %v4531, 64
        %v4557 = vpop.permute.xlu0 %4556
        %4558 = vrot.lane.b32.xlu0 %v4532, 64
        %v4559 = vpop.permute.xlu0 %4558
        %4560 = vrot.lane.b32.xlu0 %v4533, 64
        %v4561 = vpop.permute.xlu0 %4560
        %4562 = vrot.lane.b32.xlu0 %v4534, 64
        %v4563 = vpop.permute.xlu0 %4562
        %4564 = vrot.lane.b32.xlu0 %v4535, 64
        %v4565 = vpop.permute.xlu0 %4564
        %4566 = vrot.lane.b32.xlu0 %v4536, 64
        %v4567 = vpop.permute.xlu0 %4566
        %4568 = vrot.lane.b32.xlu0 %v4537, 64
        %v4569 = vpop.permute.xlu0 %4568
        %vm4586 = vcmask 650753
        %4587 = vst.msk [vmem:[#allocation3] sm:$0xe] %vm4586, %v4539
        %vm4588 = vcmask 647680
        %4589 = vst.msk [vmem:[#allocation3 + $0x4] sm:$0x1] %vm4588, %v4541
        %4590 = vst.msk [vmem:[#allocation3 + $0x8] sm:$0xe] %vm4586, %v4543
        %4591 = vst.msk [vmem:[#allocation3 + $0xc] sm:$0x1] %vm4588, %v4545
        %4592 = vst.msk [vmem:[#allocation3 + $0x10] sm:$0xe] %vm4586, %v4547
        %4593 = vst.msk [vmem:[#allocation3 + $0x14] sm:$0x1] %vm4588, %v4549
        %4594 = vst.msk [vmem:[#allocation3 + $0x18] sm:$0xe] %vm4586, %v4551
        %4595 = vst.msk [vmem:[#allocation3 + $0x1c] sm:$0x1] %vm4588, %v4553
        %4596 = vst.msk [vmem:[#allocation3 + $0x20] sm:$0xe] %vm4586, %v4555
        %4597 = vst.msk [vmem:[#allocation3 + $0x24] sm:$0x1] %vm4588, %v4557
        %4598 = vst.msk [vmem:[#allocation3 + $0x28] sm:$0xe] %vm4586, %v4559
        %4599 = vst.msk [vmem:[#allocation3 + $0x2c] sm:$0x1] %vm4588, %v4561
        %4600 = vst.msk [vmem:[#allocation3 + $0x30] sm:$0xe] %vm4586, %v4563
        %4601 = vst.msk [vmem:[#allocation3 + $0x34] sm:$0x1] %vm4588, %v4565
        %4602 = vst.msk [vmem:[#allocation3 + $0x38] sm:$0xe] %vm4586, %v4567
        %4603 = vst.msk [vmem:[#allocation3 + $0x3c] sm:$0x1] %vm4588, %v4569
        %4604 = vrot.lane.b32.xlu0 %v2702, 96
        %v4605 = vpop.permute.xlu0 %4604
        %4606 = vrot.lane.b32.xlu0 %v2703, 96
        %v4607 = vpop.permute.xlu0 %4606
        %4608 = vrot.lane.b32.xlu0 %v2704, 96
        %v4609 = vpop.permute.xlu0 %4608
        %4610 = vrot.lane.b32.xlu0 %v2705, 96
        %v4611 = vpop.permute.xlu0 %4610
        %4612 = vrot.lane.b32.xlu0 %v2706, 96
        %v4613 = vpop.permute.xlu0 %4612
        %4614 = vrot.lane.b32.xlu0 %v2707, 96
        %v4615 = vpop.permute.xlu0 %4614
        %4616 = vrot.lane.b32.xlu0 %v2708, 96
        %v4617 = vpop.permute.xlu0 %4616
        %4618 = vrot.lane.b32.xlu0 %v2709, 96
        %v4619 = vpop.permute.xlu0 %4618
        %4620 = vrot.lane.b32.xlu0 %v2710, 96
        %v4621 = vpop.permute.xlu0 %4620
        %4622 = vrot.lane.b32.xlu0 %v2711, 96
        %v4623 = vpop.permute.xlu0 %4622
        %4624 = vrot.lane.b32.xlu0 %v2712, 96
        %v4625 = vpop.permute.xlu0 %4624
        %4626 = vrot.lane.b32.xlu0 %v2713, 96
        %v4627 = vpop.permute.xlu0 %4626
        %4628 = vrot.lane.b32.xlu0 %v2714, 96
        %v4629 = vpop.permute.xlu0 %4628
        %4630 = vrot.lane.b32.xlu0 %v2715, 96
        %v4631 = vpop.permute.xlu0 %4630
        %4632 = vrot.lane.b32.xlu0 %v2716, 96
        %v4633 = vpop.permute.xlu0 %4632
        %4634 = vrot.lane.b32.xlu0 %v2717, 96
        %v4635 = vpop.permute.xlu0 %4634
        %4636 = vrot.lane.b32.xlu0 %v2718, 96
        %v4637 = vpop.permute.xlu0 %4636
        %4638 = vrot.lane.b32.xlu0 %v2719, 96
        %v4639 = vpop.permute.xlu0 %4638
        %4640 = vrot.lane.b32.xlu0 %v2720, 96
        %v4641 = vpop.permute.xlu0 %4640
        %4642 = vrot.lane.b32.xlu0 %v2721, 96
        %v4643 = vpop.permute.xlu0 %4642
        %4644 = vrot.lane.b32.xlu0 %v2722, 96
        %v4645 = vpop.permute.xlu0 %4644
        %4646 = vrot.lane.b32.xlu0 %v2723, 96
        %v4647 = vpop.permute.xlu0 %4646
        %4648 = vrot.lane.b32.xlu0 %v2724, 96
        %v4649 = vpop.permute.xlu0 %4648
        %4650 = vrot.lane.b32.xlu0 %v2725, 96
        %v4651 = vpop.permute.xlu0 %4650
        %4652 = vrot.lane.b32.xlu0 %v2726, 96
        %v4653 = vpop.permute.xlu0 %4652
        %4654 = vrot.lane.b32.xlu0 %v2727, 96
        %v4655 = vpop.permute.xlu0 %4654
        %4656 = vrot.lane.b32.xlu0 %v2728, 96
        %v4657 = vpop.permute.xlu0 %4656
        %4658 = vrot.lane.b32.xlu0 %v2729, 96
        %v4659 = vpop.permute.xlu0 %4658
        %4660 = vrot.lane.b32.xlu0 %v2730, 96
        %v4661 = vpop.permute.xlu0 %4660
        %4662 = vrot.lane.b32.xlu0 %v2731, 96
        %v4663 = vpop.permute.xlu0 %4662
        %4664 = vrot.lane.b32.xlu0 %v2732, 96
        %v4665 = vpop.permute.xlu0 %4664
        %4666 = vrot.lane.b32.xlu0 %v2733, 96
        %v4667 = vpop.permute.xlu0 %4666
        %4668 = vrot.lane.b32.xlu0 %v2734, 96
        %v4669 = vpop.permute.xlu0 %4668
        %4670 = vrot.lane.b32.xlu0 %v2735, 96
        %v4671 = vpop.permute.xlu0 %4670
        %4672 = vrot.lane.b32.xlu0 %v2736, 96
        %v4673 = vpop.permute.xlu0 %4672
        %4674 = vrot.lane.b32.xlu0 %v2737, 96
        %v4675 = vpop.permute.xlu0 %4674
        %4676 = vrot.lane.b32.xlu0 %v2738, 96
        %v4677 = vpop.permute.xlu0 %4676
        %4678 = vrot.lane.b32.xlu0 %v2739, 96
        %v4679 = vpop.permute.xlu0 %4678
        %4680 = vrot.lane.b32.xlu0 %v2740, 96
        %v4681 = vpop.permute.xlu0 %4680
        %4682 = vrot.lane.b32.xlu0 %v2741, 96
        %v4683 = vpop.permute.xlu0 %4682
        %4684 = vrot.lane.b32.xlu0 %v2742, 96
        %v4685 = vpop.permute.xlu0 %4684
        %4686 = vrot.lane.b32.xlu0 %v2743, 96
        %v4687 = vpop.permute.xlu0 %4686
        %4688 = vrot.lane.b32.xlu0 %v2744, 96
        %v4689 = vpop.permute.xlu0 %4688
        %4690 = vrot.lane.b32.xlu0 %v2745, 96
        %v4691 = vpop.permute.xlu0 %4690
        %4692 = vrot.lane.b32.xlu0 %v2746, 96
        %v4693 = vpop.permute.xlu0 %4692
        %4694 = vrot.lane.b32.xlu0 %v2747, 96
        %v4695 = vpop.permute.xlu0 %4694
        %4696 = vrot.lane.b32.xlu0 %v2748, 96
        %v4697 = vpop.permute.xlu0 %4696
        %4698 = vrot.lane.b32.xlu0 %v2749, 96
        %v4699 = vpop.permute.xlu0 %4698
        %4700 = vrot.lane.b32.xlu0 %v2750, 96
        %v4701 = vpop.permute.xlu0 %4700
        %4702 = vrot.lane.b32.xlu0 %v2751, 96
        %v4703 = vpop.permute.xlu0 %4702
        %4704 = vrot.lane.b32.xlu0 %v2752, 96
        %v4705 = vpop.permute.xlu0 %4704
        %4706 = vrot.lane.b32.xlu0 %v2753, 96
        %v4707 = vpop.permute.xlu0 %4706
        %4708 = vrot.lane.b32.xlu0 %v2754, 96
        %v4709 = vpop.permute.xlu0 %4708
        %4710 = vrot.lane.b32.xlu0 %v2755, 96
        %v4711 = vpop.permute.xlu0 %4710
        %4712 = vrot.lane.b32.xlu0 %v2756, 96
        %v4713 = vpop.permute.xlu0 %4712
        %4714 = vrot.lane.b32.xlu0 %v2757, 96
        %v4715 = vpop.permute.xlu0 %4714
        %4716 = vrot.lane.b32.xlu0 %v2758, 96
        %v4717 = vpop.permute.xlu0 %4716
        %4718 = vrot.lane.b32.xlu0 %v2759, 96
        %v4719 = vpop.permute.xlu0 %4718
        %4720 = vrot.lane.b32.xlu0 %v2760, 96
        %v4721 = vpop.permute.xlu0 %4720
        %4722 = vrot.lane.b32.xlu0 %v2761, 96
        %v4723 = vpop.permute.xlu0 %4722
        %4724 = vrot.lane.b32.xlu0 %v2762, 96
        %v4725 = vpop.permute.xlu0 %4724
        %4726 = vrot.lane.b32.xlu0 %v2763, 96
        %v4727 = vpop.permute.xlu0 %4726
        %4728 = vrot.lane.b32.xlu0 %v2764, 96
        %v4729 = vpop.permute.xlu0 %4728
        %4730 = vrot.lane.b32.xlu0 %v2765, 96
        %v4731 = vpop.permute.xlu0 %4730
        %v4732 = vrot.slane %v4605, 2
        %v4733 = vrot.slane %v4607, 2
        %v4734 = vrot.slane %v4609, 2
        %v4735 = vrot.slane %v4611, 2
        %v4736 = vrot.slane %v4613, 2
        %v4737 = vrot.slane %v4615, 2
        %v4738 = vrot.slane %v4617, 2
        %v4739 = vrot.slane %v4619, 2
        %v4740 = vrot.slane %v4621, 2
        %v4741 = vrot.slane %v4623, 2
        %v4742 = vrot.slane %v4625, 2
        %v4743 = vrot.slane %v4627, 2
        %v4744 = vrot.slane %v4629, 2
        %v4745 = vrot.slane %v4631, 2
        %v4746 = vrot.slane %v4633, 2
        %v4747 = vrot.slane %v4635, 2
        %v4748 = vrot.slane %v4637, 2
        %v4749 = vrot.slane %v4639, 2
        %v4750 = vrot.slane %v4641, 2
        %v4751 = vrot.slane %v4643, 2
        %v4752 = vrot.slane %v4645, 2
        %v4753 = vrot.slane %v4647, 2
        %v4754 = vrot.slane %v4649, 2
        %v4755 = vrot.slane %v4651, 2
        %v4756 = vrot.slane %v4653, 2
        %v4757 = vrot.slane %v4655, 2
        %v4758 = vrot.slane %v4657, 2
        %v4759 = vrot.slane %v4659, 2
        %v4760 = vrot.slane %v4661, 2
        %v4761 = vrot.slane %v4663, 2
        %v4762 = vrot.slane %v4665, 2
        %v4763 = vrot.slane %v4667, 2
        %v4764 = vrot.slane %v4669, 2
        %v4765 = vrot.slane %v4671, 2
        %v4766 = vrot.slane %v4673, 2
        %v4767 = vrot.slane %v4675, 2
        %v4768 = vrot.slane %v4677, 2
        %v4769 = vrot.slane %v4679, 2
        %v4770 = vrot.slane %v4681, 2
        %v4771 = vrot.slane %v4683, 2
        %v4772 = vrot.slane %v4685, 2
        %v4773 = vrot.slane %v4687, 2
        %v4774 = vrot.slane %v4689, 2
        %v4775 = vrot.slane %v4691, 2
        %v4776 = vrot.slane %v4693, 2
        %v4777 = vrot.slane %v4695, 2
        %v4778 = vrot.slane %v4697, 2
        %v4779 = vrot.slane %v4699, 2
        %v4780 = vrot.slane %v4701, 2
        %v4781 = vrot.slane %v4703, 2
        %v4782 = vrot.slane %v4705, 2
        %v4783 = vrot.slane %v4707, 2
        %v4784 = vrot.slane %v4709, 2
        %v4785 = vrot.slane %v4711, 2
        %v4786 = vrot.slane %v4713, 2
        %v4787 = vrot.slane %v4715, 2
        %v4788 = vrot.slane %v4717, 2
        %v4789 = vrot.slane %v4719, 2
        %v4790 = vrot.slane %v4721, 2
        %v4791 = vrot.slane %v4723, 2
        %v4792 = vrot.slane %v4725, 2
        %v4793 = vrot.slane %v4727, 2
        %v4794 = vrot.slane %v4729, 2
        %v4795 = vrot.slane %v4731, 2
        %4860 = vrot.lane.b32.xlu0 %v2702, 80
        %v4861 = vpop.permute.xlu0 %4860
        %4862 = vrot.lane.b32.xlu0 %v2703, 80
        %v4863 = vpop.permute.xlu0 %4862
        %4864 = vrot.lane.b32.xlu0 %v2704, 80
        %v4865 = vpop.permute.xlu0 %4864
        %4866 = vrot.lane.b32.xlu0 %v2705, 80
        %v4867 = vpop.permute.xlu0 %4866
        %4868 = vrot.lane.b32.xlu0 %v2706, 80
        %v4869 = vpop.permute.xlu0 %4868
        %4870 = vrot.lane.b32.xlu0 %v2707, 80
        %v4871 = vpop.permute.xlu0 %4870
        %4872 = vrot.lane.b32.xlu0 %v2708, 80
        %v4873 = vpop.permute.xlu0 %4872
        %4874 = vrot.lane.b32.xlu0 %v2709, 80
        %v4875 = vpop.permute.xlu0 %4874
        %4876 = vrot.lane.b32.xlu0 %v2710, 80
        %v4877 = vpop.permute.xlu0 %4876
        %4878 = vrot.lane.b32.xlu0 %v2711, 80
        %v4879 = vpop.permute.xlu0 %4878
        %4880 = vrot.lane.b32.xlu0 %v2712, 80
        %v4881 = vpop.permute.xlu0 %4880
        %4882 = vrot.lane.b32.xlu0 %v2713, 80
        %v4883 = vpop.permute.xlu0 %4882
        %4884 = vrot.lane.b32.xlu0 %v2714, 80
        %v4885 = vpop.permute.xlu0 %4884
        %4886 = vrot.lane.b32.xlu0 %v2715, 80
        %v4887 = vpop.permute.xlu0 %4886
        %4888 = vrot.lane.b32.xlu0 %v2716, 80
        %v4889 = vpop.permute.xlu0 %4888
        %4890 = vrot.lane.b32.xlu0 %v2717, 80
        %v4891 = vpop.permute.xlu0 %4890
        %4892 = vrot.lane.b32.xlu0 %v2718, 80
        %v4893 = vpop.permute.xlu0 %4892
        %4894 = vrot.lane.b32.xlu0 %v2719, 80
        %v4895 = vpop.permute.xlu0 %4894
        %4896 = vrot.lane.b32.xlu0 %v2720, 80
        %v4897 = vpop.permute.xlu0 %4896
        %4898 = vrot.lane.b32.xlu0 %v2721, 80
        %v4899 = vpop.permute.xlu0 %4898
        %4900 = vrot.lane.b32.xlu0 %v2722, 80
        %v4901 = vpop.permute.xlu0 %4900
        %4902 = vrot.lane.b32.xlu0 %v2723, 80
        %v4903 = vpop.permute.xlu0 %4902
        %4904 = vrot.lane.b32.xlu0 %v2724, 80
        %v4905 = vpop.permute.xlu0 %4904
        %4906 = vrot.lane.b32.xlu0 %v2725, 80
        %v4907 = vpop.permute.xlu0 %4906
        %4908 = vrot.lane.b32.xlu0 %v2726, 80
        %v4909 = vpop.permute.xlu0 %4908
        %4910 = vrot.lane.b32.xlu0 %v2727, 80
        %v4911 = vpop.permute.xlu0 %4910
        %4912 = vrot.lane.b32.xlu0 %v2728, 80
        %v4913 = vpop.permute.xlu0 %4912
        %4914 = vrot.lane.b32.xlu0 %v2729, 80
        %v4915 = vpop.permute.xlu0 %4914
        %4916 = vrot.lane.b32.xlu0 %v2730, 80
        %v4917 = vpop.permute.xlu0 %4916
        %4918 = vrot.lane.b32.xlu0 %v2731, 80
        %v4919 = vpop.permute.xlu0 %4918
        %4920 = vrot.lane.b32.xlu0 %v2732, 80
        %v4921 = vpop.permute.xlu0 %4920
        %4922 = vrot.lane.b32.xlu0 %v2733, 80
        %v4923 = vpop.permute.xlu0 %4922
        %4924 = vrot.lane.b32.xlu0 %v2734, 80
        %v4925 = vpop.permute.xlu0 %4924
        %4926 = vrot.lane.b32.xlu0 %v2735, 80
        %v4927 = vpop.permute.xlu0 %4926
        %4928 = vrot.lane.b32.xlu0 %v2736, 80
        %v4929 = vpop.permute.xlu0 %4928
        %4930 = vrot.lane.b32.xlu0 %v2737, 80
        %v4931 = vpop.permute.xlu0 %4930
        %4932 = vrot.lane.b32.xlu0 %v2738, 80
        %v4933 = vpop.permute.xlu0 %4932
        %4934 = vrot.lane.b32.xlu0 %v2739, 80
        %v4935 = vpop.permute.xlu0 %4934
        %4936 = vrot.lane.b32.xlu0 %v2740, 80
        %v4937 = vpop.permute.xlu0 %4936
        %4938 = vrot.lane.b32.xlu0 %v2741, 80
        %v4939 = vpop.permute.xlu0 %4938
        %4940 = vrot.lane.b32.xlu0 %v2742, 80
        %v4941 = vpop.permute.xlu0 %4940
        %4942 = vrot.lane.b32.xlu0 %v2743, 80
        %v4943 = vpop.permute.xlu0 %4942
        %4944 = vrot.lane.b32.xlu0 %v2744, 80
        %v4945 = vpop.permute.xlu0 %4944
        %4946 = vrot.lane.b32.xlu0 %v2745, 80
        %v4947 = vpop.permute.xlu0 %4946
        %4948 = vrot.lane.b32.xlu0 %v2746, 80
        %v4949 = vpop.permute.xlu0 %4948
        %4950 = vrot.lane.b32.xlu0 %v2747, 80
        %v4951 = vpop.permute.xlu0 %4950
        %4952 = vrot.lane.b32.xlu0 %v2748, 80
        %v4953 = vpop.permute.xlu0 %4952
        %4954 = vrot.lane.b32.xlu0 %v2749, 80
        %v4955 = vpop.permute.xlu0 %4954
        %4956 = vrot.lane.b32.xlu0 %v2750, 80
        %v4957 = vpop.permute.xlu0 %4956
        %4958 = vrot.lane.b32.xlu0 %v2751, 80
        %v4959 = vpop.permute.xlu0 %4958
        %4960 = vrot.lane.b32.xlu0 %v2752, 80
        %v4961 = vpop.permute.xlu0 %4960
        %4962 = vrot.lane.b32.xlu0 %v2753, 80
        %v4963 = vpop.permute.xlu0 %4962
        %4964 = vrot.lane.b32.xlu0 %v2754, 80
        %v4965 = vpop.permute.xlu0 %4964
        %4966 = vrot.lane.b32.xlu0 %v2755, 80
        %v4967 = vpop.permute.xlu0 %4966
        %4968 = vrot.lane.b32.xlu0 %v2756, 80
        %v4969 = vpop.permute.xlu0 %4968
        %4970 = vrot.lane.b32.xlu0 %v2757, 80
        %v4971 = vpop.permute.xlu0 %4970
        %4972 = vrot.lane.b32.xlu0 %v2758, 80
        %v4973 = vpop.permute.xlu0 %4972
        %4974 = vrot.lane.b32.xlu0 %v2759, 80
        %v4975 = vpop.permute.xlu0 %4974
        %4976 = vrot.lane.b32.xlu0 %v2760, 80
        %v4977 = vpop.permute.xlu0 %4976
        %4978 = vrot.lane.b32.xlu0 %v2761, 80
        %v4979 = vpop.permute.xlu0 %4978
        %4980 = vrot.lane.b32.xlu0 %v2762, 80
        %v4981 = vpop.permute.xlu0 %4980
        %4982 = vrot.lane.b32.xlu0 %v2763, 80
        %v4983 = vpop.permute.xlu0 %4982
        %4984 = vrot.lane.b32.xlu0 %v2764, 80
        %v4985 = vpop.permute.xlu0 %4984
        %4986 = vrot.lane.b32.xlu0 %v2765, 80
        %v4987 = vpop.permute.xlu0 %4986
        %v4988 = vrot.slane %v4861, 2
        %v4989 = vrot.slane %v4863, 2
        %v4990 = vrot.slane %v4865, 2
        %v4991 = vrot.slane %v4867, 2
        %v4992 = vrot.slane %v4869, 2
        %v4993 = vrot.slane %v4871, 2
        %v4994 = vrot.slane %v4873, 2
        %v4995 = vrot.slane %v4875, 2
        %v4996 = vrot.slane %v4877, 2
        %v4997 = vrot.slane %v4879, 2
        %v4998 = vrot.slane %v4881, 2
        %v4999 = vrot.slane %v4883, 2
        %v5000 = vrot.slane %v4885, 2
        %v5001 = vrot.slane %v4887, 2
        %v5002 = vrot.slane %v4889, 2
        %v5003 = vrot.slane %v4891, 2
        %v5004 = vrot.slane %v4893, 2
        %v5005 = vrot.slane %v4895, 2
        %v5006 = vrot.slane %v4897, 2
        %v5007 = vrot.slane %v4899, 2
        %v5008 = vrot.slane %v4901, 2
        %v5009 = vrot.slane %v4903, 2
        %v5010 = vrot.slane %v4905, 2
        %v5011 = vrot.slane %v4907, 2
        %v5012 = vrot.slane %v4909, 2
        %v5013 = vrot.slane %v4911, 2
        %v5014 = vrot.slane %v4913, 2
        %v5015 = vrot.slane %v4915, 2
        %v5016 = vrot.slane %v4917, 2
        %v5017 = vrot.slane %v4919, 2
        %v5018 = vrot.slane %v4921, 2
        %v5019 = vrot.slane %v4923, 2
        %v5020 = vrot.slane %v4925, 2
        %v5021 = vrot.slane %v4927, 2
        %v5022 = vrot.slane %v4929, 2
        %v5023 = vrot.slane %v4931, 2
        %v5024 = vrot.slane %v4933, 2
        %v5025 = vrot.slane %v4935, 2
        %v5026 = vrot.slane %v4937, 2
        %v5027 = vrot.slane %v4939, 2
        %v5028 = vrot.slane %v4941, 2
        %v5029 = vrot.slane %v4943, 2
        %v5030 = vrot.slane %v4945, 2
        %v5031 = vrot.slane %v4947, 2
        %v5032 = vrot.slane %v4949, 2
        %v5033 = vrot.slane %v4951, 2
        %v5034 = vrot.slane %v4953, 2
        %v5035 = vrot.slane %v4955, 2
        %v5036 = vrot.slane %v4957, 2
        %v5037 = vrot.slane %v4959, 2
        %v5038 = vrot.slane %v4961, 2
        %v5039 = vrot.slane %v4963, 2
        %v5040 = vrot.slane %v4965, 2
        %v5041 = vrot.slane %v4967, 2
        %v5042 = vrot.slane %v4969, 2
        %v5043 = vrot.slane %v4971, 2
        %v5044 = vrot.slane %v4973, 2
        %v5045 = vrot.slane %v4975, 2
        %v5046 = vrot.slane %v4977, 2
        %v5047 = vrot.slane %v4979, 2
        %v5048 = vrot.slane %v4981, 2
        %v5049 = vrot.slane %v4983, 2
        %v5050 = vrot.slane %v4985, 2
        %v5051 = vrot.slane %v4987, 2
        %v5116 = vmax.f32 %v4732, %v4988
        %v5117 = vmax.f32 %v4733, %v4989
        %v5118 = vmax.f32 %v4734, %v4990
        %v5119 = vmax.f32 %v4735, %v4991
        %v5120 = vmax.f32 %v4736, %v4992
        %v5121 = vmax.f32 %v4737, %v4993
        %v5122 = vmax.f32 %v4738, %v4994
        %v5123 = vmax.f32 %v4739, %v4995
        %v5124 = vmax.f32 %v4740, %v4996
        %v5125 = vmax.f32 %v4741, %v4997
        %v5126 = vmax.f32 %v4742, %v4998
        %v5127 = vmax.f32 %v4743, %v4999
        %v5128 = vmax.f32 %v4744, %v5000
        %v5129 = vmax.f32 %v4745, %v5001
        %v5130 = vmax.f32 %v4746, %v5002
        %v5131 = vmax.f32 %v4747, %v5003
        %v5132 = vmax.f32 %v4748, %v5004
        %v5133 = vmax.f32 %v4749, %v5005
        %v5134 = vmax.f32 %v4750, %v5006
        %v5135 = vmax.f32 %v4751, %v5007
        %v5136 = vmax.f32 %v4752, %v5008
        %v5137 = vmax.f32 %v4753, %v5009
        %v5138 = vmax.f32 %v4754, %v5010
        %v5139 = vmax.f32 %v4755, %v5011
        %v5140 = vmax.f32 %v4756, %v5012
        %v5141 = vmax.f32 %v4757, %v5013
        %v5142 = vmax.f32 %v4758, %v5014
        %v5143 = vmax.f32 %v4759, %v5015
        %v5144 = vmax.f32 %v4760, %v5016
        %v5145 = vmax.f32 %v4761, %v5017
        %v5146 = vmax.f32 %v4762, %v5018
        %v5147 = vmax.f32 %v4763, %v5019
        %v5148 = vmax.f32 %v4764, %v5020
        %v5149 = vmax.f32 %v4765, %v5021
        %v5150 = vmax.f32 %v4766, %v5022
        %v5151 = vmax.f32 %v4767, %v5023
        %v5152 = vmax.f32 %v4768, %v5024
        %v5153 = vmax.f32 %v4769, %v5025
        %v5154 = vmax.f32 %v4770, %v5026
        %v5155 = vmax.f32 %v4771, %v5027
        %v5156 = vmax.f32 %v4772, %v5028
        %v5157 = vmax.f32 %v4773, %v5029
        %v5158 = vmax.f32 %v4774, %v5030
        %v5159 = vmax.f32 %v4775, %v5031
        %v5160 = vmax.f32 %v4776, %v5032
        %v5161 = vmax.f32 %v4777, %v5033
        %v5162 = vmax.f32 %v4778, %v5034
        %v5163 = vmax.f32 %v4779, %v5035
        %v5164 = vmax.f32 %v4780, %v5036
        %v5165 = vmax.f32 %v4781, %v5037
        %v5166 = vmax.f32 %v4782, %v5038
        %v5167 = vmax.f32 %v4783, %v5039
        %v5168 = vmax.f32 %v4784, %v5040
        %v5169 = vmax.f32 %v4785, %v5041
        %v5170 = vmax.f32 %v4786, %v5042
        %v5171 = vmax.f32 %v4787, %v5043
        %v5172 = vmax.f32 %v4788, %v5044
        %v5173 = vmax.f32 %v4789, %v5045
        %v5174 = vmax.f32 %v4790, %v5046
        %v5175 = vmax.f32 %v4791, %v5047
        %v5176 = vmax.f32 %v4792, %v5048
        %v5177 = vmax.f32 %v4793, %v5049
        %v5178 = vmax.f32 %v4794, %v5050
        %v5179 = vmax.f32 %v4795, %v5051
        %v5180 = vpack.c.bf16 %v5116, %v5116
        %v5181 = vpack.c.bf16 %v5117, %v5117
        %v5182 = vpack.c.bf16 %v5118, %v5118
        %v5183 = vpack.c.bf16 %v5119, %v5119
        %v5184 = vpack.c.bf16 %v5120, %v5120
        %v5185 = vpack.c.bf16 %v5121, %v5121
        %v5186 = vpack.c.bf16 %v5122, %v5122
        %v5187 = vpack.c.bf16 %v5123, %v5123
        %v5188 = vpack.c.bf16 %v5124, %v5124
        %v5189 = vpack.c.bf16 %v5125, %v5125
        %v5190 = vpack.c.bf16 %v5126, %v5126
        %v5191 = vpack.c.bf16 %v5127, %v5127
        %v5192 = vpack.c.bf16 %v5128, %v5128
        %v5193 = vpack.c.bf16 %v5129, %v5129
        %v5194 = vpack.c.bf16 %v5130, %v5130
        %v5195 = vpack.c.bf16 %v5131, %v5131
        %v5196 = vpack.c.bf16 %v5132, %v5132
        %v5197 = vpack.c.bf16 %v5133, %v5133
        %v5198 = vpack.c.bf16 %v5134, %v5134
        %v5199 = vpack.c.bf16 %v5135, %v5135
        %v5200 = vpack.c.bf16 %v5136, %v5136
        %v5201 = vpack.c.bf16 %v5137, %v5137
        %v5202 = vpack.c.bf16 %v5138, %v5138
        %v5203 = vpack.c.bf16 %v5139, %v5139
        %v5204 = vpack.c.bf16 %v5140, %v5140
        %v5205 = vpack.c.bf16 %v5141, %v5141
        %v5206 = vpack.c.bf16 %v5142, %v5142
        %v5207 = vpack.c.bf16 %v5143, %v5143
        %v5208 = vpack.c.bf16 %v5144, %v5144
        %v5209 = vpack.c.bf16 %v5145, %v5145
        %v5210 = vpack.c.bf16 %v5146, %v5146
        %v5211 = vpack.c.bf16 %v5147, %v5147
        %v5212 = vpack.c.bf16 %v5148, %v5148
        %v5213 = vpack.c.bf16 %v5149, %v5149
        %v5214 = vpack.c.bf16 %v5150, %v5150
        %v5215 = vpack.c.bf16 %v5151, %v5151
        %v5216 = vpack.c.bf16 %v5152, %v5152
        %v5217 = vpack.c.bf16 %v5153, %v5153
        %v5218 = vpack.c.bf16 %v5154, %v5154
        %v5219 = vpack.c.bf16 %v5155, %v5155
        %v5220 = vpack.c.bf16 %v5156, %v5156
        %v5221 = vpack.c.bf16 %v5157, %v5157
        %v5222 = vpack.c.bf16 %v5158, %v5158
        %v5223 = vpack.c.bf16 %v5159, %v5159
        %v5224 = vpack.c.bf16 %v5160, %v5160
        %v5225 = vpack.c.bf16 %v5161, %v5161
        %v5226 = vpack.c.bf16 %v5162, %v5162
        %v5227 = vpack.c.bf16 %v5163, %v5163
        %v5228 = vpack.c.bf16 %v5164, %v5164
        %v5229 = vpack.c.bf16 %v5165, %v5165
        %v5230 = vpack.c.bf16 %v5166, %v5166
        %v5231 = vpack.c.bf16 %v5167, %v5167
        %v5232 = vpack.c.bf16 %v5168, %v5168
        %v5233 = vpack.c.bf16 %v5169, %v5169
        %v5234 = vpack.c.bf16 %v5170, %v5170
        %v5235 = vpack.c.bf16 %v5171, %v5171
        %v5236 = vpack.c.bf16 %v5172, %v5172
        %v5237 = vpack.c.bf16 %v5173, %v5173
        %v5238 = vpack.c.bf16 %v5174, %v5174
        %v5239 = vpack.c.bf16 %v5175, %v5175
        %v5240 = vpack.c.bf16 %v5176, %v5176
        %v5241 = vpack.c.bf16 %v5177, %v5177
        %v5242 = vpack.c.bf16 %v5178, %v5178
        %v5243 = vpack.c.bf16 %v5179, %v5179
        %v5308 = vunpack.c.l.b16 %v5180
        %v5309 = vunpack.c.l.b16 %v5181
        %v5310 = vunpack.c.l.b16 %v5182
        %v5311 = vunpack.c.l.b16 %v5183
        %v5312 = vunpack.c.l.b16 %v5184
        %v5313 = vunpack.c.l.b16 %v5185
        %v5314 = vunpack.c.l.b16 %v5186
        %v5315 = vunpack.c.l.b16 %v5187
        %v5316 = vunpack.c.l.b16 %v5188
        %v5317 = vunpack.c.l.b16 %v5189
        %v5318 = vunpack.c.l.b16 %v5190
        %v5319 = vunpack.c.l.b16 %v5191
        %v5320 = vunpack.c.l.b16 %v5192
        %v5321 = vunpack.c.l.b16 %v5193
        %v5322 = vunpack.c.l.b16 %v5194
        %v5323 = vunpack.c.l.b16 %v5195
        %v5324 = vunpack.c.l.b16 %v5196
        %v5325 = vunpack.c.l.b16 %v5197
        %v5326 = vunpack.c.l.b16 %v5198
        %v5327 = vunpack.c.l.b16 %v5199
        %v5328 = vunpack.c.l.b16 %v5200
        %v5329 = vunpack.c.l.b16 %v5201
        %v5330 = vunpack.c.l.b16 %v5202
        %v5331 = vunpack.c.l.b16 %v5203
        %v5332 = vunpack.c.l.b16 %v5204
        %v5333 = vunpack.c.l.b16 %v5205
        %v5334 = vunpack.c.l.b16 %v5206
        %v5335 = vunpack.c.l.b16 %v5207
        %v5336 = vunpack.c.l.b16 %v5208
        %v5337 = vunpack.c.l.b16 %v5209
        %v5338 = vunpack.c.l.b16 %v5210
        %v5339 = vunpack.c.l.b16 %v5211
        %v5340 = vunpack.c.l.b16 %v5212
        %v5341 = vunpack.c.l.b16 %v5213
        %v5342 = vunpack.c.l.b16 %v5214
        %v5343 = vunpack.c.l.b16 %v5215
        %v5344 = vunpack.c.l.b16 %v5216
        %v5345 = vunpack.c.l.b16 %v5217
        %v5346 = vunpack.c.l.b16 %v5218
        %v5347 = vunpack.c.l.b16 %v5219
        %v5348 = vunpack.c.l.b16 %v5220
        %v5349 = vunpack.c.l.b16 %v5221
        %v5350 = vunpack.c.l.b16 %v5222
        %v5351 = vunpack.c.l.b16 %v5223
        %v5352 = vunpack.c.l.b16 %v5224
        %v5353 = vunpack.c.l.b16 %v5225
        %v5354 = vunpack.c.l.b16 %v5226
        %v5355 = vunpack.c.l.b16 %v5227
        %v5356 = vunpack.c.l.b16 %v5228
        %v5357 = vunpack.c.l.b16 %v5229
        %v5358 = vunpack.c.l.b16 %v5230
        %v5359 = vunpack.c.l.b16 %v5231
        %v5360 = vunpack.c.l.b16 %v5232
        %v5361 = vunpack.c.l.b16 %v5233
        %v5362 = vunpack.c.l.b16 %v5234
        %v5363 = vunpack.c.l.b16 %v5235
        %v5364 = vunpack.c.l.b16 %v5236
        %v5365 = vunpack.c.l.b16 %v5237
        %v5366 = vunpack.c.l.b16 %v5238
        %v5367 = vunpack.c.l.b16 %v5239
        %v5368 = vunpack.c.l.b16 %v5240
        %v5369 = vunpack.c.l.b16 %v5241
        %v5370 = vunpack.c.l.b16 %v5242
        %v5371 = vunpack.c.l.b16 %v5243
        %v5372 = vpack.c.b16 %v5308, %v5308
        %v5373 = vpack.c.b16 %v5309, %v5309
        %v5374 = vpack.c.b16 %v5310, %v5310
        %v5375 = vpack.c.b16 %v5311, %v5311
        %v5376 = vpack.c.b16 %v5312, %v5312
        %v5377 = vpack.c.b16 %v5313, %v5313
        %v5378 = vpack.c.b16 %v5314, %v5314
        %v5379 = vpack.c.b16 %v5315, %v5315
        %v5380 = vpack.c.b16 %v5316, %v5316
        %v5381 = vpack.c.b16 %v5317, %v5317
        %v5382 = vpack.c.b16 %v5318, %v5318
        %v5383 = vpack.c.b16 %v5319, %v5319
        %v5384 = vpack.c.b16 %v5320, %v5320
        %v5385 = vpack.c.b16 %v5321, %v5321
        %v5386 = vpack.c.b16 %v5322, %v5322
        %v5387 = vpack.c.b16 %v5323, %v5323
        %v5388 = vpack.c.b16 %v5324, %v5324
        %v5389 = vpack.c.b16 %v5325, %v5325
        %v5390 = vpack.c.b16 %v5326, %v5326
        %v5391 = vpack.c.b16 %v5327, %v5327
        %v5392 = vpack.c.b16 %v5328, %v5328
        %v5393 = vpack.c.b16 %v5329, %v5329
        %v5394 = vpack.c.b16 %v5330, %v5330
        %v5395 = vpack.c.b16 %v5331, %v5331
        %v5396 = vpack.c.b16 %v5332, %v5332
        %v5397 = vpack.c.b16 %v5333, %v5333
        %v5398 = vpack.c.b16 %v5334, %v5334
        %v5399 = vpack.c.b16 %v5335, %v5335
        %v5400 = vpack.c.b16 %v5336, %v5336
        %v5401 = vpack.c.b16 %v5337, %v5337
        %v5402 = vpack.c.b16 %v5338, %v5338
        %v5403 = vpack.c.b16 %v5339, %v5339
        %v5404 = vpack.c.b16 %v5340, %v5340
        %v5405 = vpack.c.b16 %v5341, %v5341
        %v5406 = vpack.c.b16 %v5342, %v5342
        %v5407 = vpack.c.b16 %v5343, %v5343
        %v5408 = vpack.c.b16 %v5344, %v5344
        %v5409 = vpack.c.b16 %v5345, %v5345
        %v5410 = vpack.c.b16 %v5346, %v5346
        %v5411 = vpack.c.b16 %v5347, %v5347
        %v5412 = vpack.c.b16 %v5348, %v5348
        %v5413 = vpack.c.b16 %v5349, %v5349
        %v5414 = vpack.c.b16 %v5350, %v5350
        %v5415 = vpack.c.b16 %v5351, %v5351
        %v5416 = vpack.c.b16 %v5352, %v5352
        %v5417 = vpack.c.b16 %v5353, %v5353
        %v5418 = vpack.c.b16 %v5354, %v5354
        %v5419 = vpack.c.b16 %v5355, %v5355
        %v5420 = vpack.c.b16 %v5356, %v5356
        %v5421 = vpack.c.b16 %v5357, %v5357
        %v5422 = vpack.c.b16 %v5358, %v5358
        %v5423 = vpack.c.b16 %v5359, %v5359
        %v5424 = vpack.c.b16 %v5360, %v5360
        %v5425 = vpack.c.b16 %v5361, %v5361
        %v5426 = vpack.c.b16 %v5362, %v5362
        %v5427 = vpack.c.b16 %v5363, %v5363
        %v5428 = vpack.c.b16 %v5364, %v5364
        %v5429 = vpack.c.b16 %v5365, %v5365
        %v5430 = vpack.c.b16 %v5366, %v5366
        %v5431 = vpack.c.b16 %v5367, %v5367
        %v5432 = vpack.c.b16 %v5368, %v5368
        %v5433 = vpack.c.b16 %v5369, %v5369
        %v5434 = vpack.c.b16 %v5370, %v5370
        %v5435 = vpack.c.b16 %v5371, %v5371
        %v5436 = vunpack.c.l.b16 %v5372
        %v5437 = vunpack.c.l.b16 %v5373
        %v5438 = vunpack.c.l.b16 %v5374
        %v5439 = vunpack.c.l.b16 %v5375
        %v5440 = vunpack.c.l.b16 %v5376
        %v5441 = vunpack.c.l.b16 %v5377
        %v5442 = vunpack.c.l.b16 %v5378
        %v5443 = vunpack.c.l.b16 %v5379
        %v5444 = vunpack.c.l.b16 %v5380
        %v5445 = vunpack.c.l.b16 %v5381
        %v5446 = vunpack.c.l.b16 %v5382
        %v5447 = vunpack.c.l.b16 %v5383
        %v5448 = vunpack.c.l.b16 %v5384
        %v5449 = vunpack.c.l.b16 %v5385
        %v5450 = vunpack.c.l.b16 %v5386
        %v5451 = vunpack.c.l.b16 %v5387
        %v5452 = vunpack.c.l.b16 %v5388
        %v5453 = vunpack.c.l.b16 %v5389
        %v5454 = vunpack.c.l.b16 %v5390
        %v5455 = vunpack.c.l.b16 %v5391
        %v5456 = vunpack.c.l.b16 %v5392
        %v5457 = vunpack.c.l.b16 %v5393
        %v5458 = vunpack.c.l.b16 %v5394
        %v5459 = vunpack.c.l.b16 %v5395
        %v5460 = vunpack.c.l.b16 %v5396
        %v5461 = vunpack.c.l.b16 %v5397
        %v5462 = vunpack.c.l.b16 %v5398
        %v5463 = vunpack.c.l.b16 %v5399
        %v5464 = vunpack.c.l.b16 %v5400
        %v5465 = vunpack.c.l.b16 %v5401
        %v5466 = vunpack.c.l.b16 %v5402
        %v5467 = vunpack.c.l.b16 %v5403
        %v5468 = vunpack.c.l.b16 %v5404
        %v5469 = vunpack.c.l.b16 %v5405
        %v5470 = vunpack.c.l.b16 %v5406
        %v5471 = vunpack.c.l.b16 %v5407
        %v5472 = vunpack.c.l.b16 %v5408
        %v5473 = vunpack.c.l.b16 %v5409
        %v5474 = vunpack.c.l.b16 %v5410
        %v5475 = vunpack.c.l.b16 %v5411
        %v5476 = vunpack.c.l.b16 %v5412
        %v5477 = vunpack.c.l.b16 %v5413
        %v5478 = vunpack.c.l.b16 %v5414
        %v5479 = vunpack.c.l.b16 %v5415
        %v5480 = vunpack.c.l.b16 %v5416
        %v5481 = vunpack.c.l.b16 %v5417
        %v5482 = vunpack.c.l.b16 %v5418
        %v5483 = vunpack.c.l.b16 %v5419
        %v5484 = vunpack.c.l.b16 %v5420
        %v5485 = vunpack.c.l.b16 %v5421
        %v5486 = vunpack.c.l.b16 %v5422
        %v5487 = vunpack.c.l.b16 %v5423
        %v5488 = vunpack.c.l.b16 %v5424
        %v5489 = vunpack.c.l.b16 %v5425
        %v5490 = vunpack.c.l.b16 %v5426
        %v5491 = vunpack.c.l.b16 %v5427
        %v5492 = vunpack.c.l.b16 %v5428
        %v5493 = vunpack.c.l.b16 %v5429
        %v5494 = vunpack.c.l.b16 %v5430
        %v5495 = vunpack.c.l.b16 %v5431
        %v5496 = vunpack.c.l.b16 %v5432
        %v5497 = vunpack.c.l.b16 %v5433
        %v5498 = vunpack.c.l.b16 %v5434
        %v5499 = vunpack.c.l.b16 %v5435
        %v5500 = vrot.slane %v5436, 6
        %v5501 = vrot.slane %v5437, 5
        %v5502 = vsel %vm3424, %v5501, %v5500
        %v5503 = vrot.slane %v5438, 4
        %v5504 = vsel %vm3427, %v5503, %v5502
        %v5505 = vrot.slane %v5439, 3
        %v5506 = vsel %vm3430, %v5505, %v5504
        %v5507 = vrot.slane %v5440, 2
        %v5508 = vsel %vm3433, %v5507, %v5506
        %v5509 = vrot.slane %v5441, 1
        %v5510 = vsel %vm3436, %v5509, %v5508
        %v5511 = vrot.slane %v5443, 7
        %v5512 = vsel %vm3439, %v5511, %v5442
        %v5513 = vrot.slane %v5444, 6
        %v5514 = vrot.slane %v5445, 5
        %v5515 = vsel %vm3424, %v5514, %v5513
        %v5516 = vrot.slane %v5446, 4
        %v5517 = vsel %vm3427, %v5516, %v5515
        %v5518 = vrot.slane %v5447, 3
        %v5519 = vsel %vm3430, %v5518, %v5517
        %v5520 = vrot.slane %v5448, 2
        %v5521 = vsel %vm3433, %v5520, %v5519
        %v5522 = vrot.slane %v5449, 1
        %v5523 = vsel %vm3436, %v5522, %v5521
        %v5524 = vrot.slane %v5451, 7
        %v5525 = vsel %vm3439, %v5524, %v5450
        %v5526 = vrot.slane %v5452, 6
        %v5527 = vrot.slane %v5453, 5
        %v5528 = vsel %vm3424, %v5527, %v5526
        %v5529 = vrot.slane %v5454, 4
        %v5530 = vsel %vm3427, %v5529, %v5528
        %v5531 = vrot.slane %v5455, 3
        %v5532 = vsel %vm3430, %v5531, %v5530
        %v5533 = vrot.slane %v5456, 2
        %v5534 = vsel %vm3433, %v5533, %v5532
        %v5535 = vrot.slane %v5457, 1
        %v5536 = vsel %vm3436, %v5535, %v5534
        %v5537 = vrot.slane %v5459, 7
        %v5538 = vsel %vm3439, %v5537, %v5458
        %v5539 = vrot.slane %v5460, 6
        %v5540 = vrot.slane %v5461, 5
        %v5541 = vsel %vm3424, %v5540, %v5539
        %v5542 = vrot.slane %v5462, 4
        %v5543 = vsel %vm3427, %v5542, %v5541
        %v5544 = vrot.slane %v5463, 3
        %v5545 = vsel %vm3430, %v5544, %v5543
        %v5546 = vrot.slane %v5464, 2
        %v5547 = vsel %vm3433, %v5546, %v5545
        %v5548 = vrot.slane %v5465, 1
        %v5549 = vsel %vm3436, %v5548, %v5547
        %v5550 = vrot.slane %v5467, 7
        %v5551 = vsel %vm3439, %v5550, %v5466
        %v5552 = vrot.slane %v5468, 6
        %v5553 = vrot.slane %v5469, 5
        %v5554 = vsel %vm3424, %v5553, %v5552
        %v5555 = vrot.slane %v5470, 4
        %v5556 = vsel %vm3427, %v5555, %v5554
        %v5557 = vrot.slane %v5471, 3
        %v5558 = vsel %vm3430, %v5557, %v5556
        %v5559 = vrot.slane %v5472, 2
        %v5560 = vsel %vm3433, %v5559, %v5558
        %v5561 = vrot.slane %v5473, 1
        %v5562 = vsel %vm3436, %v5561, %v5560
        %v5563 = vrot.slane %v5475, 7
        %v5564 = vsel %vm3439, %v5563, %v5474
        %v5565 = vrot.slane %v5476, 6
        %v5566 = vrot.slane %v5477, 5
        %v5567 = vsel %vm3424, %v5566, %v5565
        %v5568 = vrot.slane %v5478, 4
        %v5569 = vsel %vm3427, %v5568, %v5567
        %v5570 = vrot.slane %v5479, 3
        %v5571 = vsel %vm3430, %v5570, %v5569
        %v5572 = vrot.slane %v5480, 2
        %v5573 = vsel %vm3433, %v5572, %v5571
        %v5574 = vrot.slane %v5481, 1
        %v5575 = vsel %vm3436, %v5574, %v5573
        %v5576 = vrot.slane %v5483, 7
        %v5577 = vsel %vm3439, %v5576, %v5482
        %v5578 = vrot.slane %v5484, 6
        %v5579 = vrot.slane %v5485, 5
        %v5580 = vsel %vm3424, %v5579, %v5578
        %v5581 = vrot.slane %v5486, 4
        %v5582 = vsel %vm3427, %v5581, %v5580
        %v5583 = vrot.slane %v5487, 3
        %v5584 = vsel %vm3430, %v5583, %v5582
        %v5585 = vrot.slane %v5488, 2
        %v5586 = vsel %vm3433, %v5585, %v5584
        %v5587 = vrot.slane %v5489, 1
        %v5588 = vsel %vm3436, %v5587, %v5586
        %v5589 = vrot.slane %v5491, 7
        %v5590 = vsel %vm3439, %v5589, %v5490
        %v5591 = vrot.slane %v5492, 6
        %v5592 = vrot.slane %v5493, 5
        %v5593 = vsel %vm3424, %v5592, %v5591
        %v5594 = vrot.slane %v5494, 4
        %v5595 = vsel %vm3427, %v5594, %v5593
        %v5596 = vrot.slane %v5495, 3
        %v5597 = vsel %vm3430, %v5596, %v5595
        %v5598 = vrot.slane %v5496, 2
        %v5599 = vsel %vm3433, %v5598, %v5597
        %v5600 = vrot.slane %v5497, 1
        %v5601 = vsel %vm3436, %v5600, %v5599
        %v5602 = vrot.slane %v5499, 7
        %v5603 = vsel %vm3439, %v5602, %v5498
        %v5604 = vpack.c.b16 %v5510, %v5510
        %v5605 = vpack.c.b16 %v5512, %v5512
        %v5606 = vpack.c.b16 %v5523, %v5523
        %v5607 = vpack.c.b16 %v5525, %v5525
        %v5608 = vpack.c.b16 %v5536, %v5536
        %v5609 = vpack.c.b16 %v5538, %v5538
        %v5610 = vpack.c.b16 %v5549, %v5549
        %v5611 = vpack.c.b16 %v5551, %v5551
        %v5612 = vpack.c.b16 %v5562, %v5562
        %v5613 = vpack.c.b16 %v5564, %v5564
        %v5614 = vpack.c.b16 %v5575, %v5575
        %v5615 = vpack.c.b16 %v5577, %v5577
        %v5616 = vpack.c.b16 %v5588, %v5588
        %v5617 = vpack.c.b16 %v5590, %v5590
        %v5618 = vpack.c.b16 %v5601, %v5601
        %v5619 = vpack.c.b16 %v5603, %v5603
        %5620 = vrot.lane.b32.xlu0 %v5604, 80
        %v5621 = vpop.permute.xlu0 %5620
        %5622 = vrot.lane.b32.xlu0 %v5605, 80
        %v5623 = vpop.permute.xlu0 %5622
        %5624 = vrot.lane.b32.xlu0 %v5606, 80
        %v5625 = vpop.permute.xlu0 %5624
        %5626 = vrot.lane.b32.xlu0 %v5607, 80
        %v5627 = vpop.permute.xlu0 %5626
        %5628 = vrot.lane.b32.xlu0 %v5608, 80
        %v5629 = vpop.permute.xlu0 %5628
        %5630 = vrot.lane.b32.xlu0 %v5609, 80
        %v5631 = vpop.permute.xlu0 %5630
        %5632 = vrot.lane.b32.xlu0 %v5610, 80
        %v5633 = vpop.permute.xlu0 %5632
        %5634 = vrot.lane.b32.xlu0 %v5611, 80
        %v5635 = vpop.permute.xlu0 %5634
        %5636 = vrot.lane.b32.xlu0 %v5612, 80
        %v5637 = vpop.permute.xlu0 %5636
        %5638 = vrot.lane.b32.xlu0 %v5613, 80
        %v5639 = vpop.permute.xlu0 %5638
        %5640 = vrot.lane.b32.xlu0 %v5614, 80
        %v5641 = vpop.permute.xlu0 %5640
        %5642 = vrot.lane.b32.xlu0 %v5615, 80
        %v5643 = vpop.permute.xlu0 %5642
        %5644 = vrot.lane.b32.xlu0 %v5616, 80
        %v5645 = vpop.permute.xlu0 %5644
        %5646 = vrot.lane.b32.xlu0 %v5617, 80
        %v5647 = vpop.permute.xlu0 %5646
        %5648 = vrot.lane.b32.xlu0 %v5618, 80
        %v5649 = vpop.permute.xlu0 %5648
        %5650 = vrot.lane.b32.xlu0 %v5619, 80
        %v5651 = vpop.permute.xlu0 %5650
        %vm5668 = vcmask 781953
        %5669 = vst.msk [vmem:[#allocation3] sm:$0xe] %vm5668, %v5621
        %vm5670 = vcmask 778880
        %5671 = vst.msk [vmem:[#allocation3 + $0x4] sm:$0x1] %vm5670, %v5623
        %5672 = vst.msk [vmem:[#allocation3 + $0x8] sm:$0xe] %vm5668, %v5625
        %5673 = vst.msk [vmem:[#allocation3 + $0xc] sm:$0x1] %vm5670, %v5627
        %5674 = vst.msk [vmem:[#allocation3 + $0x10] sm:$0xe] %vm5668, %v5629
        %5675 = vst.msk [vmem:[#allocation3 + $0x14] sm:$0x1] %vm5670, %v5631
        %5676 = vst.msk [vmem:[#allocation3 + $0x18] sm:$0xe] %vm5668, %v5633
        %5677 = vst.msk [vmem:[#allocation3 + $0x1c] sm:$0x1] %vm5670, %v5635
        %5678 = vst.msk [vmem:[#allocation3 + $0x20] sm:$0xe] %vm5668, %v5637
        %5679 = vst.msk [vmem:[#allocation3 + $0x24] sm:$0x1] %vm5670, %v5639
        %5680 = vst.msk [vmem:[#allocation3 + $0x28] sm:$0xe] %vm5668, %v5641
        %5681 = vst.msk [vmem:[#allocation3 + $0x2c] sm:$0x1] %vm5670, %v5643
        %5682 = vst.msk [vmem:[#allocation3 + $0x30] sm:$0xe] %vm5668, %v5645
        %5683 = vst.msk [vmem:[#allocation3 + $0x34] sm:$0x1] %vm5670, %v5647
        %5684 = vst.msk [vmem:[#allocation3 + $0x38] sm:$0xe] %vm5668, %v5649
        %5685 = vst.msk [vmem:[#allocation3 + $0x3c] sm:$0x1] %vm5670, %v5651
        %5686 = vrot.lane.b32.xlu0 %v2702, 64
        %v5687 = vpop.permute.xlu0 %5686
        %5688 = vrot.lane.b32.xlu0 %v2703, 64
        %v5689 = vpop.permute.xlu0 %5688
        %5690 = vrot.lane.b32.xlu0 %v2704, 64
        %v5691 = vpop.permute.xlu0 %5690
        %5692 = vrot.lane.b32.xlu0 %v2705, 64
        %v5693 = vpop.permute.xlu0 %5692
        %5694 = vrot.lane.b32.xlu0 %v2706, 64
        %v5695 = vpop.permute.xlu0 %5694
        %5696 = vrot.lane.b32.xlu0 %v2707, 64
        %v5697 = vpop.permute.xlu0 %5696
        %5698 = vrot.lane.b32.xlu0 %v2708, 64
        %v5699 = vpop.permute.xlu0 %5698
        %5700 = vrot.lane.b32.xlu0 %v2709, 64
        %v5701 = vpop.permute.xlu0 %5700
        %5702 = vrot.lane.b32.xlu0 %v2710, 64
        %v5703 = vpop.permute.xlu0 %5702
        %5704 = vrot.lane.b32.xlu0 %v2711, 64
        %v5705 = vpop.permute.xlu0 %5704
        %5706 = vrot.lane.b32.xlu0 %v2712, 64
        %v5707 = vpop.permute.xlu0 %5706
        %5708 = vrot.lane.b32.xlu0 %v2713, 64
        %v5709 = vpop.permute.xlu0 %5708
        %5710 = vrot.lane.b32.xlu0 %v2714, 64
        %v5711 = vpop.permute.xlu0 %5710
        %5712 = vrot.lane.b32.xlu0 %v2715, 64
        %v5713 = vpop.permute.xlu0 %5712
        %5714 = vrot.lane.b32.xlu0 %v2716, 64
        %v5715 = vpop.permute.xlu0 %5714
        %5716 = vrot.lane.b32.xlu0 %v2717, 64
        %v5717 = vpop.permute.xlu0 %5716
        %5718 = vrot.lane.b32.xlu0 %v2718, 64
        %v5719 = vpop.permute.xlu0 %5718
        %5720 = vrot.lane.b32.xlu0 %v2719, 64
        %v5721 = vpop.permute.xlu0 %5720
        %5722 = vrot.lane.b32.xlu0 %v2720, 64
        %v5723 = vpop.permute.xlu0 %5722
        %5724 = vrot.lane.b32.xlu0 %v2721, 64
        %v5725 = vpop.permute.xlu0 %5724
        %5726 = vrot.lane.b32.xlu0 %v2722, 64
        %v5727 = vpop.permute.xlu0 %5726
        %5728 = vrot.lane.b32.xlu0 %v2723, 64
        %v5729 = vpop.permute.xlu0 %5728
        %5730 = vrot.lane.b32.xlu0 %v2724, 64
        %v5731 = vpop.permute.xlu0 %5730
        %5732 = vrot.lane.b32.xlu0 %v2725, 64
        %v5733 = vpop.permute.xlu0 %5732
        %5734 = vrot.lane.b32.xlu0 %v2726, 64
        %v5735 = vpop.permute.xlu0 %5734
        %5736 = vrot.lane.b32.xlu0 %v2727, 64
        %v5737 = vpop.permute.xlu0 %5736
        %5738 = vrot.lane.b32.xlu0 %v2728, 64
        %v5739 = vpop.permute.xlu0 %5738
        %5740 = vrot.lane.b32.xlu0 %v2729, 64
        %v5741 = vpop.permute.xlu0 %5740
        %5742 = vrot.lane.b32.xlu0 %v2730, 64
        %v5743 = vpop.permute.xlu0 %5742
        %5744 = vrot.lane.b32.xlu0 %v2731, 64
        %v5745 = vpop.permute.xlu0 %5744
        %5746 = vrot.lane.b32.xlu0 %v2732, 64
        %v5747 = vpop.permute.xlu0 %5746
        %5748 = vrot.lane.b32.xlu0 %v2733, 64
        %v5749 = vpop.permute.xlu0 %5748
        %5750 = vrot.lane.b32.xlu0 %v2734, 64
        %v5751 = vpop.permute.xlu0 %5750
        %5752 = vrot.lane.b32.xlu0 %v2735, 64
        %v5753 = vpop.permute.xlu0 %5752
        %5754 = vrot.lane.b32.xlu0 %v2736, 64
        %v5755 = vpop.permute.xlu0 %5754
        %5756 = vrot.lane.b32.xlu0 %v2737, 64
        %v5757 = vpop.permute.xlu0 %5756
        %5758 = vrot.lane.b32.xlu0 %v2738, 64
        %v5759 = vpop.permute.xlu0 %5758
        %5760 = vrot.lane.b32.xlu0 %v2739, 64
        %v5761 = vpop.permute.xlu0 %5760
        %5762 = vrot.lane.b32.xlu0 %v2740, 64
        %v5763 = vpop.permute.xlu0 %5762
        %5764 = vrot.lane.b32.xlu0 %v2741, 64
        %v5765 = vpop.permute.xlu0 %5764
        %5766 = vrot.lane.b32.xlu0 %v2742, 64
        %v5767 = vpop.permute.xlu0 %5766
        %5768 = vrot.lane.b32.xlu0 %v2743, 64
        %v5769 = vpop.permute.xlu0 %5768
        %5770 = vrot.lane.b32.xlu0 %v2744, 64
        %v5771 = vpop.permute.xlu0 %5770
        %5772 = vrot.lane.b32.xlu0 %v2745, 64
        %v5773 = vpop.permute.xlu0 %5772
        %5774 = vrot.lane.b32.xlu0 %v2746, 64
        %v5775 = vpop.permute.xlu0 %5774
        %5776 = vrot.lane.b32.xlu0 %v2747, 64
        %v5777 = vpop.permute.xlu0 %5776
        %5778 = vrot.lane.b32.xlu0 %v2748, 64
        %v5779 = vpop.permute.xlu0 %5778
        %5780 = vrot.lane.b32.xlu0 %v2749, 64
        %v5781 = vpop.permute.xlu0 %5780
        %5782 = vrot.lane.b32.xlu0 %v2750, 64
        %v5783 = vpop.permute.xlu0 %5782
        %5784 = vrot.lane.b32.xlu0 %v2751, 64
        %v5785 = vpop.permute.xlu0 %5784
        %5786 = vrot.lane.b32.xlu0 %v2752, 64
        %v5787 = vpop.permute.xlu0 %5786
        %5788 = vrot.lane.b32.xlu0 %v2753, 64
        %v5789 = vpop.permute.xlu0 %5788
        %5790 = vrot.lane.b32.xlu0 %v2754, 64
        %v5791 = vpop.permute.xlu0 %5790
        %5792 = vrot.lane.b32.xlu0 %v2755, 64
        %v5793 = vpop.permute.xlu0 %5792
        %5794 = vrot.lane.b32.xlu0 %v2756, 64
        %v5795 = vpop.permute.xlu0 %5794
        %5796 = vrot.lane.b32.xlu0 %v2757, 64
        %v5797 = vpop.permute.xlu0 %5796
        %5798 = vrot.lane.b32.xlu0 %v2758, 64
        %v5799 = vpop.permute.xlu0 %5798
        %5800 = vrot.lane.b32.xlu0 %v2759, 64
        %v5801 = vpop.permute.xlu0 %5800
        %5802 = vrot.lane.b32.xlu0 %v2760, 64
        %v5803 = vpop.permute.xlu0 %5802
        %5804 = vrot.lane.b32.xlu0 %v2761, 64
        %v5805 = vpop.permute.xlu0 %5804
        %5806 = vrot.lane.b32.xlu0 %v2762, 64
        %v5807 = vpop.permute.xlu0 %5806
        %5808 = vrot.lane.b32.xlu0 %v2763, 64
        %v5809 = vpop.permute.xlu0 %5808
        %5810 = vrot.lane.b32.xlu0 %v2764, 64
        %v5811 = vpop.permute.xlu0 %5810
        %5812 = vrot.lane.b32.xlu0 %v2765, 64
        %v5813 = vpop.permute.xlu0 %5812
        %v5814 = vrot.slane %v5687, 2
        %v5815 = vrot.slane %v5689, 2
        %v5816 = vrot.slane %v5691, 2
        %v5817 = vrot.slane %v5693, 2
        %v5818 = vrot.slane %v5695, 2
        %v5819 = vrot.slane %v5697, 2
        %v5820 = vrot.slane %v5699, 2
        %v5821 = vrot.slane %v5701, 2
        %v5822 = vrot.slane %v5703, 2
        %v5823 = vrot.slane %v5705, 2
        %v5824 = vrot.slane %v5707, 2
        %v5825 = vrot.slane %v5709, 2
        %v5826 = vrot.slane %v5711, 2
        %v5827 = vrot.slane %v5713, 2
        %v5828 = vrot.slane %v5715, 2
        %v5829 = vrot.slane %v5717, 2
        %v5830 = vrot.slane %v5719, 2
        %v5831 = vrot.slane %v5721, 2
        %v5832 = vrot.slane %v5723, 2
        %v5833 = vrot.slane %v5725, 2
        %v5834 = vrot.slane %v5727, 2
        %v5835 = vrot.slane %v5729, 2
        %v5836 = vrot.slane %v5731, 2
        %v5837 = vrot.slane %v5733, 2
        %v5838 = vrot.slane %v5735, 2
        %v5839 = vrot.slane %v5737, 2
        %v5840 = vrot.slane %v5739, 2
        %v5841 = vrot.slane %v5741, 2
        %v5842 = vrot.slane %v5743, 2
        %v5843 = vrot.slane %v5745, 2
        %v5844 = vrot.slane %v5747, 2
        %v5845 = vrot.slane %v5749, 2
        %v5846 = vrot.slane %v5751, 2
        %v5847 = vrot.slane %v5753, 2
        %v5848 = vrot.slane %v5755, 2
        %v5849 = vrot.slane %v5757, 2
        %v5850 = vrot.slane %v5759, 2
        %v5851 = vrot.slane %v5761, 2
        %v5852 = vrot.slane %v5763, 2
        %v5853 = vrot.slane %v5765, 2
        %v5854 = vrot.slane %v5767, 2
        %v5855 = vrot.slane %v5769, 2
        %v5856 = vrot.slane %v5771, 2
        %v5857 = vrot.slane %v5773, 2
        %v5858 = vrot.slane %v5775, 2
        %v5859 = vrot.slane %v5777, 2
        %v5860 = vrot.slane %v5779, 2
        %v5861 = vrot.slane %v5781, 2
        %v5862 = vrot.slane %v5783, 2
        %v5863 = vrot.slane %v5785, 2
        %v5864 = vrot.slane %v5787, 2
        %v5865 = vrot.slane %v5789, 2
        %v5866 = vrot.slane %v5791, 2
        %v5867 = vrot.slane %v5793, 2
        %v5868 = vrot.slane %v5795, 2
        %v5869 = vrot.slane %v5797, 2
        %v5870 = vrot.slane %v5799, 2
        %v5871 = vrot.slane %v5801, 2
        %v5872 = vrot.slane %v5803, 2
        %v5873 = vrot.slane %v5805, 2
        %v5874 = vrot.slane %v5807, 2
        %v5875 = vrot.slane %v5809, 2
        %v5876 = vrot.slane %v5811, 2
        %v5877 = vrot.slane %v5813, 2
        %5942 = vrot.lane.b32.xlu0 %v2702, 48
        %v5943 = vpop.permute.xlu0 %5942
        %5944 = vrot.lane.b32.xlu0 %v2703, 48
        %v5945 = vpop.permute.xlu0 %5944
        %5946 = vrot.lane.b32.xlu0 %v2704, 48
        %v5947 = vpop.permute.xlu0 %5946
        %5948 = vrot.lane.b32.xlu0 %v2705, 48
        %v5949 = vpop.permute.xlu0 %5948
        %5950 = vrot.lane.b32.xlu0 %v2706, 48
        %v5951 = vpop.permute.xlu0 %5950
        %5952 = vrot.lane.b32.xlu0 %v2707, 48
        %v5953 = vpop.permute.xlu0 %5952
        %5954 = vrot.lane.b32.xlu0 %v2708, 48
        %v5955 = vpop.permute.xlu0 %5954
        %5956 = vrot.lane.b32.xlu0 %v2709, 48
        %v5957 = vpop.permute.xlu0 %5956
        %5958 = vrot.lane.b32.xlu0 %v2710, 48
        %v5959 = vpop.permute.xlu0 %5958
        %5960 = vrot.lane.b32.xlu0 %v2711, 48
        %v5961 = vpop.permute.xlu0 %5960
        %5962 = vrot.lane.b32.xlu0 %v2712, 48
        %v5963 = vpop.permute.xlu0 %5962
        %5964 = vrot.lane.b32.xlu0 %v2713, 48
        %v5965 = vpop.permute.xlu0 %5964
        %5966 = vrot.lane.b32.xlu0 %v2714, 48
        %v5967 = vpop.permute.xlu0 %5966
        %5968 = vrot.lane.b32.xlu0 %v2715, 48
        %v5969 = vpop.permute.xlu0 %5968
        %5970 = vrot.lane.b32.xlu0 %v2716, 48
        %v5971 = vpop.permute.xlu0 %5970
        %5972 = vrot.lane.b32.xlu0 %v2717, 48
        %v5973 = vpop.permute.xlu0 %5972
        %5974 = vrot.lane.b32.xlu0 %v2718, 48
        %v5975 = vpop.permute.xlu0 %5974
        %5976 = vrot.lane.b32.xlu0 %v2719, 48
        %v5977 = vpop.permute.xlu0 %5976
        %5978 = vrot.lane.b32.xlu0 %v2720, 48
        %v5979 = vpop.permute.xlu0 %5978
        %5980 = vrot.lane.b32.xlu0 %v2721, 48
        %v5981 = vpop.permute.xlu0 %5980
        %5982 = vrot.lane.b32.xlu0 %v2722, 48
        %v5983 = vpop.permute.xlu0 %5982
        %5984 = vrot.lane.b32.xlu0 %v2723, 48
        %v5985 = vpop.permute.xlu0 %5984
        %5986 = vrot.lane.b32.xlu0 %v2724, 48
        %v5987 = vpop.permute.xlu0 %5986
        %5988 = vrot.lane.b32.xlu0 %v2725, 48
        %v5989 = vpop.permute.xlu0 %5988
        %5990 = vrot.lane.b32.xlu0 %v2726, 48
        %v5991 = vpop.permute.xlu0 %5990
        %5992 = vrot.lane.b32.xlu0 %v2727, 48
        %v5993 = vpop.permute.xlu0 %5992
        %5994 = vrot.lane.b32.xlu0 %v2728, 48
        %v5995 = vpop.permute.xlu0 %5994
        %5996 = vrot.lane.b32.xlu0 %v2729, 48
        %v5997 = vpop.permute.xlu0 %5996
        %5998 = vrot.lane.b32.xlu0 %v2730, 48
        %v5999 = vpop.permute.xlu0 %5998
        %6000 = vrot.lane.b32.xlu0 %v2731, 48
        %v6001 = vpop.permute.xlu0 %6000
        %6002 = vrot.lane.b32.xlu0 %v2732, 48
        %v6003 = vpop.permute.xlu0 %6002
        %6004 = vrot.lane.b32.xlu0 %v2733, 48
        %v6005 = vpop.permute.xlu0 %6004
        %6006 = vrot.lane.b32.xlu0 %v2734, 48
        %v6007 = vpop.permute.xlu0 %6006
        %6008 = vrot.lane.b32.xlu0 %v2735, 48
        %v6009 = vpop.permute.xlu0 %6008
        %6010 = vrot.lane.b32.xlu0 %v2736, 48
        %v6011 = vpop.permute.xlu0 %6010
        %6012 = vrot.lane.b32.xlu0 %v2737, 48
        %v6013 = vpop.permute.xlu0 %6012
        %6014 = vrot.lane.b32.xlu0 %v2738, 48
        %v6015 = vpop.permute.xlu0 %6014
        %6016 = vrot.lane.b32.xlu0 %v2739, 48
        %v6017 = vpop.permute.xlu0 %6016
        %6018 = vrot.lane.b32.xlu0 %v2740, 48
        %v6019 = vpop.permute.xlu0 %6018
        %6020 = vrot.lane.b32.xlu0 %v2741, 48
        %v6021 = vpop.permute.xlu0 %6020
        %6022 = vrot.lane.b32.xlu0 %v2742, 48
        %v6023 = vpop.permute.xlu0 %6022
        %6024 = vrot.lane.b32.xlu0 %v2743, 48
        %v6025 = vpop.permute.xlu0 %6024
        %6026 = vrot.lane.b32.xlu0 %v2744, 48
        %v6027 = vpop.permute.xlu0 %6026
        %6028 = vrot.lane.b32.xlu0 %v2745, 48
        %v6029 = vpop.permute.xlu0 %6028
        %6030 = vrot.lane.b32.xlu0 %v2746, 48
        %v6031 = vpop.permute.xlu0 %6030
        %6032 = vrot.lane.b32.xlu0 %v2747, 48
        %v6033 = vpop.permute.xlu0 %6032
        %6034 = vrot.lane.b32.xlu0 %v2748, 48
        %v6035 = vpop.permute.xlu0 %6034
        %6036 = vrot.lane.b32.xlu0 %v2749, 48
        %v6037 = vpop.permute.xlu0 %6036
        %6038 = vrot.lane.b32.xlu0 %v2750, 48
        %v6039 = vpop.permute.xlu0 %6038
        %6040 = vrot.lane.b32.xlu0 %v2751, 48
        %v6041 = vpop.permute.xlu0 %6040
        %6042 = vrot.lane.b32.xlu0 %v2752, 48
        %v6043 = vpop.permute.xlu0 %6042
        %6044 = vrot.lane.b32.xlu0 %v2753, 48
        %v6045 = vpop.permute.xlu0 %6044
        %6046 = vrot.lane.b32.xlu0 %v2754, 48
        %v6047 = vpop.permute.xlu0 %6046
        %6048 = vrot.lane.b32.xlu0 %v2755, 48
        %v6049 = vpop.permute.xlu0 %6048
        %6050 = vrot.lane.b32.xlu0 %v2756, 48
        %v6051 = vpop.permute.xlu0 %6050
        %6052 = vrot.lane.b32.xlu0 %v2757, 48
        %v6053 = vpop.permute.xlu0 %6052
        %6054 = vrot.lane.b32.xlu0 %v2758, 48
        %v6055 = vpop.permute.xlu0 %6054
        %6056 = vrot.lane.b32.xlu0 %v2759, 48
        %v6057 = vpop.permute.xlu0 %6056
        %6058 = vrot.lane.b32.xlu0 %v2760, 48
        %v6059 = vpop.permute.xlu0 %6058
        %6060 = vrot.lane.b32.xlu0 %v2761, 48
        %v6061 = vpop.permute.xlu0 %6060
        %6062 = vrot.lane.b32.xlu0 %v2762, 48
        %v6063 = vpop.permute.xlu0 %6062
        %6064 = vrot.lane.b32.xlu0 %v2763, 48
        %v6065 = vpop.permute.xlu0 %6064
        %6066 = vrot.lane.b32.xlu0 %v2764, 48
        %v6067 = vpop.permute.xlu0 %6066
        %6068 = vrot.lane.b32.xlu0 %v2765, 48
        %v6069 = vpop.permute.xlu0 %6068
        %v6070 = vrot.slane %v5943, 2
        %v6071 = vrot.slane %v5945, 2
        %v6072 = vrot.slane %v5947, 2
        %v6073 = vrot.slane %v5949, 2
        %v6074 = vrot.slane %v5951, 2
        %v6075 = vrot.slane %v5953, 2
        %v6076 = vrot.slane %v5955, 2
        %v6077 = vrot.slane %v5957, 2
        %v6078 = vrot.slane %v5959, 2
        %v6079 = vrot.slane %v5961, 2
        %v6080 = vrot.slane %v5963, 2
        %v6081 = vrot.slane %v5965, 2
        %v6082 = vrot.slane %v5967, 2
        %v6083 = vrot.slane %v5969, 2
        %v6084 = vrot.slane %v5971, 2
        %v6085 = vrot.slane %v5973, 2
        %v6086 = vrot.slane %v5975, 2
        %v6087 = vrot.slane %v5977, 2
        %v6088 = vrot.slane %v5979, 2
        %v6089 = vrot.slane %v5981, 2
        %v6090 = vrot.slane %v5983, 2
        %v6091 = vrot.slane %v5985, 2
        %v6092 = vrot.slane %v5987, 2
        %v6093 = vrot.slane %v5989, 2
        %v6094 = vrot.slane %v5991, 2
        %v6095 = vrot.slane %v5993, 2
        %v6096 = vrot.slane %v5995, 2
        %v6097 = vrot.slane %v5997, 2
        %v6098 = vrot.slane %v5999, 2
        %v6099 = vrot.slane %v6001, 2
        %v6100 = vrot.slane %v6003, 2
        %v6101 = vrot.slane %v6005, 2
        %v6102 = vrot.slane %v6007, 2
        %v6103 = vrot.slane %v6009, 2
        %v6104 = vrot.slane %v6011, 2
        %v6105 = vrot.slane %v6013, 2
        %v6106 = vrot.slane %v6015, 2
        %v6107 = vrot.slane %v6017, 2
        %v6108 = vrot.slane %v6019, 2
        %v6109 = vrot.slane %v6021, 2
        %v6110 = vrot.slane %v6023, 2
        %v6111 = vrot.slane %v6025, 2
        %v6112 = vrot.slane %v6027, 2
        %v6113 = vrot.slane %v6029, 2
        %v6114 = vrot.slane %v6031, 2
        %v6115 = vrot.slane %v6033, 2
        %v6116 = vrot.slane %v6035, 2
        %v6117 = vrot.slane %v6037, 2
        %v6118 = vrot.slane %v6039, 2
        %v6119 = vrot.slane %v6041, 2
        %v6120 = vrot.slane %v6043, 2
        %v6121 = vrot.slane %v6045, 2
        %v6122 = vrot.slane %v6047, 2
        %v6123 = vrot.slane %v6049, 2
        %v6124 = vrot.slane %v6051, 2
        %v6125 = vrot.slane %v6053, 2
        %v6126 = vrot.slane %v6055, 2
        %v6127 = vrot.slane %v6057, 2
        %v6128 = vrot.slane %v6059, 2
        %v6129 = vrot.slane %v6061, 2
        %v6130 = vrot.slane %v6063, 2
        %v6131 = vrot.slane %v6065, 2
        %v6132 = vrot.slane %v6067, 2
        %v6133 = vrot.slane %v6069, 2
        %v6198 = vmax.f32 %v5814, %v6070
        %v6199 = vmax.f32 %v5815, %v6071
        %v6200 = vmax.f32 %v5816, %v6072
        %v6201 = vmax.f32 %v5817, %v6073
        %v6202 = vmax.f32 %v5818, %v6074
        %v6203 = vmax.f32 %v5819, %v6075
        %v6204 = vmax.f32 %v5820, %v6076
        %v6205 = vmax.f32 %v5821, %v6077
        %v6206 = vmax.f32 %v5822, %v6078
        %v6207 = vmax.f32 %v5823, %v6079
        %v6208 = vmax.f32 %v5824, %v6080
        %v6209 = vmax.f32 %v5825, %v6081
        %v6210 = vmax.f32 %v5826, %v6082
        %v6211 = vmax.f32 %v5827, %v6083
        %v6212 = vmax.f32 %v5828, %v6084
        %v6213 = vmax.f32 %v5829, %v6085
        %v6214 = vmax.f32 %v5830, %v6086
        %v6215 = vmax.f32 %v5831, %v6087
        %v6216 = vmax.f32 %v5832, %v6088
        %v6217 = vmax.f32 %v5833, %v6089
        %v6218 = vmax.f32 %v5834, %v6090
        %v6219 = vmax.f32 %v5835, %v6091
        %v6220 = vmax.f32 %v5836, %v6092
        %v6221 = vmax.f32 %v5837, %v6093
        %v6222 = vmax.f32 %v5838, %v6094
        %v6223 = vmax.f32 %v5839, %v6095
        %v6224 = vmax.f32 %v5840, %v6096
        %v6225 = vmax.f32 %v5841, %v6097
        %v6226 = vmax.f32 %v5842, %v6098
        %v6227 = vmax.f32 %v5843, %v6099
        %v6228 = vmax.f32 %v5844, %v6100
        %v6229 = vmax.f32 %v5845, %v6101
        %v6230 = vmax.f32 %v5846, %v6102
        %v6231 = vmax.f32 %v5847, %v6103
        %v6232 = vmax.f32 %v5848, %v6104
        %v6233 = vmax.f32 %v5849, %v6105
        %v6234 = vmax.f32 %v5850, %v6106
        %v6235 = vmax.f32 %v5851, %v6107
        %v6236 = vmax.f32 %v5852, %v6108
        %v6237 = vmax.f32 %v5853, %v6109
        %v6238 = vmax.f32 %v5854, %v6110
        %v6239 = vmax.f32 %v5855, %v6111
        %v6240 = vmax.f32 %v5856, %v6112
        %v6241 = vmax.f32 %v5857, %v6113
        %v6242 = vmax.f32 %v5858, %v6114
        %v6243 = vmax.f32 %v5859, %v6115
        %v6244 = vmax.f32 %v5860, %v6116
        %v6245 = vmax.f32 %v5861, %v6117
        %v6246 = vmax.f32 %v5862, %v6118
        %v6247 = vmax.f32 %v5863, %v6119
        %v6248 = vmax.f32 %v5864, %v6120
        %v6249 = vmax.f32 %v5865, %v6121
        %v6250 = vmax.f32 %v5866, %v6122
        %v6251 = vmax.f32 %v5867, %v6123
        %v6252 = vmax.f32 %v5868, %v6124
        %v6253 = vmax.f32 %v5869, %v6125
        %v6254 = vmax.f32 %v5870, %v6126
        %v6255 = vmax.f32 %v5871, %v6127
        %v6256 = vmax.f32 %v5872, %v6128
        %v6257 = vmax.f32 %v5873, %v6129
        %v6258 = vmax.f32 %v5874, %v6130
        %v6259 = vmax.f32 %v5875, %v6131
        %v6260 = vmax.f32 %v5876, %v6132
        %v6261 = vmax.f32 %v5877, %v6133
        %v6262 = vpack.c.bf16 %v6198, %v6198
        %v6263 = vpack.c.bf16 %v6199, %v6199
        %v6264 = vpack.c.bf16 %v6200, %v6200
        %v6265 = vpack.c.bf16 %v6201, %v6201
        %v6266 = vpack.c.bf16 %v6202, %v6202
        %v6267 = vpack.c.bf16 %v6203, %v6203
        %v6268 = vpack.c.bf16 %v6204, %v6204
        %v6269 = vpack.c.bf16 %v6205, %v6205
        %v6270 = vpack.c.bf16 %v6206, %v6206
        %v6271 = vpack.c.bf16 %v6207, %v6207
        %v6272 = vpack.c.bf16 %v6208, %v6208
        %v6273 = vpack.c.bf16 %v6209, %v6209
        %v6274 = vpack.c.bf16 %v6210, %v6210
        %v6275 = vpack.c.bf16 %v6211, %v6211
        %v6276 = vpack.c.bf16 %v6212, %v6212
        %v6277 = vpack.c.bf16 %v6213, %v6213
        %v6278 = vpack.c.bf16 %v6214, %v6214
        %v6279 = vpack.c.bf16 %v6215, %v6215
        %v6280 = vpack.c.bf16 %v6216, %v6216
        %v6281 = vpack.c.bf16 %v6217, %v6217
        %v6282 = vpack.c.bf16 %v6218, %v6218
        %v6283 = vpack.c.bf16 %v6219, %v6219
        %v6284 = vpack.c.bf16 %v6220, %v6220
        %v6285 = vpack.c.bf16 %v6221, %v6221
        %v6286 = vpack.c.bf16 %v6222, %v6222
        %v6287 = vpack.c.bf16 %v6223, %v6223
        %v6288 = vpack.c.bf16 %v6224, %v6224
        %v6289 = vpack.c.bf16 %v6225, %v6225
        %v6290 = vpack.c.bf16 %v6226, %v6226
        %v6291 = vpack.c.bf16 %v6227, %v6227
        %v6292 = vpack.c.bf16 %v6228, %v6228
        %v6293 = vpack.c.bf16 %v6229, %v6229
        %v6294 = vpack.c.bf16 %v6230, %v6230
        %v6295 = vpack.c.bf16 %v6231, %v6231
        %v6296 = vpack.c.bf16 %v6232, %v6232
        %v6297 = vpack.c.bf16 %v6233, %v6233
        %v6298 = vpack.c.bf16 %v6234, %v6234
        %v6299 = vpack.c.bf16 %v6235, %v6235
        %v6300 = vpack.c.bf16 %v6236, %v6236
        %v6301 = vpack.c.bf16 %v6237, %v6237
        %v6302 = vpack.c.bf16 %v6238, %v6238
        %v6303 = vpack.c.bf16 %v6239, %v6239
        %v6304 = vpack.c.bf16 %v6240, %v6240
        %v6305 = vpack.c.bf16 %v6241, %v6241
        %v6306 = vpack.c.bf16 %v6242, %v6242
        %v6307 = vpack.c.bf16 %v6243, %v6243
        %v6308 = vpack.c.bf16 %v6244, %v6244
        %v6309 = vpack.c.bf16 %v6245, %v6245
        %v6310 = vpack.c.bf16 %v6246, %v6246
        %v6311 = vpack.c.bf16 %v6247, %v6247
        %v6312 = vpack.c.bf16 %v6248, %v6248
        %v6313 = vpack.c.bf16 %v6249, %v6249
        %v6314 = vpack.c.bf16 %v6250, %v6250
        %v6315 = vpack.c.bf16 %v6251, %v6251
        %v6316 = vpack.c.bf16 %v6252, %v6252
        %v6317 = vpack.c.bf16 %v6253, %v6253
        %v6318 = vpack.c.bf16 %v6254, %v6254
        %v6319 = vpack.c.bf16 %v6255, %v6255
        %v6320 = vpack.c.bf16 %v6256, %v6256
        %v6321 = vpack.c.bf16 %v6257, %v6257
        %v6322 = vpack.c.bf16 %v6258, %v6258
        %v6323 = vpack.c.bf16 %v6259, %v6259
        %v6324 = vpack.c.bf16 %v6260, %v6260
        %v6325 = vpack.c.bf16 %v6261, %v6261
        %v6390 = vunpack.c.l.b16 %v6262
        %v6391 = vunpack.c.l.b16 %v6263
        %v6392 = vunpack.c.l.b16 %v6264
        %v6393 = vunpack.c.l.b16 %v6265
        %v6394 = vunpack.c.l.b16 %v6266
        %v6395 = vunpack.c.l.b16 %v6267
        %v6396 = vunpack.c.l.b16 %v6268
        %v6397 = vunpack.c.l.b16 %v6269
        %v6398 = vunpack.c.l.b16 %v6270
        %v6399 = vunpack.c.l.b16 %v6271
        %v6400 = vunpack.c.l.b16 %v6272
        %v6401 = vunpack.c.l.b16 %v6273
        %v6402 = vunpack.c.l.b16 %v6274
        %v6403 = vunpack.c.l.b16 %v6275
        %v6404 = vunpack.c.l.b16 %v6276
        %v6405 = vunpack.c.l.b16 %v6277
        %v6406 = vunpack.c.l.b16 %v6278
        %v6407 = vunpack.c.l.b16 %v6279
        %v6408 = vunpack.c.l.b16 %v6280
        %v6409 = vunpack.c.l.b16 %v6281
        %v6410 = vunpack.c.l.b16 %v6282
        %v6411 = vunpack.c.l.b16 %v6283
        %v6412 = vunpack.c.l.b16 %v6284
        %v6413 = vunpack.c.l.b16 %v6285
        %v6414 = vunpack.c.l.b16 %v6286
        %v6415 = vunpack.c.l.b16 %v6287
        %v6416 = vunpack.c.l.b16 %v6288
        %v6417 = vunpack.c.l.b16 %v6289
        %v6418 = vunpack.c.l.b16 %v6290
        %v6419 = vunpack.c.l.b16 %v6291
        %v6420 = vunpack.c.l.b16 %v6292
        %v6421 = vunpack.c.l.b16 %v6293
        %v6422 = vunpack.c.l.b16 %v6294
        %v6423 = vunpack.c.l.b16 %v6295
        %v6424 = vunpack.c.l.b16 %v6296
        %v6425 = vunpack.c.l.b16 %v6297
        %v6426 = vunpack.c.l.b16 %v6298
        %v6427 = vunpack.c.l.b16 %v6299
        %v6428 = vunpack.c.l.b16 %v6300
        %v6429 = vunpack.c.l.b16 %v6301
        %v6430 = vunpack.c.l.b16 %v6302
        %v6431 = vunpack.c.l.b16 %v6303
        %v6432 = vunpack.c.l.b16 %v6304
        %v6433 = vunpack.c.l.b16 %v6305
        %v6434 = vunpack.c.l.b16 %v6306
        %v6435 = vunpack.c.l.b16 %v6307
        %v6436 = vunpack.c.l.b16 %v6308
        %v6437 = vunpack.c.l.b16 %v6309
        %v6438 = vunpack.c.l.b16 %v6310
        %v6439 = vunpack.c.l.b16 %v6311
        %v6440 = vunpack.c.l.b16 %v6312
        %v6441 = vunpack.c.l.b16 %v6313
        %v6442 = vunpack.c.l.b16 %v6314
        %v6443 = vunpack.c.l.b16 %v6315
        %v6444 = vunpack.c.l.b16 %v6316
        %v6445 = vunpack.c.l.b16 %v6317
        %v6446 = vunpack.c.l.b16 %v6318
        %v6447 = vunpack.c.l.b16 %v6319
        %v6448 = vunpack.c.l.b16 %v6320
        %v6449 = vunpack.c.l.b16 %v6321
        %v6450 = vunpack.c.l.b16 %v6322
        %v6451 = vunpack.c.l.b16 %v6323
        %v6452 = vunpack.c.l.b16 %v6324
        %v6453 = vunpack.c.l.b16 %v6325
        %v6454 = vpack.c.b16 %v6390, %v6390
        %v6455 = vpack.c.b16 %v6391, %v6391
        %v6456 = vpack.c.b16 %v6392, %v6392
        %v6457 = vpack.c.b16 %v6393, %v6393
        %v6458 = vpack.c.b16 %v6394, %v6394
        %v6459 = vpack.c.b16 %v6395, %v6395
        %v6460 = vpack.c.b16 %v6396, %v6396
        %v6461 = vpack.c.b16 %v6397, %v6397
        %v6462 = vpack.c.b16 %v6398, %v6398
        %v6463 = vpack.c.b16 %v6399, %v6399
        %v6464 = vpack.c.b16 %v6400, %v6400
        %v6465 = vpack.c.b16 %v6401, %v6401
        %v6466 = vpack.c.b16 %v6402, %v6402
        %v6467 = vpack.c.b16 %v6403, %v6403
        %v6468 = vpack.c.b16 %v6404, %v6404
        %v6469 = vpack.c.b16 %v6405, %v6405
        %v6470 = vpack.c.b16 %v6406, %v6406
        %v6471 = vpack.c.b16 %v6407, %v6407
        %v6472 = vpack.c.b16 %v6408, %v6408
        %v6473 = vpack.c.b16 %v6409, %v6409
        %v6474 = vpack.c.b16 %v6410, %v6410
        %v6475 = vpack.c.b16 %v6411, %v6411
        %v6476 = vpack.c.b16 %v6412, %v6412
        %v6477 = vpack.c.b16 %v6413, %v6413
        %v6478 = vpack.c.b16 %v6414, %v6414
        %v6479 = vpack.c.b16 %v6415, %v6415
        %v6480 = vpack.c.b16 %v6416, %v6416
        %v6481 = vpack.c.b16 %v6417, %v6417
        %v6482 = vpack.c.b16 %v6418, %v6418
        %v6483 = vpack.c.b16 %v6419, %v6419
        %v6484 = vpack.c.b16 %v6420, %v6420
        %v6485 = vpack.c.b16 %v6421, %v6421
        %v6486 = vpack.c.b16 %v6422, %v6422
        %v6487 = vpack.c.b16 %v6423, %v6423
        %v6488 = vpack.c.b16 %v6424, %v6424
        %v6489 = vpack.c.b16 %v6425, %v6425
        %v6490 = vpack.c.b16 %v6426, %v6426
        %v6491 = vpack.c.b16 %v6427, %v6427
        %v6492 = vpack.c.b16 %v6428, %v6428
        %v6493 = vpack.c.b16 %v6429, %v6429
        %v6494 = vpack.c.b16 %v6430, %v6430
        %v6495 = vpack.c.b16 %v6431, %v6431
        %v6496 = vpack.c.b16 %v6432, %v6432
        %v6497 = vpack.c.b16 %v6433, %v6433
        %v6498 = vpack.c.b16 %v6434, %v6434
        %v6499 = vpack.c.b16 %v6435, %v6435
        %v6500 = vpack.c.b16 %v6436, %v6436
        %v6501 = vpack.c.b16 %v6437, %v6437
        %v6502 = vpack.c.b16 %v6438, %v6438
        %v6503 = vpack.c.b16 %v6439, %v6439
        %v6504 = vpack.c.b16 %v6440, %v6440
        %v6505 = vpack.c.b16 %v6441, %v6441
        %v6506 = vpack.c.b16 %v6442, %v6442
        %v6507 = vpack.c.b16 %v6443, %v6443
        %v6508 = vpack.c.b16 %v6444, %v6444
        %v6509 = vpack.c.b16 %v6445, %v6445
        %v6510 = vpack.c.b16 %v6446, %v6446
        %v6511 = vpack.c.b16 %v6447, %v6447
        %v6512 = vpack.c.b16 %v6448, %v6448
        %v6513 = vpack.c.b16 %v6449, %v6449
        %v6514 = vpack.c.b16 %v6450, %v6450
        %v6515 = vpack.c.b16 %v6451, %v6451
        %v6516 = vpack.c.b16 %v6452, %v6452
        %v6517 = vpack.c.b16 %v6453, %v6453
        %v6518 = vunpack.c.l.b16 %v6454
        %v6519 = vunpack.c.l.b16 %v6455
        %v6520 = vunpack.c.l.b16 %v6456
        %v6521 = vunpack.c.l.b16 %v6457
        %v6522 = vunpack.c.l.b16 %v6458
        %v6523 = vunpack.c.l.b16 %v6459
        %v6524 = vunpack.c.l.b16 %v6460
        %v6525 = vunpack.c.l.b16 %v6461
        %v6526 = vunpack.c.l.b16 %v6462
        %v6527 = vunpack.c.l.b16 %v6463
        %v6528 = vunpack.c.l.b16 %v6464
        %v6529 = vunpack.c.l.b16 %v6465
        %v6530 = vunpack.c.l.b16 %v6466
        %v6531 = vunpack.c.l.b16 %v6467
        %v6532 = vunpack.c.l.b16 %v6468
        %v6533 = vunpack.c.l.b16 %v6469
        %v6534 = vunpack.c.l.b16 %v6470
        %v6535 = vunpack.c.l.b16 %v6471
        %v6536 = vunpack.c.l.b16 %v6472
        %v6537 = vunpack.c.l.b16 %v6473
        %v6538 = vunpack.c.l.b16 %v6474
        %v6539 = vunpack.c.l.b16 %v6475
        %v6540 = vunpack.c.l.b16 %v6476
        %v6541 = vunpack.c.l.b16 %v6477
        %v6542 = vunpack.c.l.b16 %v6478
        %v6543 = vunpack.c.l.b16 %v6479
        %v6544 = vunpack.c.l.b16 %v6480
        %v6545 = vunpack.c.l.b16 %v6481
        %v6546 = vunpack.c.l.b16 %v6482
        %v6547 = vunpack.c.l.b16 %v6483
        %v6548 = vunpack.c.l.b16 %v6484
        %v6549 = vunpack.c.l.b16 %v6485
        %v6550 = vunpack.c.l.b16 %v6486
        %v6551 = vunpack.c.l.b16 %v6487
        %v6552 = vunpack.c.l.b16 %v6488
        %v6553 = vunpack.c.l.b16 %v6489
        %v6554 = vunpack.c.l.b16 %v6490
        %v6555 = vunpack.c.l.b16 %v6491
        %v6556 = vunpack.c.l.b16 %v6492
        %v6557 = vunpack.c.l.b16 %v6493
        %v6558 = vunpack.c.l.b16 %v6494
        %v6559 = vunpack.c.l.b16 %v6495
        %v6560 = vunpack.c.l.b16 %v6496
        %v6561 = vunpack.c.l.b16 %v6497
        %v6562 = vunpack.c.l.b16 %v6498
        %v6563 = vunpack.c.l.b16 %v6499
        %v6564 = vunpack.c.l.b16 %v6500
        %v6565 = vunpack.c.l.b16 %v6501
        %v6566 = vunpack.c.l.b16 %v6502
        %v6567 = vunpack.c.l.b16 %v6503
        %v6568 = vunpack.c.l.b16 %v6504
        %v6569 = vunpack.c.l.b16 %v6505
        %v6570 = vunpack.c.l.b16 %v6506
        %v6571 = vunpack.c.l.b16 %v6507
        %v6572 = vunpack.c.l.b16 %v6508
        %v6573 = vunpack.c.l.b16 %v6509
        %v6574 = vunpack.c.l.b16 %v6510
        %v6575 = vunpack.c.l.b16 %v6511
        %v6576 = vunpack.c.l.b16 %v6512
        %v6577 = vunpack.c.l.b16 %v6513
        %v6578 = vunpack.c.l.b16 %v6514
        %v6579 = vunpack.c.l.b16 %v6515
        %v6580 = vunpack.c.l.b16 %v6516
        %v6581 = vunpack.c.l.b16 %v6517
        %v6582 = vrot.slane %v6518, 6
        %v6583 = vrot.slane %v6519, 5
        %v6584 = vsel %vm3424, %v6583, %v6582
        %v6585 = vrot.slane %v6520, 4
        %v6586 = vsel %vm3427, %v6585, %v6584
        %v6587 = vrot.slane %v6521, 3
        %v6588 = vsel %vm3430, %v6587, %v6586
        %v6589 = vrot.slane %v6522, 2
        %v6590 = vsel %vm3433, %v6589, %v6588
        %v6591 = vrot.slane %v6523, 1
        %v6592 = vsel %vm3436, %v6591, %v6590
        %v6593 = vrot.slane %v6525, 7
        %v6594 = vsel %vm3439, %v6593, %v6524
        %v6595 = vrot.slane %v6526, 6
        %v6596 = vrot.slane %v6527, 5
        %v6597 = vsel %vm3424, %v6596, %v6595
        %v6598 = vrot.slane %v6528, 4
        %v6599 = vsel %vm3427, %v6598, %v6597
        %v6600 = vrot.slane %v6529, 3
        %v6601 = vsel %vm3430, %v6600, %v6599
        %v6602 = vrot.slane %v6530, 2
        %v6603 = vsel %vm3433, %v6602, %v6601
        %v6604 = vrot.slane %v6531, 1
        %v6605 = vsel %vm3436, %v6604, %v6603
        %v6606 = vrot.slane %v6533, 7
        %v6607 = vsel %vm3439, %v6606, %v6532
        %v6608 = vrot.slane %v6534, 6
        %v6609 = vrot.slane %v6535, 5
        %v6610 = vsel %vm3424, %v6609, %v6608
        %v6611 = vrot.slane %v6536, 4
        %v6612 = vsel %vm3427, %v6611, %v6610
        %v6613 = vrot.slane %v6537, 3
        %v6614 = vsel %vm3430, %v6613, %v6612
        %v6615 = vrot.slane %v6538, 2
        %v6616 = vsel %vm3433, %v6615, %v6614
        %v6617 = vrot.slane %v6539, 1
        %v6618 = vsel %vm3436, %v6617, %v6616
        %v6619 = vrot.slane %v6541, 7
        %v6620 = vsel %vm3439, %v6619, %v6540
        %v6621 = vrot.slane %v6542, 6
        %v6622 = vrot.slane %v6543, 5
        %v6623 = vsel %vm3424, %v6622, %v6621
        %v6624 = vrot.slane %v6544, 4
        %v6625 = vsel %vm3427, %v6624, %v6623
        %v6626 = vrot.slane %v6545, 3
        %v6627 = vsel %vm3430, %v6626, %v6625
        %v6628 = vrot.slane %v6546, 2
        %v6629 = vsel %vm3433, %v6628, %v6627
        %v6630 = vrot.slane %v6547, 1
        %v6631 = vsel %vm3436, %v6630, %v6629
        %v6632 = vrot.slane %v6549, 7
        %v6633 = vsel %vm3439, %v6632, %v6548
        %v6634 = vrot.slane %v6550, 6
        %v6635 = vrot.slane %v6551, 5
        %v6636 = vsel %vm3424, %v6635, %v6634
        %v6637 = vrot.slane %v6552, 4
        %v6638 = vsel %vm3427, %v6637, %v6636
        %v6639 = vrot.slane %v6553, 3
        %v6640 = vsel %vm3430, %v6639, %v6638
        %v6641 = vrot.slane %v6554, 2
        %v6642 = vsel %vm3433, %v6641, %v6640
        %v6643 = vrot.slane %v6555, 1
        %v6644 = vsel %vm3436, %v6643, %v6642
        %v6645 = vrot.slane %v6557, 7
        %v6646 = vsel %vm3439, %v6645, %v6556
        %v6647 = vrot.slane %v6558, 6
        %v6648 = vrot.slane %v6559, 5
        %v6649 = vsel %vm3424, %v6648, %v6647
        %v6650 = vrot.slane %v6560, 4
        %v6651 = vsel %vm3427, %v6650, %v6649
        %v6652 = vrot.slane %v6561, 3
        %v6653 = vsel %vm3430, %v6652, %v6651
        %v6654 = vrot.slane %v6562, 2
        %v6655 = vsel %vm3433, %v6654, %v6653
        %v6656 = vrot.slane %v6563, 1
        %v6657 = vsel %vm3436, %v6656, %v6655
        %v6658 = vrot.slane %v6565, 7
        %v6659 = vsel %vm3439, %v6658, %v6564
        %v6660 = vrot.slane %v6566, 6
        %v6661 = vrot.slane %v6567, 5
        %v6662 = vsel %vm3424, %v6661, %v6660
        %v6663 = vrot.slane %v6568, 4
        %v6664 = vsel %vm3427, %v6663, %v6662
        %v6665 = vrot.slane %v6569, 3
        %v6666 = vsel %vm3430, %v6665, %v6664
        %v6667 = vrot.slane %v6570, 2
        %v6668 = vsel %vm3433, %v6667, %v6666
        %v6669 = vrot.slane %v6571, 1
        %v6670 = vsel %vm3436, %v6669, %v6668
        %v6671 = vrot.slane %v6573, 7
        %v6672 = vsel %vm3439, %v6671, %v6572
        %v6673 = vrot.slane %v6574, 6
        %v6674 = vrot.slane %v6575, 5
        %v6675 = vsel %vm3424, %v6674, %v6673
        %v6676 = vrot.slane %v6576, 4
        %v6677 = vsel %vm3427, %v6676, %v6675
        %v6678 = vrot.slane %v6577, 3
        %v6679 = vsel %vm3430, %v6678, %v6677
        %v6680 = vrot.slane %v6578, 2
        %v6681 = vsel %vm3433, %v6680, %v6679
        %v6682 = vrot.slane %v6579, 1
        %v6683 = vsel %vm3436, %v6682, %v6681
        %v6684 = vrot.slane %v6581, 7
        %v6685 = vsel %vm3439, %v6684, %v6580
        %v6686 = vpack.c.b16 %v6592, %v6592
        %v6687 = vpack.c.b16 %v6594, %v6594
        %v6688 = vpack.c.b16 %v6605, %v6605
        %v6689 = vpack.c.b16 %v6607, %v6607
        %v6690 = vpack.c.b16 %v6618, %v6618
        %v6691 = vpack.c.b16 %v6620, %v6620
        %v6692 = vpack.c.b16 %v6631, %v6631
        %v6693 = vpack.c.b16 %v6633, %v6633
        %v6694 = vpack.c.b16 %v6644, %v6644
        %v6695 = vpack.c.b16 %v6646, %v6646
        %v6696 = vpack.c.b16 %v6657, %v6657
        %v6697 = vpack.c.b16 %v6659, %v6659
        %v6698 = vpack.c.b16 %v6670, %v6670
        %v6699 = vpack.c.b16 %v6672, %v6672
        %v6700 = vpack.c.b16 %v6683, %v6683
        %v6701 = vpack.c.b16 %v6685, %v6685
        %6702 = vrot.lane.b32.xlu0 %v6686, 96
        %v6703 = vpop.permute.xlu0 %6702
        %6704 = vrot.lane.b32.xlu0 %v6687, 96
        %v6705 = vpop.permute.xlu0 %6704
        %6706 = vrot.lane.b32.xlu0 %v6688, 96
        %v6707 = vpop.permute.xlu0 %6706
        %6708 = vrot.lane.b32.xlu0 %v6689, 96
        %v6709 = vpop.permute.xlu0 %6708
        %6710 = vrot.lane.b32.xlu0 %v6690, 96
        %v6711 = vpop.permute.xlu0 %6710
        %6712 = vrot.lane.b32.xlu0 %v6691, 96
        %v6713 = vpop.permute.xlu0 %6712
        %6714 = vrot.lane.b32.xlu0 %v6692, 96
        %v6715 = vpop.permute.xlu0 %6714
        %6716 = vrot.lane.b32.xlu0 %v6693, 96
        %v6717 = vpop.permute.xlu0 %6716
        %6718 = vrot.lane.b32.xlu0 %v6694, 96
        %v6719 = vpop.permute.xlu0 %6718
        %6720 = vrot.lane.b32.xlu0 %v6695, 96
        %v6721 = vpop.permute.xlu0 %6720
        %6722 = vrot.lane.b32.xlu0 %v6696, 96
        %v6723 = vpop.permute.xlu0 %6722
        %6724 = vrot.lane.b32.xlu0 %v6697, 96
        %v6725 = vpop.permute.xlu0 %6724
        %6726 = vrot.lane.b32.xlu0 %v6698, 96
        %v6727 = vpop.permute.xlu0 %6726
        %6728 = vrot.lane.b32.xlu0 %v6699, 96
        %v6729 = vpop.permute.xlu0 %6728
        %6730 = vrot.lane.b32.xlu0 %v6700, 96
        %v6731 = vpop.permute.xlu0 %6730
        %6732 = vrot.lane.b32.xlu0 %v6701, 96
        %v6733 = vpop.permute.xlu0 %6732
        %vm6750 = vcmask 913153
        %6751 = vst.msk [vmem:[#allocation3] sm:$0xe] %vm6750, %v6703
        %vm6752 = vcmask 910080
        %6753 = vst.msk [vmem:[#allocation3 + $0x4] sm:$0x1] %vm6752, %v6705
        %6754 = vst.msk [vmem:[#allocation3 + $0x8] sm:$0xe] %vm6750, %v6707
        %6755 = vst.msk [vmem:[#allocation3 + $0xc] sm:$0x1] %vm6752, %v6709
        %6756 = vst.msk [vmem:[#allocation3 + $0x10] sm:$0xe] %vm6750, %v6711
        %6757 = vst.msk [vmem:[#allocation3 + $0x14] sm:$0x1] %vm6752, %v6713
        %6758 = vst.msk [vmem:[#allocation3 + $0x18] sm:$0xe] %vm6750, %v6715
        %6759 = vst.msk [vmem:[#allocation3 + $0x1c] sm:$0x1] %vm6752, %v6717
        %6760 = vst.msk [vmem:[#allocation3 + $0x20] sm:$0xe] %vm6750, %v6719
        %6761 = vst.msk [vmem:[#allocation3 + $0x24] sm:$0x1] %vm6752, %v6721
        %6762 = vst.msk [vmem:[#allocation3 + $0x28] sm:$0xe] %vm6750, %v6723
        %6763 = vst.msk [vmem:[#allocation3 + $0x2c] sm:$0x1] %vm6752, %v6725
        %6764 = vst.msk [vmem:[#allocation3 + $0x30] sm:$0xe] %vm6750, %v6727
        %6765 = vst.msk [vmem:[#allocation3 + $0x34] sm:$0x1] %vm6752, %v6729
        %6766 = vst.msk [vmem:[#allocation3 + $0x38] sm:$0xe] %vm6750, %v6731
        %6767 = vst.msk [vmem:[#allocation3 + $0x3c] sm:$0x1] %vm6752, %v6733
        %6768 = vrot.lane.b32.xlu0 %v2702, 32
        %v6769 = vpop.permute.xlu0 %6768
        %6770 = vrot.lane.b32.xlu0 %v2703, 32
        %v6771 = vpop.permute.xlu0 %6770
        %6772 = vrot.lane.b32.xlu0 %v2704, 32
        %v6773 = vpop.permute.xlu0 %6772
        %6774 = vrot.lane.b32.xlu0 %v2705, 32
        %v6775 = vpop.permute.xlu0 %6774
        %6776 = vrot.lane.b32.xlu0 %v2706, 32
        %v6777 = vpop.permute.xlu0 %6776
        %6778 = vrot.lane.b32.xlu0 %v2707, 32
        %v6779 = vpop.permute.xlu0 %6778
        %6780 = vrot.lane.b32.xlu0 %v2708, 32
        %v6781 = vpop.permute.xlu0 %6780
        %6782 = vrot.lane.b32.xlu0 %v2709, 32
        %v6783 = vpop.permute.xlu0 %6782
        %6784 = vrot.lane.b32.xlu0 %v2710, 32
        %v6785 = vpop.permute.xlu0 %6784
        %6786 = vrot.lane.b32.xlu0 %v2711, 32
        %v6787 = vpop.permute.xlu0 %6786
        %6788 = vrot.lane.b32.xlu0 %v2712, 32
        %v6789 = vpop.permute.xlu0 %6788
        %6790 = vrot.lane.b32.xlu0 %v2713, 32
        %v6791 = vpop.permute.xlu0 %6790
        %6792 = vrot.lane.b32.xlu0 %v2714, 32
        %v6793 = vpop.permute.xlu0 %6792
        %6794 = vrot.lane.b32.xlu0 %v2715, 32
        %v6795 = vpop.permute.xlu0 %6794
        %6796 = vrot.lane.b32.xlu0 %v2716, 32
        %v6797 = vpop.permute.xlu0 %6796
        %6798 = vrot.lane.b32.xlu0 %v2717, 32
        %v6799 = vpop.permute.xlu0 %6798
        %6800 = vrot.lane.b32.xlu0 %v2718, 32
        %v6801 = vpop.permute.xlu0 %6800
        %6802 = vrot.lane.b32.xlu0 %v2719, 32
        %v6803 = vpop.permute.xlu0 %6802
        %6804 = vrot.lane.b32.xlu0 %v2720, 32
        %v6805 = vpop.permute.xlu0 %6804
        %6806 = vrot.lane.b32.xlu0 %v2721, 32
        %v6807 = vpop.permute.xlu0 %6806
        %6808 = vrot.lane.b32.xlu0 %v2722, 32
        %v6809 = vpop.permute.xlu0 %6808
        %6810 = vrot.lane.b32.xlu0 %v2723, 32
        %v6811 = vpop.permute.xlu0 %6810
        %6812 = vrot.lane.b32.xlu0 %v2724, 32
        %v6813 = vpop.permute.xlu0 %6812
        %6814 = vrot.lane.b32.xlu0 %v2725, 32
        %v6815 = vpop.permute.xlu0 %6814
        %6816 = vrot.lane.b32.xlu0 %v2726, 32
        %v6817 = vpop.permute.xlu0 %6816
        %6818 = vrot.lane.b32.xlu0 %v2727, 32
        %v6819 = vpop.permute.xlu0 %6818
        %6820 = vrot.lane.b32.xlu0 %v2728, 32
        %v6821 = vpop.permute.xlu0 %6820
        %6822 = vrot.lane.b32.xlu0 %v2729, 32
        %v6823 = vpop.permute.xlu0 %6822
        %6824 = vrot.lane.b32.xlu0 %v2730, 32
        %v6825 = vpop.permute.xlu0 %6824
        %6826 = vrot.lane.b32.xlu0 %v2731, 32
        %v6827 = vpop.permute.xlu0 %6826
        %6828 = vrot.lane.b32.xlu0 %v2732, 32
        %v6829 = vpop.permute.xlu0 %6828
        %6830 = vrot.lane.b32.xlu0 %v2733, 32
        %v6831 = vpop.permute.xlu0 %6830
        %6832 = vrot.lane.b32.xlu0 %v2734, 32
        %v6833 = vpop.permute.xlu0 %6832
        %6834 = vrot.lane.b32.xlu0 %v2735, 32
        %v6835 = vpop.permute.xlu0 %6834
        %6836 = vrot.lane.b32.xlu0 %v2736, 32
        %v6837 = vpop.permute.xlu0 %6836
        %6838 = vrot.lane.b32.xlu0 %v2737, 32
        %v6839 = vpop.permute.xlu0 %6838
        %6840 = vrot.lane.b32.xlu0 %v2738, 32
        %v6841 = vpop.permute.xlu0 %6840
        %6842 = vrot.lane.b32.xlu0 %v2739, 32
        %v6843 = vpop.permute.xlu0 %6842
        %6844 = vrot.lane.b32.xlu0 %v2740, 32
        %v6845 = vpop.permute.xlu0 %6844
        %6846 = vrot.lane.b32.xlu0 %v2741, 32
        %v6847 = vpop.permute.xlu0 %6846
        %6848 = vrot.lane.b32.xlu0 %v2742, 32
        %v6849 = vpop.permute.xlu0 %6848
        %6850 = vrot.lane.b32.xlu0 %v2743, 32
        %v6851 = vpop.permute.xlu0 %6850
        %6852 = vrot.lane.b32.xlu0 %v2744, 32
        %v6853 = vpop.permute.xlu0 %6852
        %6854 = vrot.lane.b32.xlu0 %v2745, 32
        %v6855 = vpop.permute.xlu0 %6854
        %6856 = vrot.lane.b32.xlu0 %v2746, 32
        %v6857 = vpop.permute.xlu0 %6856
        %6858 = vrot.lane.b32.xlu0 %v2747, 32
        %v6859 = vpop.permute.xlu0 %6858
        %6860 = vrot.lane.b32.xlu0 %v2748, 32
        %v6861 = vpop.permute.xlu0 %6860
        %6862 = vrot.lane.b32.xlu0 %v2749, 32
        %v6863 = vpop.permute.xlu0 %6862
        %6864 = vrot.lane.b32.xlu0 %v2750, 32
        %v6865 = vpop.permute.xlu0 %6864
        %6866 = vrot.lane.b32.xlu0 %v2751, 32
        %v6867 = vpop.permute.xlu0 %6866
        %6868 = vrot.lane.b32.xlu0 %v2752, 32
        %v6869 = vpop.permute.xlu0 %6868
        %6870 = vrot.lane.b32.xlu0 %v2753, 32
        %v6871 = vpop.permute.xlu0 %6870
        %6872 = vrot.lane.b32.xlu0 %v2754, 32
        %v6873 = vpop.permute.xlu0 %6872
        %6874 = vrot.lane.b32.xlu0 %v2755, 32
        %v6875 = vpop.permute.xlu0 %6874
        %6876 = vrot.lane.b32.xlu0 %v2756, 32
        %v6877 = vpop.permute.xlu0 %6876
        %6878 = vrot.lane.b32.xlu0 %v2757, 32
        %v6879 = vpop.permute.xlu0 %6878
        %6880 = vrot.lane.b32.xlu0 %v2758, 32
        %v6881 = vpop.permute.xlu0 %6880
        %6882 = vrot.lane.b32.xlu0 %v2759, 32
        %v6883 = vpop.permute.xlu0 %6882
        %6884 = vrot.lane.b32.xlu0 %v2760, 32
        %v6885 = vpop.permute.xlu0 %6884
        %6886 = vrot.lane.b32.xlu0 %v2761, 32
        %v6887 = vpop.permute.xlu0 %6886
        %6888 = vrot.lane.b32.xlu0 %v2762, 32
        %v6889 = vpop.permute.xlu0 %6888
        %6890 = vrot.lane.b32.xlu0 %v2763, 32
        %v6891 = vpop.permute.xlu0 %6890
        %6892 = vrot.lane.b32.xlu0 %v2764, 32
        %v6893 = vpop.permute.xlu0 %6892
        %6894 = vrot.lane.b32.xlu0 %v2765, 32
        %v6895 = vpop.permute.xlu0 %6894
        %v6896 = vrot.slane %v6769, 2
        %v6897 = vrot.slane %v6771, 2
        %v6898 = vrot.slane %v6773, 2
        %v6899 = vrot.slane %v6775, 2
        %v6900 = vrot.slane %v6777, 2
        %v6901 = vrot.slane %v6779, 2
        %v6902 = vrot.slane %v6781, 2
        %v6903 = vrot.slane %v6783, 2
        %v6904 = vrot.slane %v6785, 2
        %v6905 = vrot.slane %v6787, 2
        %v6906 = vrot.slane %v6789, 2
        %v6907 = vrot.slane %v6791, 2
        %v6908 = vrot.slane %v6793, 2
        %v6909 = vrot.slane %v6795, 2
        %v6910 = vrot.slane %v6797, 2
        %v6911 = vrot.slane %v6799, 2
        %v6912 = vrot.slane %v6801, 2
        %v6913 = vrot.slane %v6803, 2
        %v6914 = vrot.slane %v6805, 2
        %v6915 = vrot.slane %v6807, 2
        %v6916 = vrot.slane %v6809, 2
        %v6917 = vrot.slane %v6811, 2
        %v6918 = vrot.slane %v6813, 2
        %v6919 = vrot.slane %v6815, 2
        %v6920 = vrot.slane %v6817, 2
        %v6921 = vrot.slane %v6819, 2
        %v6922 = vrot.slane %v6821, 2
        %v6923 = vrot.slane %v6823, 2
        %v6924 = vrot.slane %v6825, 2
        %v6925 = vrot.slane %v6827, 2
        %v6926 = vrot.slane %v6829, 2
        %v6927 = vrot.slane %v6831, 2
        %v6928 = vrot.slane %v6833, 2
        %v6929 = vrot.slane %v6835, 2
        %v6930 = vrot.slane %v6837, 2
        %v6931 = vrot.slane %v6839, 2
        %v6932 = vrot.slane %v6841, 2
        %v6933 = vrot.slane %v6843, 2
        %v6934 = vrot.slane %v6845, 2
        %v6935 = vrot.slane %v6847, 2
        %v6936 = vrot.slane %v6849, 2
        %v6937 = vrot.slane %v6851, 2
        %v6938 = vrot.slane %v6853, 2
        %v6939 = vrot.slane %v6855, 2
        %v6940 = vrot.slane %v6857, 2
        %v6941 = vrot.slane %v6859, 2
        %v6942 = vrot.slane %v6861, 2
        %v6943 = vrot.slane %v6863, 2
        %v6944 = vrot.slane %v6865, 2
        %v6945 = vrot.slane %v6867, 2
        %v6946 = vrot.slane %v6869, 2
        %v6947 = vrot.slane %v6871, 2
        %v6948 = vrot.slane %v6873, 2
        %v6949 = vrot.slane %v6875, 2
        %v6950 = vrot.slane %v6877, 2
        %v6951 = vrot.slane %v6879, 2
        %v6952 = vrot.slane %v6881, 2
        %v6953 = vrot.slane %v6883, 2
        %v6954 = vrot.slane %v6885, 2
        %v6955 = vrot.slane %v6887, 2
        %v6956 = vrot.slane %v6889, 2
        %v6957 = vrot.slane %v6891, 2
        %v6958 = vrot.slane %v6893, 2
        %v6959 = vrot.slane %v6895, 2
        %7024 = vrot.lane.b32.xlu0 %v2702, 16
        %v7025 = vpop.permute.xlu0 %7024
        %7026 = vrot.lane.b32.xlu0 %v2703, 16
        %v7027 = vpop.permute.xlu0 %7026
        %7028 = vrot.lane.b32.xlu0 %v2704, 16
        %v7029 = vpop.permute.xlu0 %7028
        %7030 = vrot.lane.b32.xlu0 %v2705, 16
        %v7031 = vpop.permute.xlu0 %7030
        %7032 = vrot.lane.b32.xlu0 %v2706, 16
        %v7033 = vpop.permute.xlu0 %7032
        %7034 = vrot.lane.b32.xlu0 %v2707, 16
        %v7035 = vpop.permute.xlu0 %7034
        %7036 = vrot.lane.b32.xlu0 %v2708, 16
        %v7037 = vpop.permute.xlu0 %7036
        %7038 = vrot.lane.b32.xlu0 %v2709, 16
        %v7039 = vpop.permute.xlu0 %7038
        %7040 = vrot.lane.b32.xlu0 %v2710, 16
        %v7041 = vpop.permute.xlu0 %7040
        %7042 = vrot.lane.b32.xlu0 %v2711, 16
        %v7043 = vpop.permute.xlu0 %7042
        %7044 = vrot.lane.b32.xlu0 %v2712, 16
        %v7045 = vpop.permute.xlu0 %7044
        %7046 = vrot.lane.b32.xlu0 %v2713, 16
        %v7047 = vpop.permute.xlu0 %7046
        %7048 = vrot.lane.b32.xlu0 %v2714, 16
        %v7049 = vpop.permute.xlu0 %7048
        %7050 = vrot.lane.b32.xlu0 %v2715, 16
        %v7051 = vpop.permute.xlu0 %7050
        %7052 = vrot.lane.b32.xlu0 %v2716, 16
        %v7053 = vpop.permute.xlu0 %7052
        %7054 = vrot.lane.b32.xlu0 %v2717, 16
        %v7055 = vpop.permute.xlu0 %7054
        %7056 = vrot.lane.b32.xlu0 %v2718, 16
        %v7057 = vpop.permute.xlu0 %7056
        %7058 = vrot.lane.b32.xlu0 %v2719, 16
        %v7059 = vpop.permute.xlu0 %7058
        %7060 = vrot.lane.b32.xlu0 %v2720, 16
        %v7061 = vpop.permute.xlu0 %7060
        %7062 = vrot.lane.b32.xlu0 %v2721, 16
        %v7063 = vpop.permute.xlu0 %7062
        %7064 = vrot.lane.b32.xlu0 %v2722, 16
        %v7065 = vpop.permute.xlu0 %7064
        %7066 = vrot.lane.b32.xlu0 %v2723, 16
        %v7067 = vpop.permute.xlu0 %7066
        %7068 = vrot.lane.b32.xlu0 %v2724, 16
        %v7069 = vpop.permute.xlu0 %7068
        %7070 = vrot.lane.b32.xlu0 %v2725, 16
        %v7071 = vpop.permute.xlu0 %7070
        %7072 = vrot.lane.b32.xlu0 %v2726, 16
        %v7073 = vpop.permute.xlu0 %7072
        %7074 = vrot.lane.b32.xlu0 %v2727, 16
        %v7075 = vpop.permute.xlu0 %7074
        %7076 = vrot.lane.b32.xlu0 %v2728, 16
        %v7077 = vpop.permute.xlu0 %7076
        %7078 = vrot.lane.b32.xlu0 %v2729, 16
        %v7079 = vpop.permute.xlu0 %7078
        %7080 = vrot.lane.b32.xlu0 %v2730, 16
        %v7081 = vpop.permute.xlu0 %7080
        %7082 = vrot.lane.b32.xlu0 %v2731, 16
        %v7083 = vpop.permute.xlu0 %7082
        %7084 = vrot.lane.b32.xlu0 %v2732, 16
        %v7085 = vpop.permute.xlu0 %7084
        %7086 = vrot.lane.b32.xlu0 %v2733, 16
        %v7087 = vpop.permute.xlu0 %7086
        %7088 = vrot.lane.b32.xlu0 %v2734, 16
        %v7089 = vpop.permute.xlu0 %7088
        %7090 = vrot.lane.b32.xlu0 %v2735, 16
        %v7091 = vpop.permute.xlu0 %7090
        %7092 = vrot.lane.b32.xlu0 %v2736, 16
        %v7093 = vpop.permute.xlu0 %7092
        %7094 = vrot.lane.b32.xlu0 %v2737, 16
        %v7095 = vpop.permute.xlu0 %7094
        %7096 = vrot.lane.b32.xlu0 %v2738, 16
        %v7097 = vpop.permute.xlu0 %7096
        %7098 = vrot.lane.b32.xlu0 %v2739, 16
        %v7099 = vpop.permute.xlu0 %7098
        %7100 = vrot.lane.b32.xlu0 %v2740, 16
        %v7101 = vpop.permute.xlu0 %7100
        %7102 = vrot.lane.b32.xlu0 %v2741, 16
        %v7103 = vpop.permute.xlu0 %7102
        %7104 = vrot.lane.b32.xlu0 %v2742, 16
        %v7105 = vpop.permute.xlu0 %7104
        %7106 = vrot.lane.b32.xlu0 %v2743, 16
        %v7107 = vpop.permute.xlu0 %7106
        %7108 = vrot.lane.b32.xlu0 %v2744, 16
        %v7109 = vpop.permute.xlu0 %7108
        %7110 = vrot.lane.b32.xlu0 %v2745, 16
        %v7111 = vpop.permute.xlu0 %7110
        %7112 = vrot.lane.b32.xlu0 %v2746, 16
        %v7113 = vpop.permute.xlu0 %7112
        %7114 = vrot.lane.b32.xlu0 %v2747, 16
        %v7115 = vpop.permute.xlu0 %7114
        %7116 = vrot.lane.b32.xlu0 %v2748, 16
        %v7117 = vpop.permute.xlu0 %7116
        %7118 = vrot.lane.b32.xlu0 %v2749, 16
        %v7119 = vpop.permute.xlu0 %7118
        %7120 = vrot.lane.b32.xlu0 %v2750, 16
        %v7121 = vpop.permute.xlu0 %7120
        %7122 = vrot.lane.b32.xlu0 %v2751, 16
        %v7123 = vpop.permute.xlu0 %7122
        %7124 = vrot.lane.b32.xlu0 %v2752, 16
        %v7125 = vpop.permute.xlu0 %7124
        %7126 = vrot.lane.b32.xlu0 %v2753, 16
        %v7127 = vpop.permute.xlu0 %7126
        %7128 = vrot.lane.b32.xlu0 %v2754, 16
        %v7129 = vpop.permute.xlu0 %7128
        %7130 = vrot.lane.b32.xlu0 %v2755, 16
        %v7131 = vpop.permute.xlu0 %7130
        %7132 = vrot.lane.b32.xlu0 %v2756, 16
        %v7133 = vpop.permute.xlu0 %7132
        %7134 = vrot.lane.b32.xlu0 %v2757, 16
        %v7135 = vpop.permute.xlu0 %7134
        %7136 = vrot.lane.b32.xlu0 %v2758, 16
        %v7137 = vpop.permute.xlu0 %7136
        %7138 = vrot.lane.b32.xlu0 %v2759, 16
        %v7139 = vpop.permute.xlu0 %7138
        %7140 = vrot.lane.b32.xlu0 %v2760, 16
        %v7141 = vpop.permute.xlu0 %7140
        %7142 = vrot.lane.b32.xlu0 %v2761, 16
        %v7143 = vpop.permute.xlu0 %7142
        %7144 = vrot.lane.b32.xlu0 %v2762, 16
        %v7145 = vpop.permute.xlu0 %7144
        %7146 = vrot.lane.b32.xlu0 %v2763, 16
        %v7147 = vpop.permute.xlu0 %7146
        %7148 = vrot.lane.b32.xlu0 %v2764, 16
        %v7149 = vpop.permute.xlu0 %7148
        %7150 = vrot.lane.b32.xlu0 %v2765, 16
        %v7151 = vpop.permute.xlu0 %7150
        %v7152 = vrot.slane %v7025, 2
        %v7153 = vrot.slane %v7027, 2
        %v7154 = vrot.slane %v7029, 2
        %v7155 = vrot.slane %v7031, 2
        %v7156 = vrot.slane %v7033, 2
        %v7157 = vrot.slane %v7035, 2
        %v7158 = vrot.slane %v7037, 2
        %v7159 = vrot.slane %v7039, 2
        %v7160 = vrot.slane %v7041, 2
        %v7161 = vrot.slane %v7043, 2
        %v7162 = vrot.slane %v7045, 2
        %v7163 = vrot.slane %v7047, 2
        %v7164 = vrot.slane %v7049, 2
        %v7165 = vrot.slane %v7051, 2
        %v7166 = vrot.slane %v7053, 2
        %v7167 = vrot.slane %v7055, 2
        %v7168 = vrot.slane %v7057, 2
        %v7169 = vrot.slane %v7059, 2
        %v7170 = vrot.slane %v7061, 2
        %v7171 = vrot.slane %v7063, 2
        %v7172 = vrot.slane %v7065, 2
        %v7173 = vrot.slane %v7067, 2
        %v7174 = vrot.slane %v7069, 2
        %v7175 = vrot.slane %v7071, 2
        %v7176 = vrot.slane %v7073, 2
        %v7177 = vrot.slane %v7075, 2
        %v7178 = vrot.slane %v7077, 2
        %v7179 = vrot.slane %v7079, 2
        %v7180 = vrot.slane %v7081, 2
        %v7181 = vrot.slane %v7083, 2
        %v7182 = vrot.slane %v7085, 2
        %v7183 = vrot.slane %v7087, 2
        %v7184 = vrot.slane %v7089, 2
        %v7185 = vrot.slane %v7091, 2
        %v7186 = vrot.slane %v7093, 2
        %v7187 = vrot.slane %v7095, 2
        %v7188 = vrot.slane %v7097, 2
        %v7189 = vrot.slane %v7099, 2
        %v7190 = vrot.slane %v7101, 2
        %v7191 = vrot.slane %v7103, 2
        %v7192 = vrot.slane %v7105, 2
        %v7193 = vrot.slane %v7107, 2
        %v7194 = vrot.slane %v7109, 2
        %v7195 = vrot.slane %v7111, 2
        %v7196 = vrot.slane %v7113, 2
        %v7197 = vrot.slane %v7115, 2
        %v7198 = vrot.slane %v7117, 2
        %v7199 = vrot.slane %v7119, 2
        %v7200 = vrot.slane %v7121, 2
        %v7201 = vrot.slane %v7123, 2
        %v7202 = vrot.slane %v7125, 2
        %v7203 = vrot.slane %v7127, 2
        %v7204 = vrot.slane %v7129, 2
        %v7205 = vrot.slane %v7131, 2
        %v7206 = vrot.slane %v7133, 2
        %v7207 = vrot.slane %v7135, 2
        %v7208 = vrot.slane %v7137, 2
        %v7209 = vrot.slane %v7139, 2
        %v7210 = vrot.slane %v7141, 2
        %v7211 = vrot.slane %v7143, 2
        %v7212 = vrot.slane %v7145, 2
        %v7213 = vrot.slane %v7147, 2
        %v7214 = vrot.slane %v7149, 2
        %v7215 = vrot.slane %v7151, 2
        %v7280 = vmax.f32 %v6896, %v7152
        %v7281 = vmax.f32 %v6897, %v7153
        %v7282 = vmax.f32 %v6898, %v7154
        %v7283 = vmax.f32 %v6899, %v7155
        %v7284 = vmax.f32 %v6900, %v7156
        %v7285 = vmax.f32 %v6901, %v7157
        %v7286 = vmax.f32 %v6902, %v7158
        %v7287 = vmax.f32 %v6903, %v7159
        %v7288 = vmax.f32 %v6904, %v7160
        %v7289 = vmax.f32 %v6905, %v7161
        %v7290 = vmax.f32 %v6906, %v7162
        %v7291 = vmax.f32 %v6907, %v7163
        %v7292 = vmax.f32 %v6908, %v7164
        %v7293 = vmax.f32 %v6909, %v7165
        %v7294 = vmax.f32 %v6910, %v7166
        %v7295 = vmax.f32 %v6911, %v7167
        %v7296 = vmax.f32 %v6912, %v7168
        %v7297 = vmax.f32 %v6913, %v7169
        %v7298 = vmax.f32 %v6914, %v7170
        %v7299 = vmax.f32 %v6915, %v7171
        %v7300 = vmax.f32 %v6916, %v7172
        %v7301 = vmax.f32 %v6917, %v7173
        %v7302 = vmax.f32 %v6918, %v7174
        %v7303 = vmax.f32 %v6919, %v7175
        %v7304 = vmax.f32 %v6920, %v7176
        %v7305 = vmax.f32 %v6921, %v7177
        %v7306 = vmax.f32 %v6922, %v7178
        %v7307 = vmax.f32 %v6923, %v7179
        %v7308 = vmax.f32 %v6924, %v7180
        %v7309 = vmax.f32 %v6925, %v7181
        %v7310 = vmax.f32 %v6926, %v7182
        %v7311 = vmax.f32 %v6927, %v7183
        %v7312 = vmax.f32 %v6928, %v7184
        %v7313 = vmax.f32 %v6929, %v7185
        %v7314 = vmax.f32 %v6930, %v7186
        %v7315 = vmax.f32 %v6931, %v7187
        %v7316 = vmax.f32 %v6932, %v7188
        %v7317 = vmax.f32 %v6933, %v7189
        %v7318 = vmax.f32 %v6934, %v7190
        %v7319 = vmax.f32 %v6935, %v7191
        %v7320 = vmax.f32 %v6936, %v7192
        %v7321 = vmax.f32 %v6937, %v7193
        %v7322 = vmax.f32 %v6938, %v7194
        %v7323 = vmax.f32 %v6939, %v7195
        %v7324 = vmax.f32 %v6940, %v7196
        %v7325 = vmax.f32 %v6941, %v7197
        %v7326 = vmax.f32 %v6942, %v7198
        %v7327 = vmax.f32 %v6943, %v7199
        %v7328 = vmax.f32 %v6944, %v7200
        %v7329 = vmax.f32 %v6945, %v7201
        %v7330 = vmax.f32 %v6946, %v7202
        %v7331 = vmax.f32 %v6947, %v7203
        %v7332 = vmax.f32 %v6948, %v7204
        %v7333 = vmax.f32 %v6949, %v7205
        %v7334 = vmax.f32 %v6950, %v7206
        %v7335 = vmax.f32 %v6951, %v7207
        %v7336 = vmax.f32 %v6952, %v7208
        %v7337 = vmax.f32 %v6953, %v7209
        %v7338 = vmax.f32 %v6954, %v7210
        %v7339 = vmax.f32 %v6955, %v7211
        %v7340 = vmax.f32 %v6956, %v7212
        %v7341 = vmax.f32 %v6957, %v7213
        %v7342 = vmax.f32 %v6958, %v7214
        %v7343 = vmax.f32 %v6959, %v7215
        %v7344 = vpack.c.bf16 %v7280, %v7280
        %v7345 = vpack.c.bf16 %v7281, %v7281
        %v7346 = vpack.c.bf16 %v7282, %v7282
        %v7347 = vpack.c.bf16 %v7283, %v7283
        %v7348 = vpack.c.bf16 %v7284, %v7284
        %v7349 = vpack.c.bf16 %v7285, %v7285
        %v7350 = vpack.c.bf16 %v7286, %v7286
        %v7351 = vpack.c.bf16 %v7287, %v7287
        %v7352 = vpack.c.bf16 %v7288, %v7288
        %v7353 = vpack.c.bf16 %v7289, %v7289
        %v7354 = vpack.c.bf16 %v7290, %v7290
        %v7355 = vpack.c.bf16 %v7291, %v7291
        %v7356 = vpack.c.bf16 %v7292, %v7292
        %v7357 = vpack.c.bf16 %v7293, %v7293
        %v7358 = vpack.c.bf16 %v7294, %v7294
        %v7359 = vpack.c.bf16 %v7295, %v7295
        %v7360 = vpack.c.bf16 %v7296, %v7296
        %v7361 = vpack.c.bf16 %v7297, %v7297
        %v7362 = vpack.c.bf16 %v7298, %v7298
        %v7363 = vpack.c.bf16 %v7299, %v7299
        %v7364 = vpack.c.bf16 %v7300, %v7300
        %v7365 = vpack.c.bf16 %v7301, %v7301
        %v7366 = vpack.c.bf16 %v7302, %v7302
        %v7367 = vpack.c.bf16 %v7303, %v7303
        %v7368 = vpack.c.bf16 %v7304, %v7304
        %v7369 = vpack.c.bf16 %v7305, %v7305
        %v7370 = vpack.c.bf16 %v7306, %v7306
        %v7371 = vpack.c.bf16 %v7307, %v7307
        %v7372 = vpack.c.bf16 %v7308, %v7308
        %v7373 = vpack.c.bf16 %v7309, %v7309
        %v7374 = vpack.c.bf16 %v7310, %v7310
        %v7375 = vpack.c.bf16 %v7311, %v7311
        %v7376 = vpack.c.bf16 %v7312, %v7312
        %v7377 = vpack.c.bf16 %v7313, %v7313
        %v7378 = vpack.c.bf16 %v7314, %v7314
        %v7379 = vpack.c.bf16 %v7315, %v7315
        %v7380 = vpack.c.bf16 %v7316, %v7316
        %v7381 = vpack.c.bf16 %v7317, %v7317
        %v7382 = vpack.c.bf16 %v7318, %v7318
        %v7383 = vpack.c.bf16 %v7319, %v7319
        %v7384 = vpack.c.bf16 %v7320, %v7320
        %v7385 = vpack.c.bf16 %v7321, %v7321
        %v7386 = vpack.c.bf16 %v7322, %v7322
        %v7387 = vpack.c.bf16 %v7323, %v7323
        %v7388 = vpack.c.bf16 %v7324, %v7324
        %v7389 = vpack.c.bf16 %v7325, %v7325
        %v7390 = vpack.c.bf16 %v7326, %v7326
        %v7391 = vpack.c.bf16 %v7327, %v7327
        %v7392 = vpack.c.bf16 %v7328, %v7328
        %v7393 = vpack.c.bf16 %v7329, %v7329
        %v7394 = vpack.c.bf16 %v7330, %v7330
        %v7395 = vpack.c.bf16 %v7331, %v7331
        %v7396 = vpack.c.bf16 %v7332, %v7332
        %v7397 = vpack.c.bf16 %v7333, %v7333
        %v7398 = vpack.c.bf16 %v7334, %v7334
        %v7399 = vpack.c.bf16 %v7335, %v7335
        %v7400 = vpack.c.bf16 %v7336, %v7336
        %v7401 = vpack.c.bf16 %v7337, %v7337
        %v7402 = vpack.c.bf16 %v7338, %v7338
        %v7403 = vpack.c.bf16 %v7339, %v7339
        %v7404 = vpack.c.bf16 %v7340, %v7340
        %v7405 = vpack.c.bf16 %v7341, %v7341
        %v7406 = vpack.c.bf16 %v7342, %v7342
        %v7407 = vpack.c.bf16 %v7343, %v7343
        %v7472 = vunpack.c.l.b16 %v7344
        %v7473 = vunpack.c.l.b16 %v7345
        %v7474 = vunpack.c.l.b16 %v7346
        %v7475 = vunpack.c.l.b16 %v7347
        %v7476 = vunpack.c.l.b16 %v7348
        %v7477 = vunpack.c.l.b16 %v7349
        %v7478 = vunpack.c.l.b16 %v7350
        %v7479 = vunpack.c.l.b16 %v7351
        %v7480 = vunpack.c.l.b16 %v7352
        %v7481 = vunpack.c.l.b16 %v7353
        %v7482 = vunpack.c.l.b16 %v7354
        %v7483 = vunpack.c.l.b16 %v7355
        %v7484 = vunpack.c.l.b16 %v7356
        %v7485 = vunpack.c.l.b16 %v7357
        %v7486 = vunpack.c.l.b16 %v7358
        %v7487 = vunpack.c.l.b16 %v7359
        %v7488 = vunpack.c.l.b16 %v7360
        %v7489 = vunpack.c.l.b16 %v7361
        %v7490 = vunpack.c.l.b16 %v7362
        %v7491 = vunpack.c.l.b16 %v7363
        %v7492 = vunpack.c.l.b16 %v7364
        %v7493 = vunpack.c.l.b16 %v7365
        %v7494 = vunpack.c.l.b16 %v7366
        %v7495 = vunpack.c.l.b16 %v7367
        %v7496 = vunpack.c.l.b16 %v7368
        %v7497 = vunpack.c.l.b16 %v7369
        %v7498 = vunpack.c.l.b16 %v7370
        %v7499 = vunpack.c.l.b16 %v7371
        %v7500 = vunpack.c.l.b16 %v7372
        %v7501 = vunpack.c.l.b16 %v7373
        %v7502 = vunpack.c.l.b16 %v7374
        %v7503 = vunpack.c.l.b16 %v7375
        %v7504 = vunpack.c.l.b16 %v7376
        %v7505 = vunpack.c.l.b16 %v7377
        %v7506 = vunpack.c.l.b16 %v7378
        %v7507 = vunpack.c.l.b16 %v7379
        %v7508 = vunpack.c.l.b16 %v7380
        %v7509 = vunpack.c.l.b16 %v7381
        %v7510 = vunpack.c.l.b16 %v7382
        %v7511 = vunpack.c.l.b16 %v7383
        %v7512 = vunpack.c.l.b16 %v7384
        %v7513 = vunpack.c.l.b16 %v7385
        %v7514 = vunpack.c.l.b16 %v7386
        %v7515 = vunpack.c.l.b16 %v7387
        %v7516 = vunpack.c.l.b16 %v7388
        %v7517 = vunpack.c.l.b16 %v7389
        %v7518 = vunpack.c.l.b16 %v7390
        %v7519 = vunpack.c.l.b16 %v7391
        %v7520 = vunpack.c.l.b16 %v7392
        %v7521 = vunpack.c.l.b16 %v7393
        %v7522 = vunpack.c.l.b16 %v7394
        %v7523 = vunpack.c.l.b16 %v7395
        %v7524 = vunpack.c.l.b16 %v7396
        %v7525 = vunpack.c.l.b16 %v7397
        %v7526 = vunpack.c.l.b16 %v7398
        %v7527 = vunpack.c.l.b16 %v7399
        %v7528 = vunpack.c.l.b16 %v7400
        %v7529 = vunpack.c.l.b16 %v7401
        %v7530 = vunpack.c.l.b16 %v7402
        %v7531 = vunpack.c.l.b16 %v7403
        %v7532 = vunpack.c.l.b16 %v7404
        %v7533 = vunpack.c.l.b16 %v7405
        %v7534 = vunpack.c.l.b16 %v7406
        %v7535 = vunpack.c.l.b16 %v7407
        %v7536 = vpack.c.b16 %v7472, %v7472
        %v7537 = vpack.c.b16 %v7473, %v7473
        %v7538 = vpack.c.b16 %v7474, %v7474
        %v7539 = vpack.c.b16 %v7475, %v7475
        %v7540 = vpack.c.b16 %v7476, %v7476
        %v7541 = vpack.c.b16 %v7477, %v7477
        %v7542 = vpack.c.b16 %v7478, %v7478
        %v7543 = vpack.c.b16 %v7479, %v7479
        %v7544 = vpack.c.b16 %v7480, %v7480
        %v7545 = vpack.c.b16 %v7481, %v7481
        %v7546 = vpack.c.b16 %v7482, %v7482
        %v7547 = vpack.c.b16 %v7483, %v7483
        %v7548 = vpack.c.b16 %v7484, %v7484
        %v7549 = vpack.c.b16 %v7485, %v7485
        %v7550 = vpack.c.b16 %v7486, %v7486
        %v7551 = vpack.c.b16 %v7487, %v7487
        %v7552 = vpack.c.b16 %v7488, %v7488
        %v7553 = vpack.c.b16 %v7489, %v7489
        %v7554 = vpack.c.b16 %v7490, %v7490
        %v7555 = vpack.c.b16 %v7491, %v7491
        %v7556 = vpack.c.b16 %v7492, %v7492
        %v7557 = vpack.c.b16 %v7493, %v7493
        %v7558 = vpack.c.b16 %v7494, %v7494
        %v7559 = vpack.c.b16 %v7495, %v7495
        %v7560 = vpack.c.b16 %v7496, %v7496
        %v7561 = vpack.c.b16 %v7497, %v7497
        %v7562 = vpack.c.b16 %v7498, %v7498
        %v7563 = vpack.c.b16 %v7499, %v7499
        %v7564 = vpack.c.b16 %v7500, %v7500
        %v7565 = vpack.c.b16 %v7501, %v7501
        %v7566 = vpack.c.b16 %v7502, %v7502
        %v7567 = vpack.c.b16 %v7503, %v7503
        %v7568 = vpack.c.b16 %v7504, %v7504
        %v7569 = vpack.c.b16 %v7505, %v7505
        %v7570 = vpack.c.b16 %v7506, %v7506
        %v7571 = vpack.c.b16 %v7507, %v7507
        %v7572 = vpack.c.b16 %v7508, %v7508
        %v7573 = vpack.c.b16 %v7509, %v7509
        %v7574 = vpack.c.b16 %v7510, %v7510
        %v7575 = vpack.c.b16 %v7511, %v7511
        %v7576 = vpack.c.b16 %v7512, %v7512
        %v7577 = vpack.c.b16 %v7513, %v7513
        %v7578 = vpack.c.b16 %v7514, %v7514
        %v7579 = vpack.c.b16 %v7515, %v7515
        %v7580 = vpack.c.b16 %v7516, %v7516
        %v7581 = vpack.c.b16 %v7517, %v7517
        %v7582 = vpack.c.b16 %v7518, %v7518
        %v7583 = vpack.c.b16 %v7519, %v7519
        %v7584 = vpack.c.b16 %v7520, %v7520
        %v7585 = vpack.c.b16 %v7521, %v7521
        %v7586 = vpack.c.b16 %v7522, %v7522
        %v7587 = vpack.c.b16 %v7523, %v7523
        %v7588 = vpack.c.b16 %v7524, %v7524
        %v7589 = vpack.c.b16 %v7525, %v7525
        %v7590 = vpack.c.b16 %v7526, %v7526
        %v7591 = vpack.c.b16 %v7527, %v7527
        %v7592 = vpack.c.b16 %v7528, %v7528
        %v7593 = vpack.c.b16 %v7529, %v7529
        %v7594 = vpack.c.b16 %v7530, %v7530
        %v7595 = vpack.c.b16 %v7531, %v7531
        %v7596 = vpack.c.b16 %v7532, %v7532
        %v7597 = vpack.c.b16 %v7533, %v7533
        %v7598 = vpack.c.b16 %v7534, %v7534
        %v7599 = vpack.c.b16 %v7535, %v7535
        %v7600 = vunpack.c.l.b16 %v7536
        %v7601 = vunpack.c.l.b16 %v7537
        %v7602 = vunpack.c.l.b16 %v7538
        %v7603 = vunpack.c.l.b16 %v7539
        %v7604 = vunpack.c.l.b16 %v7540
        %v7605 = vunpack.c.l.b16 %v7541
        %v7606 = vunpack.c.l.b16 %v7542
        %v7607 = vunpack.c.l.b16 %v7543
        %v7608 = vunpack.c.l.b16 %v7544
        %v7609 = vunpack.c.l.b16 %v7545
        %v7610 = vunpack.c.l.b16 %v7546
        %v7611 = vunpack.c.l.b16 %v7547
        %v7612 = vunpack.c.l.b16 %v7548
        %v7613 = vunpack.c.l.b16 %v7549
        %v7614 = vunpack.c.l.b16 %v7550
        %v7615 = vunpack.c.l.b16 %v7551
        %v7616 = vunpack.c.l.b16 %v7552
        %v7617 = vunpack.c.l.b16 %v7553
        %v7618 = vunpack.c.l.b16 %v7554
        %v7619 = vunpack.c.l.b16 %v7555
        %v7620 = vunpack.c.l.b16 %v7556
        %v7621 = vunpack.c.l.b16 %v7557
        %v7622 = vunpack.c.l.b16 %v7558
        %v7623 = vunpack.c.l.b16 %v7559
        %v7624 = vunpack.c.l.b16 %v7560
        %v7625 = vunpack.c.l.b16 %v7561
        %v7626 = vunpack.c.l.b16 %v7562
        %v7627 = vunpack.c.l.b16 %v7563
        %v7628 = vunpack.c.l.b16 %v7564
        %v7629 = vunpack.c.l.b16 %v7565
        %v7630 = vunpack.c.l.b16 %v7566
        %v7631 = vunpack.c.l.b16 %v7567
        %v7632 = vunpack.c.l.b16 %v7568
        %v7633 = vunpack.c.l.b16 %v7569
        %v7634 = vunpack.c.l.b16 %v7570
        %v7635 = vunpack.c.l.b16 %v7571
        %v7636 = vunpack.c.l.b16 %v7572
        %v7637 = vunpack.c.l.b16 %v7573
        %v7638 = vunpack.c.l.b16 %v7574
        %v7639 = vunpack.c.l.b16 %v7575
        %v7640 = vunpack.c.l.b16 %v7576
        %v7641 = vunpack.c.l.b16 %v7577
        %v7642 = vunpack.c.l.b16 %v7578
        %v7643 = vunpack.c.l.b16 %v7579
        %v7644 = vunpack.c.l.b16 %v7580
        %v7645 = vunpack.c.l.b16 %v7581
        %v7646 = vunpack.c.l.b16 %v7582
        %v7647 = vunpack.c.l.b16 %v7583
        %v7648 = vunpack.c.l.b16 %v7584
        %v7649 = vunpack.c.l.b16 %v7585
        %v7650 = vunpack.c.l.b16 %v7586
        %v7651 = vunpack.c.l.b16 %v7587
        %v7652 = vunpack.c.l.b16 %v7588
        %v7653 = vunpack.c.l.b16 %v7589
        %v7654 = vunpack.c.l.b16 %v7590
        %v7655 = vunpack.c.l.b16 %v7591
        %v7656 = vunpack.c.l.b16 %v7592
        %v7657 = vunpack.c.l.b16 %v7593
        %v7658 = vunpack.c.l.b16 %v7594
        %v7659 = vunpack.c.l.b16 %v7595
        %v7660 = vunpack.c.l.b16 %v7596
        %v7661 = vunpack.c.l.b16 %v7597
        %v7662 = vunpack.c.l.b16 %v7598
        %v7663 = vunpack.c.l.b16 %v7599
        %v7664 = vrot.slane %v7600, 6
        %v7665 = vrot.slane %v7601, 5
        %v7666 = vsel %vm3424, %v7665, %v7664
        %v7667 = vrot.slane %v7602, 4
        %v7668 = vsel %vm3427, %v7667, %v7666
        %v7669 = vrot.slane %v7603, 3
        %v7670 = vsel %vm3430, %v7669, %v7668
        %v7671 = vrot.slane %v7604, 2
        %v7672 = vsel %vm3433, %v7671, %v7670
        %v7673 = vrot.slane %v7605, 1
        %v7674 = vsel %vm3436, %v7673, %v7672
        %v7675 = vrot.slane %v7607, 7
        %v7676 = vsel %vm3439, %v7675, %v7606
        %v7677 = vrot.slane %v7608, 6
        %v7678 = vrot.slane %v7609, 5
        %v7679 = vsel %vm3424, %v7678, %v7677
        %v7680 = vrot.slane %v7610, 4
        %v7681 = vsel %vm3427, %v7680, %v7679
        %v7682 = vrot.slane %v7611, 3
        %v7683 = vsel %vm3430, %v7682, %v7681
        %v7684 = vrot.slane %v7612, 2
        %v7685 = vsel %vm3433, %v7684, %v7683
        %v7686 = vrot.slane %v7613, 1
        %v7687 = vsel %vm3436, %v7686, %v7685
        %v7688 = vrot.slane %v7615, 7
        %v7689 = vsel %vm3439, %v7688, %v7614
        %v7690 = vrot.slane %v7616, 6
        %v7691 = vrot.slane %v7617, 5
        %v7692 = vsel %vm3424, %v7691, %v7690
        %v7693 = vrot.slane %v7618, 4
        %v7694 = vsel %vm3427, %v7693, %v7692
        %v7695 = vrot.slane %v7619, 3
        %v7696 = vsel %vm3430, %v7695, %v7694
        %v7697 = vrot.slane %v7620, 2
        %v7698 = vsel %vm3433, %v7697, %v7696
        %v7699 = vrot.slane %v7621, 1
        %v7700 = vsel %vm3436, %v7699, %v7698
        %v7701 = vrot.slane %v7623, 7
        %v7702 = vsel %vm3439, %v7701, %v7622
        %v7703 = vrot.slane %v7624, 6
        %v7704 = vrot.slane %v7625, 5
        %v7705 = vsel %vm3424, %v7704, %v7703
        %v7706 = vrot.slane %v7626, 4
        %v7707 = vsel %vm3427, %v7706, %v7705
        %v7708 = vrot.slane %v7627, 3
        %v7709 = vsel %vm3430, %v7708, %v7707
        %v7710 = vrot.slane %v7628, 2
        %v7711 = vsel %vm3433, %v7710, %v7709
        %v7712 = vrot.slane %v7629, 1
        %v7713 = vsel %vm3436, %v7712, %v7711
        %v7714 = vrot.slane %v7631, 7
        %v7715 = vsel %vm3439, %v7714, %v7630
        %v7716 = vrot.slane %v7632, 6
        %v7717 = vrot.slane %v7633, 5
        %v7718 = vsel %vm3424, %v7717, %v7716
        %v7719 = vrot.slane %v7634, 4
        %v7720 = vsel %vm3427, %v7719, %v7718
        %v7721 = vrot.slane %v7635, 3
        %v7722 = vsel %vm3430, %v7721, %v7720
        %v7723 = vrot.slane %v7636, 2
        %v7724 = vsel %vm3433, %v7723, %v7722
        %v7725 = vrot.slane %v7637, 1
        %v7726 = vsel %vm3436, %v7725, %v7724
        %v7727 = vrot.slane %v7639, 7
        %v7728 = vsel %vm3439, %v7727, %v7638
        %v7729 = vrot.slane %v7640, 6
        %v7730 = vrot.slane %v7641, 5
        %v7731 = vsel %vm3424, %v7730, %v7729
        %v7732 = vrot.slane %v7642, 4
        %v7733 = vsel %vm3427, %v7732, %v7731
        %v7734 = vrot.slane %v7643, 3
        %v7735 = vsel %vm3430, %v7734, %v7733
        %v7736 = vrot.slane %v7644, 2
        %v7737 = vsel %vm3433, %v7736, %v7735
        %v7738 = vrot.slane %v7645, 1
        %v7739 = vsel %vm3436, %v7738, %v7737
        %v7740 = vrot.slane %v7647, 7
        %v7741 = vsel %vm3439, %v7740, %v7646
        %v7742 = vrot.slane %v7648, 6
        %v7743 = vrot.slane %v7649, 5
        %v7744 = vsel %vm3424, %v7743, %v7742
        %v7745 = vrot.slane %v7650, 4
        %v7746 = vsel %vm3427, %v7745, %v7744
        %v7747 = vrot.slane %v7651, 3
        %v7748 = vsel %vm3430, %v7747, %v7746
        %v7749 = vrot.slane %v7652, 2
        %v7750 = vsel %vm3433, %v7749, %v7748
        %v7751 = vrot.slane %v7653, 1
        %v7752 = vsel %vm3436, %v7751, %v7750
        %v7753 = vrot.slane %v7655, 7
        %v7754 = vsel %vm3439, %v7753, %v7654
        %v7755 = vrot.slane %v7656, 6
        %v7756 = vrot.slane %v7657, 5
        %v7757 = vsel %vm3424, %v7756, %v7755
        %v7758 = vrot.slane %v7658, 4
        %v7759 = vsel %vm3427, %v7758, %v7757
        %v7760 = vrot.slane %v7659, 3
        %v7761 = vsel %vm3430, %v7760, %v7759
        %v7762 = vrot.slane %v7660, 2
        %v7763 = vsel %vm3433, %v7762, %v7761
        %v7764 = vrot.slane %v7661, 1
        %v7765 = vsel %vm3436, %v7764, %v7763
        %v7766 = vrot.slane %v7663, 7
        %v7767 = vsel %vm3439, %v7766, %v7662
        %v7768 = vpack.c.b16 %v7674, %v7674
        %v7769 = vpack.c.b16 %v7676, %v7676
        %v7770 = vpack.c.b16 %v7687, %v7687
        %v7771 = vpack.c.b16 %v7689, %v7689
        %v7772 = vpack.c.b16 %v7700, %v7700
        %v7773 = vpack.c.b16 %v7702, %v7702
        %v7774 = vpack.c.b16 %v7713, %v7713
        %v7775 = vpack.c.b16 %v7715, %v7715
        %v7776 = vpack.c.b16 %v7726, %v7726
        %v7777 = vpack.c.b16 %v7728, %v7728
        %v7778 = vpack.c.b16 %v7739, %v7739
        %v7779 = vpack.c.b16 %v7741, %v7741
        %v7780 = vpack.c.b16 %v7752, %v7752
        %v7781 = vpack.c.b16 %v7754, %v7754
        %v7782 = vpack.c.b16 %v7765, %v7765
        %v7783 = vpack.c.b16 %v7767, %v7767
        %7784 = vrot.lane.b32.xlu0 %v7768, 112
        %v7785 = vpop.permute.xlu0 %7784
        %7786 = vrot.lane.b32.xlu0 %v7769, 112
        %v7787 = vpop.permute.xlu0 %7786
        %7788 = vrot.lane.b32.xlu0 %v7770, 112
        %v7789 = vpop.permute.xlu0 %7788
        %7790 = vrot.lane.b32.xlu0 %v7771, 112
        %v7791 = vpop.permute.xlu0 %7790
        %7792 = vrot.lane.b32.xlu0 %v7772, 112
        %v7793 = vpop.permute.xlu0 %7792
        %7794 = vrot.lane.b32.xlu0 %v7773, 112
        %v7795 = vpop.permute.xlu0 %7794
        %7796 = vrot.lane.b32.xlu0 %v7774, 112
        %v7797 = vpop.permute.xlu0 %7796
        %7798 = vrot.lane.b32.xlu0 %v7775, 112
        %v7799 = vpop.permute.xlu0 %7798
        %7800 = vrot.lane.b32.xlu0 %v7776, 112
        %v7801 = vpop.permute.xlu0 %7800
        %7802 = vrot.lane.b32.xlu0 %v7777, 112
        %v7803 = vpop.permute.xlu0 %7802
        %7804 = vrot.lane.b32.xlu0 %v7778, 112
        %v7805 = vpop.permute.xlu0 %7804
        %7806 = vrot.lane.b32.xlu0 %v7779, 112
        %v7807 = vpop.permute.xlu0 %7806
        %7808 = vrot.lane.b32.xlu0 %v7780, 112
        %v7809 = vpop.permute.xlu0 %7808
        %7810 = vrot.lane.b32.xlu0 %v7781, 112
        %v7811 = vpop.permute.xlu0 %7810
        %7812 = vrot.lane.b32.xlu0 %v7782, 112
        %v7813 = vpop.permute.xlu0 %7812
        %7814 = vrot.lane.b32.xlu0 %v7783, 112
        %v7815 = vpop.permute.xlu0 %7814
        %vm7832 = vcmask 1044353
        %7833 = vst.msk [vmem:[#allocation3] sm:$0xe] %vm7832, %v7785
        %vm7834 = vcmask 1041280
        %7835 = vst.msk [vmem:[#allocation3 + $0x4] sm:$0x1] %vm7834, %v7787
        %7836 = vst.msk [vmem:[#allocation3 + $0x8] sm:$0xe] %vm7832, %v7789
        %7837 = vst.msk [vmem:[#allocation3 + $0xc] sm:$0x1] %vm7834, %v7791
        %7838 = vst.msk [vmem:[#allocation3 + $0x10] sm:$0xe] %vm7832, %v7793
        %7839 = vst.msk [vmem:[#allocation3 + $0x14] sm:$0x1] %vm7834, %v7795
        %7840 = vst.msk [vmem:[#allocation3 + $0x18] sm:$0xe] %vm7832, %v7797
        %7841 = vst.msk [vmem:[#allocation3 + $0x1c] sm:$0x1] %vm7834, %v7799
        %7842 = vst.msk [vmem:[#allocation3 + $0x20] sm:$0xe] %vm7832, %v7801
        %7843 = vst.msk [vmem:[#allocation3 + $0x24] sm:$0x1] %vm7834, %v7803
        %7844 = vst.msk [vmem:[#allocation3 + $0x28] sm:$0xe] %vm7832, %v7805
        %7845 = vst.msk [vmem:[#allocation3 + $0x2c] sm:$0x1] %vm7834, %v7807
        %7846 = vst.msk [vmem:[#allocation3 + $0x30] sm:$0xe] %vm7832, %v7809
        %7847 = vst.msk [vmem:[#allocation3 + $0x34] sm:$0x1] %vm7834, %v7811
        %7848 = vst.msk [vmem:[#allocation3 + $0x38] sm:$0xe] %vm7832, %v7813
        %7849 = vst.msk [vmem:[#allocation3 + $0x3c] sm:$0x1] %vm7834, %v7815
        %v7850 = vld [vmem:[#allocation3] sm:$0xf]
        %v7851 = vld [vmem:[#allocation3 + $0x8] sm:$0xf]
        %v7852 = vld [vmem:[#allocation3 + $0x10] sm:$0xf]
        %v7853 = vld [vmem:[#allocation3 + $0x18] sm:$0xf]
        %v7854 = vld [vmem:[#allocation3 + $0x20] sm:$0xf]
        %v7855 = vld [vmem:[#allocation3 + $0x28] sm:$0xf]
        %v7856 = vld [vmem:[#allocation3 + $0x30] sm:$0xf]
        %v7857 = vld [vmem:[#allocation3 + $0x38] sm:$0xf]
        %v7858 = vld [vmem:[#allocation8] sm:$0xff]
        %v7859 = vld [vmem:[#allocation8 + $0x8] sm:$0xff]
        %v7860 = vld [vmem:[#allocation8 + $0x10] sm:$0xff]
        %v7861 = vld [vmem:[#allocation8 + $0x18] sm:$0xff]
        %v7862 = vld [vmem:[#allocation8 + $0x20] sm:$0xff]
        %v7863 = vld [vmem:[#allocation8 + $0x28] sm:$0xff]
        %v7864 = vld [vmem:[#allocation8 + $0x30] sm:$0xff]
        %v7865 = vld [vmem:[#allocation8 + $0x38] sm:$0xff]
        %v7866 = vld [vmem:[#allocation8 + $0x40] sm:$0xff]
        %v7867 = vld [vmem:[#allocation8 + $0x48] sm:$0xff]
        %v7868 = vld [vmem:[#allocation8 + $0x50] sm:$0xff]
        %v7869 = vld [vmem:[#allocation8 + $0x58] sm:$0xff]
        %v7870 = vld [vmem:[#allocation8 + $0x60] sm:$0xff]
        %v7871 = vld [vmem:[#allocation8 + $0x68] sm:$0xff]
        %v7872 = vld [vmem:[#allocation8 + $0x70] sm:$0xff]
        %v7873 = vld [vmem:[#allocation8 + $0x78] sm:$0xff]
        %v7874 = vld [vmem:[#allocation3 + $0x4] sm:$0x1]
        %v7875 = vld [vmem:[#allocation3 + $0xc] sm:$0x1]
        %v7876 = vld [vmem:[#allocation3 + $0x14] sm:$0x1]
        %v7877 = vld [vmem:[#allocation3 + $0x1c] sm:$0x1]
        %v7878 = vld [vmem:[#allocation3 + $0x24] sm:$0x1]
        %v7879 = vld [vmem:[#allocation3 + $0x2c] sm:$0x1]
        %v7880 = vld [vmem:[#allocation3 + $0x34] sm:$0x1]
        %v7881 = vld [vmem:[#allocation3 + $0x3c] sm:$0x1]
        %v7883 = vshrl.u32 %v7850, 16
        %v7885 = vrot.slane %v7883, 4
        %v7886 = vshll.u32 %v7850, 16
        %v7888 = vrot.slane %v7886, 5
        %v7889 = vor.u32 %v7885, %v7888
        %v7890 = vrot.slane %v7889, 4
        %v7892 = vshll.u32 %v7874, 16
        %v7894 = vrot.slane %v7892, 5
        %v7895 = vsel %vm516, %v7890, %v7894
        %v7897 = vshrl.u32 %v7851, 16
        %v7899 = vrot.slane %v7897, 4
        %v7900 = vshll.u32 %v7851, 16
        %v7902 = vrot.slane %v7900, 5
        %v7903 = vor.u32 %v7899, %v7902
        %v7904 = vrot.slane %v7903, 4
        %v7906 = vshll.u32 %v7875, 16
        %v7908 = vrot.slane %v7906, 5
        %v7909 = vsel %vm516, %v7904, %v7908
        %v7911 = vshrl.u32 %v7852, 16
        %v7913 = vrot.slane %v7911, 4
        %v7914 = vshll.u32 %v7852, 16
        %v7916 = vrot.slane %v7914, 5
        %v7917 = vor.u32 %v7913, %v7916
        %v7918 = vrot.slane %v7917, 4
        %v7920 = vshll.u32 %v7876, 16
        %v7922 = vrot.slane %v7920, 5
        %v7923 = vsel %vm516, %v7918, %v7922
        %v7925 = vshrl.u32 %v7853, 16
        %v7927 = vrot.slane %v7925, 4
        %v7928 = vshll.u32 %v7853, 16
        %v7930 = vrot.slane %v7928, 5
        %v7931 = vor.u32 %v7927, %v7930
        %v7932 = vrot.slane %v7931, 4
        %v7934 = vshll.u32 %v7877, 16
        %v7936 = vrot.slane %v7934, 5
        %v7937 = vsel %vm516, %v7932, %v7936
        %v7939 = vshrl.u32 %v7854, 16
        %v7941 = vrot.slane %v7939, 4
        %v7942 = vshll.u32 %v7854, 16
        %v7944 = vrot.slane %v7942, 5
        %v7945 = vor.u32 %v7941, %v7944
        %v7946 = vrot.slane %v7945, 4
        %v7948 = vshll.u32 %v7878, 16
        %v7950 = vrot.slane %v7948, 5
        %v7951 = vsel %vm516, %v7946, %v7950
        %v7953 = vshrl.u32 %v7855, 16
        %v7955 = vrot.slane %v7953, 4
        %v7956 = vshll.u32 %v7855, 16
        %v7958 = vrot.slane %v7956, 5
        %v7959 = vor.u32 %v7955, %v7958
        %v7960 = vrot.slane %v7959, 4
        %v7962 = vshll.u32 %v7879, 16
        %v7964 = vrot.slane %v7962, 5
        %v7965 = vsel %vm516, %v7960, %v7964
        %v7967 = vshrl.u32 %v7856, 16
        %v7969 = vrot.slane %v7967, 4
        %v7970 = vshll.u32 %v7856, 16
        %v7972 = vrot.slane %v7970, 5
        %v7973 = vor.u32 %v7969, %v7972
        %v7974 = vrot.slane %v7973, 4
        %v7976 = vshll.u32 %v7880, 16
        %v7978 = vrot.slane %v7976, 5
        %v7979 = vsel %vm516, %v7974, %v7978
        %v7981 = vshrl.u32 %v7857, 16
        %v7983 = vrot.slane %v7981, 4
        %v7984 = vshll.u32 %v7857, 16
        %v7986 = vrot.slane %v7984, 5
        %v7987 = vor.u32 %v7983, %v7986
        %v7988 = vrot.slane %v7987, 4
        %v7990 = vshll.u32 %v7881, 16
        %v7992 = vrot.slane %v7990, 5
        %v7993 = vsel %vm516, %v7988, %v7992
        %s7994 = scalar_lea.vmem [#allocation8], 128
        %v7995 = vld [vmem:[%s7994] sm:$0xff]
        %v7996 = vld [vmem:[%s7994 + $0x8] sm:$0xff]
        %v7997 = vld [vmem:[%s7994 + $0x10] sm:$0xff]
        %v7998 = vld [vmem:[%s7994 + $0x18] sm:$0xff]
        %v7999 = vld [vmem:[%s7994 + $0x20] sm:$0xff]
        %v8000 = vld [vmem:[%s7994 + $0x28] sm:$0xff]
        %v8001 = vld [vmem:[%s7994 + $0x30] sm:$0xff]
        %v8002 = vld [vmem:[%s7994 + $0x38] sm:$0xff]
        %v8003 = vld [vmem:[%s7994 + $0x40] sm:$0xff]
        %v8004 = vld [vmem:[%s7994 + $0x48] sm:$0xff]
        %v8005 = vld [vmem:[%s7994 + $0x50] sm:$0xff]
        %v8006 = vld [vmem:[%s7994 + $0x58] sm:$0xff]
        %v8007 = vld [vmem:[%s7994 + $0x60] sm:$0xff]
        %v8008 = vld [vmem:[%s7994 + $0x68] sm:$0xff]
        %v8009 = vld [vmem:[%s7994 + $0x70] sm:$0xff]
        %v8010 = vld [vmem:[%s7994 + $0x78] sm:$0xff]
        %v8011 = vunpack.c.l.b16 %v7895
        %v8012 = vunpack.c.l.b16 %v7909
        %v8013 = vunpack.c.l.b16 %v7923
        %v8014 = vunpack.c.l.b16 %v7937
        %v8015 = vunpack.c.l.b16 %v7951
        %v8016 = vunpack.c.l.b16 %v7965
        %v8017 = vunpack.c.l.b16 %v7979
        %v8018 = vunpack.c.l.b16 %v7993
        %v8019 = vpack.c.b16 %v8012, %v8011
        %v8020 = vpack.c.b16 %v8014, %v8013
        %v8021 = vpack.c.b16 %v8016, %v8015
        %v8022 = vpack.c.b16 %v8018, %v8017
        %v8043 = vunpack.c.l.b16 %v7995
        %v8044 = vunpack.c.h.b16 %v7995
        %v8045 = vunpack.c.l.b16 %v7996
        %v8046 = vunpack.c.h.b16 %v7996
        %v8047 = vunpack.c.l.b16 %v7997
        %v8048 = vunpack.c.h.b16 %v7997
        %v8049 = vunpack.c.l.b16 %v7998
        %v8050 = vunpack.c.h.b16 %v7998
        %v8051 = vunpack.c.l.b16 %v7999
        %v8052 = vunpack.c.h.b16 %v7999
        %v8053 = vunpack.c.l.b16 %v8000
        %v8054 = vunpack.c.h.b16 %v8000
        %v8055 = vunpack.c.l.b16 %v8001
        %v8056 = vunpack.c.h.b16 %v8001
        %v8057 = vunpack.c.l.b16 %v8002
        %v8058 = vunpack.c.h.b16 %v8002
        %v8059 = vunpack.c.l.b16 %v8003
        %v8060 = vunpack.c.h.b16 %v8003
        %v8061 = vunpack.c.l.b16 %v8004
        %v8062 = vunpack.c.h.b16 %v8004
        %v8063 = vunpack.c.l.b16 %v8005
        %v8064 = vunpack.c.h.b16 %v8005
        %v8065 = vunpack.c.l.b16 %v8006
        %v8066 = vunpack.c.h.b16 %v8006
        %v8067 = vunpack.c.l.b16 %v8007
        %v8068 = vunpack.c.h.b16 %v8007
        %v8069 = vunpack.c.l.b16 %v8008
        %v8070 = vunpack.c.h.b16 %v8008
        %v8071 = vunpack.c.l.b16 %v8009
        %v8072 = vunpack.c.h.b16 %v8009
        %v8073 = vunpack.c.l.b16 %v8010
        %v8074 = vunpack.c.h.b16 %v8010
        %v8075 = vpack.c.b16 %v8045, %v8043
        %v8076 = vpack.c.b16 %v8046, %v8044
        %v8077 = vpack.c.b16 %v8049, %v8047
        %v8078 = vpack.c.b16 %v8050, %v8048
        %v8079 = vpack.c.b16 %v8053, %v8051
        %v8080 = vpack.c.b16 %v8054, %v8052
        %v8081 = vpack.c.b16 %v8057, %v8055
        %v8082 = vpack.c.b16 %v8058, %v8056
        %v8083 = vpack.c.b16 %v8061, %v8059
        %v8084 = vpack.c.b16 %v8062, %v8060
        %v8085 = vpack.c.b16 %v8065, %v8063
        %v8086 = vpack.c.b16 %v8066, %v8064
        %v8087 = vpack.c.b16 %v8069, %v8067
        %v8088 = vpack.c.b16 %v8070, %v8068
        %v8089 = vpack.c.b16 %v8073, %v8071
        %v8090 = vpack.c.b16 %v8074, %v8072
        %8107 = vmatprep.subr.bf16.mxu0 %v8090
        %8108 = vmatpush1.bf16.msra.mxu0 %v8089
        %8109 = vmatprep.subr.bf16.mxu0 %v8088
        %8110 = vmatpush1.bf16.msra.mxu0 %v8087
        %8111 = vmatprep.subr.bf16.mxu0 %v8086
        %8112 = vmatpush1.bf16.msra.mxu0 %v8085
        %8113 = vmatprep.subr.bf16.mxu0 %v8084
        %8114 = vmatpush1.bf16.msra.mxu0 %v8083
        %8115 = vmatprep.subr.bf16.mxu0 %v8082
        %8116 = vmatpush1.bf16.msra.mxu0 %v8081
        %8117 = vmatprep.subr.bf16.mxu0 %v8080
        %8118 = vmatpush1.bf16.msra.mxu0 %v8079
        %8119 = vmatprep.subr.bf16.mxu0 %v8078
        %8120 = vmatpush1.bf16.msra.mxu0 %v8077
        %8121 = vmatprep.subr.bf16.mxu0 %v8076
        %8122 = vmatpush1.bf16.msra.mxu0 %v8075
        %8123 = vmatprep.subr.bf16.mxu0 0
        %8124 = vmatpush2.bf16.msra.mxu0 0
        %8125 = vmatprep.subr.bf16.mxu0 0
        %8126 = vmatpush2.bf16.msra.mxu0 0
        %8127 = vmatprep.subr.bf16.mxu0 0
        %8128 = vmatpush2.bf16.msra.mxu0 0
        %8129 = vmatprep.subr.bf16.mxu0 0
        %8130 = vmatpush2.bf16.msra.mxu0 0
        %8131 = vmatprep.subr.bf16.mxu0 0
        %8132 = vmatpush2.bf16.msra.mxu0 0
        %8133 = vmatprep.subr.bf16.mxu0 0
        %8134 = vmatpush2.bf16.msra.mxu0 0
        %8135 = vmatprep.subr.bf16.mxu0 0
        %8136 = vmatpush2.bf16.msra.mxu0 0
        %8137 = vmatprep.subr.bf16.mxu0 0
        %8138 = vmatpush2.bf16.msra.mxu0 0
        %8139 = vmatprep.mubr.bf16.mxu0 0
        %8140 = vmatmul.mubr.bf16.gmra.mxu0 %v8019
        %v8141 = vpop.f32.mrf.mxu0
        %v8142 = vadd.f32 0.0, %v8141
        %v8143 = vpop.f32.mrf.mxu0
        %v8144 = vadd.f32 0.0, %v8143
        %v8145 = vpop.f32.mrf.mxu0
        %v8146 = vadd.f32 0.0, %v8145
        %v8147 = vpop.f32.mrf.mxu0
        %v8148 = vadd.f32 0.0, %v8147
        %8149 = vmatprep.mubr.bf16.mxu0 0
        %8150 = vmatmul.mubr.bf16.gmra.mxu0 %v8020
        %v8151 = vpop.f32.mrf.mxu0
        %v8152 = vadd.f32 0.0, %v8151
        %v8153 = vpop.f32.mrf.mxu0
        %v8154 = vadd.f32 0.0, %v8153
        %v8155 = vpop.f32.mrf.mxu0
        %v8156 = vadd.f32 0.0, %v8155
        %v8157 = vpop.f32.mrf.mxu0
        %v8158 = vadd.f32 0.0, %v8157
        %8159 = vmatprep.mubr.bf16.mxu0 0
        %8160 = vmatmul.mubr.bf16.gmra.mxu0 %v8021
        %v8161 = vpop.f32.mrf.mxu0
        %v8162 = vadd.f32 0.0, %v8161
        %v8163 = vpop.f32.mrf.mxu0
        %v8164 = vadd.f32 0.0, %v8163
        %v8165 = vpop.f32.mrf.mxu0
        %v8166 = vadd.f32 0.0, %v8165
        %v8167 = vpop.f32.mrf.mxu0
        %v8168 = vadd.f32 0.0, %v8167
        %8169 = vmatprep.mubr.bf16.mxu0 0
        %8170 = vmatmul.mubr.bf16.gmra.mxu0 %v8022
        %v8171 = vpop.f32.mrf.mxu0
        %v8172 = vadd.f32 0.0, %v8171
        %v8173 = vpop.f32.mrf.mxu0
        %v8174 = vadd.f32 0.0, %v8173
        %v8175 = vpop.f32.mrf.mxu0
        %v8176 = vadd.f32 0.0, %v8175
        %v8177 = vpop.f32.mrf.mxu0
        %v8178 = vadd.f32 0.0, %v8177
        %8179 = vdwg.mxu0
        %v8188 = vunpack.c.l.b16 %v7850
        %v8189 = vunpack.c.l.b16 %v7851
        %v8190 = vunpack.c.l.b16 %v7852
        %v8191 = vunpack.c.l.b16 %v7853
        %v8192 = vunpack.c.l.b16 %v7854
        %v8193 = vunpack.c.l.b16 %v7855
        %v8194 = vunpack.c.l.b16 %v7856
        %v8195 = vunpack.c.l.b16 %v7857
        %v8196 = vpack.c.b16 %v8189, %v8188
        %v8197 = vpack.c.b16 %v8191, %v8190
        %v8198 = vpack.c.b16 %v8193, %v8192
        %v8199 = vpack.c.b16 %v8195, %v8194
        %v8220 = vunpack.c.l.b16 %v7858
        %v8221 = vunpack.c.h.b16 %v7858
        %v8222 = vunpack.c.l.b16 %v7859
        %v8223 = vunpack.c.h.b16 %v7859
        %v8224 = vunpack.c.l.b16 %v7860
        %v8225 = vunpack.c.h.b16 %v7860
        %v8226 = vunpack.c.l.b16 %v7861
        %v8227 = vunpack.c.h.b16 %v7861
        %v8228 = vunpack.c.l.b16 %v7862
        %v8229 = vunpack.c.h.b16 %v7862
        %v8230 = vunpack.c.l.b16 %v7863
        %v8231 = vunpack.c.h.b16 %v7863
        %v8232 = vunpack.c.l.b16 %v7864
        %v8233 = vunpack.c.h.b16 %v7864
        %v8234 = vunpack.c.l.b16 %v7865
        %v8235 = vunpack.c.h.b16 %v7865
        %v8236 = vunpack.c.l.b16 %v7866
        %v8237 = vunpack.c.h.b16 %v7866
        %v8238 = vunpack.c.l.b16 %v7867
        %v8239 = vunpack.c.h.b16 %v7867
        %v8240 = vunpack.c.l.b16 %v7868
        %v8241 = vunpack.c.h.b16 %v7868
        %v8242 = vunpack.c.l.b16 %v7869
        %v8243 = vunpack.c.h.b16 %v7869
        %v8244 = vunpack.c.l.b16 %v7870
        %v8245 = vunpack.c.h.b16 %v7870
        %v8246 = vunpack.c.l.b16 %v7871
        %v8247 = vunpack.c.h.b16 %v7871
        %v8248 = vunpack.c.l.b16 %v7872
        %v8249 = vunpack.c.h.b16 %v7872
        %v8250 = vunpack.c.l.b16 %v7873
        %v8251 = vunpack.c.h.b16 %v7873
        %v8252 = vpack.c.b16 %v8222, %v8220
        %v8253 = vpack.c.b16 %v8223, %v8221
        %v8254 = vpack.c.b16 %v8226, %v8224
        %v8255 = vpack.c.b16 %v8227, %v8225
        %v8256 = vpack.c.b16 %v8230, %v8228
        %v8257 = vpack.c.b16 %v8231, %v8229
        %v8258 = vpack.c.b16 %v8234, %v8232
        %v8259 = vpack.c.b16 %v8235, %v8233
        %v8260 = vpack.c.b16 %v8238, %v8236
        %v8261 = vpack.c.b16 %v8239, %v8237
        %v8262 = vpack.c.b16 %v8242, %v8240
        %v8263 = vpack.c.b16 %v8243, %v8241
        %v8264 = vpack.c.b16 %v8246, %v8244
        %v8265 = vpack.c.b16 %v8247, %v8245
        %v8266 = vpack.c.b16 %v8250, %v8248
        %v8267 = vpack.c.b16 %v8251, %v8249
        %8284 = vmatprep.subr.bf16.mxu0 %v8267
        %8285 = vmatpush1.bf16.msra.mxu0 %v8266
        %8286 = vmatprep.subr.bf16.mxu0 %v8265
        %8287 = vmatpush1.bf16.msra.mxu0 %v8264
        %8288 = vmatprep.subr.bf16.mxu0 %v8263
        %8289 = vmatpush1.bf16.msra.mxu0 %v8262
        %8290 = vmatprep.subr.bf16.mxu0 %v8261
        %8291 = vmatpush1.bf16.msra.mxu0 %v8260
        %8292 = vmatprep.subr.bf16.mxu0 %v8259
        %8293 = vmatpush1.bf16.msra.mxu0 %v8258
        %8294 = vmatprep.subr.bf16.mxu0 %v8257
        %8295 = vmatpush1.bf16.msra.mxu0 %v8256
        %8296 = vmatprep.subr.bf16.mxu0 %v8255
        %8297 = vmatpush1.bf16.msra.mxu0 %v8254
        %8298 = vmatprep.subr.bf16.mxu0 %v8253
        %8299 = vmatpush1.bf16.msra.mxu0 %v8252
        %8300 = vmatprep.subr.bf16.mxu0 0
        %8301 = vmatpush2.bf16.msra.mxu0 0
        %8302 = vmatprep.subr.bf16.mxu0 0
        %8303 = vmatpush2.bf16.msra.mxu0 0
        %8304 = vmatprep.subr.bf16.mxu0 0
        %8305 = vmatpush2.bf16.msra.mxu0 0
        %8306 = vmatprep.subr.bf16.mxu0 0
        %8307 = vmatpush2.bf16.msra.mxu0 0
        %8308 = vmatprep.subr.bf16.mxu0 0
        %8309 = vmatpush2.bf16.msra.mxu0 0
        %8310 = vmatprep.subr.bf16.mxu0 0
        %8311 = vmatpush2.bf16.msra.mxu0 0
        %8312 = vmatprep.subr.bf16.mxu0 0
        %8313 = vmatpush2.bf16.msra.mxu0 0
        %8314 = vmatprep.subr.bf16.mxu0 0
        %8315 = vmatpush2.bf16.msra.mxu0 0
        %8316 = vmatprep.mubr.bf16.mxu0 0
        %8317 = vmatmul.mubr.bf16.gmra.mxu0 %v8196
        %v8318 = vpop.f32.mrf.mxu0
        %v8319 = vadd.f32 %v8142, %v8318
        %v8320 = vpop.f32.mrf.mxu0
        %v8321 = vadd.f32 %v8144, %v8320
        %v8322 = vpop.f32.mrf.mxu0
        %v8323 = vadd.f32 %v8146, %v8322
        %v8324 = vpop.f32.mrf.mxu0
        %v8325 = vadd.f32 %v8148, %v8324
        %8326 = vmatprep.mubr.bf16.mxu0 0
        %8327 = vmatmul.mubr.bf16.gmra.mxu0 %v8197
        %v8328 = vpop.f32.mrf.mxu0
        %v8329 = vadd.f32 %v8152, %v8328
        %v8330 = vpop.f32.mrf.mxu0
        %v8331 = vadd.f32 %v8154, %v8330
        %v8332 = vpop.f32.mrf.mxu0
        %v8333 = vadd.f32 %v8156, %v8332
        %v8334 = vpop.f32.mrf.mxu0
        %v8335 = vadd.f32 %v8158, %v8334
        %8336 = vmatprep.mubr.bf16.mxu0 0
        %8337 = vmatmul.mubr.bf16.gmra.mxu0 %v8198
        %v8338 = vpop.f32.mrf.mxu0
        %v8339 = vadd.f32 %v8162, %v8338
        %v8340 = vpop.f32.mrf.mxu0
        %v8341 = vadd.f32 %v8164, %v8340
        %v8342 = vpop.f32.mrf.mxu0
        %v8343 = vadd.f32 %v8166, %v8342
        %v8344 = vpop.f32.mrf.mxu0
        %v8345 = vadd.f32 %v8168, %v8344
        %8346 = vmatprep.mubr.bf16.mxu0 0
        %8347 = vmatmul.mubr.bf16.gmra.mxu0 %v8199
        %v8348 = vpop.f32.mrf.mxu0
        %v8349 = vadd.f32 %v8172, %v8348
        %v8350 = vpop.f32.mrf.mxu0
        %v8351 = vadd.f32 %v8174, %v8350
        %v8352 = vpop.f32.mrf.mxu0
        %v8353 = vadd.f32 %v8176, %v8352
        %v8354 = vpop.f32.mrf.mxu0
        %v8355 = vadd.f32 %v8178, %v8354
        %8356 = vdwg.mxu0
        %v8357 = vld [vmem:[#allocation3] sm:$0xe]
        %v8358 = vld [vmem:[#allocation3 + $0x8] sm:$0xe]
        %v8359 = vld [vmem:[#allocation3 + $0x10] sm:$0xe]
        %v8360 = vld [vmem:[#allocation3 + $0x18] sm:$0xe]
        %v8361 = vld [vmem:[#allocation3 + $0x20] sm:$0xe]
        %v8362 = vld [vmem:[#allocation3 + $0x28] sm:$0xe]
        %v8363 = vld [vmem:[#allocation3 + $0x30] sm:$0xe]
        %v8364 = vld [vmem:[#allocation3 + $0x38] sm:$0xe]
        %v8381 = vrot.slane %v8357, 5
        %v8382 = vrot.slane %v8381, 4
        %v8383 = vrot.slane %v7874, 5
        %v8384 = vsel %vm1097, %v8382, %v8383
        %v8385 = vrot.slane %v8358, 5
        %v8386 = vrot.slane %v8385, 4
        %v8387 = vrot.slane %v7875, 5
        %v8388 = vsel %vm1097, %v8386, %v8387
        %v8389 = vrot.slane %v8359, 5
        %v8390 = vrot.slane %v8389, 4
        %v8391 = vrot.slane %v7876, 5
        %v8392 = vsel %vm1097, %v8390, %v8391
        %v8393 = vrot.slane %v8360, 5
        %v8394 = vrot.slane %v8393, 4
        %v8395 = vrot.slane %v7877, 5
        %v8396 = vsel %vm1097, %v8394, %v8395
        %v8397 = vrot.slane %v8361, 5
        %v8398 = vrot.slane %v8397, 4
        %v8399 = vrot.slane %v7878, 5
        %v8400 = vsel %vm1097, %v8398, %v8399
        %v8401 = vrot.slane %v8362, 5
        %v8402 = vrot.slane %v8401, 4
        %v8403 = vrot.slane %v7879, 5
        %v8404 = vsel %vm1097, %v8402, %v8403
        %v8405 = vrot.slane %v8363, 5
        %v8406 = vrot.slane %v8405, 4
        %v8407 = vrot.slane %v7880, 5
        %v8408 = vsel %vm1097, %v8406, %v8407
        %v8409 = vrot.slane %v8364, 5
        %v8410 = vrot.slane %v8409, 4
        %v8411 = vrot.slane %v7881, 5
        %v8412 = vsel %vm1097, %v8410, %v8411
        %s8413 = scalar_lea.vmem [#allocation8], 256
        %v8414 = vld [vmem:[%s8413] sm:$0xff]
        %v8415 = vld [vmem:[%s8413 + $0x8] sm:$0xff]
        %v8416 = vld [vmem:[%s8413 + $0x10] sm:$0xff]
        %v8417 = vld [vmem:[%s8413 + $0x18] sm:$0xff]
        %v8418 = vld [vmem:[%s8413 + $0x20] sm:$0xff]
        %v8419 = vld [vmem:[%s8413 + $0x28] sm:$0xff]
        %v8420 = vld [vmem:[%s8413 + $0x30] sm:$0xff]
        %v8421 = vld [vmem:[%s8413 + $0x38] sm:$0xff]
        %v8422 = vld [vmem:[%s8413 + $0x40] sm:$0xff]
        %v8423 = vld [vmem:[%s8413 + $0x48] sm:$0xff]
        %v8424 = vld [vmem:[%s8413 + $0x50] sm:$0xff]
        %v8425 = vld [vmem:[%s8413 + $0x58] sm:$0xff]
        %v8426 = vld [vmem:[%s8413 + $0x60] sm:$0xff]
        %v8427 = vld [vmem:[%s8413 + $0x68] sm:$0xff]
        %v8428 = vld [vmem:[%s8413 + $0x70] sm:$0xff]
        %v8429 = vld [vmem:[%s8413 + $0x78] sm:$0xff]
        %v8430 = vunpack.c.l.b16 %v8384
        %v8431 = vunpack.c.l.b16 %v8388
        %v8432 = vunpack.c.l.b16 %v8392
        %v8433 = vunpack.c.l.b16 %v8396
        %v8434 = vunpack.c.l.b16 %v8400
        %v8435 = vunpack.c.l.b16 %v8404
        %v8436 = vunpack.c.l.b16 %v8408
        %v8437 = vunpack.c.l.b16 %v8412
        %v8438 = vpack.c.b16 %v8431, %v8430
        %v8439 = vpack.c.b16 %v8433, %v8432
        %v8440 = vpack.c.b16 %v8435, %v8434
        %v8441 = vpack.c.b16 %v8437, %v8436
        %v8462 = vunpack.c.l.b16 %v8414
        %v8463 = vunpack.c.h.b16 %v8414
        %v8464 = vunpack.c.l.b16 %v8415
        %v8465 = vunpack.c.h.b16 %v8415
        %v8466 = vunpack.c.l.b16 %v8416
        %v8467 = vunpack.c.h.b16 %v8416
        %v8468 = vunpack.c.l.b16 %v8417
        %v8469 = vunpack.c.h.b16 %v8417
        %v8470 = vunpack.c.l.b16 %v8418
        %v8471 = vunpack.c.h.b16 %v8418
        %v8472 = vunpack.c.l.b16 %v8419
        %v8473 = vunpack.c.h.b16 %v8419
        %v8474 = vunpack.c.l.b16 %v8420
        %v8475 = vunpack.c.h.b16 %v8420
        %v8476 = vunpack.c.l.b16 %v8421
        %v8477 = vunpack.c.h.b16 %v8421
        %v8478 = vunpack.c.l.b16 %v8422
        %v8479 = vunpack.c.h.b16 %v8422
        %v8480 = vunpack.c.l.b16 %v8423
        %v8481 = vunpack.c.h.b16 %v8423
        %v8482 = vunpack.c.l.b16 %v8424
        %v8483 = vunpack.c.h.b16 %v8424
        %v8484 = vunpack.c.l.b16 %v8425
        %v8485 = vunpack.c.h.b16 %v8425
        %v8486 = vunpack.c.l.b16 %v8426
        %v8487 = vunpack.c.h.b16 %v8426
        %v8488 = vunpack.c.l.b16 %v8427
        %v8489 = vunpack.c.h.b16 %v8427
        %v8490 = vunpack.c.l.b16 %v8428
        %v8491 = vunpack.c.h.b16 %v8428
        %v8492 = vunpack.c.l.b16 %v8429
        %v8493 = vunpack.c.h.b16 %v8429
        %v8494 = vpack.c.b16 %v8464, %v8462
        %v8495 = vpack.c.b16 %v8465, %v8463
        %v8496 = vpack.c.b16 %v8468, %v8466
        %v8497 = vpack.c.b16 %v8469, %v8467
        %v8498 = vpack.c.b16 %v8472, %v8470
        %v8499 = vpack.c.b16 %v8473, %v8471
        %v8500 = vpack.c.b16 %v8476, %v8474
        %v8501 = vpack.c.b16 %v8477, %v8475
        %v8502 = vpack.c.b16 %v8480, %v8478
        %v8503 = vpack.c.b16 %v8481, %v8479
        %v8504 = vpack.c.b16 %v8484, %v8482
        %v8505 = vpack.c.b16 %v8485, %v8483
        %v8506 = vpack.c.b16 %v8488, %v8486
        %v8507 = vpack.c.b16 %v8489, %v8487
        %v8508 = vpack.c.b16 %v8492, %v8490
        %v8509 = vpack.c.b16 %v8493, %v8491
        %8526 = vmatprep.subr.bf16.mxu0 %v8509
        %8527 = vmatpush1.bf16.msra.mxu0 %v8508
        %8528 = vmatprep.subr.bf16.mxu0 %v8507
        %8529 = vmatpush1.bf16.msra.mxu0 %v8506
        %8530 = vmatprep.subr.bf16.mxu0 %v8505
        %8531 = vmatpush1.bf16.msra.mxu0 %v8504
        %8532 = vmatprep.subr.bf16.mxu0 %v8503
        %8533 = vmatpush1.bf16.msra.mxu0 %v8502
        %8534 = vmatprep.subr.bf16.mxu0 %v8501
        %8535 = vmatpush1.bf16.msra.mxu0 %v8500
        %8536 = vmatprep.subr.bf16.mxu0 %v8499
        %8537 = vmatpush1.bf16.msra.mxu0 %v8498
        %8538 = vmatprep.subr.bf16.mxu0 %v8497
        %8539 = vmatpush1.bf16.msra.mxu0 %v8496
        %8540 = vmatprep.subr.bf16.mxu0 %v8495
        %8541 = vmatpush1.bf16.msra.mxu0 %v8494
        %8542 = vmatprep.subr.bf16.mxu0 0
        %8543 = vmatpush2.bf16.msra.mxu0 0
        %8544 = vmatprep.subr.bf16.mxu0 0
        %8545 = vmatpush2.bf16.msra.mxu0 0
        %8546 = vmatprep.subr.bf16.mxu0 0
        %8547 = vmatpush2.bf16.msra.mxu0 0
        %8548 = vmatprep.subr.bf16.mxu0 0
        %8549 = vmatpush2.bf16.msra.mxu0 0
        %8550 = vmatprep.subr.bf16.mxu0 0
        %8551 = vmatpush2.bf16.msra.mxu0 0
        %8552 = vmatprep.subr.bf16.mxu0 0
        %8553 = vmatpush2.bf16.msra.mxu0 0
        %8554 = vmatprep.subr.bf16.mxu0 0
        %8555 = vmatpush2.bf16.msra.mxu0 0
        %8556 = vmatprep.subr.bf16.mxu0 0
        %8557 = vmatpush2.bf16.msra.mxu0 0
        %8558 = vmatprep.mubr.bf16.mxu0 0
        %8559 = vmatmul.mubr.bf16.gmra.mxu0 %v8438
        %v8560 = vpop.f32.mrf.mxu0
        %v8561 = vadd.f32 0.0, %v8560
        %v8562 = vpop.f32.mrf.mxu0
        %v8563 = vadd.f32 0.0, %v8562
        %v8564 = vpop.f32.mrf.mxu0
        %v8565 = vadd.f32 0.0, %v8564
        %v8566 = vpop.f32.mrf.mxu0
        %v8567 = vadd.f32 0.0, %v8566
        %8568 = vmatprep.mubr.bf16.mxu0 0
        %8569 = vmatmul.mubr.bf16.gmra.mxu0 %v8439
        %v8570 = vpop.f32.mrf.mxu0
        %v8571 = vadd.f32 0.0, %v8570
        %v8572 = vpop.f32.mrf.mxu0
        %v8573 = vadd.f32 0.0, %v8572
        %v8574 = vpop.f32.mrf.mxu0
        %v8575 = vadd.f32 0.0, %v8574
        %v8576 = vpop.f32.mrf.mxu0
        %v8577 = vadd.f32 0.0, %v8576
        %8578 = vmatprep.mubr.bf16.mxu0 0
        %8579 = vmatmul.mubr.bf16.gmra.mxu0 %v8440
        %v8580 = vpop.f32.mrf.mxu0
        %v8581 = vadd.f32 0.0, %v8580
        %v8582 = vpop.f32.mrf.mxu0
        %v8583 = vadd.f32 0.0, %v8582
        %v8584 = vpop.f32.mrf.mxu0
        %v8585 = vadd.f32 0.0, %v8584
        %v8586 = vpop.f32.mrf.mxu0
        %v8587 = vadd.f32 0.0, %v8586
        %8588 = vmatprep.mubr.bf16.mxu0 0
        %8589 = vmatmul.mubr.bf16.gmra.mxu0 %v8441
        %v8590 = vpop.f32.mrf.mxu0
        %v8591 = vadd.f32 0.0, %v8590
        %v8592 = vpop.f32.mrf.mxu0
        %v8593 = vadd.f32 0.0, %v8592
        %v8594 = vpop.f32.mrf.mxu0
        %v8595 = vadd.f32 0.0, %v8594
        %v8596 = vpop.f32.mrf.mxu0
        %v8597 = vadd.f32 0.0, %v8596
        %8598 = vdwg.mxu0
        %v8599 = vadd.f32 %v8319, %v8561
        %v8600 = vadd.f32 %v8321, %v8563
        %v8601 = vadd.f32 %v8323, %v8565
        %v8602 = vadd.f32 %v8325, %v8567
        %v8603 = vadd.f32 %v8329, %v8571
        %v8604 = vadd.f32 %v8331, %v8573
        %v8605 = vadd.f32 %v8333, %v8575
        %v8606 = vadd.f32 %v8335, %v8577
        %v8607 = vadd.f32 %v8339, %v8581
        %v8608 = vadd.f32 %v8341, %v8583
        %v8609 = vadd.f32 %v8343, %v8585
        %v8610 = vadd.f32 %v8345, %v8587
        %v8611 = vadd.f32 %v8349, %v8591
        %v8612 = vadd.f32 %v8351, %v8593
        %v8613 = vadd.f32 %v8353, %v8595
        %v8614 = vadd.f32 %v8355, %v8597
        %v8615 = vld [vmem:[#allocation3 + $0x4] sm:$0x3]
        %v8616 = vld [vmem:[#allocation3 + $0xc] sm:$0x3]
        %v8617 = vld [vmem:[#allocation3 + $0x14] sm:$0x3]
        %v8618 = vld [vmem:[#allocation3 + $0x1c] sm:$0x3]
        %v8619 = vld [vmem:[#allocation3 + $0x24] sm:$0x3]
        %v8620 = vld [vmem:[#allocation3 + $0x2c] sm:$0x3]
        %v8621 = vld [vmem:[#allocation3 + $0x34] sm:$0x3]
        %v8622 = vld [vmem:[#allocation3 + $0x3c] sm:$0x3]
        %v8624 = vshrl.u32 %v8357, 16
        %v8626 = vrot.slane %v8624, 5
        %v8627 = vshll.u32 %v8357, 16
        %v8629 = vrot.slane %v8627, 6
        %v8630 = vor.u32 %v8626, %v8629
        %v8631 = vrot.slane %v8630, 4
        %v8633 = vshrl.u32 %v8615, 16
        %v8635 = vrot.slane %v8633, 5
        %v8636 = vshll.u32 %v8615, 16
        %v8638 = vrot.slane %v8636, 6
        %v8639 = vor.u32 %v8635, %v8638
        %v8640 = vsel %vm1370, %v8631, %v8639
        %v8642 = vshrl.u32 %v8358, 16
        %v8644 = vrot.slane %v8642, 5
        %v8645 = vshll.u32 %v8358, 16
        %v8647 = vrot.slane %v8645, 6
        %v8648 = vor.u32 %v8644, %v8647
        %v8649 = vrot.slane %v8648, 4
        %v8651 = vshrl.u32 %v8616, 16
        %v8653 = vrot.slane %v8651, 5
        %v8654 = vshll.u32 %v8616, 16
        %v8656 = vrot.slane %v8654, 6
        %v8657 = vor.u32 %v8653, %v8656
        %v8658 = vsel %vm1370, %v8649, %v8657
        %v8660 = vshrl.u32 %v8359, 16
        %v8662 = vrot.slane %v8660, 5
        %v8663 = vshll.u32 %v8359, 16
        %v8665 = vrot.slane %v8663, 6
        %v8666 = vor.u32 %v8662, %v8665
        %v8667 = vrot.slane %v8666, 4
        %v8669 = vshrl.u32 %v8617, 16
        %v8671 = vrot.slane %v8669, 5
        %v8672 = vshll.u32 %v8617, 16
        %v8674 = vrot.slane %v8672, 6
        %v8675 = vor.u32 %v8671, %v8674
        %v8676 = vsel %vm1370, %v8667, %v8675
        %v8678 = vshrl.u32 %v8360, 16
        %v8680 = vrot.slane %v8678, 5
        %v8681 = vshll.u32 %v8360, 16
        %v8683 = vrot.slane %v8681, 6
        %v8684 = vor.u32 %v8680, %v8683
        %v8685 = vrot.slane %v8684, 4
        %v8687 = vshrl.u32 %v8618, 16
        %v8689 = vrot.slane %v8687, 5
        %v8690 = vshll.u32 %v8618, 16
        %v8692 = vrot.slane %v8690, 6
        %v8693 = vor.u32 %v8689, %v8692
        %v8694 = vsel %vm1370, %v8685, %v8693
        %v8696 = vshrl.u32 %v8361, 16
        %v8698 = vrot.slane %v8696, 5
        %v8699 = vshll.u32 %v8361, 16
        %v8701 = vrot.slane %v8699, 6
        %v8702 = vor.u32 %v8698, %v8701
        %v8703 = vrot.slane %v8702, 4
        %v8705 = vshrl.u32 %v8619, 16
        %v8707 = vrot.slane %v8705, 5
        %v8708 = vshll.u32 %v8619, 16
        %v8710 = vrot.slane %v8708, 6
        %v8711 = vor.u32 %v8707, %v8710
        %v8712 = vsel %vm1370, %v8703, %v8711
        %v8714 = vshrl.u32 %v8362, 16
        %v8716 = vrot.slane %v8714, 5
        %v8717 = vshll.u32 %v8362, 16
        %v8719 = vrot.slane %v8717, 6
        %v8720 = vor.u32 %v8716, %v8719
        %v8721 = vrot.slane %v8720, 4
        %v8723 = vshrl.u32 %v8620, 16
        %v8725 = vrot.slane %v8723, 5
        %v8726 = vshll.u32 %v8620, 16
        %v8728 = vrot.slane %v8726, 6
        %v8729 = vor.u32 %v8725, %v8728
        %v8730 = vsel %vm1370, %v8721, %v8729
        %v8732 = vshrl.u32 %v8363, 16
        %v8734 = vrot.slane %v8732, 5
        %v8735 = vshll.u32 %v8363, 16
        %v8737 = vrot.slane %v8735, 6
        %v8738 = vor.u32 %v8734, %v8737
        %v8739 = vrot.slane %v8738, 4
        %v8741 = vshrl.u32 %v8621, 16
        %v8743 = vrot.slane %v8741, 5
        %v8744 = vshll.u32 %v8621, 16
        %v8746 = vrot.slane %v8744, 6
        %v8747 = vor.u32 %v8743, %v8746
        %v8748 = vsel %vm1370, %v8739, %v8747
        %v8750 = vshrl.u32 %v8364, 16
        %v8752 = vrot.slane %v8750, 5
        %v8753 = vshll.u32 %v8364, 16
        %v8755 = vrot.slane %v8753, 6
        %v8756 = vor.u32 %v8752, %v8755
        %v8757 = vrot.slane %v8756, 4
        %v8759 = vshrl.u32 %v8622, 16
        %v8761 = vrot.slane %v8759, 5
        %v8762 = vshll.u32 %v8622, 16
        %v8764 = vrot.slane %v8762, 6
        %v8765 = vor.u32 %v8761, %v8764
        %v8766 = vsel %vm1370, %v8757, %v8765
        %s8767 = scalar_lea.vmem [#allocation8], 384
        %v8768 = vld [vmem:[%s8767] sm:$0xff]
        %v8769 = vld [vmem:[%s8767 + $0x8] sm:$0xff]
        %v8770 = vld [vmem:[%s8767 + $0x10] sm:$0xff]
        %v8771 = vld [vmem:[%s8767 + $0x18] sm:$0xff]
        %v8772 = vld [vmem:[%s8767 + $0x20] sm:$0xff]
        %v8773 = vld [vmem:[%s8767 + $0x28] sm:$0xff]
        %v8774 = vld [vmem:[%s8767 + $0x30] sm:$0xff]
        %v8775 = vld [vmem:[%s8767 + $0x38] sm:$0xff]
        %v8776 = vld [vmem:[%s8767 + $0x40] sm:$0xff]
        %v8777 = vld [vmem:[%s8767 + $0x48] sm:$0xff]
        %v8778 = vld [vmem:[%s8767 + $0x50] sm:$0xff]
        %v8779 = vld [vmem:[%s8767 + $0x58] sm:$0xff]
        %v8780 = vld [vmem:[%s8767 + $0x60] sm:$0xff]
        %v8781 = vld [vmem:[%s8767 + $0x68] sm:$0xff]
        %v8782 = vld [vmem:[%s8767 + $0x70] sm:$0xff]
        %v8783 = vld [vmem:[%s8767 + $0x78] sm:$0xff]
        %v8784 = vunpack.c.l.b16 %v8640
        %v8785 = vunpack.c.l.b16 %v8658
        %v8786 = vunpack.c.l.b16 %v8676
        %v8787 = vunpack.c.l.b16 %v8694
        %v8788 = vunpack.c.l.b16 %v8712
        %v8789 = vunpack.c.l.b16 %v8730
        %v8790 = vunpack.c.l.b16 %v8748
        %v8791 = vunpack.c.l.b16 %v8766
        %v8792 = vpack.c.b16 %v8785, %v8784
        %v8793 = vpack.c.b16 %v8787, %v8786
        %v8794 = vpack.c.b16 %v8789, %v8788
        %v8795 = vpack.c.b16 %v8791, %v8790
        %v8816 = vunpack.c.l.b16 %v8768
        %v8817 = vunpack.c.h.b16 %v8768
        %v8818 = vunpack.c.l.b16 %v8769
        %v8819 = vunpack.c.h.b16 %v8769
        %v8820 = vunpack.c.l.b16 %v8770
        %v8821 = vunpack.c.h.b16 %v8770
        %v8822 = vunpack.c.l.b16 %v8771
        %v8823 = vunpack.c.h.b16 %v8771
        %v8824 = vunpack.c.l.b16 %v8772
        %v8825 = vunpack.c.h.b16 %v8772
        %v8826 = vunpack.c.l.b16 %v8773
        %v8827 = vunpack.c.h.b16 %v8773
        %v8828 = vunpack.c.l.b16 %v8774
        %v8829 = vunpack.c.h.b16 %v8774
        %v8830 = vunpack.c.l.b16 %v8775
        %v8831 = vunpack.c.h.b16 %v8775
        %v8832 = vunpack.c.l.b16 %v8776
        %v8833 = vunpack.c.h.b16 %v8776
        %v8834 = vunpack.c.l.b16 %v8777
        %v8835 = vunpack.c.h.b16 %v8777
        %v8836 = vunpack.c.l.b16 %v8778
        %v8837 = vunpack.c.h.b16 %v8778
        %v8838 = vunpack.c.l.b16 %v8779
        %v8839 = vunpack.c.h.b16 %v8779
        %v8840 = vunpack.c.l.b16 %v8780
        %v8841 = vunpack.c.h.b16 %v8780
        %v8842 = vunpack.c.l.b16 %v8781
        %v8843 = vunpack.c.h.b16 %v8781
        %v8844 = vunpack.c.l.b16 %v8782
        %v8845 = vunpack.c.h.b16 %v8782
        %v8846 = vunpack.c.l.b16 %v8783
        %v8847 = vunpack.c.h.b16 %v8783
        %v8848 = vpack.c.b16 %v8818, %v8816
        %v8849 = vpack.c.b16 %v8819, %v8817
        %v8850 = vpack.c.b16 %v8822, %v8820
        %v8851 = vpack.c.b16 %v8823, %v8821
        %v8852 = vpack.c.b16 %v8826, %v8824
        %v8853 = vpack.c.b16 %v8827, %v8825
        %v8854 = vpack.c.b16 %v8830, %v8828
        %v8855 = vpack.c.b16 %v8831, %v8829
        %v8856 = vpack.c.b16 %v8834, %v8832
        %v8857 = vpack.c.b16 %v8835, %v8833
        %v8858 = vpack.c.b16 %v8838, %v8836
        %v8859 = vpack.c.b16 %v8839, %v8837
        %v8860 = vpack.c.b16 %v8842, %v8840
        %v8861 = vpack.c.b16 %v8843, %v8841
        %v8862 = vpack.c.b16 %v8846, %v8844
        %v8863 = vpack.c.b16 %v8847, %v8845
        %8880 = vmatprep.subr.bf16.mxu0 %v8863
        %8881 = vmatpush1.bf16.msra.mxu0 %v8862
        %8882 = vmatprep.subr.bf16.mxu0 %v8861
        %8883 = vmatpush1.bf16.msra.mxu0 %v8860
        %8884 = vmatprep.subr.bf16.mxu0 %v8859
        %8885 = vmatpush1.bf16.msra.mxu0 %v8858
        %8886 = vmatprep.subr.bf16.mxu0 %v8857
        %8887 = vmatpush1.bf16.msra.mxu0 %v8856
        %8888 = vmatprep.subr.bf16.mxu0 %v8855
        %8889 = vmatpush1.bf16.msra.mxu0 %v8854
        %8890 = vmatprep.subr.bf16.mxu0 %v8853
        %8891 = vmatpush1.bf16.msra.mxu0 %v8852
        %8892 = vmatprep.subr.bf16.mxu0 %v8851
        %8893 = vmatpush1.bf16.msra.mxu0 %v8850
        %8894 = vmatprep.subr.bf16.mxu0 %v8849
        %8895 = vmatpush1.bf16.msra.mxu0 %v8848
        %8896 = vmatprep.subr.bf16.mxu0 0
        %8897 = vmatpush2.bf16.msra.mxu0 0
        %8898 = vmatprep.subr.bf16.mxu0 0
        %8899 = vmatpush2.bf16.msra.mxu0 0
        %8900 = vmatprep.subr.bf16.mxu0 0
        %8901 = vmatpush2.bf16.msra.mxu0 0
        %8902 = vmatprep.subr.bf16.mxu0 0
        %8903 = vmatpush2.bf16.msra.mxu0 0
        %8904 = vmatprep.subr.bf16.mxu0 0
        %8905 = vmatpush2.bf16.msra.mxu0 0
        %8906 = vmatprep.subr.bf16.mxu0 0
        %8907 = vmatpush2.bf16.msra.mxu0 0
        %8908 = vmatprep.subr.bf16.mxu0 0
        %8909 = vmatpush2.bf16.msra.mxu0 0
        %8910 = vmatprep.subr.bf16.mxu0 0
        %8911 = vmatpush2.bf16.msra.mxu0 0
        %8912 = vmatprep.mubr.bf16.mxu0 0
        %8913 = vmatmul.mubr.bf16.gmra.mxu0 %v8792
        %v8914 = vpop.f32.mrf.mxu0
        %v8915 = vadd.f32 0.0, %v8914
        %v8916 = vpop.f32.mrf.mxu0
        %v8917 = vadd.f32 0.0, %v8916
        %v8918 = vpop.f32.mrf.mxu0
        %v8919 = vadd.f32 0.0, %v8918
        %v8920 = vpop.f32.mrf.mxu0
        %v8921 = vadd.f32 0.0, %v8920
        %8922 = vmatprep.mubr.bf16.mxu0 0
        %8923 = vmatmul.mubr.bf16.gmra.mxu0 %v8793
        %v8924 = vpop.f32.mrf.mxu0
        %v8925 = vadd.f32 0.0, %v8924
        %v8926 = vpop.f32.mrf.mxu0
        %v8927 = vadd.f32 0.0, %v8926
        %v8928 = vpop.f32.mrf.mxu0
        %v8929 = vadd.f32 0.0, %v8928
        %v8930 = vpop.f32.mrf.mxu0
        %v8931 = vadd.f32 0.0, %v8930
        %8932 = vmatprep.mubr.bf16.mxu0 0
        %8933 = vmatmul.mubr.bf16.gmra.mxu0 %v8794
        %v8934 = vpop.f32.mrf.mxu0
        %v8935 = vadd.f32 0.0, %v8934
        %v8936 = vpop.f32.mrf.mxu0
        %v8937 = vadd.f32 0.0, %v8936
        %v8938 = vpop.f32.mrf.mxu0
        %v8939 = vadd.f32 0.0, %v8938
        %v8940 = vpop.f32.mrf.mxu0
        %v8941 = vadd.f32 0.0, %v8940
        %8942 = vmatprep.mubr.bf16.mxu0 0
        %8943 = vmatmul.mubr.bf16.gmra.mxu0 %v8795
        %v8944 = vpop.f32.mrf.mxu0
        %v8945 = vadd.f32 0.0, %v8944
        %v8946 = vpop.f32.mrf.mxu0
        %v8947 = vadd.f32 0.0, %v8946
        %v8948 = vpop.f32.mrf.mxu0
        %v8949 = vadd.f32 0.0, %v8948
        %v8950 = vpop.f32.mrf.mxu0
        %v8951 = vadd.f32 0.0, %v8950
        %8952 = vdwg.mxu0
        %v8953 = vadd.f32 %v8599, %v8915
        %v8954 = vadd.f32 %v8600, %v8917
        %v8955 = vadd.f32 %v8601, %v8919
        %v8956 = vadd.f32 %v8602, %v8921
        %v8957 = vadd.f32 %v8603, %v8925
        %v8958 = vadd.f32 %v8604, %v8927
        %v8959 = vadd.f32 %v8605, %v8929
        %v8960 = vadd.f32 %v8606, %v8931
        %v8961 = vadd.f32 %v8607, %v8935
        %v8962 = vadd.f32 %v8608, %v8937
        %v8963 = vadd.f32 %v8609, %v8939
        %v8964 = vadd.f32 %v8610, %v8941
        %v8965 = vadd.f32 %v8611, %v8945
        %v8966 = vadd.f32 %v8612, %v8947
        %v8967 = vadd.f32 %v8613, %v8949
        %v8968 = vadd.f32 %v8614, %v8951
        %v8969 = vld [vmem:[#allocation3] sm:$0xc]
        %v8970 = vld [vmem:[#allocation3 + $0x8] sm:$0xc]
        %v8971 = vld [vmem:[#allocation3 + $0x10] sm:$0xc]
        %v8972 = vld [vmem:[#allocation3 + $0x18] sm:$0xc]
        %v8973 = vld [vmem:[#allocation3 + $0x20] sm:$0xc]
        %v8974 = vld [vmem:[#allocation3 + $0x28] sm:$0xc]
        %v8975 = vld [vmem:[#allocation3 + $0x30] sm:$0xc]
        %v8976 = vld [vmem:[#allocation3 + $0x38] sm:$0xc]
        %v8993 = vrot.slane %v8969, 6
        %v8994 = vrot.slane %v8993, 4
        %v8995 = vrot.slane %v8615, 6
        %v8996 = vsel %vm1787, %v8994, %v8995
        %v8997 = vrot.slane %v8970, 6
        %v8998 = vrot.slane %v8997, 4
        %v8999 = vrot.slane %v8616, 6
        %v9000 = vsel %vm1787, %v8998, %v8999
        %v9001 = vrot.slane %v8971, 6
        %v9002 = vrot.slane %v9001, 4
        %v9003 = vrot.slane %v8617, 6
        %v9004 = vsel %vm1787, %v9002, %v9003
        %v9005 = vrot.slane %v8972, 6
        %v9006 = vrot.slane %v9005, 4
        %v9007 = vrot.slane %v8618, 6
        %v9008 = vsel %vm1787, %v9006, %v9007
        %v9009 = vrot.slane %v8973, 6
        %v9010 = vrot.slane %v9009, 4
        %v9011 = vrot.slane %v8619, 6
        %v9012 = vsel %vm1787, %v9010, %v9011
        %v9013 = vrot.slane %v8974, 6
        %v9014 = vrot.slane %v9013, 4
        %v9015 = vrot.slane %v8620, 6
        %v9016 = vsel %vm1787, %v9014, %v9015
        %v9017 = vrot.slane %v8975, 6
        %v9018 = vrot.slane %v9017, 4
        %v9019 = vrot.slane %v8621, 6
        %v9020 = vsel %vm1787, %v9018, %v9019
        %v9021 = vrot.slane %v8976, 6
        %v9022 = vrot.slane %v9021, 4
        %v9023 = vrot.slane %v8622, 6
        %v9024 = vsel %vm1787, %v9022, %v9023
        %s9025 = scalar_lea.vmem [#allocation8], 512
        %v9026 = vld [vmem:[%s9025] sm:$0xff]
        %v9027 = vld [vmem:[%s9025 + $0x8] sm:$0xff]
        %v9028 = vld [vmem:[%s9025 + $0x10] sm:$0xff]
        %v9029 = vld [vmem:[%s9025 + $0x18] sm:$0xff]
        %v9030 = vld [vmem:[%s9025 + $0x20] sm:$0xff]
        %v9031 = vld [vmem:[%s9025 + $0x28] sm:$0xff]
        %v9032 = vld [vmem:[%s9025 + $0x30] sm:$0xff]
        %v9033 = vld [vmem:[%s9025 + $0x38] sm:$0xff]
        %v9034 = vld [vmem:[%s9025 + $0x40] sm:$0xff]
        %v9035 = vld [vmem:[%s9025 + $0x48] sm:$0xff]
        %v9036 = vld [vmem:[%s9025 + $0x50] sm:$0xff]
        %v9037 = vld [vmem:[%s9025 + $0x58] sm:$0xff]
        %v9038 = vld [vmem:[%s9025 + $0x60] sm:$0xff]
        %v9039 = vld [vmem:[%s9025 + $0x68] sm:$0xff]
        %v9040 = vld [vmem:[%s9025 + $0x70] sm:$0xff]
        %v9041 = vld [vmem:[%s9025 + $0x78] sm:$0xff]
        %v9042 = vunpack.c.l.b16 %v8996
        %v9043 = vunpack.c.l.b16 %v9000
        %v9044 = vunpack.c.l.b16 %v9004
        %v9045 = vunpack.c.l.b16 %v9008
        %v9046 = vunpack.c.l.b16 %v9012
        %v9047 = vunpack.c.l.b16 %v9016
        %v9048 = vunpack.c.l.b16 %v9020
        %v9049 = vunpack.c.l.b16 %v9024
        %v9050 = vpack.c.b16 %v9043, %v9042
        %v9051 = vpack.c.b16 %v9045, %v9044
        %v9052 = vpack.c.b16 %v9047, %v9046
        %v9053 = vpack.c.b16 %v9049, %v9048
        %v9074 = vunpack.c.l.b16 %v9026
        %v9075 = vunpack.c.h.b16 %v9026
        %v9076 = vunpack.c.l.b16 %v9027
        %v9077 = vunpack.c.h.b16 %v9027
        %v9078 = vunpack.c.l.b16 %v9028
        %v9079 = vunpack.c.h.b16 %v9028
        %v9080 = vunpack.c.l.b16 %v9029
        %v9081 = vunpack.c.h.b16 %v9029
        %v9082 = vunpack.c.l.b16 %v9030
        %v9083 = vunpack.c.h.b16 %v9030
        %v9084 = vunpack.c.l.b16 %v9031
        %v9085 = vunpack.c.h.b16 %v9031
        %v9086 = vunpack.c.l.b16 %v9032
        %v9087 = vunpack.c.h.b16 %v9032
        %v9088 = vunpack.c.l.b16 %v9033
        %v9089 = vunpack.c.h.b16 %v9033
        %v9090 = vunpack.c.l.b16 %v9034
        %v9091 = vunpack.c.h.b16 %v9034
        %v9092 = vunpack.c.l.b16 %v9035
        %v9093 = vunpack.c.h.b16 %v9035
        %v9094 = vunpack.c.l.b16 %v9036
        %v9095 = vunpack.c.h.b16 %v9036
        %v9096 = vunpack.c.l.b16 %v9037
        %v9097 = vunpack.c.h.b16 %v9037
        %v9098 = vunpack.c.l.b16 %v9038
        %v9099 = vunpack.c.h.b16 %v9038
        %v9100 = vunpack.c.l.b16 %v9039
        %v9101 = vunpack.c.h.b16 %v9039
        %v9102 = vunpack.c.l.b16 %v9040
        %v9103 = vunpack.c.h.b16 %v9040
        %v9104 = vunpack.c.l.b16 %v9041
        %v9105 = vunpack.c.h.b16 %v9041
        %v9106 = vpack.c.b16 %v9076, %v9074
        %v9107 = vpack.c.b16 %v9077, %v9075
        %v9108 = vpack.c.b16 %v9080, %v9078
        %v9109 = vpack.c.b16 %v9081, %v9079
        %v9110 = vpack.c.b16 %v9084, %v9082
        %v9111 = vpack.c.b16 %v9085, %v9083
        %v9112 = vpack.c.b16 %v9088, %v9086
        %v9113 = vpack.c.b16 %v9089, %v9087
        %v9114 = vpack.c.b16 %v9092, %v9090
        %v9115 = vpack.c.b16 %v9093, %v9091
        %v9116 = vpack.c.b16 %v9096, %v9094
        %v9117 = vpack.c.b16 %v9097, %v9095
        %v9118 = vpack.c.b16 %v9100, %v9098
        %v9119 = vpack.c.b16 %v9101, %v9099
        %v9120 = vpack.c.b16 %v9104, %v9102
        %v9121 = vpack.c.b16 %v9105, %v9103
        %9138 = vmatprep.subr.bf16.mxu0 %v9121
        %9139 = vmatpush1.bf16.msra.mxu0 %v9120
        %9140 = vmatprep.subr.bf16.mxu0 %v9119
        %9141 = vmatpush1.bf16.msra.mxu0 %v9118
        %9142 = vmatprep.subr.bf16.mxu0 %v9117
        %9143 = vmatpush1.bf16.msra.mxu0 %v9116
        %9144 = vmatprep.subr.bf16.mxu0 %v9115
        %9145 = vmatpush1.bf16.msra.mxu0 %v9114
        %9146 = vmatprep.subr.bf16.mxu0 %v9113
        %9147 = vmatpush1.bf16.msra.mxu0 %v9112
        %9148 = vmatprep.subr.bf16.mxu0 %v9111
        %9149 = vmatpush1.bf16.msra.mxu0 %v9110
        %9150 = vmatprep.subr.bf16.mxu0 %v9109
        %9151 = vmatpush1.bf16.msra.mxu0 %v9108
        %9152 = vmatprep.subr.bf16.mxu0 %v9107
        %9153 = vmatpush1.bf16.msra.mxu0 %v9106
        %9154 = vmatprep.subr.bf16.mxu0 0
        %9155 = vmatpush2.bf16.msra.mxu0 0
        %9156 = vmatprep.subr.bf16.mxu0 0
        %9157 = vmatpush2.bf16.msra.mxu0 0
        %9158 = vmatprep.subr.bf16.mxu0 0
        %9159 = vmatpush2.bf16.msra.mxu0 0
        %9160 = vmatprep.subr.bf16.mxu0 0
        %9161 = vmatpush2.bf16.msra.mxu0 0
        %9162 = vmatprep.subr.bf16.mxu0 0
        %9163 = vmatpush2.bf16.msra.mxu0 0
        %9164 = vmatprep.subr.bf16.mxu0 0
        %9165 = vmatpush2.bf16.msra.mxu0 0
        %9166 = vmatprep.subr.bf16.mxu0 0
        %9167 = vmatpush2.bf16.msra.mxu0 0
        %9168 = vmatprep.subr.bf16.mxu0 0
        %9169 = vmatpush2.bf16.msra.mxu0 0
        %9170 = vmatprep.mubr.bf16.mxu0 0
        %9171 = vmatmul.mubr.bf16.gmra.mxu0 %v9050
        %v9172 = vpop.f32.mrf.mxu0
        %v9173 = vadd.f32 0.0, %v9172
        %v9174 = vpop.f32.mrf.mxu0
        %v9175 = vadd.f32 0.0, %v9174
        %v9176 = vpop.f32.mrf.mxu0
        %v9177 = vadd.f32 0.0, %v9176
        %v9178 = vpop.f32.mrf.mxu0
        %v9179 = vadd.f32 0.0, %v9178
        %9180 = vmatprep.mubr.bf16.mxu0 0
        %9181 = vmatmul.mubr.bf16.gmra.mxu0 %v9051
        %v9182 = vpop.f32.mrf.mxu0
        %v9183 = vadd.f32 0.0, %v9182
        %v9184 = vpop.f32.mrf.mxu0
        %v9185 = vadd.f32 0.0, %v9184
        %v9186 = vpop.f32.mrf.mxu0
        %v9187 = vadd.f32 0.0, %v9186
        %v9188 = vpop.f32.mrf.mxu0
        %v9189 = vadd.f32 0.0, %v9188
        %9190 = vmatprep.mubr.bf16.mxu0 0
        %9191 = vmatmul.mubr.bf16.gmra.mxu0 %v9052
        %v9192 = vpop.f32.mrf.mxu0
        %v9193 = vadd.f32 0.0, %v9192
        %v9194 = vpop.f32.mrf.mxu0
        %v9195 = vadd.f32 0.0, %v9194
        %v9196 = vpop.f32.mrf.mxu0
        %v9197 = vadd.f32 0.0, %v9196
        %v9198 = vpop.f32.mrf.mxu0
        %v9199 = vadd.f32 0.0, %v9198
        %9200 = vmatprep.mubr.bf16.mxu0 0
        %9201 = vmatmul.mubr.bf16.gmra.mxu0 %v9053
        %v9202 = vpop.f32.mrf.mxu0
        %v9203 = vadd.f32 0.0, %v9202
        %v9204 = vpop.f32.mrf.mxu0
        %v9205 = vadd.f32 0.0, %v9204
        %v9206 = vpop.f32.mrf.mxu0
        %v9207 = vadd.f32 0.0, %v9206
        %v9208 = vpop.f32.mrf.mxu0
        %v9209 = vadd.f32 0.0, %v9208
        %9210 = vdwg.mxu0
        %v9211 = vadd.f32 %v8953, %v9173
        %v9212 = vadd.f32 %v8954, %v9175
        %v9213 = vadd.f32 %v8955, %v9177
        %v9214 = vadd.f32 %v8956, %v9179
        %v9215 = vadd.f32 %v8957, %v9183
        %v9216 = vadd.f32 %v8958, %v9185
        %v9217 = vadd.f32 %v8959, %v9187
        %v9218 = vadd.f32 %v8960, %v9189
        %v9219 = vadd.f32 %v8961, %v9193
        %v9220 = vadd.f32 %v8962, %v9195
        %v9221 = vadd.f32 %v8963, %v9197
        %v9222 = vadd.f32 %v8964, %v9199
        %v9223 = vadd.f32 %v8965, %v9203
        %v9224 = vadd.f32 %v8966, %v9205
        %v9225 = vadd.f32 %v8967, %v9207
        %v9226 = vadd.f32 %v8968, %v9209
        %v9227 = vld [vmem:[%s4] sm:$0x3]
        %v9229 = vlaneseq
        %v9230 = vshrl.u32 %v9229, 7
        %v9231 = vsub.s32 0, %v9230
        %v9232 = vrot.slane %v9227, %v9231
        %v9233 = vlaneseq
        %v9234 = vshrl.u32 %v9233, 7
        %v9235 = vsub.s32 1, %v9234
        %v9236 = vrot.slane %v9227, %v9235
        %v9239 = vadd.f32 %v9211, %v9232
        %v9240 = vadd.f32 %v9212, %v9236
        %v9241 = vadd.f32 %v9213, %v9232
        %v9242 = vadd.f32 %v9214, %v9236
        %v9243 = vadd.f32 %v9215, %v9232
        %v9244 = vadd.f32 %v9216, %v9236
        %v9245 = vadd.f32 %v9217, %v9232
        %v9246 = vadd.f32 %v9218, %v9236
        %v9247 = vadd.f32 %v9219, %v9232
        %v9248 = vadd.f32 %v9220, %v9236
        %v9249 = vadd.f32 %v9221, %v9232
        %v9250 = vadd.f32 %v9222, %v9236
        %v9251 = vadd.f32 %v9223, %v9232
        %v9252 = vadd.f32 %v9224, %v9236
        %v9253 = vadd.f32 %v9225, %v9232
        %v9254 = vadd.f32 %v9226, %v9236
        %v9255 = vmax.f32 %v9239, 0.0
        %v9256 = vmax.f32 %v9240, 0.0
        %v9257 = vmax.f32 %v9241, 0.0
        %v9258 = vmax.f32 %v9242, 0.0
        %v9259 = vmax.f32 %v9243, 0.0
        %v9260 = vmax.f32 %v9244, 0.0
        %v9261 = vmax.f32 %v9245, 0.0
        %v9262 = vmax.f32 %v9246, 0.0
        %v9263 = vmax.f32 %v9247, 0.0
        %v9264 = vmax.f32 %v9248, 0.0
        %v9265 = vmax.f32 %v9249, 0.0
        %v9266 = vmax.f32 %v9250, 0.0
        %v9267 = vmax.f32 %v9251, 0.0
        %v9268 = vmax.f32 %v9252, 0.0
        %v9269 = vmax.f32 %v9253, 0.0
        %v9270 = vmax.f32 %v9254, 0.0
        %v9287 = vcombine.low %v9255, %v9256
        %v9288 = vcombine.high %v9255, %v9256
        %v9290 = vunpack.c.l.s4 1983009808
        %v9291 = vunpack.c.0.s8 %v9290
        %v9292 = vlaneseq
        %v9293 = vshrl.u32 %v9292, 7
        %v9294 = vsub.s32 %v9291, %v9293
        %v9295 = vrot.slane %v9287, %v9294
        %v9297 = vunpack.c.l.s4 1983009808
        %v9298 = vunpack.c.0.s8 %v9297
        %v9299 = vlaneseq
        %v9300 = vshrl.u32 %v9299, 7
        %v9301 = vsub.s32 %v9298, %v9300
        %v9302 = vrot.slane %v9288, %v9301
        %v9303 = vcombine.high %v9295, %v9295
        %v9304 = vcombine.high %v9302, %v9302
        %v9305 = vcombine.low %v9257, %v9258
        %v9306 = vcombine.high %v9257, %v9258
        %v9308 = vunpack.c.l.s4 1983009808
        %v9309 = vunpack.c.0.s8 %v9308
        %v9310 = vlaneseq
        %v9311 = vshrl.u32 %v9310, 7
        %v9312 = vsub.s32 %v9309, %v9311
        %v9313 = vrot.slane %v9305, %v9312
        %v9315 = vunpack.c.l.s4 1983009808
        %v9316 = vunpack.c.0.s8 %v9315
        %v9317 = vlaneseq
        %v9318 = vshrl.u32 %v9317, 7
        %v9319 = vsub.s32 %v9316, %v9318
        %v9320 = vrot.slane %v9306, %v9319
        %v9321 = vcombine.high %v9313, %v9313
        %v9322 = vcombine.high %v9320, %v9320
        %v9323 = vcombine.low %v9259, %v9260
        %v9324 = vcombine.high %v9259, %v9260
        %v9326 = vunpack.c.l.s4 1983009808
        %v9327 = vunpack.c.0.s8 %v9326
        %v9328 = vlaneseq
        %v9329 = vshrl.u32 %v9328, 7
        %v9330 = vsub.s32 %v9327, %v9329
        %v9331 = vrot.slane %v9323, %v9330
        %v9333 = vunpack.c.l.s4 1983009808
        %v9334 = vunpack.c.0.s8 %v9333
        %v9335 = vlaneseq
        %v9336 = vshrl.u32 %v9335, 7
        %v9337 = vsub.s32 %v9334, %v9336
        %v9338 = vrot.slane %v9324, %v9337
        %v9339 = vcombine.high %v9331, %v9331
        %v9340 = vcombine.high %v9338, %v9338
        %v9341 = vcombine.low %v9261, %v9262
        %v9342 = vcombine.high %v9261, %v9262
        %v9344 = vunpack.c.l.s4 1983009808
        %v9345 = vunpack.c.0.s8 %v9344
        %v9346 = vlaneseq
        %v9347 = vshrl.u32 %v9346, 7
        %v9348 = vsub.s32 %v9345, %v9347
        %v9349 = vrot.slane %v9341, %v9348
        %v9351 = vunpack.c.l.s4 1983009808
        %v9352 = vunpack.c.0.s8 %v9351
        %v9353 = vlaneseq
        %v9354 = vshrl.u32 %v9353, 7
        %v9355 = vsub.s32 %v9352, %v9354
        %v9356 = vrot.slane %v9342, %v9355
        %v9357 = vcombine.high %v9349, %v9349
        %v9358 = vcombine.high %v9356, %v9356
        %v9359 = vcombine.low %v9263, %v9264
        %v9360 = vcombine.high %v9263, %v9264
        %v9362 = vunpack.c.l.s4 1983009808
        %v9363 = vunpack.c.0.s8 %v9362
        %v9364 = vlaneseq
        %v9365 = vshrl.u32 %v9364, 7
        %v9366 = vsub.s32 %v9363, %v9365
        %v9367 = vrot.slane %v9359, %v9366
        %v9369 = vunpack.c.l.s4 1983009808
        %v9370 = vunpack.c.0.s8 %v9369
        %v9371 = vlaneseq
        %v9372 = vshrl.u32 %v9371, 7
        %v9373 = vsub.s32 %v9370, %v9372
        %v9374 = vrot.slane %v9360, %v9373
        %v9375 = vcombine.high %v9367, %v9367
        %v9376 = vcombine.high %v9374, %v9374
        %v9377 = vcombine.low %v9265, %v9266
        %v9378 = vcombine.high %v9265, %v9266
        %v9380 = vunpack.c.l.s4 1983009808
        %v9381 = vunpack.c.0.s8 %v9380
        %v9382 = vlaneseq
        %v9383 = vshrl.u32 %v9382, 7
        %v9384 = vsub.s32 %v9381, %v9383
        %v9385 = vrot.slane %v9377, %v9384
        %v9387 = vunpack.c.l.s4 1983009808
        %v9388 = vunpack.c.0.s8 %v9387
        %v9389 = vlaneseq
        %v9390 = vshrl.u32 %v9389, 7
        %v9391 = vsub.s32 %v9388, %v9390
        %v9392 = vrot.slane %v9378, %v9391
        %v9393 = vcombine.high %v9385, %v9385
        %v9394 = vcombine.high %v9392, %v9392
        %v9395 = vcombine.low %v9267, %v9268
        %v9396 = vcombine.high %v9267, %v9268
        %v9398 = vunpack.c.l.s4 1983009808
        %v9399 = vunpack.c.0.s8 %v9398
        %v9400 = vlaneseq
        %v9401 = vshrl.u32 %v9400, 7
        %v9402 = vsub.s32 %v9399, %v9401
        %v9403 = vrot.slane %v9395, %v9402
        %v9405 = vunpack.c.l.s4 1983009808
        %v9406 = vunpack.c.0.s8 %v9405
        %v9407 = vlaneseq
        %v9408 = vshrl.u32 %v9407, 7
        %v9409 = vsub.s32 %v9406, %v9408
        %v9410 = vrot.slane %v9396, %v9409
        %v9411 = vcombine.high %v9403, %v9403
        %v9412 = vcombine.high %v9410, %v9410
        %v9413 = vcombine.low %v9269, %v9270
        %v9414 = vcombine.high %v9269, %v9270
        %v9416 = vunpack.c.l.s4 1983009808
        %v9417 = vunpack.c.0.s8 %v9416
        %v9418 = vlaneseq
        %v9419 = vshrl.u32 %v9418, 7
        %v9420 = vsub.s32 %v9417, %v9419
        %v9421 = vrot.slane %v9413, %v9420
        %v9423 = vunpack.c.l.s4 1983009808
        %v9424 = vunpack.c.0.s8 %v9423
        %v9425 = vlaneseq
        %v9426 = vshrl.u32 %v9425, 7
        %v9427 = vsub.s32 %v9424, %v9426
        %v9428 = vrot.slane %v9414, %v9427
        %v9429 = vcombine.high %v9421, %v9421
        %v9430 = vcombine.high %v9428, %v9428
        %v9463 = vrot.slane %v9295, 7
        %v9464 = vrot.slane %v9463, 2
        %v9465 = vrot.slane %v9303, 7
        %v9466 = vrot.slane %v9465, 2
        %v9467 = vrot.slane %v9302, 7
        %v9468 = vrot.slane %v9467, 2
        %v9469 = vrot.slane %v9304, 7
        %v9470 = vrot.slane %v9469, 2
        %v9471 = vrot.slane %v9313, 7
        %v9472 = vrot.slane %v9471, 2
        %v9473 = vrot.slane %v9321, 7
        %v9474 = vrot.slane %v9473, 2
        %v9475 = vrot.slane %v9320, 7
        %v9476 = vrot.slane %v9475, 2
        %v9477 = vrot.slane %v9322, 7
        %v9478 = vrot.slane %v9477, 2
        %v9479 = vrot.slane %v9331, 7
        %v9480 = vrot.slane %v9479, 2
        %v9481 = vrot.slane %v9339, 7
        %v9482 = vrot.slane %v9481, 2
        %v9483 = vrot.slane %v9338, 7
        %v9484 = vrot.slane %v9483, 2
        %v9485 = vrot.slane %v9340, 7
        %v9486 = vrot.slane %v9485, 2
        %v9487 = vrot.slane %v9349, 7
        %v9488 = vrot.slane %v9487, 2
        %v9489 = vrot.slane %v9357, 7
        %v9490 = vrot.slane %v9489, 2
        %v9491 = vrot.slane %v9356, 7
        %v9492 = vrot.slane %v9491, 2
        %v9493 = vrot.slane %v9358, 7
        %v9494 = vrot.slane %v9493, 2
        %v9495 = vrot.slane %v9367, 7
        %v9496 = vrot.slane %v9495, 2
        %v9497 = vrot.slane %v9375, 7
        %v9498 = vrot.slane %v9497, 2
        %v9499 = vrot.slane %v9374, 7
        %v9500 = vrot.slane %v9499, 2
        %v9501 = vrot.slane %v9376, 7
        %v9502 = vrot.slane %v9501, 2
        %v9503 = vrot.slane %v9385, 7
        %v9504 = vrot.slane %v9503, 2
        %v9505 = vrot.slane %v9393, 7
        %v9506 = vrot.slane %v9505, 2
        %v9507 = vrot.slane %v9392, 7
        %v9508 = vrot.slane %v9507, 2
        %v9509 = vrot.slane %v9394, 7
        %v9510 = vrot.slane %v9509, 2
        %v9511 = vrot.slane %v9403, 7
        %v9512 = vrot.slane %v9511, 2
        %v9513 = vrot.slane %v9411, 7
        %v9514 = vrot.slane %v9513, 2
        %v9515 = vrot.slane %v9410, 7
        %v9516 = vrot.slane %v9515, 2
        %v9517 = vrot.slane %v9412, 7
        %v9518 = vrot.slane %v9517, 2
        %v9519 = vrot.slane %v9421, 7
        %v9520 = vrot.slane %v9519, 2
        %v9521 = vrot.slane %v9429, 7
        %v9522 = vrot.slane %v9521, 2
        %v9523 = vrot.slane %v9428, 7
        %v9524 = vrot.slane %v9523, 2
        %v9525 = vrot.slane %v9430, 7
        %v9526 = vrot.slane %v9525, 2
        %v9559 = vmax.f32 %v9295, %v9464
        %v9560 = vmax.f32 %v9303, %v9466
        %v9561 = vmax.f32 %v9302, %v9468
        %v9562 = vmax.f32 %v9304, %v9470
        %v9563 = vmax.f32 %v9313, %v9472
        %v9564 = vmax.f32 %v9321, %v9474
        %v9565 = vmax.f32 %v9320, %v9476
        %v9566 = vmax.f32 %v9322, %v9478
        %v9567 = vmax.f32 %v9331, %v9480
        %v9568 = vmax.f32 %v9339, %v9482
        %v9569 = vmax.f32 %v9338, %v9484
        %v9570 = vmax.f32 %v9340, %v9486
        %v9571 = vmax.f32 %v9349, %v9488
        %v9572 = vmax.f32 %v9357, %v9490
        %v9573 = vmax.f32 %v9356, %v9492
        %v9574 = vmax.f32 %v9358, %v9494
        %v9575 = vmax.f32 %v9367, %v9496
        %v9576 = vmax.f32 %v9375, %v9498
        %v9577 = vmax.f32 %v9374, %v9500
        %v9578 = vmax.f32 %v9376, %v9502
        %v9579 = vmax.f32 %v9385, %v9504
        %v9580 = vmax.f32 %v9393, %v9506
        %v9581 = vmax.f32 %v9392, %v9508
        %v9582 = vmax.f32 %v9394, %v9510
        %v9583 = vmax.f32 %v9403, %v9512
        %v9584 = vmax.f32 %v9411, %v9514
        %v9585 = vmax.f32 %v9410, %v9516
        %v9586 = vmax.f32 %v9412, %v9518
        %v9587 = vmax.f32 %v9421, %v9520
        %v9588 = vmax.f32 %v9429, %v9522
        %v9589 = vmax.f32 %v9428, %v9524
        %v9590 = vmax.f32 %v9430, %v9526
        %9623 = vrot.lane.b32.xlu0 %v9559, 96
        %v9624 = vpop.permute.xlu0 %9623
        %9625 = vrot.lane.b32.xlu0 %v9560, 96
        %v9626 = vpop.permute.xlu0 %9625
        %9627 = vrot.lane.b32.xlu0 %v9561, 96
        %v9628 = vpop.permute.xlu0 %9627
        %9629 = vrot.lane.b32.xlu0 %v9562, 96
        %v9630 = vpop.permute.xlu0 %9629
        %9631 = vrot.lane.b32.xlu0 %v9563, 96
        %v9632 = vpop.permute.xlu0 %9631
        %9633 = vrot.lane.b32.xlu0 %v9564, 96
        %v9634 = vpop.permute.xlu0 %9633
        %9635 = vrot.lane.b32.xlu0 %v9565, 96
        %v9636 = vpop.permute.xlu0 %9635
        %9637 = vrot.lane.b32.xlu0 %v9566, 96
        %v9638 = vpop.permute.xlu0 %9637
        %9639 = vrot.lane.b32.xlu0 %v9567, 96
        %v9640 = vpop.permute.xlu0 %9639
        %9641 = vrot.lane.b32.xlu0 %v9568, 96
        %v9642 = vpop.permute.xlu0 %9641
        %9643 = vrot.lane.b32.xlu0 %v9569, 96
        %v9644 = vpop.permute.xlu0 %9643
        %9645 = vrot.lane.b32.xlu0 %v9570, 96
        %v9646 = vpop.permute.xlu0 %9645
        %9647 = vrot.lane.b32.xlu0 %v9571, 96
        %v9648 = vpop.permute.xlu0 %9647
        %9649 = vrot.lane.b32.xlu0 %v9572, 96
        %v9650 = vpop.permute.xlu0 %9649
        %9651 = vrot.lane.b32.xlu0 %v9573, 96
        %v9652 = vpop.permute.xlu0 %9651
        %9653 = vrot.lane.b32.xlu0 %v9574, 96
        %v9654 = vpop.permute.xlu0 %9653
        %9655 = vrot.lane.b32.xlu0 %v9575, 96
        %v9656 = vpop.permute.xlu0 %9655
        %9657 = vrot.lane.b32.xlu0 %v9576, 96
        %v9658 = vpop.permute.xlu0 %9657
        %9659 = vrot.lane.b32.xlu0 %v9577, 96
        %v9660 = vpop.permute.xlu0 %9659
        %9661 = vrot.lane.b32.xlu0 %v9578, 96
        %v9662 = vpop.permute.xlu0 %9661
        %9663 = vrot.lane.b32.xlu0 %v9579, 96
        %v9664 = vpop.permute.xlu0 %9663
        %9665 = vrot.lane.b32.xlu0 %v9580, 96
        %v9666 = vpop.permute.xlu0 %9665
        %9667 = vrot.lane.b32.xlu0 %v9581, 96
        %v9668 = vpop.permute.xlu0 %9667
        %9669 = vrot.lane.b32.xlu0 %v9582, 96
        %v9670 = vpop.permute.xlu0 %9669
        %9671 = vrot.lane.b32.xlu0 %v9583, 96
        %v9672 = vpop.permute.xlu0 %9671
        %9673 = vrot.lane.b32.xlu0 %v9584, 96
        %v9674 = vpop.permute.xlu0 %9673
        %9675 = vrot.lane.b32.xlu0 %v9585, 96
        %v9676 = vpop.permute.xlu0 %9675
        %9677 = vrot.lane.b32.xlu0 %v9586, 96
        %v9678 = vpop.permute.xlu0 %9677
        %9679 = vrot.lane.b32.xlu0 %v9587, 96
        %v9680 = vpop.permute.xlu0 %9679
        %9681 = vrot.lane.b32.xlu0 %v9588, 96
        %v9682 = vpop.permute.xlu0 %9681
        %9683 = vrot.lane.b32.xlu0 %v9589, 96
        %v9684 = vpop.permute.xlu0 %9683
        %9685 = vrot.lane.b32.xlu0 %v9590, 96
        %v9686 = vpop.permute.xlu0 %9685
        %v9719 = vmax.f32 %v9559, %v9624
        %v9720 = vmax.f32 %v9560, %v9626
        %v9721 = vmax.f32 %v9561, %v9628
        %v9722 = vmax.f32 %v9562, %v9630
        %v9723 = vmax.f32 %v9563, %v9632
        %v9724 = vmax.f32 %v9564, %v9634
        %v9725 = vmax.f32 %v9565, %v9636
        %v9726 = vmax.f32 %v9566, %v9638
        %v9727 = vmax.f32 %v9567, %v9640
        %v9728 = vmax.f32 %v9568, %v9642
        %v9729 = vmax.f32 %v9569, %v9644
        %v9730 = vmax.f32 %v9570, %v9646
        %v9731 = vmax.f32 %v9571, %v9648
        %v9732 = vmax.f32 %v9572, %v9650
        %v9733 = vmax.f32 %v9573, %v9652
        %v9734 = vmax.f32 %v9574, %v9654
        %v9735 = vmax.f32 %v9575, %v9656
        %v9736 = vmax.f32 %v9576, %v9658
        %v9737 = vmax.f32 %v9577, %v9660
        %v9738 = vmax.f32 %v9578, %v9662
        %v9739 = vmax.f32 %v9579, %v9664
        %v9740 = vmax.f32 %v9580, %v9666
        %v9741 = vmax.f32 %v9581, %v9668
        %v9742 = vmax.f32 %v9582, %v9670
        %v9743 = vmax.f32 %v9583, %v9672
        %v9744 = vmax.f32 %v9584, %v9674
        %v9745 = vmax.f32 %v9585, %v9676
        %v9746 = vmax.f32 %v9586, %v9678
        %v9747 = vmax.f32 %v9587, %v9680
        %v9748 = vmax.f32 %v9588, %v9682
        %v9749 = vmax.f32 %v9589, %v9684
        %v9750 = vmax.f32 %v9590, %v9686
        %v9751 = vpack.c.bf16 %v9719, %v9719
        %v9752 = vpack.c.bf16 %v9720, %v9720
        %v9753 = vpack.c.bf16 %v9721, %v9721
        %v9754 = vpack.c.bf16 %v9722, %v9722
        %v9755 = vpack.c.bf16 %v9723, %v9723
        %v9756 = vpack.c.bf16 %v9724, %v9724
        %v9757 = vpack.c.bf16 %v9725, %v9725
        %v9758 = vpack.c.bf16 %v9726, %v9726
        %v9759 = vpack.c.bf16 %v9727, %v9727
        %v9760 = vpack.c.bf16 %v9728, %v9728
        %v9761 = vpack.c.bf16 %v9729, %v9729
        %v9762 = vpack.c.bf16 %v9730, %v9730
        %v9763 = vpack.c.bf16 %v9731, %v9731
        %v9764 = vpack.c.bf16 %v9732, %v9732
        %v9765 = vpack.c.bf16 %v9733, %v9733
        %v9766 = vpack.c.bf16 %v9734, %v9734
        %v9767 = vpack.c.bf16 %v9735, %v9735
        %v9768 = vpack.c.bf16 %v9736, %v9736
        %v9769 = vpack.c.bf16 %v9737, %v9737
        %v9770 = vpack.c.bf16 %v9738, %v9738
        %v9771 = vpack.c.bf16 %v9739, %v9739
        %v9772 = vpack.c.bf16 %v9740, %v9740
        %v9773 = vpack.c.bf16 %v9741, %v9741
        %v9774 = vpack.c.bf16 %v9742, %v9742
        %v9775 = vpack.c.bf16 %v9743, %v9743
        %v9776 = vpack.c.bf16 %v9744, %v9744
        %v9777 = vpack.c.bf16 %v9745, %v9745
        %v9778 = vpack.c.bf16 %v9746, %v9746
        %v9779 = vpack.c.bf16 %v9747, %v9747
        %v9780 = vpack.c.bf16 %v9748, %v9748
        %v9781 = vpack.c.bf16 %v9749, %v9749
        %v9782 = vpack.c.bf16 %v9750, %v9750
        %v9816 = vunpack.c.l.s4 1983009808
        %v9817 = vunpack.c.0.s8 %v9816
        %v9818 = vlaneseq
        %v9819 = vshrl.u32 %v9818, 7
        %v9820 = vsub.s32 %v9817, %v9819
        %v9821 = vrot.slane %v9751, %v9820
        %v9823 = vunpack.c.l.s4 1983009808
        %v9824 = vunpack.c.0.s8 %v9823
        %v9825 = vlaneseq
        %v9826 = vshrl.u32 %v9825, 7
        %v9827 = vsub.s32 %v9824, %v9826
        %v9828 = vrot.slane %v9752, %v9827
        %v9830 = vunpack.c.l.s4 1983009808
        %v9831 = vunpack.c.0.s8 %v9830
        %v9832 = vlaneseq
        %v9833 = vshrl.u32 %v9832, 7
        %v9834 = vsub.s32 %v9831, %v9833
        %v9835 = vrot.slane %v9753, %v9834
        %v9837 = vunpack.c.l.s4 1983009808
        %v9838 = vunpack.c.0.s8 %v9837
        %v9839 = vlaneseq
        %v9840 = vshrl.u32 %v9839, 7
        %v9841 = vsub.s32 %v9838, %v9840
        %v9842 = vrot.slane %v9754, %v9841
        %v9844 = vunpack.c.l.s4 1983009808
        %v9845 = vunpack.c.0.s8 %v9844
        %v9846 = vlaneseq
        %v9847 = vshrl.u32 %v9846, 7
        %v9848 = vsub.s32 %v9845, %v9847
        %v9849 = vrot.slane %v9755, %v9848
        %v9851 = vunpack.c.l.s4 1983009808
        %v9852 = vunpack.c.0.s8 %v9851
        %v9853 = vlaneseq
        %v9854 = vshrl.u32 %v9853, 7
        %v9855 = vsub.s32 %v9852, %v9854
        %v9856 = vrot.slane %v9756, %v9855
        %v9858 = vunpack.c.l.s4 1983009808
        %v9859 = vunpack.c.0.s8 %v9858
        %v9860 = vlaneseq
        %v9861 = vshrl.u32 %v9860, 7
        %v9862 = vsub.s32 %v9859, %v9861
        %v9863 = vrot.slane %v9757, %v9862
        %v9865 = vunpack.c.l.s4 1983009808
        %v9866 = vunpack.c.0.s8 %v9865
        %v9867 = vlaneseq
        %v9868 = vshrl.u32 %v9867, 7
        %v9869 = vsub.s32 %v9866, %v9868
        %v9870 = vrot.slane %v9758, %v9869
        %v9872 = vunpack.c.l.s4 1983009808
        %v9873 = vunpack.c.0.s8 %v9872
        %v9874 = vlaneseq
        %v9875 = vshrl.u32 %v9874, 7
        %v9876 = vsub.s32 %v9873, %v9875
        %v9877 = vrot.slane %v9759, %v9876
        %v9879 = vunpack.c.l.s4 1983009808
        %v9880 = vunpack.c.0.s8 %v9879
        %v9881 = vlaneseq
        %v9882 = vshrl.u32 %v9881, 7
        %v9883 = vsub.s32 %v9880, %v9882
        %v9884 = vrot.slane %v9760, %v9883
        %v9886 = vunpack.c.l.s4 1983009808
        %v9887 = vunpack.c.0.s8 %v9886
        %v9888 = vlaneseq
        %v9889 = vshrl.u32 %v9888, 7
        %v9890 = vsub.s32 %v9887, %v9889
        %v9891 = vrot.slane %v9761, %v9890
        %v9893 = vunpack.c.l.s4 1983009808
        %v9894 = vunpack.c.0.s8 %v9893
        %v9895 = vlaneseq
        %v9896 = vshrl.u32 %v9895, 7
        %v9897 = vsub.s32 %v9894, %v9896
        %v9898 = vrot.slane %v9762, %v9897
        %v9900 = vunpack.c.l.s4 1983009808
        %v9901 = vunpack.c.0.s8 %v9900
        %v9902 = vlaneseq
        %v9903 = vshrl.u32 %v9902, 7
        %v9904 = vsub.s32 %v9901, %v9903
        %v9905 = vrot.slane %v9763, %v9904
        %v9907 = vunpack.c.l.s4 1983009808
        %v9908 = vunpack.c.0.s8 %v9907
        %v9909 = vlaneseq
        %v9910 = vshrl.u32 %v9909, 7
        %v9911 = vsub.s32 %v9908, %v9910
        %v9912 = vrot.slane %v9764, %v9911
        %v9914 = vunpack.c.l.s4 1983009808
        %v9915 = vunpack.c.0.s8 %v9914
        %v9916 = vlaneseq
        %v9917 = vshrl.u32 %v9916, 7
        %v9918 = vsub.s32 %v9915, %v9917
        %v9919 = vrot.slane %v9765, %v9918
        %v9921 = vunpack.c.l.s4 1983009808
        %v9922 = vunpack.c.0.s8 %v9921
        %v9923 = vlaneseq
        %v9924 = vshrl.u32 %v9923, 7
        %v9925 = vsub.s32 %v9922, %v9924
        %v9926 = vrot.slane %v9766, %v9925
        %v9928 = vunpack.c.l.s4 1983009808
        %v9929 = vunpack.c.0.s8 %v9928
        %v9930 = vlaneseq
        %v9931 = vshrl.u32 %v9930, 7
        %v9932 = vsub.s32 %v9929, %v9931
        %v9933 = vrot.slane %v9767, %v9932
        %v9935 = vunpack.c.l.s4 1983009808
        %v9936 = vunpack.c.0.s8 %v9935
        %v9937 = vlaneseq
        %v9938 = vshrl.u32 %v9937, 7
        %v9939 = vsub.s32 %v9936, %v9938
        %v9940 = vrot.slane %v9768, %v9939
        %v9942 = vunpack.c.l.s4 1983009808
        %v9943 = vunpack.c.0.s8 %v9942
        %v9944 = vlaneseq
        %v9945 = vshrl.u32 %v9944, 7
        %v9946 = vsub.s32 %v9943, %v9945
        %v9947 = vrot.slane %v9769, %v9946
        %v9949 = vunpack.c.l.s4 1983009808
        %v9950 = vunpack.c.0.s8 %v9949
        %v9951 = vlaneseq
        %v9952 = vshrl.u32 %v9951, 7
        %v9953 = vsub.s32 %v9950, %v9952
        %v9954 = vrot.slane %v9770, %v9953
        %v9956 = vunpack.c.l.s4 1983009808
        %v9957 = vunpack.c.0.s8 %v9956
        %v9958 = vlaneseq
        %v9959 = vshrl.u32 %v9958, 7
        %v9960 = vsub.s32 %v9957, %v9959
        %v9961 = vrot.slane %v9771, %v9960
        %v9963 = vunpack.c.l.s4 1983009808
        %v9964 = vunpack.c.0.s8 %v9963
        %v9965 = vlaneseq
        %v9966 = vshrl.u32 %v9965, 7
        %v9967 = vsub.s32 %v9964, %v9966
        %v9968 = vrot.slane %v9772, %v9967
        %v9970 = vunpack.c.l.s4 1983009808
        %v9971 = vunpack.c.0.s8 %v9970
        %v9972 = vlaneseq
        %v9973 = vshrl.u32 %v9972, 7
        %v9974 = vsub.s32 %v9971, %v9973
        %v9975 = vrot.slane %v9773, %v9974
        %v9977 = vunpack.c.l.s4 1983009808
        %v9978 = vunpack.c.0.s8 %v9977
        %v9979 = vlaneseq
        %v9980 = vshrl.u32 %v9979, 7
        %v9981 = vsub.s32 %v9978, %v9980
        %v9982 = vrot.slane %v9774, %v9981
        %v9984 = vunpack.c.l.s4 1983009808
        %v9985 = vunpack.c.0.s8 %v9984
        %v9986 = vlaneseq
        %v9987 = vshrl.u32 %v9986, 7
        %v9988 = vsub.s32 %v9985, %v9987
        %v9989 = vrot.slane %v9775, %v9988
        %v9991 = vunpack.c.l.s4 1983009808
        %v9992 = vunpack.c.0.s8 %v9991
        %v9993 = vlaneseq
        %v9994 = vshrl.u32 %v9993, 7
        %v9995 = vsub.s32 %v9992, %v9994
        %v9996 = vrot.slane %v9776, %v9995
        %v9998 = vunpack.c.l.s4 1983009808
        %v9999 = vunpack.c.0.s8 %v9998
        %v10000 = vlaneseq
        %v10001 = vshrl.u32 %v10000, 7
        %v10002 = vsub.s32 %v9999, %v10001
        %v10003 = vrot.slane %v9777, %v10002
        %v10005 = vunpack.c.l.s4 1983009808
        %v10006 = vunpack.c.0.s8 %v10005
        %v10007 = vlaneseq
        %v10008 = vshrl.u32 %v10007, 7
        %v10009 = vsub.s32 %v10006, %v10008
        %v10010 = vrot.slane %v9778, %v10009
        %v10012 = vunpack.c.l.s4 1983009808
        %v10013 = vunpack.c.0.s8 %v10012
        %v10014 = vlaneseq
        %v10015 = vshrl.u32 %v10014, 7
        %v10016 = vsub.s32 %v10013, %v10015
        %v10017 = vrot.slane %v9779, %v10016
        %v10019 = vunpack.c.l.s4 1983009808
        %v10020 = vunpack.c.0.s8 %v10019
        %v10021 = vlaneseq
        %v10022 = vshrl.u32 %v10021, 7
        %v10023 = vsub.s32 %v10020, %v10022
        %v10024 = vrot.slane %v9780, %v10023
        %v10026 = vunpack.c.l.s4 1983009808
        %v10027 = vunpack.c.0.s8 %v10026
        %v10028 = vlaneseq
        %v10029 = vshrl.u32 %v10028, 7
        %v10030 = vsub.s32 %v10027, %v10029
        %v10031 = vrot.slane %v9781, %v10030
        %v10033 = vunpack.c.l.s4 1983009808
        %v10034 = vunpack.c.0.s8 %v10033
        %v10035 = vlaneseq
        %v10036 = vshrl.u32 %v10035, 7
        %v10037 = vsub.s32 %v10034, %v10036
        %v10038 = vrot.slane %v9782, %v10037
        %v10040 = vunpack.c.l.s4 1983009808
        %v10041 = vunpack.c.0.s8 %v10040
        %v10042 = vlaneseq
        %v10043 = vshrl.u32 %v10042, 7
        %v10044 = vsub.s32 %v10041, %v10043
        %v10045 = vrot.slane %v9821, %v10044
        %v10047 = vunpack.c.l.s4 1983009808
        %v10048 = vunpack.c.0.s8 %v10047
        %v10049 = vlaneseq
        %v10050 = vshrl.u32 %v10049, 7
        %v10051 = vsub.s32 %v10048, %v10050
        %v10052 = vrot.slane %v9828, %v10051
        %v10054 = vunpack.c.l.s4 1983009808
        %v10055 = vunpack.c.0.s8 %v10054
        %v10056 = vlaneseq
        %v10057 = vshrl.u32 %v10056, 7
        %v10058 = vsub.s32 %v10055, %v10057
        %v10059 = vrot.slane %v9835, %v10058
        %v10061 = vunpack.c.l.s4 1983009808
        %v10062 = vunpack.c.0.s8 %v10061
        %v10063 = vlaneseq
        %v10064 = vshrl.u32 %v10063, 7
        %v10065 = vsub.s32 %v10062, %v10064
        %v10066 = vrot.slane %v9842, %v10065
        %v10068 = vunpack.c.l.s4 1983009808
        %v10069 = vunpack.c.0.s8 %v10068
        %v10070 = vlaneseq
        %v10071 = vshrl.u32 %v10070, 7
        %v10072 = vsub.s32 %v10069, %v10071
        %v10073 = vrot.slane %v9849, %v10072
        %v10075 = vunpack.c.l.s4 1983009808
        %v10076 = vunpack.c.0.s8 %v10075
        %v10077 = vlaneseq
        %v10078 = vshrl.u32 %v10077, 7
        %v10079 = vsub.s32 %v10076, %v10078
        %v10080 = vrot.slane %v9856, %v10079
        %v10082 = vunpack.c.l.s4 1983009808
        %v10083 = vunpack.c.0.s8 %v10082
        %v10084 = vlaneseq
        %v10085 = vshrl.u32 %v10084, 7
        %v10086 = vsub.s32 %v10083, %v10085
        %v10087 = vrot.slane %v9863, %v10086
        %v10089 = vunpack.c.l.s4 1983009808
        %v10090 = vunpack.c.0.s8 %v10089
        %v10091 = vlaneseq
        %v10092 = vshrl.u32 %v10091, 7
        %v10093 = vsub.s32 %v10090, %v10092
        %v10094 = vrot.slane %v9870, %v10093
        %v10096 = vunpack.c.l.s4 1983009808
        %v10097 = vunpack.c.0.s8 %v10096
        %v10098 = vlaneseq
        %v10099 = vshrl.u32 %v10098, 7
        %v10100 = vsub.s32 %v10097, %v10099
        %v10101 = vrot.slane %v9877, %v10100
        %v10103 = vunpack.c.l.s4 1983009808
        %v10104 = vunpack.c.0.s8 %v10103
        %v10105 = vlaneseq
        %v10106 = vshrl.u32 %v10105, 7
        %v10107 = vsub.s32 %v10104, %v10106
        %v10108 = vrot.slane %v9884, %v10107
        %v10110 = vunpack.c.l.s4 1983009808
        %v10111 = vunpack.c.0.s8 %v10110
        %v10112 = vlaneseq
        %v10113 = vshrl.u32 %v10112, 7
        %v10114 = vsub.s32 %v10111, %v10113
        %v10115 = vrot.slane %v9891, %v10114
        %v10117 = vunpack.c.l.s4 1983009808
        %v10118 = vunpack.c.0.s8 %v10117
        %v10119 = vlaneseq
        %v10120 = vshrl.u32 %v10119, 7
        %v10121 = vsub.s32 %v10118, %v10120
        %v10122 = vrot.slane %v9898, %v10121
        %v10124 = vunpack.c.l.s4 1983009808
        %v10125 = vunpack.c.0.s8 %v10124
        %v10126 = vlaneseq
        %v10127 = vshrl.u32 %v10126, 7
        %v10128 = vsub.s32 %v10125, %v10127
        %v10129 = vrot.slane %v9905, %v10128
        %v10131 = vunpack.c.l.s4 1983009808
        %v10132 = vunpack.c.0.s8 %v10131
        %v10133 = vlaneseq
        %v10134 = vshrl.u32 %v10133, 7
        %v10135 = vsub.s32 %v10132, %v10134
        %v10136 = vrot.slane %v9912, %v10135
        %v10138 = vunpack.c.l.s4 1983009808
        %v10139 = vunpack.c.0.s8 %v10138
        %v10140 = vlaneseq
        %v10141 = vshrl.u32 %v10140, 7
        %v10142 = vsub.s32 %v10139, %v10141
        %v10143 = vrot.slane %v9919, %v10142
        %v10145 = vunpack.c.l.s4 1983009808
        %v10146 = vunpack.c.0.s8 %v10145
        %v10147 = vlaneseq
        %v10148 = vshrl.u32 %v10147, 7
        %v10149 = vsub.s32 %v10146, %v10148
        %v10150 = vrot.slane %v9926, %v10149
        %v10152 = vunpack.c.l.s4 1983009808
        %v10153 = vunpack.c.0.s8 %v10152
        %v10154 = vlaneseq
        %v10155 = vshrl.u32 %v10154, 7
        %v10156 = vsub.s32 %v10153, %v10155
        %v10157 = vrot.slane %v9933, %v10156
        %v10159 = vunpack.c.l.s4 1983009808
        %v10160 = vunpack.c.0.s8 %v10159
        %v10161 = vlaneseq
        %v10162 = vshrl.u32 %v10161, 7
        %v10163 = vsub.s32 %v10160, %v10162
        %v10164 = vrot.slane %v9940, %v10163
        %v10166 = vunpack.c.l.s4 1983009808
        %v10167 = vunpack.c.0.s8 %v10166
        %v10168 = vlaneseq
        %v10169 = vshrl.u32 %v10168, 7
        %v10170 = vsub.s32 %v10167, %v10169
        %v10171 = vrot.slane %v9947, %v10170
        %v10173 = vunpack.c.l.s4 1983009808
        %v10174 = vunpack.c.0.s8 %v10173
        %v10175 = vlaneseq
        %v10176 = vshrl.u32 %v10175, 7
        %v10177 = vsub.s32 %v10174, %v10176
        %v10178 = vrot.slane %v9954, %v10177
        %v10180 = vunpack.c.l.s4 1983009808
        %v10181 = vunpack.c.0.s8 %v10180
        %v10182 = vlaneseq
        %v10183 = vshrl.u32 %v10182, 7
        %v10184 = vsub.s32 %v10181, %v10183
        %v10185 = vrot.slane %v9961, %v10184
        %v10187 = vunpack.c.l.s4 1983009808
        %v10188 = vunpack.c.0.s8 %v10187
        %v10189 = vlaneseq
        %v10190 = vshrl.u32 %v10189, 7
        %v10191 = vsub.s32 %v10188, %v10190
        %v10192 = vrot.slane %v9968, %v10191
        %v10194 = vunpack.c.l.s4 1983009808
        %v10195 = vunpack.c.0.s8 %v10194
        %v10196 = vlaneseq
        %v10197 = vshrl.u32 %v10196, 7
        %v10198 = vsub.s32 %v10195, %v10197
        %v10199 = vrot.slane %v9975, %v10198
        %v10201 = vunpack.c.l.s4 1983009808
        %v10202 = vunpack.c.0.s8 %v10201
        %v10203 = vlaneseq
        %v10204 = vshrl.u32 %v10203, 7
        %v10205 = vsub.s32 %v10202, %v10204
        %v10206 = vrot.slane %v9982, %v10205
        %v10208 = vunpack.c.l.s4 1983009808
        %v10209 = vunpack.c.0.s8 %v10208
        %v10210 = vlaneseq
        %v10211 = vshrl.u32 %v10210, 7
        %v10212 = vsub.s32 %v10209, %v10211
        %v10213 = vrot.slane %v9989, %v10212
        %v10215 = vunpack.c.l.s4 1983009808
        %v10216 = vunpack.c.0.s8 %v10215
        %v10217 = vlaneseq
        %v10218 = vshrl.u32 %v10217, 7
        %v10219 = vsub.s32 %v10216, %v10218
        %v10220 = vrot.slane %v9996, %v10219
        %v10222 = vunpack.c.l.s4 1983009808
        %v10223 = vunpack.c.0.s8 %v10222
        %v10224 = vlaneseq
        %v10225 = vshrl.u32 %v10224, 7
        %v10226 = vsub.s32 %v10223, %v10225
        %v10227 = vrot.slane %v10003, %v10226
        %v10229 = vunpack.c.l.s4 1983009808
        %v10230 = vunpack.c.0.s8 %v10229
        %v10231 = vlaneseq
        %v10232 = vshrl.u32 %v10231, 7
        %v10233 = vsub.s32 %v10230, %v10232
        %v10234 = vrot.slane %v10010, %v10233
        %v10236 = vunpack.c.l.s4 1983009808
        %v10237 = vunpack.c.0.s8 %v10236
        %v10238 = vlaneseq
        %v10239 = vshrl.u32 %v10238, 7
        %v10240 = vsub.s32 %v10237, %v10239
        %v10241 = vrot.slane %v10017, %v10240
        %v10243 = vunpack.c.l.s4 1983009808
        %v10244 = vunpack.c.0.s8 %v10243
        %v10245 = vlaneseq
        %v10246 = vshrl.u32 %v10245, 7
        %v10247 = vsub.s32 %v10244, %v10246
        %v10248 = vrot.slane %v10024, %v10247
        %v10250 = vunpack.c.l.s4 1983009808
        %v10251 = vunpack.c.0.s8 %v10250
        %v10252 = vlaneseq
        %v10253 = vshrl.u32 %v10252, 7
        %v10254 = vsub.s32 %v10251, %v10253
        %v10255 = vrot.slane %v10031, %v10254
        %v10257 = vunpack.c.l.s4 1983009808
        %v10258 = vunpack.c.0.s8 %v10257
        %v10259 = vlaneseq
        %v10260 = vshrl.u32 %v10259, 7
        %v10261 = vsub.s32 %v10258, %v10260
        %v10262 = vrot.slane %v10038, %v10261
        %v10263 = vunpack.c.l.b16 %v10045
        %v10264 = vunpack.c.l.b16 %v10052
        %v10265 = vunpack.c.l.b16 %v10059
        %v10266 = vunpack.c.l.b16 %v10066
        %v10267 = vunpack.c.l.b16 %v10073
        %v10268 = vunpack.c.l.b16 %v10080
        %v10269 = vunpack.c.l.b16 %v10087
        %v10270 = vunpack.c.l.b16 %v10094
        %v10271 = vunpack.c.l.b16 %v10101
        %v10272 = vunpack.c.l.b16 %v10108
        %v10273 = vunpack.c.l.b16 %v10115
        %v10274 = vunpack.c.l.b16 %v10122
        %v10275 = vunpack.c.l.b16 %v10129
        %v10276 = vunpack.c.l.b16 %v10136
        %v10277 = vunpack.c.l.b16 %v10143
        %v10278 = vunpack.c.l.b16 %v10150
        %v10279 = vunpack.c.l.b16 %v10157
        %v10280 = vunpack.c.l.b16 %v10164
        %v10281 = vunpack.c.l.b16 %v10171
        %v10282 = vunpack.c.l.b16 %v10178
        %v10283 = vunpack.c.l.b16 %v10185
        %v10284 = vunpack.c.l.b16 %v10192
        %v10285 = vunpack.c.l.b16 %v10199
        %v10286 = vunpack.c.l.b16 %v10206
        %v10287 = vunpack.c.l.b16 %v10213
        %v10288 = vunpack.c.l.b16 %v10220
        %v10289 = vunpack.c.l.b16 %v10227
        %v10290 = vunpack.c.l.b16 %v10234
        %v10291 = vunpack.c.l.b16 %v10241
        %v10292 = vunpack.c.l.b16 %v10248
        %v10293 = vunpack.c.l.b16 %v10255
        %v10294 = vunpack.c.l.b16 %v10262
        %v10295 = vrot.slane %v10264, 7
        %v10296 = vsel %vm3439, %v10295, %v10263
        %v10297 = vrot.slane %v10265, 6
        %vm10298 = vcmask 1042434
        %v10299 = vsel %vm10298, %v10297, %v10296
        %v10300 = vrot.slane %v10266, 5
        %v10301 = vsel %vm3424, %v10300, %v10299
        %v10302 = vrot.slane %v10268, 7
        %v10303 = vsel %vm3439, %v10302, %v10267
        %v10304 = vrot.slane %v10269, 6
        %v10305 = vsel %vm10298, %v10304, %v10303
        %v10306 = vrot.slane %v10270, 5
        %v10307 = vsel %vm3424, %v10306, %v10305
        %v10308 = vrot.slane %v10272, 7
        %v10309 = vsel %vm3439, %v10308, %v10271
        %v10310 = vrot.slane %v10273, 6
        %v10311 = vsel %vm10298, %v10310, %v10309
        %v10312 = vrot.slane %v10274, 5
        %v10313 = vsel %vm3424, %v10312, %v10311
        %v10314 = vrot.slane %v10276, 7
        %v10315 = vsel %vm3439, %v10314, %v10275
        %v10316 = vrot.slane %v10277, 6
        %v10317 = vsel %vm10298, %v10316, %v10315
        %v10318 = vrot.slane %v10278, 5
        %v10319 = vsel %vm3424, %v10318, %v10317
        %v10320 = vrot.slane %v10280, 7
        %v10321 = vsel %vm3439, %v10320, %v10279
        %v10322 = vrot.slane %v10281, 6
        %v10323 = vsel %vm10298, %v10322, %v10321
        %v10324 = vrot.slane %v10282, 5
        %v10325 = vsel %vm3424, %v10324, %v10323
        %v10326 = vrot.slane %v10284, 7
        %v10327 = vsel %vm3439, %v10326, %v10283
        %v10328 = vrot.slane %v10285, 6
        %v10329 = vsel %vm10298, %v10328, %v10327
        %v10330 = vrot.slane %v10286, 5
        %v10331 = vsel %vm3424, %v10330, %v10329
        %v10332 = vrot.slane %v10288, 7
        %v10333 = vsel %vm3439, %v10332, %v10287
        %v10334 = vrot.slane %v10289, 6
        %v10335 = vsel %vm10298, %v10334, %v10333
        %v10336 = vrot.slane %v10290, 5
        %v10337 = vsel %vm3424, %v10336, %v10335
        %v10338 = vrot.slane %v10292, 7
        %v10339 = vsel %vm3439, %v10338, %v10291
        %v10340 = vrot.slane %v10293, 6
        %v10341 = vsel %vm10298, %v10340, %v10339
        %v10342 = vrot.slane %v10294, 5
        %v10343 = vsel %vm3424, %v10342, %v10341
        %v10344 = vpack.c.b16 %v10301, %v10301
        %v10345 = vpack.c.b16 %v10307, %v10307
        %v10346 = vpack.c.b16 %v10313, %v10313
        %v10347 = vpack.c.b16 %v10319, %v10319
        %v10348 = vpack.c.b16 %v10325, %v10325
        %v10349 = vpack.c.b16 %v10331, %v10331
        %v10350 = vpack.c.b16 %v10337, %v10337
        %v10351 = vpack.c.b16 %v10343, %v10343
        %v10353 = vunpack.c.l.s4 1983009808
        %v10354 = vunpack.c.0.s8 %v10353
        %v10355 = vlaneseq
        %v10356 = vshrl.u32 %v10355, 7
        %v10357 = vsub.s32 %v10354, %v10356
        %v10358 = vrot.slane %v10344, %v10357
        %v10360 = vunpack.c.l.s4 1983009808
        %v10361 = vunpack.c.0.s8 %v10360
        %v10362 = vlaneseq
        %v10363 = vshrl.u32 %v10362, 7
        %v10364 = vsub.s32 %v10361, %v10363
        %v10365 = vrot.slane %v10345, %v10364
        %v10367 = vunpack.c.l.s4 1983009808
        %v10368 = vunpack.c.0.s8 %v10367
        %v10369 = vlaneseq
        %v10370 = vshrl.u32 %v10369, 7
        %v10371 = vsub.s32 %v10368, %v10370
        %v10372 = vrot.slane %v10346, %v10371
        %v10374 = vunpack.c.l.s4 1983009808
        %v10375 = vunpack.c.0.s8 %v10374
        %v10376 = vlaneseq
        %v10377 = vshrl.u32 %v10376, 7
        %v10378 = vsub.s32 %v10375, %v10377
        %v10379 = vrot.slane %v10347, %v10378
        %v10381 = vunpack.c.l.s4 1983009808
        %v10382 = vunpack.c.0.s8 %v10381
        %v10383 = vlaneseq
        %v10384 = vshrl.u32 %v10383, 7
        %v10385 = vsub.s32 %v10382, %v10384
        %v10386 = vrot.slane %v10348, %v10385
        %v10388 = vunpack.c.l.s4 1983009808
        %v10389 = vunpack.c.0.s8 %v10388
        %v10390 = vlaneseq
        %v10391 = vshrl.u32 %v10390, 7
        %v10392 = vsub.s32 %v10389, %v10391
        %v10393 = vrot.slane %v10349, %v10392
        %v10395 = vunpack.c.l.s4 1983009808
        %v10396 = vunpack.c.0.s8 %v10395
        %v10397 = vlaneseq
        %v10398 = vshrl.u32 %v10397, 7
        %v10399 = vsub.s32 %v10396, %v10398
        %v10400 = vrot.slane %v10350, %v10399
        %v10402 = vunpack.c.l.s4 1983009808
        %v10403 = vunpack.c.0.s8 %v10402
        %v10404 = vlaneseq
        %v10405 = vshrl.u32 %v10404, 7
        %v10406 = vsub.s32 %v10403, %v10405
        %v10407 = vrot.slane %v10351, %v10406
        %vm10416 = vcmask 254976
        %10417 = vst.msk [vmem:[#allocation4] sm:$0x3] %vm10416, %v10358
        %10418 = vst.msk [vmem:[#allocation4 + $0x2] sm:$0x3] %vm10416, %v10365
        %10419 = vst.msk [vmem:[#allocation4 + $0x4] sm:$0x3] %vm10416, %v10372
        %10420 = vst.msk [vmem:[#allocation4 + $0x6] sm:$0x3] %vm10416, %v10379
        %10421 = vst.msk [vmem:[#allocation4 + $0x8] sm:$0x3] %vm10416, %v10386
        %10422 = vst.msk [vmem:[#allocation4 + $0xa] sm:$0x3] %vm10416, %v10393
        %10423 = vst.msk [vmem:[#allocation4 + $0xc] sm:$0x3] %vm10416, %v10400
        %10424 = vst.msk [vmem:[#allocation4 + $0xe] sm:$0x3] %vm10416, %v10407
        %10425 = vrot.lane.b32.xlu0 %v10358, 96
        %v10426 = vpop.permute.xlu0 %10425
        %10427 = vrot.lane.b32.xlu0 %v10365, 96
        %v10428 = vpop.permute.xlu0 %10427
        %10429 = vrot.lane.b32.xlu0 %v10372, 96
        %v10430 = vpop.permute.xlu0 %10429
        %10431 = vrot.lane.b32.xlu0 %v10379, 96
        %v10432 = vpop.permute.xlu0 %10431
        %10433 = vrot.lane.b32.xlu0 %v10386, 96
        %v10434 = vpop.permute.xlu0 %10433
        %10435 = vrot.lane.b32.xlu0 %v10393, 96
        %v10436 = vpop.permute.xlu0 %10435
        %10437 = vrot.lane.b32.xlu0 %v10400, 96
        %v10438 = vpop.permute.xlu0 %10437
        %10439 = vrot.lane.b32.xlu0 %v10407, 96
        %v10440 = vpop.permute.xlu0 %10439
        %vm10449 = vcmask 517376
        %10450 = vst.msk [vmem:[#allocation4] sm:$0x3] %vm10449, %v10426
        %10451 = vst.msk [vmem:[#allocation4 + $0x2] sm:$0x3] %vm10449, %v10428
        %10452 = vst.msk [vmem:[#allocation4 + $0x4] sm:$0x3] %vm10449, %v10430
        %10453 = vst.msk [vmem:[#allocation4 + $0x6] sm:$0x3] %vm10449, %v10432
        %10454 = vst.msk [vmem:[#allocation4 + $0x8] sm:$0x3] %vm10449, %v10434
        %10455 = vst.msk [vmem:[#allocation4 + $0xa] sm:$0x3] %vm10449, %v10436
        %10456 = vst.msk [vmem:[#allocation4 + $0xc] sm:$0x3] %vm10449, %v10438
        %10457 = vst.msk [vmem:[#allocation4 + $0xe] sm:$0x3] %vm10449, %v10440
        %v10458 = vrot.slane %v9559, 2
        %v10459 = vrot.slane %v9560, 2
        %v10460 = vrot.slane %v9561, 2
        %v10461 = vrot.slane %v9562, 2
        %v10462 = vrot.slane %v9563, 2
        %v10463 = vrot.slane %v9564, 2
        %v10464 = vrot.slane %v9565, 2
        %v10465 = vrot.slane %v9566, 2
        %v10466 = vrot.slane %v9567, 2
        %v10467 = vrot.slane %v9568, 2
        %v10468 = vrot.slane %v9569, 2
        %v10469 = vrot.slane %v9570, 2
        %v10470 = vrot.slane %v9571, 2
        %v10471 = vrot.slane %v9572, 2
        %v10472 = vrot.slane %v9573, 2
        %v10473 = vrot.slane %v9574, 2
        %v10474 = vrot.slane %v9575, 2
        %v10475 = vrot.slane %v9576, 2
        %v10476 = vrot.slane %v9577, 2
        %v10477 = vrot.slane %v9578, 2
        %v10478 = vrot.slane %v9579, 2
        %v10479 = vrot.slane %v9580, 2
        %v10480 = vrot.slane %v9581, 2
        %v10481 = vrot.slane %v9582, 2
        %v10482 = vrot.slane %v9583, 2
        %v10483 = vrot.slane %v9584, 2
        %v10484 = vrot.slane %v9585, 2
        %v10485 = vrot.slane %v9586, 2
        %v10486 = vrot.slane %v9587, 2
        %v10487 = vrot.slane %v9588, 2
        %v10488 = vrot.slane %v9589, 2
        %v10489 = vrot.slane %v9590, 2
        %v10522 = vrot.slane %v9624, 2
        %v10523 = vrot.slane %v9626, 2
        %v10524 = vrot.slane %v9628, 2
        %v10525 = vrot.slane %v9630, 2
        %v10526 = vrot.slane %v9632, 2
        %v10527 = vrot.slane %v9634, 2
        %v10528 = vrot.slane %v9636, 2
        %v10529 = vrot.slane %v9638, 2
        %v10530 = vrot.slane %v9640, 2
        %v10531 = vrot.slane %v9642, 2
        %v10532 = vrot.slane %v9644, 2
        %v10533 = vrot.slane %v9646, 2
        %v10534 = vrot.slane %v9648, 2
        %v10535 = vrot.slane %v9650, 2
        %v10536 = vrot.slane %v9652, 2
        %v10537 = vrot.slane %v9654, 2
        %v10538 = vrot.slane %v9656, 2
        %v10539 = vrot.slane %v9658, 2
        %v10540 = vrot.slane %v9660, 2
        %v10541 = vrot.slane %v9662, 2
        %v10542 = vrot.slane %v9664, 2
        %v10543 = vrot.slane %v9666, 2
        %v10544 = vrot.slane %v9668, 2
        %v10545 = vrot.slane %v9670, 2
        %v10546 = vrot.slane %v9672, 2
        %v10547 = vrot.slane %v9674, 2
        %v10548 = vrot.slane %v9676, 2
        %v10549 = vrot.slane %v9678, 2
        %v10550 = vrot.slane %v9680, 2
        %v10551 = vrot.slane %v9682, 2
        %v10552 = vrot.slane %v9684, 2
        %v10553 = vrot.slane %v9686, 2
        %v10586 = vmax.f32 %v10458, %v10522
        %v10587 = vmax.f32 %v10459, %v10523
        %v10588 = vmax.f32 %v10460, %v10524
        %v10589 = vmax.f32 %v10461, %v10525
        %v10590 = vmax.f32 %v10462, %v10526
        %v10591 = vmax.f32 %v10463, %v10527
        %v10592 = vmax.f32 %v10464, %v10528
        %v10593 = vmax.f32 %v10465, %v10529
        %v10594 = vmax.f32 %v10466, %v10530
        %v10595 = vmax.f32 %v10467, %v10531
        %v10596 = vmax.f32 %v10468, %v10532
        %v10597 = vmax.f32 %v10469, %v10533
        %v10598 = vmax.f32 %v10470, %v10534
        %v10599 = vmax.f32 %v10471, %v10535
        %v10600 = vmax.f32 %v10472, %v10536
        %v10601 = vmax.f32 %v10473, %v10537
        %v10602 = vmax.f32 %v10474, %v10538
        %v10603 = vmax.f32 %v10475, %v10539
        %v10604 = vmax.f32 %v10476, %v10540
        %v10605 = vmax.f32 %v10477, %v10541
        %v10606 = vmax.f32 %v10478, %v10542
        %v10607 = vmax.f32 %v10479, %v10543
        %v10608 = vmax.f32 %v10480, %v10544
        %v10609 = vmax.f32 %v10481, %v10545
        %v10610 = vmax.f32 %v10482, %v10546
        %v10611 = vmax.f32 %v10483, %v10547
        %v10612 = vmax.f32 %v10484, %v10548
        %v10613 = vmax.f32 %v10485, %v10549
        %v10614 = vmax.f32 %v10486, %v10550
        %v10615 = vmax.f32 %v10487, %v10551
        %v10616 = vmax.f32 %v10488, %v10552
        %v10617 = vmax.f32 %v10489, %v10553
        %v10618 = vpack.c.bf16 %v10586, %v10586
        %v10619 = vpack.c.bf16 %v10587, %v10587
        %v10620 = vpack.c.bf16 %v10588, %v10588
        %v10621 = vpack.c.bf16 %v10589, %v10589
        %v10622 = vpack.c.bf16 %v10590, %v10590
        %v10623 = vpack.c.bf16 %v10591, %v10591
        %v10624 = vpack.c.bf16 %v10592, %v10592
        %v10625 = vpack.c.bf16 %v10593, %v10593
        %v10626 = vpack.c.bf16 %v10594, %v10594
        %v10627 = vpack.c.bf16 %v10595, %v10595
        %v10628 = vpack.c.bf16 %v10596, %v10596
        %v10629 = vpack.c.bf16 %v10597, %v10597
        %v10630 = vpack.c.bf16 %v10598, %v10598
        %v10631 = vpack.c.bf16 %v10599, %v10599
        %v10632 = vpack.c.bf16 %v10600, %v10600
        %v10633 = vpack.c.bf16 %v10601, %v10601
        %v10634 = vpack.c.bf16 %v10602, %v10602
        %v10635 = vpack.c.bf16 %v10603, %v10603
        %v10636 = vpack.c.bf16 %v10604, %v10604
        %v10637 = vpack.c.bf16 %v10605, %v10605
        %v10638 = vpack.c.bf16 %v10606, %v10606
        %v10639 = vpack.c.bf16 %v10607, %v10607
        %v10640 = vpack.c.bf16 %v10608, %v10608
        %v10641 = vpack.c.bf16 %v10609, %v10609
        %v10642 = vpack.c.bf16 %v10610, %v10610
        %v10643 = vpack.c.bf16 %v10611, %v10611
        %v10644 = vpack.c.bf16 %v10612, %v10612
        %v10645 = vpack.c.bf16 %v10613, %v10613
        %v10646 = vpack.c.bf16 %v10614, %v10614
        %v10647 = vpack.c.bf16 %v10615, %v10615
        %v10648 = vpack.c.bf16 %v10616, %v10616
        %v10649 = vpack.c.bf16 %v10617, %v10617
        %v10683 = vunpack.c.l.s4 1983009808
        %v10684 = vunpack.c.0.s8 %v10683
        %v10685 = vlaneseq
        %v10686 = vshrl.u32 %v10685, 7
        %v10687 = vsub.s32 %v10684, %v10686
        %v10688 = vrot.slane %v10618, %v10687
        %v10690 = vunpack.c.l.s4 1983009808
        %v10691 = vunpack.c.0.s8 %v10690
        %v10692 = vlaneseq
        %v10693 = vshrl.u32 %v10692, 7
        %v10694 = vsub.s32 %v10691, %v10693
        %v10695 = vrot.slane %v10619, %v10694
        %v10697 = vunpack.c.l.s4 1983009808
        %v10698 = vunpack.c.0.s8 %v10697
        %v10699 = vlaneseq
        %v10700 = vshrl.u32 %v10699, 7
        %v10701 = vsub.s32 %v10698, %v10700
        %v10702 = vrot.slane %v10620, %v10701
        %v10704 = vunpack.c.l.s4 1983009808
        %v10705 = vunpack.c.0.s8 %v10704
        %v10706 = vlaneseq
        %v10707 = vshrl.u32 %v10706, 7
        %v10708 = vsub.s32 %v10705, %v10707
        %v10709 = vrot.slane %v10621, %v10708
        %v10711 = vunpack.c.l.s4 1983009808
        %v10712 = vunpack.c.0.s8 %v10711
        %v10713 = vlaneseq
        %v10714 = vshrl.u32 %v10713, 7
        %v10715 = vsub.s32 %v10712, %v10714
        %v10716 = vrot.slane %v10622, %v10715
        %v10718 = vunpack.c.l.s4 1983009808
        %v10719 = vunpack.c.0.s8 %v10718
        %v10720 = vlaneseq
        %v10721 = vshrl.u32 %v10720, 7
        %v10722 = vsub.s32 %v10719, %v10721
        %v10723 = vrot.slane %v10623, %v10722
        %v10725 = vunpack.c.l.s4 1983009808
        %v10726 = vunpack.c.0.s8 %v10725
        %v10727 = vlaneseq
        %v10728 = vshrl.u32 %v10727, 7
        %v10729 = vsub.s32 %v10726, %v10728
        %v10730 = vrot.slane %v10624, %v10729
        %v10732 = vunpack.c.l.s4 1983009808
        %v10733 = vunpack.c.0.s8 %v10732
        %v10734 = vlaneseq
        %v10735 = vshrl.u32 %v10734, 7
        %v10736 = vsub.s32 %v10733, %v10735
        %v10737 = vrot.slane %v10625, %v10736
        %v10739 = vunpack.c.l.s4 1983009808
        %v10740 = vunpack.c.0.s8 %v10739
        %v10741 = vlaneseq
        %v10742 = vshrl.u32 %v10741, 7
        %v10743 = vsub.s32 %v10740, %v10742
        %v10744 = vrot.slane %v10626, %v10743
        %v10746 = vunpack.c.l.s4 1983009808
        %v10747 = vunpack.c.0.s8 %v10746
        %v10748 = vlaneseq
        %v10749 = vshrl.u32 %v10748, 7
        %v10750 = vsub.s32 %v10747, %v10749
        %v10751 = vrot.slane %v10627, %v10750
        %v10753 = vunpack.c.l.s4 1983009808
        %v10754 = vunpack.c.0.s8 %v10753
        %v10755 = vlaneseq
        %v10756 = vshrl.u32 %v10755, 7
        %v10757 = vsub.s32 %v10754, %v10756
        %v10758 = vrot.slane %v10628, %v10757
        %v10760 = vunpack.c.l.s4 1983009808
        %v10761 = vunpack.c.0.s8 %v10760
        %v10762 = vlaneseq
        %v10763 = vshrl.u32 %v10762, 7
        %v10764 = vsub.s32 %v10761, %v10763
        %v10765 = vrot.slane %v10629, %v10764
        %v10767 = vunpack.c.l.s4 1983009808
        %v10768 = vunpack.c.0.s8 %v10767
        %v10769 = vlaneseq
        %v10770 = vshrl.u32 %v10769, 7
        %v10771 = vsub.s32 %v10768, %v10770
        %v10772 = vrot.slane %v10630, %v10771
        %v10774 = vunpack.c.l.s4 1983009808
        %v10775 = vunpack.c.0.s8 %v10774
        %v10776 = vlaneseq
        %v10777 = vshrl.u32 %v10776, 7
        %v10778 = vsub.s32 %v10775, %v10777
        %v10779 = vrot.slane %v10631, %v10778
        %v10781 = vunpack.c.l.s4 1983009808
        %v10782 = vunpack.c.0.s8 %v10781
        %v10783 = vlaneseq
        %v10784 = vshrl.u32 %v10783, 7
        %v10785 = vsub.s32 %v10782, %v10784
        %v10786 = vrot.slane %v10632, %v10785
        %v10788 = vunpack.c.l.s4 1983009808
        %v10789 = vunpack.c.0.s8 %v10788
        %v10790 = vlaneseq
        %v10791 = vshrl.u32 %v10790, 7
        %v10792 = vsub.s32 %v10789, %v10791
        %v10793 = vrot.slane %v10633, %v10792
        %v10795 = vunpack.c.l.s4 1983009808
        %v10796 = vunpack.c.0.s8 %v10795
        %v10797 = vlaneseq
        %v10798 = vshrl.u32 %v10797, 7
        %v10799 = vsub.s32 %v10796, %v10798
        %v10800 = vrot.slane %v10634, %v10799
        %v10802 = vunpack.c.l.s4 1983009808
        %v10803 = vunpack.c.0.s8 %v10802
        %v10804 = vlaneseq
        %v10805 = vshrl.u32 %v10804, 7
        %v10806 = vsub.s32 %v10803, %v10805
        %v10807 = vrot.slane %v10635, %v10806
        %v10809 = vunpack.c.l.s4 1983009808
        %v10810 = vunpack.c.0.s8 %v10809
        %v10811 = vlaneseq
        %v10812 = vshrl.u32 %v10811, 7
        %v10813 = vsub.s32 %v10810, %v10812
        %v10814 = vrot.slane %v10636, %v10813
        %v10816 = vunpack.c.l.s4 1983009808
        %v10817 = vunpack.c.0.s8 %v10816
        %v10818 = vlaneseq
        %v10819 = vshrl.u32 %v10818, 7
        %v10820 = vsub.s32 %v10817, %v10819
        %v10821 = vrot.slane %v10637, %v10820
        %v10823 = vunpack.c.l.s4 1983009808
        %v10824 = vunpack.c.0.s8 %v10823
        %v10825 = vlaneseq
        %v10826 = vshrl.u32 %v10825, 7
        %v10827 = vsub.s32 %v10824, %v10826
        %v10828 = vrot.slane %v10638, %v10827
        %v10830 = vunpack.c.l.s4 1983009808
        %v10831 = vunpack.c.0.s8 %v10830
        %v10832 = vlaneseq
        %v10833 = vshrl.u32 %v10832, 7
        %v10834 = vsub.s32 %v10831, %v10833
        %v10835 = vrot.slane %v10639, %v10834
        %v10837 = vunpack.c.l.s4 1983009808
        %v10838 = vunpack.c.0.s8 %v10837
        %v10839 = vlaneseq
        %v10840 = vshrl.u32 %v10839, 7
        %v10841 = vsub.s32 %v10838, %v10840
        %v10842 = vrot.slane %v10640, %v10841
        %v10844 = vunpack.c.l.s4 1983009808
        %v10845 = vunpack.c.0.s8 %v10844
        %v10846 = vlaneseq
        %v10847 = vshrl.u32 %v10846, 7
        %v10848 = vsub.s32 %v10845, %v10847
        %v10849 = vrot.slane %v10641, %v10848
        %v10851 = vunpack.c.l.s4 1983009808
        %v10852 = vunpack.c.0.s8 %v10851
        %v10853 = vlaneseq
        %v10854 = vshrl.u32 %v10853, 7
        %v10855 = vsub.s32 %v10852, %v10854
        %v10856 = vrot.slane %v10642, %v10855
        %v10858 = vunpack.c.l.s4 1983009808
        %v10859 = vunpack.c.0.s8 %v10858
        %v10860 = vlaneseq
        %v10861 = vshrl.u32 %v10860, 7
        %v10862 = vsub.s32 %v10859, %v10861
        %v10863 = vrot.slane %v10643, %v10862
        %v10865 = vunpack.c.l.s4 1983009808
        %v10866 = vunpack.c.0.s8 %v10865
        %v10867 = vlaneseq
        %v10868 = vshrl.u32 %v10867, 7
        %v10869 = vsub.s32 %v10866, %v10868
        %v10870 = vrot.slane %v10644, %v10869
        %v10872 = vunpack.c.l.s4 1983009808
        %v10873 = vunpack.c.0.s8 %v10872
        %v10874 = vlaneseq
        %v10875 = vshrl.u32 %v10874, 7
        %v10876 = vsub.s32 %v10873, %v10875
        %v10877 = vrot.slane %v10645, %v10876
        %v10879 = vunpack.c.l.s4 1983009808
        %v10880 = vunpack.c.0.s8 %v10879
        %v10881 = vlaneseq
        %v10882 = vshrl.u32 %v10881, 7
        %v10883 = vsub.s32 %v10880, %v10882
        %v10884 = vrot.slane %v10646, %v10883
        %v10886 = vunpack.c.l.s4 1983009808
        %v10887 = vunpack.c.0.s8 %v10886
        %v10888 = vlaneseq
        %v10889 = vshrl.u32 %v10888, 7
        %v10890 = vsub.s32 %v10887, %v10889
        %v10891 = vrot.slane %v10647, %v10890
        %v10893 = vunpack.c.l.s4 1983009808
        %v10894 = vunpack.c.0.s8 %v10893
        %v10895 = vlaneseq
        %v10896 = vshrl.u32 %v10895, 7
        %v10897 = vsub.s32 %v10894, %v10896
        %v10898 = vrot.slane %v10648, %v10897
        %v10900 = vunpack.c.l.s4 1983009808
        %v10901 = vunpack.c.0.s8 %v10900
        %v10902 = vlaneseq
        %v10903 = vshrl.u32 %v10902, 7
        %v10904 = vsub.s32 %v10901, %v10903
        %v10905 = vrot.slane %v10649, %v10904
        %v10907 = vunpack.c.l.s4 1983009808
        %v10908 = vunpack.c.0.s8 %v10907
        %v10909 = vlaneseq
        %v10910 = vshrl.u32 %v10909, 7
        %v10911 = vsub.s32 %v10908, %v10910
        %v10912 = vrot.slane %v10688, %v10911
        %v10914 = vunpack.c.l.s4 1983009808
        %v10915 = vunpack.c.0.s8 %v10914
        %v10916 = vlaneseq
        %v10917 = vshrl.u32 %v10916, 7
        %v10918 = vsub.s32 %v10915, %v10917
        %v10919 = vrot.slane %v10695, %v10918
        %v10921 = vunpack.c.l.s4 1983009808
        %v10922 = vunpack.c.0.s8 %v10921
        %v10923 = vlaneseq
        %v10924 = vshrl.u32 %v10923, 7
        %v10925 = vsub.s32 %v10922, %v10924
        %v10926 = vrot.slane %v10702, %v10925
        %v10928 = vunpack.c.l.s4 1983009808
        %v10929 = vunpack.c.0.s8 %v10928
        %v10930 = vlaneseq
        %v10931 = vshrl.u32 %v10930, 7
        %v10932 = vsub.s32 %v10929, %v10931
        %v10933 = vrot.slane %v10709, %v10932
        %v10935 = vunpack.c.l.s4 1983009808
        %v10936 = vunpack.c.0.s8 %v10935
        %v10937 = vlaneseq
        %v10938 = vshrl.u32 %v10937, 7
        %v10939 = vsub.s32 %v10936, %v10938
        %v10940 = vrot.slane %v10716, %v10939
        %v10942 = vunpack.c.l.s4 1983009808
        %v10943 = vunpack.c.0.s8 %v10942
        %v10944 = vlaneseq
        %v10945 = vshrl.u32 %v10944, 7
        %v10946 = vsub.s32 %v10943, %v10945
        %v10947 = vrot.slane %v10723, %v10946
        %v10949 = vunpack.c.l.s4 1983009808
        %v10950 = vunpack.c.0.s8 %v10949
        %v10951 = vlaneseq
        %v10952 = vshrl.u32 %v10951, 7
        %v10953 = vsub.s32 %v10950, %v10952
        %v10954 = vrot.slane %v10730, %v10953
        %v10956 = vunpack.c.l.s4 1983009808
        %v10957 = vunpack.c.0.s8 %v10956
        %v10958 = vlaneseq
        %v10959 = vshrl.u32 %v10958, 7
        %v10960 = vsub.s32 %v10957, %v10959
        %v10961 = vrot.slane %v10737, %v10960
        %v10963 = vunpack.c.l.s4 1983009808
        %v10964 = vunpack.c.0.s8 %v10963
        %v10965 = vlaneseq
        %v10966 = vshrl.u32 %v10965, 7
        %v10967 = vsub.s32 %v10964, %v10966
        %v10968 = vrot.slane %v10744, %v10967
        %v10970 = vunpack.c.l.s4 1983009808
        %v10971 = vunpack.c.0.s8 %v10970
        %v10972 = vlaneseq
        %v10973 = vshrl.u32 %v10972, 7
        %v10974 = vsub.s32 %v10971, %v10973
        %v10975 = vrot.slane %v10751, %v10974
        %v10977 = vunpack.c.l.s4 1983009808
        %v10978 = vunpack.c.0.s8 %v10977
        %v10979 = vlaneseq
        %v10980 = vshrl.u32 %v10979, 7
        %v10981 = vsub.s32 %v10978, %v10980
        %v10982 = vrot.slane %v10758, %v10981
        %v10984 = vunpack.c.l.s4 1983009808
        %v10985 = vunpack.c.0.s8 %v10984
        %v10986 = vlaneseq
        %v10987 = vshrl.u32 %v10986, 7
        %v10988 = vsub.s32 %v10985, %v10987
        %v10989 = vrot.slane %v10765, %v10988
        %v10991 = vunpack.c.l.s4 1983009808
        %v10992 = vunpack.c.0.s8 %v10991
        %v10993 = vlaneseq
        %v10994 = vshrl.u32 %v10993, 7
        %v10995 = vsub.s32 %v10992, %v10994
        %v10996 = vrot.slane %v10772, %v10995
        %v10998 = vunpack.c.l.s4 1983009808
        %v10999 = vunpack.c.0.s8 %v10998
        %v11000 = vlaneseq
        %v11001 = vshrl.u32 %v11000, 7
        %v11002 = vsub.s32 %v10999, %v11001
        %v11003 = vrot.slane %v10779, %v11002
        %v11005 = vunpack.c.l.s4 1983009808
        %v11006 = vunpack.c.0.s8 %v11005
        %v11007 = vlaneseq
        %v11008 = vshrl.u32 %v11007, 7
        %v11009 = vsub.s32 %v11006, %v11008
        %v11010 = vrot.slane %v10786, %v11009
        %v11012 = vunpack.c.l.s4 1983009808
        %v11013 = vunpack.c.0.s8 %v11012
        %v11014 = vlaneseq
        %v11015 = vshrl.u32 %v11014, 7
        %v11016 = vsub.s32 %v11013, %v11015
        %v11017 = vrot.slane %v10793, %v11016
        %v11019 = vunpack.c.l.s4 1983009808
        %v11020 = vunpack.c.0.s8 %v11019
        %v11021 = vlaneseq
        %v11022 = vshrl.u32 %v11021, 7
        %v11023 = vsub.s32 %v11020, %v11022
        %v11024 = vrot.slane %v10800, %v11023
        %v11026 = vunpack.c.l.s4 1983009808
        %v11027 = vunpack.c.0.s8 %v11026
        %v11028 = vlaneseq
        %v11029 = vshrl.u32 %v11028, 7
        %v11030 = vsub.s32 %v11027, %v11029
        %v11031 = vrot.slane %v10807, %v11030
        %v11033 = vunpack.c.l.s4 1983009808
        %v11034 = vunpack.c.0.s8 %v11033
        %v11035 = vlaneseq
        %v11036 = vshrl.u32 %v11035, 7
        %v11037 = vsub.s32 %v11034, %v11036
        %v11038 = vrot.slane %v10814, %v11037
        %v11040 = vunpack.c.l.s4 1983009808
        %v11041 = vunpack.c.0.s8 %v11040
        %v11042 = vlaneseq
        %v11043 = vshrl.u32 %v11042, 7
        %v11044 = vsub.s32 %v11041, %v11043
        %v11045 = vrot.slane %v10821, %v11044
        %v11047 = vunpack.c.l.s4 1983009808
        %v11048 = vunpack.c.0.s8 %v11047
        %v11049 = vlaneseq
        %v11050 = vshrl.u32 %v11049, 7
        %v11051 = vsub.s32 %v11048, %v11050
        %v11052 = vrot.slane %v10828, %v11051
        %v11054 = vunpack.c.l.s4 1983009808
        %v11055 = vunpack.c.0.s8 %v11054
        %v11056 = vlaneseq
        %v11057 = vshrl.u32 %v11056, 7
        %v11058 = vsub.s32 %v11055, %v11057
        %v11059 = vrot.slane %v10835, %v11058
        %v11061 = vunpack.c.l.s4 1983009808
        %v11062 = vunpack.c.0.s8 %v11061
        %v11063 = vlaneseq
        %v11064 = vshrl.u32 %v11063, 7
        %v11065 = vsub.s32 %v11062, %v11064
        %v11066 = vrot.slane %v10842, %v11065
        %v11068 = vunpack.c.l.s4 1983009808
        %v11069 = vunpack.c.0.s8 %v11068
        %v11070 = vlaneseq
        %v11071 = vshrl.u32 %v11070, 7
        %v11072 = vsub.s32 %v11069, %v11071
        %v11073 = vrot.slane %v10849, %v11072
        %v11075 = vunpack.c.l.s4 1983009808
        %v11076 = vunpack.c.0.s8 %v11075
        %v11077 = vlaneseq
        %v11078 = vshrl.u32 %v11077, 7
        %v11079 = vsub.s32 %v11076, %v11078
        %v11080 = vrot.slane %v10856, %v11079
        %v11082 = vunpack.c.l.s4 1983009808
        %v11083 = vunpack.c.0.s8 %v11082
        %v11084 = vlaneseq
        %v11085 = vshrl.u32 %v11084, 7
        %v11086 = vsub.s32 %v11083, %v11085
        %v11087 = vrot.slane %v10863, %v11086
        %v11089 = vunpack.c.l.s4 1983009808
        %v11090 = vunpack.c.0.s8 %v11089
        %v11091 = vlaneseq
        %v11092 = vshrl.u32 %v11091, 7
        %v11093 = vsub.s32 %v11090, %v11092
        %v11094 = vrot.slane %v10870, %v11093
        %v11096 = vunpack.c.l.s4 1983009808
        %v11097 = vunpack.c.0.s8 %v11096
        %v11098 = vlaneseq
        %v11099 = vshrl.u32 %v11098, 7
        %v11100 = vsub.s32 %v11097, %v11099
        %v11101 = vrot.slane %v10877, %v11100
        %v11103 = vunpack.c.l.s4 1983009808
        %v11104 = vunpack.c.0.s8 %v11103
        %v11105 = vlaneseq
        %v11106 = vshrl.u32 %v11105, 7
        %v11107 = vsub.s32 %v11104, %v11106
        %v11108 = vrot.slane %v10884, %v11107
        %v11110 = vunpack.c.l.s4 1983009808
        %v11111 = vunpack.c.0.s8 %v11110
        %v11112 = vlaneseq
        %v11113 = vshrl.u32 %v11112, 7
        %v11114 = vsub.s32 %v11111, %v11113
        %v11115 = vrot.slane %v10891, %v11114
        %v11117 = vunpack.c.l.s4 1983009808
        %v11118 = vunpack.c.0.s8 %v11117
        %v11119 = vlaneseq
        %v11120 = vshrl.u32 %v11119, 7
        %v11121 = vsub.s32 %v11118, %v11120
        %v11122 = vrot.slane %v10898, %v11121
        %v11124 = vunpack.c.l.s4 1983009808
        %v11125 = vunpack.c.0.s8 %v11124
        %v11126 = vlaneseq
        %v11127 = vshrl.u32 %v11126, 7
        %v11128 = vsub.s32 %v11125, %v11127
        %v11129 = vrot.slane %v10905, %v11128
        %v11130 = vunpack.c.l.b16 %v10912
        %v11131 = vunpack.c.l.b16 %v10919
        %v11132 = vunpack.c.l.b16 %v10926
        %v11133 = vunpack.c.l.b16 %v10933
        %v11134 = vunpack.c.l.b16 %v10940
        %v11135 = vunpack.c.l.b16 %v10947
        %v11136 = vunpack.c.l.b16 %v10954
        %v11137 = vunpack.c.l.b16 %v10961
        %v11138 = vunpack.c.l.b16 %v10968
        %v11139 = vunpack.c.l.b16 %v10975
        %v11140 = vunpack.c.l.b16 %v10982
        %v11141 = vunpack.c.l.b16 %v10989
        %v11142 = vunpack.c.l.b16 %v10996
        %v11143 = vunpack.c.l.b16 %v11003
        %v11144 = vunpack.c.l.b16 %v11010
        %v11145 = vunpack.c.l.b16 %v11017
        %v11146 = vunpack.c.l.b16 %v11024
        %v11147 = vunpack.c.l.b16 %v11031
        %v11148 = vunpack.c.l.b16 %v11038
        %v11149 = vunpack.c.l.b16 %v11045
        %v11150 = vunpack.c.l.b16 %v11052
        %v11151 = vunpack.c.l.b16 %v11059
        %v11152 = vunpack.c.l.b16 %v11066
        %v11153 = vunpack.c.l.b16 %v11073
        %v11154 = vunpack.c.l.b16 %v11080
        %v11155 = vunpack.c.l.b16 %v11087
        %v11156 = vunpack.c.l.b16 %v11094
        %v11157 = vunpack.c.l.b16 %v11101
        %v11158 = vunpack.c.l.b16 %v11108
        %v11159 = vunpack.c.l.b16 %v11115
        %v11160 = vunpack.c.l.b16 %v11122
        %v11161 = vunpack.c.l.b16 %v11129
        %v11162 = vrot.slane %v11131, 7
        %v11163 = vsel %vm3439, %v11162, %v11130
        %v11164 = vrot.slane %v11132, 6
        %v11165 = vsel %vm10298, %v11164, %v11163
        %v11166 = vrot.slane %v11133, 5
        %v11167 = vsel %vm3424, %v11166, %v11165
        %v11168 = vrot.slane %v11135, 7
        %v11169 = vsel %vm3439, %v11168, %v11134
        %v11170 = vrot.slane %v11136, 6
        %v11171 = vsel %vm10298, %v11170, %v11169
        %v11172 = vrot.slane %v11137, 5
        %v11173 = vsel %vm3424, %v11172, %v11171
        %v11174 = vrot.slane %v11139, 7
        %v11175 = vsel %vm3439, %v11174, %v11138
        %v11176 = vrot.slane %v11140, 6
        %v11177 = vsel %vm10298, %v11176, %v11175
        %v11178 = vrot.slane %v11141, 5
        %v11179 = vsel %vm3424, %v11178, %v11177
        %v11180 = vrot.slane %v11143, 7
        %v11181 = vsel %vm3439, %v11180, %v11142
        %v11182 = vrot.slane %v11144, 6
        %v11183 = vsel %vm10298, %v11182, %v11181
        %v11184 = vrot.slane %v11145, 5
        %v11185 = vsel %vm3424, %v11184, %v11183
        %v11186 = vrot.slane %v11147, 7
        %v11187 = vsel %vm3439, %v11186, %v11146
        %v11188 = vrot.slane %v11148, 6
        %v11189 = vsel %vm10298, %v11188, %v11187
        %v11190 = vrot.slane %v11149, 5
        %v11191 = vsel %vm3424, %v11190, %v11189
        %v11192 = vrot.slane %v11151, 7
        %v11193 = vsel %vm3439, %v11192, %v11150
        %v11194 = vrot.slane %v11152, 6
        %v11195 = vsel %vm10298, %v11194, %v11193
        %v11196 = vrot.slane %v11153, 5
        %v11197 = vsel %vm3424, %v11196, %v11195
        %v11198 = vrot.slane %v11155, 7
        %v11199 = vsel %vm3439, %v11198, %v11154
        %v11200 = vrot.slane %v11156, 6
        %v11201 = vsel %vm10298, %v11200, %v11199
        %v11202 = vrot.slane %v11157, 5
        %v11203 = vsel %vm3424, %v11202, %v11201
        %v11204 = vrot.slane %v11159, 7
        %v11205 = vsel %vm3439, %v11204, %v11158
        %v11206 = vrot.slane %v11160, 6
        %v11207 = vsel %vm10298, %v11206, %v11205
        %v11208 = vrot.slane %v11161, 5
        %v11209 = vsel %vm3424, %v11208, %v11207
        %v11210 = vpack.c.b16 %v11167, %v11167
        %v11211 = vpack.c.b16 %v11173, %v11173
        %v11212 = vpack.c.b16 %v11179, %v11179
        %v11213 = vpack.c.b16 %v11185, %v11185
        %v11214 = vpack.c.b16 %v11191, %v11191
        %v11215 = vpack.c.b16 %v11197, %v11197
        %v11216 = vpack.c.b16 %v11203, %v11203
        %v11217 = vpack.c.b16 %v11209, %v11209
        %v11219 = vunpack.c.l.s4 1983009808
        %v11220 = vunpack.c.0.s8 %v11219
        %v11221 = vlaneseq
        %v11222 = vshrl.u32 %v11221, 7
        %v11223 = vsub.s32 %v11220, %v11222
        %v11224 = vrot.slane %v11210, %v11223
        %v11226 = vunpack.c.l.s4 1983009808
        %v11227 = vunpack.c.0.s8 %v11226
        %v11228 = vlaneseq
        %v11229 = vshrl.u32 %v11228, 7
        %v11230 = vsub.s32 %v11227, %v11229
        %v11231 = vrot.slane %v11211, %v11230
        %v11233 = vunpack.c.l.s4 1983009808
        %v11234 = vunpack.c.0.s8 %v11233
        %v11235 = vlaneseq
        %v11236 = vshrl.u32 %v11235, 7
        %v11237 = vsub.s32 %v11234, %v11236
        %v11238 = vrot.slane %v11212, %v11237
        %v11240 = vunpack.c.l.s4 1983009808
        %v11241 = vunpack.c.0.s8 %v11240
        %v11242 = vlaneseq
        %v11243 = vshrl.u32 %v11242, 7
        %v11244 = vsub.s32 %v11241, %v11243
        %v11245 = vrot.slane %v11213, %v11244
        %v11247 = vunpack.c.l.s4 1983009808
        %v11248 = vunpack.c.0.s8 %v11247
        %v11249 = vlaneseq
        %v11250 = vshrl.u32 %v11249, 7
        %v11251 = vsub.s32 %v11248, %v11250
        %v11252 = vrot.slane %v11214, %v11251
        %v11254 = vunpack.c.l.s4 1983009808
        %v11255 = vunpack.c.0.s8 %v11254
        %v11256 = vlaneseq
        %v11257 = vshrl.u32 %v11256, 7
        %v11258 = vsub.s32 %v11255, %v11257
        %v11259 = vrot.slane %v11215, %v11258
        %v11261 = vunpack.c.l.s4 1983009808
        %v11262 = vunpack.c.0.s8 %v11261
        %v11263 = vlaneseq
        %v11264 = vshrl.u32 %v11263, 7
        %v11265 = vsub.s32 %v11262, %v11264
        %v11266 = vrot.slane %v11216, %v11265
        %v11268 = vunpack.c.l.s4 1983009808
        %v11269 = vunpack.c.0.s8 %v11268
        %v11270 = vlaneseq
        %v11271 = vshrl.u32 %v11270, 7
        %v11272 = vsub.s32 %v11269, %v11271
        %v11273 = vrot.slane %v11217, %v11272
        %11274 = vrot.lane.b32.xlu0 %v11224, 64
        %v11275 = vpop.permute.xlu0 %11274
        %11276 = vrot.lane.b32.xlu0 %v11231, 64
        %v11277 = vpop.permute.xlu0 %11276
        %11278 = vrot.lane.b32.xlu0 %v11238, 64
        %v11279 = vpop.permute.xlu0 %11278
        %11280 = vrot.lane.b32.xlu0 %v11245, 64
        %v11281 = vpop.permute.xlu0 %11280
        %11282 = vrot.lane.b32.xlu0 %v11252, 64
        %v11283 = vpop.permute.xlu0 %11282
        %11284 = vrot.lane.b32.xlu0 %v11259, 64
        %v11285 = vpop.permute.xlu0 %11284
        %11286 = vrot.lane.b32.xlu0 %v11266, 64
        %v11287 = vpop.permute.xlu0 %11286
        %11288 = vrot.lane.b32.xlu0 %v11273, 64
        %v11289 = vpop.permute.xlu0 %11288
        %vm11298 = vcmask 779776
        %11299 = vst.msk [vmem:[#allocation4] sm:$0x3] %vm11298, %v11275
        %11300 = vst.msk [vmem:[#allocation4 + $0x2] sm:$0x3] %vm11298, %v11277
        %11301 = vst.msk [vmem:[#allocation4 + $0x4] sm:$0x3] %vm11298, %v11279
        %11302 = vst.msk [vmem:[#allocation4 + $0x6] sm:$0x3] %vm11298, %v11281
        %11303 = vst.msk [vmem:[#allocation4 + $0x8] sm:$0x3] %vm11298, %v11283
        %11304 = vst.msk [vmem:[#allocation4 + $0xa] sm:$0x3] %vm11298, %v11285
        %11305 = vst.msk [vmem:[#allocation4 + $0xc] sm:$0x3] %vm11298, %v11287
        %11306 = vst.msk [vmem:[#allocation4 + $0xe] sm:$0x3] %vm11298, %v11289
        %11307 = vrot.lane.b32.xlu0 %v9559, 64
        %v11308 = vpop.permute.xlu0 %11307
        %11309 = vrot.lane.b32.xlu0 %v9560, 64
        %v11310 = vpop.permute.xlu0 %11309
        %11311 = vrot.lane.b32.xlu0 %v9561, 64
        %v11312 = vpop.permute.xlu0 %11311
        %11313 = vrot.lane.b32.xlu0 %v9562, 64
        %v11314 = vpop.permute.xlu0 %11313
        %11315 = vrot.lane.b32.xlu0 %v9563, 64
        %v11316 = vpop.permute.xlu0 %11315
        %11317 = vrot.lane.b32.xlu0 %v9564, 64
        %v11318 = vpop.permute.xlu0 %11317
        %11319 = vrot.lane.b32.xlu0 %v9565, 64
        %v11320 = vpop.permute.xlu0 %11319
        %11321 = vrot.lane.b32.xlu0 %v9566, 64
        %v11322 = vpop.permute.xlu0 %11321
        %11323 = vrot.lane.b32.xlu0 %v9567, 64
        %v11324 = vpop.permute.xlu0 %11323
        %11325 = vrot.lane.b32.xlu0 %v9568, 64
        %v11326 = vpop.permute.xlu0 %11325
        %11327 = vrot.lane.b32.xlu0 %v9569, 64
        %v11328 = vpop.permute.xlu0 %11327
        %11329 = vrot.lane.b32.xlu0 %v9570, 64
        %v11330 = vpop.permute.xlu0 %11329
        %11331 = vrot.lane.b32.xlu0 %v9571, 64
        %v11332 = vpop.permute.xlu0 %11331
        %11333 = vrot.lane.b32.xlu0 %v9572, 64
        %v11334 = vpop.permute.xlu0 %11333
        %11335 = vrot.lane.b32.xlu0 %v9573, 64
        %v11336 = vpop.permute.xlu0 %11335
        %11337 = vrot.lane.b32.xlu0 %v9574, 64
        %v11338 = vpop.permute.xlu0 %11337
        %11339 = vrot.lane.b32.xlu0 %v9575, 64
        %v11340 = vpop.permute.xlu0 %11339
        %11341 = vrot.lane.b32.xlu0 %v9576, 64
        %v11342 = vpop.permute.xlu0 %11341
        %11343 = vrot.lane.b32.xlu0 %v9577, 64
        %v11344 = vpop.permute.xlu0 %11343
        %11345 = vrot.lane.b32.xlu0 %v9578, 64
        %v11346 = vpop.permute.xlu0 %11345
        %11347 = vrot.lane.b32.xlu0 %v9579, 64
        %v11348 = vpop.permute.xlu0 %11347
        %11349 = vrot.lane.b32.xlu0 %v9580, 64
        %v11350 = vpop.permute.xlu0 %11349
        %11351 = vrot.lane.b32.xlu0 %v9581, 64
        %v11352 = vpop.permute.xlu0 %11351
        %11353 = vrot.lane.b32.xlu0 %v9582, 64
        %v11354 = vpop.permute.xlu0 %11353
        %11355 = vrot.lane.b32.xlu0 %v9583, 64
        %v11356 = vpop.permute.xlu0 %11355
        %11357 = vrot.lane.b32.xlu0 %v9584, 64
        %v11358 = vpop.permute.xlu0 %11357
        %11359 = vrot.lane.b32.xlu0 %v9585, 64
        %v11360 = vpop.permute.xlu0 %11359
        %11361 = vrot.lane.b32.xlu0 %v9586, 64
        %v11362 = vpop.permute.xlu0 %11361
        %11363 = vrot.lane.b32.xlu0 %v9587, 64
        %v11364 = vpop.permute.xlu0 %11363
        %11365 = vrot.lane.b32.xlu0 %v9588, 64
        %v11366 = vpop.permute.xlu0 %11365
        %11367 = vrot.lane.b32.xlu0 %v9589, 64
        %v11368 = vpop.permute.xlu0 %11367
        %11369 = vrot.lane.b32.xlu0 %v9590, 64
        %v11370 = vpop.permute.xlu0 %11369
        %v11371 = vrot.slane %v11308, 2
        %v11372 = vrot.slane %v11310, 2
        %v11373 = vrot.slane %v11312, 2
        %v11374 = vrot.slane %v11314, 2
        %v11375 = vrot.slane %v11316, 2
        %v11376 = vrot.slane %v11318, 2
        %v11377 = vrot.slane %v11320, 2
        %v11378 = vrot.slane %v11322, 2
        %v11379 = vrot.slane %v11324, 2
        %v11380 = vrot.slane %v11326, 2
        %v11381 = vrot.slane %v11328, 2
        %v11382 = vrot.slane %v11330, 2
        %v11383 = vrot.slane %v11332, 2
        %v11384 = vrot.slane %v11334, 2
        %v11385 = vrot.slane %v11336, 2
        %v11386 = vrot.slane %v11338, 2
        %v11387 = vrot.slane %v11340, 2
        %v11388 = vrot.slane %v11342, 2
        %v11389 = vrot.slane %v11344, 2
        %v11390 = vrot.slane %v11346, 2
        %v11391 = vrot.slane %v11348, 2
        %v11392 = vrot.slane %v11350, 2
        %v11393 = vrot.slane %v11352, 2
        %v11394 = vrot.slane %v11354, 2
        %v11395 = vrot.slane %v11356, 2
        %v11396 = vrot.slane %v11358, 2
        %v11397 = vrot.slane %v11360, 2
        %v11398 = vrot.slane %v11362, 2
        %v11399 = vrot.slane %v11364, 2
        %v11400 = vrot.slane %v11366, 2
        %v11401 = vrot.slane %v11368, 2
        %v11402 = vrot.slane %v11370, 2
        %11435 = vrot.lane.b32.xlu0 %v9559, 32
        %v11436 = vpop.permute.xlu0 %11435
        %11437 = vrot.lane.b32.xlu0 %v9560, 32
        %v11438 = vpop.permute.xlu0 %11437
        %11439 = vrot.lane.b32.xlu0 %v9561, 32
        %v11440 = vpop.permute.xlu0 %11439
        %11441 = vrot.lane.b32.xlu0 %v9562, 32
        %v11442 = vpop.permute.xlu0 %11441
        %11443 = vrot.lane.b32.xlu0 %v9563, 32
        %v11444 = vpop.permute.xlu0 %11443
        %11445 = vrot.lane.b32.xlu0 %v9564, 32
        %v11446 = vpop.permute.xlu0 %11445
        %11447 = vrot.lane.b32.xlu0 %v9565, 32
        %v11448 = vpop.permute.xlu0 %11447
        %11449 = vrot.lane.b32.xlu0 %v9566, 32
        %v11450 = vpop.permute.xlu0 %11449
        %11451 = vrot.lane.b32.xlu0 %v9567, 32
        %v11452 = vpop.permute.xlu0 %11451
        %11453 = vrot.lane.b32.xlu0 %v9568, 32
        %v11454 = vpop.permute.xlu0 %11453
        %11455 = vrot.lane.b32.xlu0 %v9569, 32
        %v11456 = vpop.permute.xlu0 %11455
        %11457 = vrot.lane.b32.xlu0 %v9570, 32
        %v11458 = vpop.permute.xlu0 %11457
        %11459 = vrot.lane.b32.xlu0 %v9571, 32
        %v11460 = vpop.permute.xlu0 %11459
        %11461 = vrot.lane.b32.xlu0 %v9572, 32
        %v11462 = vpop.permute.xlu0 %11461
        %11463 = vrot.lane.b32.xlu0 %v9573, 32
        %v11464 = vpop.permute.xlu0 %11463
        %11465 = vrot.lane.b32.xlu0 %v9574, 32
        %v11466 = vpop.permute.xlu0 %11465
        %11467 = vrot.lane.b32.xlu0 %v9575, 32
        %v11468 = vpop.permute.xlu0 %11467
        %11469 = vrot.lane.b32.xlu0 %v9576, 32
        %v11470 = vpop.permute.xlu0 %11469
        %11471 = vrot.lane.b32.xlu0 %v9577, 32
        %v11472 = vpop.permute.xlu0 %11471
        %11473 = vrot.lane.b32.xlu0 %v9578, 32
        %v11474 = vpop.permute.xlu0 %11473
        %11475 = vrot.lane.b32.xlu0 %v9579, 32
        %v11476 = vpop.permute.xlu0 %11475
        %11477 = vrot.lane.b32.xlu0 %v9580, 32
        %v11478 = vpop.permute.xlu0 %11477
        %11479 = vrot.lane.b32.xlu0 %v9581, 32
        %v11480 = vpop.permute.xlu0 %11479
        %11481 = vrot.lane.b32.xlu0 %v9582, 32
        %v11482 = vpop.permute.xlu0 %11481
        %11483 = vrot.lane.b32.xlu0 %v9583, 32
        %v11484 = vpop.permute.xlu0 %11483
        %11485 = vrot.lane.b32.xlu0 %v9584, 32
        %v11486 = vpop.permute.xlu0 %11485
        %11487 = vrot.lane.b32.xlu0 %v9585, 32
        %v11488 = vpop.permute.xlu0 %11487
        %11489 = vrot.lane.b32.xlu0 %v9586, 32
        %v11490 = vpop.permute.xlu0 %11489
        %11491 = vrot.lane.b32.xlu0 %v9587, 32
        %v11492 = vpop.permute.xlu0 %11491
        %11493 = vrot.lane.b32.xlu0 %v9588, 32
        %v11494 = vpop.permute.xlu0 %11493
        %11495 = vrot.lane.b32.xlu0 %v9589, 32
        %v11496 = vpop.permute.xlu0 %11495
        %11497 = vrot.lane.b32.xlu0 %v9590, 32
        %v11498 = vpop.permute.xlu0 %11497
        %v11499 = vrot.slane %v11436, 2
        %v11500 = vrot.slane %v11438, 2
        %v11501 = vrot.slane %v11440, 2
        %v11502 = vrot.slane %v11442, 2
        %v11503 = vrot.slane %v11444, 2
        %v11504 = vrot.slane %v11446, 2
        %v11505 = vrot.slane %v11448, 2
        %v11506 = vrot.slane %v11450, 2
        %v11507 = vrot.slane %v11452, 2
        %v11508 = vrot.slane %v11454, 2
        %v11509 = vrot.slane %v11456, 2
        %v11510 = vrot.slane %v11458, 2
        %v11511 = vrot.slane %v11460, 2
        %v11512 = vrot.slane %v11462, 2
        %v11513 = vrot.slane %v11464, 2
        %v11514 = vrot.slane %v11466, 2
        %v11515 = vrot.slane %v11468, 2
        %v11516 = vrot.slane %v11470, 2
        %v11517 = vrot.slane %v11472, 2
        %v11518 = vrot.slane %v11474, 2
        %v11519 = vrot.slane %v11476, 2
        %v11520 = vrot.slane %v11478, 2
        %v11521 = vrot.slane %v11480, 2
        %v11522 = vrot.slane %v11482, 2
        %v11523 = vrot.slane %v11484, 2
        %v11524 = vrot.slane %v11486, 2
        %v11525 = vrot.slane %v11488, 2
        %v11526 = vrot.slane %v11490, 2
        %v11527 = vrot.slane %v11492, 2
        %v11528 = vrot.slane %v11494, 2
        %v11529 = vrot.slane %v11496, 2
        %v11530 = vrot.slane %v11498, 2
        %v11563 = vmax.f32 %v11371, %v11499
        %v11564 = vmax.f32 %v11372, %v11500
        %v11565 = vmax.f32 %v11373, %v11501
        %v11566 = vmax.f32 %v11374, %v11502
        %v11567 = vmax.f32 %v11375, %v11503
        %v11568 = vmax.f32 %v11376, %v11504
        %v11569 = vmax.f32 %v11377, %v11505
        %v11570 = vmax.f32 %v11378, %v11506
        %v11571 = vmax.f32 %v11379, %v11507
        %v11572 = vmax.f32 %v11380, %v11508
        %v11573 = vmax.f32 %v11381, %v11509
        %v11574 = vmax.f32 %v11382, %v11510
        %v11575 = vmax.f32 %v11383, %v11511
        %v11576 = vmax.f32 %v11384, %v11512
        %v11577 = vmax.f32 %v11385, %v11513
        %v11578 = vmax.f32 %v11386, %v11514
        %v11579 = vmax.f32 %v11387, %v11515
        %v11580 = vmax.f32 %v11388, %v11516
        %v11581 = vmax.f32 %v11389, %v11517
        %v11582 = vmax.f32 %v11390, %v11518
        %v11583 = vmax.f32 %v11391, %v11519
        %v11584 = vmax.f32 %v11392, %v11520
        %v11585 = vmax.f32 %v11393, %v11521
        %v11586 = vmax.f32 %v11394, %v11522
        %v11587 = vmax.f32 %v11395, %v11523
        %v11588 = vmax.f32 %v11396, %v11524
        %v11589 = vmax.f32 %v11397, %v11525
        %v11590 = vmax.f32 %v11398, %v11526
        %v11591 = vmax.f32 %v11399, %v11527
        %v11592 = vmax.f32 %v11400, %v11528
        %v11593 = vmax.f32 %v11401, %v11529
        %v11594 = vmax.f32 %v11402, %v11530
        %v11595 = vpack.c.bf16 %v11563, %v11563
        %v11596 = vpack.c.bf16 %v11564, %v11564
        %v11597 = vpack.c.bf16 %v11565, %v11565
        %v11598 = vpack.c.bf16 %v11566, %v11566
        %v11599 = vpack.c.bf16 %v11567, %v11567
        %v11600 = vpack.c.bf16 %v11568, %v11568
        %v11601 = vpack.c.bf16 %v11569, %v11569
        %v11602 = vpack.c.bf16 %v11570, %v11570
        %v11603 = vpack.c.bf16 %v11571, %v11571
        %v11604 = vpack.c.bf16 %v11572, %v11572
        %v11605 = vpack.c.bf16 %v11573, %v11573
        %v11606 = vpack.c.bf16 %v11574, %v11574
        %v11607 = vpack.c.bf16 %v11575, %v11575
        %v11608 = vpack.c.bf16 %v11576, %v11576
        %v11609 = vpack.c.bf16 %v11577, %v11577
        %v11610 = vpack.c.bf16 %v11578, %v11578
        %v11611 = vpack.c.bf16 %v11579, %v11579
        %v11612 = vpack.c.bf16 %v11580, %v11580
        %v11613 = vpack.c.bf16 %v11581, %v11581
        %v11614 = vpack.c.bf16 %v11582, %v11582
        %v11615 = vpack.c.bf16 %v11583, %v11583
        %v11616 = vpack.c.bf16 %v11584, %v11584
        %v11617 = vpack.c.bf16 %v11585, %v11585
        %v11618 = vpack.c.bf16 %v11586, %v11586
        %v11619 = vpack.c.bf16 %v11587, %v11587
        %v11620 = vpack.c.bf16 %v11588, %v11588
        %v11621 = vpack.c.bf16 %v11589, %v11589
        %v11622 = vpack.c.bf16 %v11590, %v11590
        %v11623 = vpack.c.bf16 %v11591, %v11591
        %v11624 = vpack.c.bf16 %v11592, %v11592
        %v11625 = vpack.c.bf16 %v11593, %v11593
        %v11626 = vpack.c.bf16 %v11594, %v11594
        %v11660 = vunpack.c.l.s4 1983009808
        %v11661 = vunpack.c.0.s8 %v11660
        %v11662 = vlaneseq
        %v11663 = vshrl.u32 %v11662, 7
        %v11664 = vsub.s32 %v11661, %v11663
        %v11665 = vrot.slane %v11595, %v11664
        %v11667 = vunpack.c.l.s4 1983009808
        %v11668 = vunpack.c.0.s8 %v11667
        %v11669 = vlaneseq
        %v11670 = vshrl.u32 %v11669, 7
        %v11671 = vsub.s32 %v11668, %v11670
        %v11672 = vrot.slane %v11596, %v11671
        %v11674 = vunpack.c.l.s4 1983009808
        %v11675 = vunpack.c.0.s8 %v11674
        %v11676 = vlaneseq
        %v11677 = vshrl.u32 %v11676, 7
        %v11678 = vsub.s32 %v11675, %v11677
        %v11679 = vrot.slane %v11597, %v11678
        %v11681 = vunpack.c.l.s4 1983009808
        %v11682 = vunpack.c.0.s8 %v11681
        %v11683 = vlaneseq
        %v11684 = vshrl.u32 %v11683, 7
        %v11685 = vsub.s32 %v11682, %v11684
        %v11686 = vrot.slane %v11598, %v11685
        %v11688 = vunpack.c.l.s4 1983009808
        %v11689 = vunpack.c.0.s8 %v11688
        %v11690 = vlaneseq
        %v11691 = vshrl.u32 %v11690, 7
        %v11692 = vsub.s32 %v11689, %v11691
        %v11693 = vrot.slane %v11599, %v11692
        %v11695 = vunpack.c.l.s4 1983009808
        %v11696 = vunpack.c.0.s8 %v11695
        %v11697 = vlaneseq
        %v11698 = vshrl.u32 %v11697, 7
        %v11699 = vsub.s32 %v11696, %v11698
        %v11700 = vrot.slane %v11600, %v11699
        %v11702 = vunpack.c.l.s4 1983009808
        %v11703 = vunpack.c.0.s8 %v11702
        %v11704 = vlaneseq
        %v11705 = vshrl.u32 %v11704, 7
        %v11706 = vsub.s32 %v11703, %v11705
        %v11707 = vrot.slane %v11601, %v11706
        %v11709 = vunpack.c.l.s4 1983009808
        %v11710 = vunpack.c.0.s8 %v11709
        %v11711 = vlaneseq
        %v11712 = vshrl.u32 %v11711, 7
        %v11713 = vsub.s32 %v11710, %v11712
        %v11714 = vrot.slane %v11602, %v11713
        %v11716 = vunpack.c.l.s4 1983009808
        %v11717 = vunpack.c.0.s8 %v11716
        %v11718 = vlaneseq
        %v11719 = vshrl.u32 %v11718, 7
        %v11720 = vsub.s32 %v11717, %v11719
        %v11721 = vrot.slane %v11603, %v11720
        %v11723 = vunpack.c.l.s4 1983009808
        %v11724 = vunpack.c.0.s8 %v11723
        %v11725 = vlaneseq
        %v11726 = vshrl.u32 %v11725, 7
        %v11727 = vsub.s32 %v11724, %v11726
        %v11728 = vrot.slane %v11604, %v11727
        %v11730 = vunpack.c.l.s4 1983009808
        %v11731 = vunpack.c.0.s8 %v11730
        %v11732 = vlaneseq
        %v11733 = vshrl.u32 %v11732, 7
        %v11734 = vsub.s32 %v11731, %v11733
        %v11735 = vrot.slane %v11605, %v11734
        %v11737 = vunpack.c.l.s4 1983009808
        %v11738 = vunpack.c.0.s8 %v11737
        %v11739 = vlaneseq
        %v11740 = vshrl.u32 %v11739, 7
        %v11741 = vsub.s32 %v11738, %v11740
        %v11742 = vrot.slane %v11606, %v11741
        %v11744 = vunpack.c.l.s4 1983009808
        %v11745 = vunpack.c.0.s8 %v11744
        %v11746 = vlaneseq
        %v11747 = vshrl.u32 %v11746, 7
        %v11748 = vsub.s32 %v11745, %v11747
        %v11749 = vrot.slane %v11607, %v11748
        %v11751 = vunpack.c.l.s4 1983009808
        %v11752 = vunpack.c.0.s8 %v11751
        %v11753 = vlaneseq
        %v11754 = vshrl.u32 %v11753, 7
        %v11755 = vsub.s32 %v11752, %v11754
        %v11756 = vrot.slane %v11608, %v11755
        %v11758 = vunpack.c.l.s4 1983009808
        %v11759 = vunpack.c.0.s8 %v11758
        %v11760 = vlaneseq
        %v11761 = vshrl.u32 %v11760, 7
        %v11762 = vsub.s32 %v11759, %v11761
        %v11763 = vrot.slane %v11609, %v11762
        %v11765 = vunpack.c.l.s4 1983009808
        %v11766 = vunpack.c.0.s8 %v11765
        %v11767 = vlaneseq
        %v11768 = vshrl.u32 %v11767, 7
        %v11769 = vsub.s32 %v11766, %v11768
        %v11770 = vrot.slane %v11610, %v11769
        %v11772 = vunpack.c.l.s4 1983009808
        %v11773 = vunpack.c.0.s8 %v11772
        %v11774 = vlaneseq
        %v11775 = vshrl.u32 %v11774, 7
        %v11776 = vsub.s32 %v11773, %v11775
        %v11777 = vrot.slane %v11611, %v11776
        %v11779 = vunpack.c.l.s4 1983009808
        %v11780 = vunpack.c.0.s8 %v11779
        %v11781 = vlaneseq
        %v11782 = vshrl.u32 %v11781, 7
        %v11783 = vsub.s32 %v11780, %v11782
        %v11784 = vrot.slane %v11612, %v11783
        %v11786 = vunpack.c.l.s4 1983009808
        %v11787 = vunpack.c.0.s8 %v11786
        %v11788 = vlaneseq
        %v11789 = vshrl.u32 %v11788, 7
        %v11790 = vsub.s32 %v11787, %v11789
        %v11791 = vrot.slane %v11613, %v11790
        %v11793 = vunpack.c.l.s4 1983009808
        %v11794 = vunpack.c.0.s8 %v11793
        %v11795 = vlaneseq
        %v11796 = vshrl.u32 %v11795, 7
        %v11797 = vsub.s32 %v11794, %v11796
        %v11798 = vrot.slane %v11614, %v11797
        %v11800 = vunpack.c.l.s4 1983009808
        %v11801 = vunpack.c.0.s8 %v11800
        %v11802 = vlaneseq
        %v11803 = vshrl.u32 %v11802, 7
        %v11804 = vsub.s32 %v11801, %v11803
        %v11805 = vrot.slane %v11615, %v11804
        %v11807 = vunpack.c.l.s4 1983009808
        %v11808 = vunpack.c.0.s8 %v11807
        %v11809 = vlaneseq
        %v11810 = vshrl.u32 %v11809, 7
        %v11811 = vsub.s32 %v11808, %v11810
        %v11812 = vrot.slane %v11616, %v11811
        %v11814 = vunpack.c.l.s4 1983009808
        %v11815 = vunpack.c.0.s8 %v11814
        %v11816 = vlaneseq
        %v11817 = vshrl.u32 %v11816, 7
        %v11818 = vsub.s32 %v11815, %v11817
        %v11819 = vrot.slane %v11617, %v11818
        %v11821 = vunpack.c.l.s4 1983009808
        %v11822 = vunpack.c.0.s8 %v11821
        %v11823 = vlaneseq
        %v11824 = vshrl.u32 %v11823, 7
        %v11825 = vsub.s32 %v11822, %v11824
        %v11826 = vrot.slane %v11618, %v11825
        %v11828 = vunpack.c.l.s4 1983009808
        %v11829 = vunpack.c.0.s8 %v11828
        %v11830 = vlaneseq
        %v11831 = vshrl.u32 %v11830, 7
        %v11832 = vsub.s32 %v11829, %v11831
        %v11833 = vrot.slane %v11619, %v11832
        %v11835 = vunpack.c.l.s4 1983009808
        %v11836 = vunpack.c.0.s8 %v11835
        %v11837 = vlaneseq
        %v11838 = vshrl.u32 %v11837, 7
        %v11839 = vsub.s32 %v11836, %v11838
        %v11840 = vrot.slane %v11620, %v11839
        %v11842 = vunpack.c.l.s4 1983009808
        %v11843 = vunpack.c.0.s8 %v11842
        %v11844 = vlaneseq
        %v11845 = vshrl.u32 %v11844, 7
        %v11846 = vsub.s32 %v11843, %v11845
        %v11847 = vrot.slane %v11621, %v11846
        %v11849 = vunpack.c.l.s4 1983009808
        %v11850 = vunpack.c.0.s8 %v11849
        %v11851 = vlaneseq
        %v11852 = vshrl.u32 %v11851, 7
        %v11853 = vsub.s32 %v11850, %v11852
        %v11854 = vrot.slane %v11622, %v11853
        %v11856 = vunpack.c.l.s4 1983009808
        %v11857 = vunpack.c.0.s8 %v11856
        %v11858 = vlaneseq
        %v11859 = vshrl.u32 %v11858, 7
        %v11860 = vsub.s32 %v11857, %v11859
        %v11861 = vrot.slane %v11623, %v11860
        %v11863 = vunpack.c.l.s4 1983009808
        %v11864 = vunpack.c.0.s8 %v11863
        %v11865 = vlaneseq
        %v11866 = vshrl.u32 %v11865, 7
        %v11867 = vsub.s32 %v11864, %v11866
        %v11868 = vrot.slane %v11624, %v11867
        %v11870 = vunpack.c.l.s4 1983009808
        %v11871 = vunpack.c.0.s8 %v11870
        %v11872 = vlaneseq
        %v11873 = vshrl.u32 %v11872, 7
        %v11874 = vsub.s32 %v11871, %v11873
        %v11875 = vrot.slane %v11625, %v11874
        %v11877 = vunpack.c.l.s4 1983009808
        %v11878 = vunpack.c.0.s8 %v11877
        %v11879 = vlaneseq
        %v11880 = vshrl.u32 %v11879, 7
        %v11881 = vsub.s32 %v11878, %v11880
        %v11882 = vrot.slane %v11626, %v11881
        %v11884 = vunpack.c.l.s4 1983009808
        %v11885 = vunpack.c.0.s8 %v11884
        %v11886 = vlaneseq
        %v11887 = vshrl.u32 %v11886, 7
        %v11888 = vsub.s32 %v11885, %v11887
        %v11889 = vrot.slane %v11665, %v11888
        %v11891 = vunpack.c.l.s4 1983009808
        %v11892 = vunpack.c.0.s8 %v11891
        %v11893 = vlaneseq
        %v11894 = vshrl.u32 %v11893, 7
        %v11895 = vsub.s32 %v11892, %v11894
        %v11896 = vrot.slane %v11672, %v11895
        %v11898 = vunpack.c.l.s4 1983009808
        %v11899 = vunpack.c.0.s8 %v11898
        %v11900 = vlaneseq
        %v11901 = vshrl.u32 %v11900, 7
        %v11902 = vsub.s32 %v11899, %v11901
        %v11903 = vrot.slane %v11679, %v11902
        %v11905 = vunpack.c.l.s4 1983009808
        %v11906 = vunpack.c.0.s8 %v11905
        %v11907 = vlaneseq
        %v11908 = vshrl.u32 %v11907, 7
        %v11909 = vsub.s32 %v11906, %v11908
        %v11910 = vrot.slane %v11686, %v11909
        %v11912 = vunpack.c.l.s4 1983009808
        %v11913 = vunpack.c.0.s8 %v11912
        %v11914 = vlaneseq
        %v11915 = vshrl.u32 %v11914, 7
        %v11916 = vsub.s32 %v11913, %v11915
        %v11917 = vrot.slane %v11693, %v11916
        %v11919 = vunpack.c.l.s4 1983009808
        %v11920 = vunpack.c.0.s8 %v11919
        %v11921 = vlaneseq
        %v11922 = vshrl.u32 %v11921, 7
        %v11923 = vsub.s32 %v11920, %v11922
        %v11924 = vrot.slane %v11700, %v11923
        %v11926 = vunpack.c.l.s4 1983009808
        %v11927 = vunpack.c.0.s8 %v11926
        %v11928 = vlaneseq
        %v11929 = vshrl.u32 %v11928, 7
        %v11930 = vsub.s32 %v11927, %v11929
        %v11931 = vrot.slane %v11707, %v11930
        %v11933 = vunpack.c.l.s4 1983009808
        %v11934 = vunpack.c.0.s8 %v11933
        %v11935 = vlaneseq
        %v11936 = vshrl.u32 %v11935, 7
        %v11937 = vsub.s32 %v11934, %v11936
        %v11938 = vrot.slane %v11714, %v11937
        %v11940 = vunpack.c.l.s4 1983009808
        %v11941 = vunpack.c.0.s8 %v11940
        %v11942 = vlaneseq
        %v11943 = vshrl.u32 %v11942, 7
        %v11944 = vsub.s32 %v11941, %v11943
        %v11945 = vrot.slane %v11721, %v11944
        %v11947 = vunpack.c.l.s4 1983009808
        %v11948 = vunpack.c.0.s8 %v11947
        %v11949 = vlaneseq
        %v11950 = vshrl.u32 %v11949, 7
        %v11951 = vsub.s32 %v11948, %v11950
        %v11952 = vrot.slane %v11728, %v11951
        %v11954 = vunpack.c.l.s4 1983009808
        %v11955 = vunpack.c.0.s8 %v11954
        %v11956 = vlaneseq
        %v11957 = vshrl.u32 %v11956, 7
        %v11958 = vsub.s32 %v11955, %v11957
        %v11959 = vrot.slane %v11735, %v11958
        %v11961 = vunpack.c.l.s4 1983009808
        %v11962 = vunpack.c.0.s8 %v11961
        %v11963 = vlaneseq
        %v11964 = vshrl.u32 %v11963, 7
        %v11965 = vsub.s32 %v11962, %v11964
        %v11966 = vrot.slane %v11742, %v11965
        %v11968 = vunpack.c.l.s4 1983009808
        %v11969 = vunpack.c.0.s8 %v11968
        %v11970 = vlaneseq
        %v11971 = vshrl.u32 %v11970, 7
        %v11972 = vsub.s32 %v11969, %v11971
        %v11973 = vrot.slane %v11749, %v11972
        %v11975 = vunpack.c.l.s4 1983009808
        %v11976 = vunpack.c.0.s8 %v11975
        %v11977 = vlaneseq
        %v11978 = vshrl.u32 %v11977, 7
        %v11979 = vsub.s32 %v11976, %v11978
        %v11980 = vrot.slane %v11756, %v11979
        %v11982 = vunpack.c.l.s4 1983009808
        %v11983 = vunpack.c.0.s8 %v11982
        %v11984 = vlaneseq
        %v11985 = vshrl.u32 %v11984, 7
        %v11986 = vsub.s32 %v11983, %v11985
        %v11987 = vrot.slane %v11763, %v11986
        %v11989 = vunpack.c.l.s4 1983009808
        %v11990 = vunpack.c.0.s8 %v11989
        %v11991 = vlaneseq
        %v11992 = vshrl.u32 %v11991, 7
        %v11993 = vsub.s32 %v11990, %v11992
        %v11994 = vrot.slane %v11770, %v11993
        %v11996 = vunpack.c.l.s4 1983009808
        %v11997 = vunpack.c.0.s8 %v11996
        %v11998 = vlaneseq
        %v11999 = vshrl.u32 %v11998, 7
        %v12000 = vsub.s32 %v11997, %v11999
        %v12001 = vrot.slane %v11777, %v12000
        %v12003 = vunpack.c.l.s4 1983009808
        %v12004 = vunpack.c.0.s8 %v12003
        %v12005 = vlaneseq
        %v12006 = vshrl.u32 %v12005, 7
        %v12007 = vsub.s32 %v12004, %v12006
        %v12008 = vrot.slane %v11784, %v12007
        %v12010 = vunpack.c.l.s4 1983009808
        %v12011 = vunpack.c.0.s8 %v12010
        %v12012 = vlaneseq
        %v12013 = vshrl.u32 %v12012, 7
        %v12014 = vsub.s32 %v12011, %v12013
        %v12015 = vrot.slane %v11791, %v12014
        %v12017 = vunpack.c.l.s4 1983009808
        %v12018 = vunpack.c.0.s8 %v12017
        %v12019 = vlaneseq
        %v12020 = vshrl.u32 %v12019, 7
        %v12021 = vsub.s32 %v12018, %v12020
        %v12022 = vrot.slane %v11798, %v12021
        %v12024 = vunpack.c.l.s4 1983009808
        %v12025 = vunpack.c.0.s8 %v12024
        %v12026 = vlaneseq
        %v12027 = vshrl.u32 %v12026, 7
        %v12028 = vsub.s32 %v12025, %v12027
        %v12029 = vrot.slane %v11805, %v12028
        %v12031 = vunpack.c.l.s4 1983009808
        %v12032 = vunpack.c.0.s8 %v12031
        %v12033 = vlaneseq
        %v12034 = vshrl.u32 %v12033, 7
        %v12035 = vsub.s32 %v12032, %v12034
        %v12036 = vrot.slane %v11812, %v12035
        %v12038 = vunpack.c.l.s4 1983009808
        %v12039 = vunpack.c.0.s8 %v12038
        %v12040 = vlaneseq
        %v12041 = vshrl.u32 %v12040, 7
        %v12042 = vsub.s32 %v12039, %v12041
        %v12043 = vrot.slane %v11819, %v12042
        %v12045 = vunpack.c.l.s4 1983009808
        %v12046 = vunpack.c.0.s8 %v12045
        %v12047 = vlaneseq
        %v12048 = vshrl.u32 %v12047, 7
        %v12049 = vsub.s32 %v12046, %v12048
        %v12050 = vrot.slane %v11826, %v12049
        %v12052 = vunpack.c.l.s4 1983009808
        %v12053 = vunpack.c.0.s8 %v12052
        %v12054 = vlaneseq
        %v12055 = vshrl.u32 %v12054, 7
        %v12056 = vsub.s32 %v12053, %v12055
        %v12057 = vrot.slane %v11833, %v12056
        %v12059 = vunpack.c.l.s4 1983009808
        %v12060 = vunpack.c.0.s8 %v12059
        %v12061 = vlaneseq
        %v12062 = vshrl.u32 %v12061, 7
        %v12063 = vsub.s32 %v12060, %v12062
        %v12064 = vrot.slane %v11840, %v12063
        %v12066 = vunpack.c.l.s4 1983009808
        %v12067 = vunpack.c.0.s8 %v12066
        %v12068 = vlaneseq
        %v12069 = vshrl.u32 %v12068, 7
        %v12070 = vsub.s32 %v12067, %v12069
        %v12071 = vrot.slane %v11847, %v12070
        %v12073 = vunpack.c.l.s4 1983009808
        %v12074 = vunpack.c.0.s8 %v12073
        %v12075 = vlaneseq
        %v12076 = vshrl.u32 %v12075, 7
        %v12077 = vsub.s32 %v12074, %v12076
        %v12078 = vrot.slane %v11854, %v12077
        %v12080 = vunpack.c.l.s4 1983009808
        %v12081 = vunpack.c.0.s8 %v12080
        %v12082 = vlaneseq
        %v12083 = vshrl.u32 %v12082, 7
        %v12084 = vsub.s32 %v12081, %v12083
        %v12085 = vrot.slane %v11861, %v12084
        %v12087 = vunpack.c.l.s4 1983009808
        %v12088 = vunpack.c.0.s8 %v12087
        %v12089 = vlaneseq
        %v12090 = vshrl.u32 %v12089, 7
        %v12091 = vsub.s32 %v12088, %v12090
        %v12092 = vrot.slane %v11868, %v12091
        %v12094 = vunpack.c.l.s4 1983009808
        %v12095 = vunpack.c.0.s8 %v12094
        %v12096 = vlaneseq
        %v12097 = vshrl.u32 %v12096, 7
        %v12098 = vsub.s32 %v12095, %v12097
        %v12099 = vrot.slane %v11875, %v12098
        %v12101 = vunpack.c.l.s4 1983009808
        %v12102 = vunpack.c.0.s8 %v12101
        %v12103 = vlaneseq
        %v12104 = vshrl.u32 %v12103, 7
        %v12105 = vsub.s32 %v12102, %v12104
        %v12106 = vrot.slane %v11882, %v12105
        %v12107 = vunpack.c.l.b16 %v11889
        %v12108 = vunpack.c.l.b16 %v11896
        %v12109 = vunpack.c.l.b16 %v11903
        %v12110 = vunpack.c.l.b16 %v11910
        %v12111 = vunpack.c.l.b16 %v11917
        %v12112 = vunpack.c.l.b16 %v11924
        %v12113 = vunpack.c.l.b16 %v11931
        %v12114 = vunpack.c.l.b16 %v11938
        %v12115 = vunpack.c.l.b16 %v11945
        %v12116 = vunpack.c.l.b16 %v11952
        %v12117 = vunpack.c.l.b16 %v11959
        %v12118 = vunpack.c.l.b16 %v11966
        %v12119 = vunpack.c.l.b16 %v11973
        %v12120 = vunpack.c.l.b16 %v11980
        %v12121 = vunpack.c.l.b16 %v11987
        %v12122 = vunpack.c.l.b16 %v11994
        %v12123 = vunpack.c.l.b16 %v12001
        %v12124 = vunpack.c.l.b16 %v12008
        %v12125 = vunpack.c.l.b16 %v12015
        %v12126 = vunpack.c.l.b16 %v12022
        %v12127 = vunpack.c.l.b16 %v12029
        %v12128 = vunpack.c.l.b16 %v12036
        %v12129 = vunpack.c.l.b16 %v12043
        %v12130 = vunpack.c.l.b16 %v12050
        %v12131 = vunpack.c.l.b16 %v12057
        %v12132 = vunpack.c.l.b16 %v12064
        %v12133 = vunpack.c.l.b16 %v12071
        %v12134 = vunpack.c.l.b16 %v12078
        %v12135 = vunpack.c.l.b16 %v12085
        %v12136 = vunpack.c.l.b16 %v12092
        %v12137 = vunpack.c.l.b16 %v12099
        %v12138 = vunpack.c.l.b16 %v12106
        %v12139 = vrot.slane %v12108, 7
        %v12140 = vsel %vm3439, %v12139, %v12107
        %v12141 = vrot.slane %v12109, 6
        %v12142 = vsel %vm10298, %v12141, %v12140
        %v12143 = vrot.slane %v12110, 5
        %v12144 = vsel %vm3424, %v12143, %v12142
        %v12145 = vrot.slane %v12112, 7
        %v12146 = vsel %vm3439, %v12145, %v12111
        %v12147 = vrot.slane %v12113, 6
        %v12148 = vsel %vm10298, %v12147, %v12146
        %v12149 = vrot.slane %v12114, 5
        %v12150 = vsel %vm3424, %v12149, %v12148
        %v12151 = vrot.slane %v12116, 7
        %v12152 = vsel %vm3439, %v12151, %v12115
        %v12153 = vrot.slane %v12117, 6
        %v12154 = vsel %vm10298, %v12153, %v12152
        %v12155 = vrot.slane %v12118, 5
        %v12156 = vsel %vm3424, %v12155, %v12154
        %v12157 = vrot.slane %v12120, 7
        %v12158 = vsel %vm3439, %v12157, %v12119
        %v12159 = vrot.slane %v12121, 6
        %v12160 = vsel %vm10298, %v12159, %v12158
        %v12161 = vrot.slane %v12122, 5
        %v12162 = vsel %vm3424, %v12161, %v12160
        %v12163 = vrot.slane %v12124, 7
        %v12164 = vsel %vm3439, %v12163, %v12123
        %v12165 = vrot.slane %v12125, 6
        %v12166 = vsel %vm10298, %v12165, %v12164
        %v12167 = vrot.slane %v12126, 5
        %v12168 = vsel %vm3424, %v12167, %v12166
        %v12169 = vrot.slane %v12128, 7
        %v12170 = vsel %vm3439, %v12169, %v12127
        %v12171 = vrot.slane %v12129, 6
        %v12172 = vsel %vm10298, %v12171, %v12170
        %v12173 = vrot.slane %v12130, 5
        %v12174 = vsel %vm3424, %v12173, %v12172
        %v12175 = vrot.slane %v12132, 7
        %v12176 = vsel %vm3439, %v12175, %v12131
        %v12177 = vrot.slane %v12133, 6
        %v12178 = vsel %vm10298, %v12177, %v12176
        %v12179 = vrot.slane %v12134, 5
        %v12180 = vsel %vm3424, %v12179, %v12178
        %v12181 = vrot.slane %v12136, 7
        %v12182 = vsel %vm3439, %v12181, %v12135
        %v12183 = vrot.slane %v12137, 6
        %v12184 = vsel %vm10298, %v12183, %v12182
        %v12185 = vrot.slane %v12138, 5
        %v12186 = vsel %vm3424, %v12185, %v12184
        %v12187 = vpack.c.b16 %v12144, %v12144
        %v12188 = vpack.c.b16 %v12150, %v12150
        %v12189 = vpack.c.b16 %v12156, %v12156
        %v12190 = vpack.c.b16 %v12162, %v12162
        %v12191 = vpack.c.b16 %v12168, %v12168
        %v12192 = vpack.c.b16 %v12174, %v12174
        %v12193 = vpack.c.b16 %v12180, %v12180
        %v12194 = vpack.c.b16 %v12186, %v12186
        %v12196 = vunpack.c.l.s4 1983009808
        %v12197 = vunpack.c.0.s8 %v12196
        %v12198 = vlaneseq
        %v12199 = vshrl.u32 %v12198, 7
        %v12200 = vsub.s32 %v12197, %v12199
        %v12201 = vrot.slane %v12187, %v12200
        %v12203 = vunpack.c.l.s4 1983009808
        %v12204 = vunpack.c.0.s8 %v12203
        %v12205 = vlaneseq
        %v12206 = vshrl.u32 %v12205, 7
        %v12207 = vsub.s32 %v12204, %v12206
        %v12208 = vrot.slane %v12188, %v12207
        %v12210 = vunpack.c.l.s4 1983009808
        %v12211 = vunpack.c.0.s8 %v12210
        %v12212 = vlaneseq
        %v12213 = vshrl.u32 %v12212, 7
        %v12214 = vsub.s32 %v12211, %v12213
        %v12215 = vrot.slane %v12189, %v12214
        %v12217 = vunpack.c.l.s4 1983009808
        %v12218 = vunpack.c.0.s8 %v12217
        %v12219 = vlaneseq
        %v12220 = vshrl.u32 %v12219, 7
        %v12221 = vsub.s32 %v12218, %v12220
        %v12222 = vrot.slane %v12190, %v12221
        %v12224 = vunpack.c.l.s4 1983009808
        %v12225 = vunpack.c.0.s8 %v12224
        %v12226 = vlaneseq
        %v12227 = vshrl.u32 %v12226, 7
        %v12228 = vsub.s32 %v12225, %v12227
        %v12229 = vrot.slane %v12191, %v12228
        %v12231 = vunpack.c.l.s4 1983009808
        %v12232 = vunpack.c.0.s8 %v12231
        %v12233 = vlaneseq
        %v12234 = vshrl.u32 %v12233, 7
        %v12235 = vsub.s32 %v12232, %v12234
        %v12236 = vrot.slane %v12192, %v12235
        %v12238 = vunpack.c.l.s4 1983009808
        %v12239 = vunpack.c.0.s8 %v12238
        %v12240 = vlaneseq
        %v12241 = vshrl.u32 %v12240, 7
        %v12242 = vsub.s32 %v12239, %v12241
        %v12243 = vrot.slane %v12193, %v12242
        %v12245 = vunpack.c.l.s4 1983009808
        %v12246 = vunpack.c.0.s8 %v12245
        %v12247 = vlaneseq
        %v12248 = vshrl.u32 %v12247, 7
        %v12249 = vsub.s32 %v12246, %v12248
        %v12250 = vrot.slane %v12194, %v12249
        %12251 = vrot.lane.b32.xlu0 %v12201, 96
        %v12252 = vpop.permute.xlu0 %12251
        %12253 = vrot.lane.b32.xlu0 %v12208, 96
        %v12254 = vpop.permute.xlu0 %12253
        %12255 = vrot.lane.b32.xlu0 %v12215, 96
        %v12256 = vpop.permute.xlu0 %12255
        %12257 = vrot.lane.b32.xlu0 %v12222, 96
        %v12258 = vpop.permute.xlu0 %12257
        %12259 = vrot.lane.b32.xlu0 %v12229, 96
        %v12260 = vpop.permute.xlu0 %12259
        %12261 = vrot.lane.b32.xlu0 %v12236, 96
        %v12262 = vpop.permute.xlu0 %12261
        %12263 = vrot.lane.b32.xlu0 %v12243, 96
        %v12264 = vpop.permute.xlu0 %12263
        %12265 = vrot.lane.b32.xlu0 %v12250, 96
        %v12266 = vpop.permute.xlu0 %12265
        %vm12275 = vcmask 1042176
        %12276 = vst.msk [vmem:[#allocation4] sm:$0x3] %vm12275, %v12252
        %12277 = vst.msk [vmem:[#allocation4 + $0x2] sm:$0x3] %vm12275, %v12254
        %12278 = vst.msk [vmem:[#allocation4 + $0x4] sm:$0x3] %vm12275, %v12256
        %12279 = vst.msk [vmem:[#allocation4 + $0x6] sm:$0x3] %vm12275, %v12258
        %12280 = vst.msk [vmem:[#allocation4 + $0x8] sm:$0x3] %vm12275, %v12260
        %12281 = vst.msk [vmem:[#allocation4 + $0xa] sm:$0x3] %vm12275, %v12262
        %12282 = vst.msk [vmem:[#allocation4 + $0xc] sm:$0x3] %vm12275, %v12264
        %12283 = vst.msk [vmem:[#allocation4 + $0xe] sm:$0x3] %vm12275, %v12266
        %v12284 = vld [vmem:[#allocation4] sm:$0x1]
        %v12285 = vld [vmem:[#allocation4 + $0x2] sm:$0x1]
        %v12286 = vld [vmem:[#allocation4 + $0x4] sm:$0x1]
        %v12287 = vld [vmem:[#allocation4 + $0x6] sm:$0x1]
        %v12288 = vld [vmem:[#allocation4 + $0x8] sm:$0x1]
        %v12289 = vld [vmem:[#allocation4 + $0xa] sm:$0x1]
        %v12290 = vld [vmem:[#allocation4 + $0xc] sm:$0x1]
        %v12291 = vld [vmem:[#allocation4 + $0xe] sm:$0x1]
        %v12292 = vld [vmem:[%s5] sm:$0xf]
        %v12293 = vld [vmem:[%s5 + $0x4] sm:$0xf]
        %v12294 = vld [vmem:[%s5 + $0x8] sm:$0xf]
        %v12295 = vld [vmem:[%s5 + $0xc] sm:$0xf]
        %v12296 = vld [vmem:[%s5 + $0x10] sm:$0xf]
        %v12297 = vld [vmem:[%s5 + $0x14] sm:$0xf]
        %v12298 = vld [vmem:[%s5 + $0x18] sm:$0xf]
        %v12299 = vld [vmem:[%s5 + $0x1c] sm:$0xf]
        %v12300 = vld [vmem:[%s5 + $0x20] sm:$0xf]
        %v12301 = vld [vmem:[%s5 + $0x24] sm:$0xf]
        %v12302 = vld [vmem:[%s5 + $0x28] sm:$0xf]
        %v12303 = vld [vmem:[%s5 + $0x2c] sm:$0xf]
        %v12304 = vld [vmem:[%s5 + $0x30] sm:$0xf]
        %v12305 = vld [vmem:[%s5 + $0x34] sm:$0xf]
        %v12306 = vld [vmem:[%s5 + $0x38] sm:$0xf]
        %v12307 = vld [vmem:[%s5 + $0x3c] sm:$0xf]
        %s12308 = scalar_lea.vmem %s5, 64
        %v12309 = vld [vmem:[%s12308] sm:$0xf]
        %v12310 = vld [vmem:[%s12308 + $0x4] sm:$0xf]
        %v12311 = vld [vmem:[%s12308 + $0x8] sm:$0xf]
        %v12312 = vld [vmem:[%s12308 + $0xc] sm:$0xf]
        %v12313 = vld [vmem:[%s12308 + $0x10] sm:$0xf]
        %v12314 = vld [vmem:[%s12308 + $0x14] sm:$0xf]
        %v12315 = vld [vmem:[%s12308 + $0x18] sm:$0xf]
        %v12316 = vld [vmem:[%s12308 + $0x1c] sm:$0xf]
        %v12317 = vld [vmem:[%s12308 + $0x20] sm:$0xf]
        %v12318 = vld [vmem:[%s12308 + $0x24] sm:$0xf]
        %v12319 = vld [vmem:[%s12308 + $0x28] sm:$0xf]
        %v12320 = vld [vmem:[%s12308 + $0x2c] sm:$0xf]
        %v12321 = vld [vmem:[%s12308 + $0x30] sm:$0xf]
        %v12322 = vld [vmem:[%s12308 + $0x34] sm:$0xf]
        %v12323 = vld [vmem:[%s12308 + $0x38] sm:$0xf]
        %v12324 = vld [vmem:[%s12308 + $0x3c] sm:$0xf]
        %v12334 = vunpack.c.l.s4 1983009808
        %v12335 = vunpack.c.0.s8 %v12334
        %v12336 = vlaneseq
        %v12337 = vshrl.u32 %v12336, 7
        %v12338 = vsub.s32 %v12335, %v12337
        %v12339 = vrot.slane %v12284, %v12338
        %v12341 = vunpack.c.l.s4 1983009808
        %v12342 = vunpack.c.0.s8 %v12341
        %v12343 = vlaneseq
        %v12344 = vshrl.u32 %v12343, 7
        %v12345 = vsub.s32 %v12342, %v12344
        %v12346 = vrot.slane %v12285, %v12345
        %v12348 = vunpack.c.l.s4 1983009808
        %v12349 = vunpack.c.0.s8 %v12348
        %v12350 = vlaneseq
        %v12351 = vshrl.u32 %v12350, 7
        %v12352 = vsub.s32 %v12349, %v12351
        %v12353 = vrot.slane %v12286, %v12352
        %v12355 = vunpack.c.l.s4 1983009808
        %v12356 = vunpack.c.0.s8 %v12355
        %v12357 = vlaneseq
        %v12358 = vshrl.u32 %v12357, 7
        %v12359 = vsub.s32 %v12356, %v12358
        %v12360 = vrot.slane %v12287, %v12359
        %v12362 = vunpack.c.l.s4 1983009808
        %v12363 = vunpack.c.0.s8 %v12362
        %v12364 = vlaneseq
        %v12365 = vshrl.u32 %v12364, 7
        %v12366 = vsub.s32 %v12363, %v12365
        %v12367 = vrot.slane %v12288, %v12366
        %v12369 = vunpack.c.l.s4 1983009808
        %v12370 = vunpack.c.0.s8 %v12369
        %v12371 = vlaneseq
        %v12372 = vshrl.u32 %v12371, 7
        %v12373 = vsub.s32 %v12370, %v12372
        %v12374 = vrot.slane %v12289, %v12373
        %v12376 = vunpack.c.l.s4 1983009808
        %v12377 = vunpack.c.0.s8 %v12376
        %v12378 = vlaneseq
        %v12379 = vshrl.u32 %v12378, 7
        %v12380 = vsub.s32 %v12377, %v12379
        %v12381 = vrot.slane %v12290, %v12380
        %v12383 = vunpack.c.l.s4 1983009808
        %v12384 = vunpack.c.0.s8 %v12383
        %v12385 = vlaneseq
        %v12386 = vshrl.u32 %v12385, 7
        %v12387 = vsub.s32 %v12384, %v12386
        %v12388 = vrot.slane %v12291, %v12387
        %v12389 = vunpack.c.l.b16 %v12339
        %v12390 = vunpack.c.l.b16 %v12346
        %v12391 = vunpack.c.l.b16 %v12353
        %v12392 = vunpack.c.l.b16 %v12360
        %v12393 = vunpack.c.l.b16 %v12367
        %v12394 = vunpack.c.l.b16 %v12374
        %v12395 = vunpack.c.l.b16 %v12381
        %v12396 = vunpack.c.l.b16 %v12388
        %v12397 = vrot.slane %v12389, 1
        %v12398 = vsel %vm3439, %v12390, %v12397
        %v12399 = vrot.slane %v12391, 7
        %v12400 = vsel %vm10298, %v12399, %v12398
        %v12401 = vrot.slane %v12392, 6
        %v12402 = vsel %vm3424, %v12401, %v12400
        %v12403 = vrot.slane %v12393, 5
        %v12404 = vsel %vm3427, %v12403, %v12402
        %v12405 = vrot.slane %v12394, 4
        %v12406 = vsel %vm3430, %v12405, %v12404
        %v12407 = vrot.slane %v12395, 3
        %v12408 = vsel %vm3433, %v12407, %v12406
        %v12409 = vrot.slane %v12396, 2
        %v12410 = vsel %vm3436, %v12409, %v12408
        %v12411 = vpack.c.b16 %v12410, %v12410
        %v12429 = vunpack.c.l.b16 %v12309
        %v12430 = vunpack.c.l.b16 %v12310
        %v12431 = vunpack.c.l.b16 %v12311
        %v12432 = vunpack.c.l.b16 %v12312
        %v12433 = vunpack.c.l.b16 %v12313
        %v12434 = vunpack.c.l.b16 %v12314
        %v12435 = vunpack.c.l.b16 %v12315
        %v12436 = vunpack.c.l.b16 %v12316
        %v12437 = vunpack.c.l.b16 %v12317
        %v12438 = vunpack.c.l.b16 %v12318
        %v12439 = vunpack.c.l.b16 %v12319
        %v12440 = vunpack.c.l.b16 %v12320
        %v12441 = vunpack.c.l.b16 %v12321
        %v12442 = vunpack.c.l.b16 %v12322
        %v12443 = vunpack.c.l.b16 %v12323
        %v12444 = vunpack.c.l.b16 %v12324
        %v12445 = vpack.c.b16 %v12430, %v12429
        %v12446 = vpack.c.b16 %v12432, %v12431
        %v12447 = vpack.c.b16 %v12434, %v12433
        %v12448 = vpack.c.b16 %v12436, %v12435
        %v12449 = vpack.c.b16 %v12438, %v12437
        %v12450 = vpack.c.b16 %v12440, %v12439
        %v12451 = vpack.c.b16 %v12442, %v12441
        %v12452 = vpack.c.b16 %v12444, %v12443
        %12461 = vmatprep.subr.bf16.mxu0 0
        %12462 = vmatpush1.bf16.msra.mxu0 %v12452
        %12463 = vmatprep.subr.bf16.mxu0 0
        %12464 = vmatpush1.bf16.msra.mxu0 %v12451
        %12465 = vmatprep.subr.bf16.mxu0 0
        %12466 = vmatpush1.bf16.msra.mxu0 %v12450
        %12467 = vmatprep.subr.bf16.mxu0 0
        %12468 = vmatpush1.bf16.msra.mxu0 %v12449
        %12469 = vmatprep.subr.bf16.mxu0 0
        %12470 = vmatpush1.bf16.msra.mxu0 %v12448
        %12471 = vmatprep.subr.bf16.mxu0 0
        %12472 = vmatpush1.bf16.msra.mxu0 %v12447
        %12473 = vmatprep.subr.bf16.mxu0 0
        %12474 = vmatpush1.bf16.msra.mxu0 %v12446
        %12475 = vmatprep.subr.bf16.mxu0 0
        %12476 = vmatpush1.bf16.msra.mxu0 %v12445
        %12477 = vmatprep.subr.bf16.mxu0 0
        %12478 = vmatpush2.bf16.msra.mxu0 0
        %12479 = vmatprep.subr.bf16.mxu0 0
        %12480 = vmatpush2.bf16.msra.mxu0 0
        %12481 = vmatprep.subr.bf16.mxu0 0
        %12482 = vmatpush2.bf16.msra.mxu0 0
        %12483 = vmatprep.subr.bf16.mxu0 0
        %12484 = vmatpush2.bf16.msra.mxu0 0
        %12485 = vmatprep.subr.bf16.mxu0 0
        %12486 = vmatpush2.bf16.msra.mxu0 0
        %12487 = vmatprep.subr.bf16.mxu0 0
        %12488 = vmatpush2.bf16.msra.mxu0 0
        %12489 = vmatprep.subr.bf16.mxu0 0
        %12490 = vmatpush2.bf16.msra.mxu0 0
        %12491 = vmatprep.subr.bf16.mxu0 0
        %12492 = vmatpush2.bf16.msra.mxu0 0
        %12493 = vmatprep.mubr.bf16.mxu0 0
        %12494 = vmatmul.mubr.bf16.gmra.mxu0 %v12411
        %v12495 = vpop.f32.mrf.mxu0
        %v12496 = vadd.f32 0.0, %v12495
        %v12497 = vpop.f32.mrf.mxu0
        %v12498 = vpop.f32.mrf.mxu0
        %v12499 = vpop.f32.mrf.mxu0
        %12500 = vdwg.mxu0
        %v12501 = vrot.slane %v12390, 7
        %v12502 = vsel %vm3439, %v12501, %v12389
        %v12503 = vrot.slane %v12391, 6
        %v12504 = vsel %vm10298, %v12503, %v12502
        %v12505 = vrot.slane %v12392, 5
        %v12506 = vsel %vm3424, %v12505, %v12504
        %v12507 = vrot.slane %v12393, 4
        %v12508 = vsel %vm3427, %v12507, %v12506
        %v12509 = vrot.slane %v12394, 3
        %v12510 = vsel %vm3430, %v12509, %v12508
        %v12511 = vrot.slane %v12395, 2
        %v12512 = vsel %vm3433, %v12511, %v12510
        %v12513 = vrot.slane %v12396, 1
        %v12514 = vsel %vm3436, %v12513, %v12512
        %v12515 = vpack.c.b16 %v12514, %v12514
        %v12533 = vunpack.c.l.b16 %v12292
        %v12534 = vunpack.c.l.b16 %v12293
        %v12535 = vunpack.c.l.b16 %v12294
        %v12536 = vunpack.c.l.b16 %v12295
        %v12537 = vunpack.c.l.b16 %v12296
        %v12538 = vunpack.c.l.b16 %v12297
        %v12539 = vunpack.c.l.b16 %v12298
        %v12540 = vunpack.c.l.b16 %v12299
        %v12541 = vunpack.c.l.b16 %v12300
        %v12542 = vunpack.c.l.b16 %v12301
        %v12543 = vunpack.c.l.b16 %v12302
        %v12544 = vunpack.c.l.b16 %v12303
        %v12545 = vunpack.c.l.b16 %v12304
        %v12546 = vunpack.c.l.b16 %v12305
        %v12547 = vunpack.c.l.b16 %v12306
        %v12548 = vunpack.c.l.b16 %v12307
        %v12549 = vpack.c.b16 %v12534, %v12533
        %v12550 = vpack.c.b16 %v12536, %v12535
        %v12551 = vpack.c.b16 %v12538, %v12537
        %v12552 = vpack.c.b16 %v12540, %v12539
        %v12553 = vpack.c.b16 %v12542, %v12541
        %v12554 = vpack.c.b16 %v12544, %v12543
        %v12555 = vpack.c.b16 %v12546, %v12545
        %v12556 = vpack.c.b16 %v12548, %v12547
        %12565 = vmatprep.subr.bf16.mxu0 0
        %12566 = vmatpush1.bf16.msra.mxu0 %v12556
        %12567 = vmatprep.subr.bf16.mxu0 0
        %12568 = vmatpush1.bf16.msra.mxu0 %v12555
        %12569 = vmatprep.subr.bf16.mxu0 0
        %12570 = vmatpush1.bf16.msra.mxu0 %v12554
        %12571 = vmatprep.subr.bf16.mxu0 0
        %12572 = vmatpush1.bf16.msra.mxu0 %v12553
        %12573 = vmatprep.subr.bf16.mxu0 0
        %12574 = vmatpush1.bf16.msra.mxu0 %v12552
        %12575 = vmatprep.subr.bf16.mxu0 0
        %12576 = vmatpush1.bf16.msra.mxu0 %v12551
        %12577 = vmatprep.subr.bf16.mxu0 0
        %12578 = vmatpush1.bf16.msra.mxu0 %v12550
        %12579 = vmatprep.subr.bf16.mxu0 0
        %12580 = vmatpush1.bf16.msra.mxu0 %v12549
        %12581 = vmatprep.subr.bf16.mxu0 0
        %12582 = vmatpush2.bf16.msra.mxu0 0
        %12583 = vmatprep.subr.bf16.mxu0 0
        %12584 = vmatpush2.bf16.msra.mxu0 0
        %12585 = vmatprep.subr.bf16.mxu0 0
        %12586 = vmatpush2.bf16.msra.mxu0 0
        %12587 = vmatprep.subr.bf16.mxu0 0
        %12588 = vmatpush2.bf16.msra.mxu0 0
        %12589 = vmatprep.subr.bf16.mxu0 0
        %12590 = vmatpush2.bf16.msra.mxu0 0
        %12591 = vmatprep.subr.bf16.mxu0 0
        %12592 = vmatpush2.bf16.msra.mxu0 0
        %12593 = vmatprep.subr.bf16.mxu0 0
        %12594 = vmatpush2.bf16.msra.mxu0 0
        %12595 = vmatprep.subr.bf16.mxu0 0
        %12596 = vmatpush2.bf16.msra.mxu0 0
        %12597 = vmatprep.mubr.bf16.mxu0 0
        %12598 = vmatmul.mubr.bf16.gmra.mxu0 %v12515
        %v12599 = vpop.f32.mrf.mxu0
        %v12600 = vadd.f32 %v12496, %v12599
        %v12601 = vpop.f32.mrf.mxu0
        %v12602 = vpop.f32.mrf.mxu0
        %v12603 = vpop.f32.mrf.mxu0
        %12604 = vdwg.mxu0
        %v12605 = vld [vmem:[#allocation4] sm:$0x2]
        %v12606 = vld [vmem:[#allocation4 + $0x2] sm:$0x2]
        %v12607 = vld [vmem:[#allocation4 + $0x4] sm:$0x2]
        %v12608 = vld [vmem:[#allocation4 + $0x6] sm:$0x2]
        %v12609 = vld [vmem:[#allocation4 + $0x8] sm:$0x2]
        %v12610 = vld [vmem:[#allocation4 + $0xa] sm:$0x2]
        %v12611 = vld [vmem:[#allocation4 + $0xc] sm:$0x2]
        %v12612 = vld [vmem:[#allocation4 + $0xe] sm:$0x2]
        %s12613 = scalar_lea.vmem %s5, 128
        %v12614 = vld [vmem:[%s12613] sm:$0xf]
        %v12615 = vld [vmem:[%s12613 + $0x4] sm:$0xf]
        %v12616 = vld [vmem:[%s12613 + $0x8] sm:$0xf]
        %v12617 = vld [vmem:[%s12613 + $0xc] sm:$0xf]
        %v12618 = vld [vmem:[%s12613 + $0x10] sm:$0xf]
        %v12619 = vld [vmem:[%s12613 + $0x14] sm:$0xf]
        %v12620 = vld [vmem:[%s12613 + $0x18] sm:$0xf]
        %v12621 = vld [vmem:[%s12613 + $0x1c] sm:$0xf]
        %v12622 = vld [vmem:[%s12613 + $0x20] sm:$0xf]
        %v12623 = vld [vmem:[%s12613 + $0x24] sm:$0xf]
        %v12624 = vld [vmem:[%s12613 + $0x28] sm:$0xf]
        %v12625 = vld [vmem:[%s12613 + $0x2c] sm:$0xf]
        %v12626 = vld [vmem:[%s12613 + $0x30] sm:$0xf]
        %v12627 = vld [vmem:[%s12613 + $0x34] sm:$0xf]
        %v12628 = vld [vmem:[%s12613 + $0x38] sm:$0xf]
        %v12629 = vld [vmem:[%s12613 + $0x3c] sm:$0xf]
        %v12639 = vunpack.c.l.s4 1983009808
        %v12640 = vunpack.c.0.s8 %v12639
        %v12641 = vlaneseq
        %v12642 = vshrl.u32 %v12641, 7
        %v12643 = vsub.s32 %v12640, %v12642
        %v12644 = vrot.slane %v12605, %v12643
        %v12646 = vunpack.c.l.s4 1983009808
        %v12647 = vunpack.c.0.s8 %v12646
        %v12648 = vlaneseq
        %v12649 = vshrl.u32 %v12648, 7
        %v12650 = vsub.s32 %v12647, %v12649
        %v12651 = vrot.slane %v12606, %v12650
        %v12653 = vunpack.c.l.s4 1983009808
        %v12654 = vunpack.c.0.s8 %v12653
        %v12655 = vlaneseq
        %v12656 = vshrl.u32 %v12655, 7
        %v12657 = vsub.s32 %v12654, %v12656
        %v12658 = vrot.slane %v12607, %v12657
        %v12660 = vunpack.c.l.s4 1983009808
        %v12661 = vunpack.c.0.s8 %v12660
        %v12662 = vlaneseq
        %v12663 = vshrl.u32 %v12662, 7
        %v12664 = vsub.s32 %v12661, %v12663
        %v12665 = vrot.slane %v12608, %v12664
        %v12667 = vunpack.c.l.s4 1983009808
        %v12668 = vunpack.c.0.s8 %v12667
        %v12669 = vlaneseq
        %v12670 = vshrl.u32 %v12669, 7
        %v12671 = vsub.s32 %v12668, %v12670
        %v12672 = vrot.slane %v12609, %v12671
        %v12674 = vunpack.c.l.s4 1983009808
        %v12675 = vunpack.c.0.s8 %v12674
        %v12676 = vlaneseq
        %v12677 = vshrl.u32 %v12676, 7
        %v12678 = vsub.s32 %v12675, %v12677
        %v12679 = vrot.slane %v12610, %v12678
        %v12681 = vunpack.c.l.s4 1983009808
        %v12682 = vunpack.c.0.s8 %v12681
        %v12683 = vlaneseq
        %v12684 = vshrl.u32 %v12683, 7
        %v12685 = vsub.s32 %v12682, %v12684
        %v12686 = vrot.slane %v12611, %v12685
        %v12688 = vunpack.c.l.s4 1983009808
        %v12689 = vunpack.c.0.s8 %v12688
        %v12690 = vlaneseq
        %v12691 = vshrl.u32 %v12690, 7
        %v12692 = vsub.s32 %v12689, %v12691
        %v12693 = vrot.slane %v12612, %v12692
        %v12694 = vunpack.c.l.b16 %v12644
        %v12695 = vunpack.c.l.b16 %v12651
        %v12696 = vunpack.c.l.b16 %v12658
        %v12697 = vunpack.c.l.b16 %v12665
        %v12698 = vunpack.c.l.b16 %v12672
        %v12699 = vunpack.c.l.b16 %v12679
        %v12700 = vunpack.c.l.b16 %v12686
        %v12701 = vunpack.c.l.b16 %v12693
        %v12702 = vrot.slane %v12694, 2
        %v12703 = vrot.slane %v12695, 1
        %v12704 = vsel %vm3439, %v12703, %v12702
        %v12705 = vsel %vm10298, %v12696, %v12704
        %v12706 = vrot.slane %v12697, 7
        %v12707 = vsel %vm3424, %v12706, %v12705
        %v12708 = vrot.slane %v12698, 6
        %v12709 = vsel %vm3427, %v12708, %v12707
        %v12710 = vrot.slane %v12699, 5
        %v12711 = vsel %vm3430, %v12710, %v12709
        %v12712 = vrot.slane %v12700, 4
        %v12713 = vsel %vm3433, %v12712, %v12711
        %v12714 = vrot.slane %v12701, 3
        %v12715 = vsel %vm3436, %v12714, %v12713
        %v12716 = vpack.c.b16 %v12715, %v12715
        %v12734 = vunpack.c.l.b16 %v12614
        %v12735 = vunpack.c.l.b16 %v12615
        %v12736 = vunpack.c.l.b16 %v12616
        %v12737 = vunpack.c.l.b16 %v12617
        %v12738 = vunpack.c.l.b16 %v12618
        %v12739 = vunpack.c.l.b16 %v12619
        %v12740 = vunpack.c.l.b16 %v12620
        %v12741 = vunpack.c.l.b16 %v12621
        %v12742 = vunpack.c.l.b16 %v12622
        %v12743 = vunpack.c.l.b16 %v12623
        %v12744 = vunpack.c.l.b16 %v12624
        %v12745 = vunpack.c.l.b16 %v12625
        %v12746 = vunpack.c.l.b16 %v12626
        %v12747 = vunpack.c.l.b16 %v12627
        %v12748 = vunpack.c.l.b16 %v12628
        %v12749 = vunpack.c.l.b16 %v12629
        %v12750 = vpack.c.b16 %v12735, %v12734
        %v12751 = vpack.c.b16 %v12737, %v12736
        %v12752 = vpack.c.b16 %v12739, %v12738
        %v12753 = vpack.c.b16 %v12741, %v12740
        %v12754 = vpack.c.b16 %v12743, %v12742
        %v12755 = vpack.c.b16 %v12745, %v12744
        %v12756 = vpack.c.b16 %v12747, %v12746
        %v12757 = vpack.c.b16 %v12749, %v12748
        %12766 = vmatprep.subr.bf16.mxu0 0
        %12767 = vmatpush1.bf16.msra.mxu0 %v12757
        %12768 = vmatprep.subr.bf16.mxu0 0
        %12769 = vmatpush1.bf16.msra.mxu0 %v12756
        %12770 = vmatprep.subr.bf16.mxu0 0
        %12771 = vmatpush1.bf16.msra.mxu0 %v12755
        %12772 = vmatprep.subr.bf16.mxu0 0
        %12773 = vmatpush1.bf16.msra.mxu0 %v12754
        %12774 = vmatprep.subr.bf16.mxu0 0
        %12775 = vmatpush1.bf16.msra.mxu0 %v12753
        %12776 = vmatprep.subr.bf16.mxu0 0
        %12777 = vmatpush1.bf16.msra.mxu0 %v12752
        %12778 = vmatprep.subr.bf16.mxu0 0
        %12779 = vmatpush1.bf16.msra.mxu0 %v12751
        %12780 = vmatprep.subr.bf16.mxu0 0
        %12781 = vmatpush1.bf16.msra.mxu0 %v12750
        %12782 = vmatprep.subr.bf16.mxu0 0
        %12783 = vmatpush2.bf16.msra.mxu0 0
        %12784 = vmatprep.subr.bf16.mxu0 0
        %12785 = vmatpush2.bf16.msra.mxu0 0
        %12786 = vmatprep.subr.bf16.mxu0 0
        %12787 = vmatpush2.bf16.msra.mxu0 0
        %12788 = vmatprep.subr.bf16.mxu0 0
        %12789 = vmatpush2.bf16.msra.mxu0 0
        %12790 = vmatprep.subr.bf16.mxu0 0
        %12791 = vmatpush2.bf16.msra.mxu0 0
        %12792 = vmatprep.subr.bf16.mxu0 0
        %12793 = vmatpush2.bf16.msra.mxu0 0
        %12794 = vmatprep.subr.bf16.mxu0 0
        %12795 = vmatpush2.bf16.msra.mxu0 0
        %12796 = vmatprep.subr.bf16.mxu0 0
        %12797 = vmatpush2.bf16.msra.mxu0 0
        %12798 = vmatprep.mubr.bf16.mxu0 0
        %12799 = vmatmul.mubr.bf16.gmra.mxu0 %v12716
        %v12800 = vpop.f32.mrf.mxu0
        %v12801 = vadd.f32 0.0, %v12800
        %v12802 = vpop.f32.mrf.mxu0
        %v12803 = vpop.f32.mrf.mxu0
        %v12804 = vpop.f32.mrf.mxu0
        %12805 = vdwg.mxu0
        %v12806 = vadd.f32 %v12600, %v12801
        %v12807 = vld [vmem:[#allocation4] sm:$0x2]
        %v12808 = vld [vmem:[#allocation4 + $0x2] sm:$0x2]
        %v12809 = vld [vmem:[#allocation4 + $0x4] sm:$0x2]
        %v12810 = vld [vmem:[#allocation4 + $0x6] sm:$0x2]
        %v12811 = vld [vmem:[#allocation4 + $0x8] sm:$0x2]
        %v12812 = vld [vmem:[#allocation4 + $0xa] sm:$0x2]
        %v12813 = vld [vmem:[#allocation4 + $0xc] sm:$0x2]
        %v12814 = vld [vmem:[#allocation4 + $0xe] sm:$0x2]
        %s12815 = scalar_lea.vmem %s5, 192
        %v12816 = vld [vmem:[%s12815] sm:$0xf]
        %v12817 = vld [vmem:[%s12815 + $0x4] sm:$0xf]
        %v12818 = vld [vmem:[%s12815 + $0x8] sm:$0xf]
        %v12819 = vld [vmem:[%s12815 + $0xc] sm:$0xf]
        %v12820 = vld [vmem:[%s12815 + $0x10] sm:$0xf]
        %v12821 = vld [vmem:[%s12815 + $0x14] sm:$0xf]
        %v12822 = vld [vmem:[%s12815 + $0x18] sm:$0xf]
        %v12823 = vld [vmem:[%s12815 + $0x1c] sm:$0xf]
        %v12824 = vld [vmem:[%s12815 + $0x20] sm:$0xf]
        %v12825 = vld [vmem:[%s12815 + $0x24] sm:$0xf]
        %v12826 = vld [vmem:[%s12815 + $0x28] sm:$0xf]
        %v12827 = vld [vmem:[%s12815 + $0x2c] sm:$0xf]
        %v12828 = vld [vmem:[%s12815 + $0x30] sm:$0xf]
        %v12829 = vld [vmem:[%s12815 + $0x34] sm:$0xf]
        %v12830 = vld [vmem:[%s12815 + $0x38] sm:$0xf]
        %v12831 = vld [vmem:[%s12815 + $0x3c] sm:$0xf]
        %v12841 = vunpack.c.l.s4 1983009808
        %v12842 = vunpack.c.0.s8 %v12841
        %v12843 = vlaneseq
        %v12844 = vshrl.u32 %v12843, 7
        %v12845 = vsub.s32 %v12842, %v12844
        %v12846 = vrot.slane %v12807, %v12845
        %v12848 = vunpack.c.l.s4 1983009808
        %v12849 = vunpack.c.0.s8 %v12848
        %v12850 = vlaneseq
        %v12851 = vshrl.u32 %v12850, 7
        %v12852 = vsub.s32 %v12849, %v12851
        %v12853 = vrot.slane %v12808, %v12852
        %v12855 = vunpack.c.l.s4 1983009808
        %v12856 = vunpack.c.0.s8 %v12855
        %v12857 = vlaneseq
        %v12858 = vshrl.u32 %v12857, 7
        %v12859 = vsub.s32 %v12856, %v12858
        %v12860 = vrot.slane %v12809, %v12859
        %v12862 = vunpack.c.l.s4 1983009808
        %v12863 = vunpack.c.0.s8 %v12862
        %v12864 = vlaneseq
        %v12865 = vshrl.u32 %v12864, 7
        %v12866 = vsub.s32 %v12863, %v12865
        %v12867 = vrot.slane %v12810, %v12866
        %v12869 = vunpack.c.l.s4 1983009808
        %v12870 = vunpack.c.0.s8 %v12869
        %v12871 = vlaneseq
        %v12872 = vshrl.u32 %v12871, 7
        %v12873 = vsub.s32 %v12870, %v12872
        %v12874 = vrot.slane %v12811, %v12873
        %v12876 = vunpack.c.l.s4 1983009808
        %v12877 = vunpack.c.0.s8 %v12876
        %v12878 = vlaneseq
        %v12879 = vshrl.u32 %v12878, 7
        %v12880 = vsub.s32 %v12877, %v12879
        %v12881 = vrot.slane %v12812, %v12880
        %v12883 = vunpack.c.l.s4 1983009808
        %v12884 = vunpack.c.0.s8 %v12883
        %v12885 = vlaneseq
        %v12886 = vshrl.u32 %v12885, 7
        %v12887 = vsub.s32 %v12884, %v12886
        %v12888 = vrot.slane %v12813, %v12887
        %v12890 = vunpack.c.l.s4 1983009808
        %v12891 = vunpack.c.0.s8 %v12890
        %v12892 = vlaneseq
        %v12893 = vshrl.u32 %v12892, 7
        %v12894 = vsub.s32 %v12891, %v12893
        %v12895 = vrot.slane %v12814, %v12894
        %v12896 = vunpack.c.l.b16 %v12846
        %v12897 = vunpack.c.l.b16 %v12853
        %v12898 = vunpack.c.l.b16 %v12860
        %v12899 = vunpack.c.l.b16 %v12867
        %v12900 = vunpack.c.l.b16 %v12874
        %v12901 = vunpack.c.l.b16 %v12881
        %v12902 = vunpack.c.l.b16 %v12888
        %v12903 = vunpack.c.l.b16 %v12895
        %v12904 = vrot.slane %v12896, 3
        %v12905 = vrot.slane %v12897, 2
        %v12906 = vsel %vm3439, %v12905, %v12904
        %v12907 = vrot.slane %v12898, 1
        %v12908 = vsel %vm10298, %v12907, %v12906
        %v12909 = vsel %vm3424, %v12899, %v12908
        %v12910 = vrot.slane %v12900, 7
        %v12911 = vsel %vm3427, %v12910, %v12909
        %v12912 = vrot.slane %v12901, 6
        %v12913 = vsel %vm3430, %v12912, %v12911
        %v12914 = vrot.slane %v12902, 5
        %v12915 = vsel %vm3433, %v12914, %v12913
        %v12916 = vrot.slane %v12903, 4
        %v12917 = vsel %vm3436, %v12916, %v12915
        %v12918 = vpack.c.b16 %v12917, %v12917
        %v12936 = vunpack.c.l.b16 %v12816
        %v12937 = vunpack.c.l.b16 %v12817
        %v12938 = vunpack.c.l.b16 %v12818
        %v12939 = vunpack.c.l.b16 %v12819
        %v12940 = vunpack.c.l.b16 %v12820
        %v12941 = vunpack.c.l.b16 %v12821
        %v12942 = vunpack.c.l.b16 %v12822
        %v12943 = vunpack.c.l.b16 %v12823
        %v12944 = vunpack.c.l.b16 %v12824
        %v12945 = vunpack.c.l.b16 %v12825
        %v12946 = vunpack.c.l.b16 %v12826
        %v12947 = vunpack.c.l.b16 %v12827
        %v12948 = vunpack.c.l.b16 %v12828
        %v12949 = vunpack.c.l.b16 %v12829
        %v12950 = vunpack.c.l.b16 %v12830
        %v12951 = vunpack.c.l.b16 %v12831
        %v12952 = vpack.c.b16 %v12937, %v12936
        %v12953 = vpack.c.b16 %v12939, %v12938
        %v12954 = vpack.c.b16 %v12941, %v12940
        %v12955 = vpack.c.b16 %v12943, %v12942
        %v12956 = vpack.c.b16 %v12945, %v12944
        %v12957 = vpack.c.b16 %v12947, %v12946
        %v12958 = vpack.c.b16 %v12949, %v12948
        %v12959 = vpack.c.b16 %v12951, %v12950
        %12968 = vmatprep.subr.bf16.mxu0 0
        %12969 = vmatpush1.bf16.msra.mxu0 %v12959
        %12970 = vmatprep.subr.bf16.mxu0 0
        %12971 = vmatpush1.bf16.msra.mxu0 %v12958
        %12972 = vmatprep.subr.bf16.mxu0 0
        %12973 = vmatpush1.bf16.msra.mxu0 %v12957
        %12974 = vmatprep.subr.bf16.mxu0 0
        %12975 = vmatpush1.bf16.msra.mxu0 %v12956
        %12976 = vmatprep.subr.bf16.mxu0 0
        %12977 = vmatpush1.bf16.msra.mxu0 %v12955
        %12978 = vmatprep.subr.bf16.mxu0 0
        %12979 = vmatpush1.bf16.msra.mxu0 %v12954
        %12980 = vmatprep.subr.bf16.mxu0 0
        %12981 = vmatpush1.bf16.msra.mxu0 %v12953
        %12982 = vmatprep.subr.bf16.mxu0 0
        %12983 = vmatpush1.bf16.msra.mxu0 %v12952
        %12984 = vmatprep.subr.bf16.mxu0 0
        %12985 = vmatpush2.bf16.msra.mxu0 0
        %12986 = vmatprep.subr.bf16.mxu0 0
        %12987 = vmatpush2.bf16.msra.mxu0 0
        %12988 = vmatprep.subr.bf16.mxu0 0
        %12989 = vmatpush2.bf16.msra.mxu0 0
        %12990 = vmatprep.subr.bf16.mxu0 0
        %12991 = vmatpush2.bf16.msra.mxu0 0
        %12992 = vmatprep.subr.bf16.mxu0 0
        %12993 = vmatpush2.bf16.msra.mxu0 0
        %12994 = vmatprep.subr.bf16.mxu0 0
        %12995 = vmatpush2.bf16.msra.mxu0 0
        %12996 = vmatprep.subr.bf16.mxu0 0
        %12997 = vmatpush2.bf16.msra.mxu0 0
        %12998 = vmatprep.subr.bf16.mxu0 0
        %12999 = vmatpush2.bf16.msra.mxu0 0
        %13000 = vmatprep.mubr.bf16.mxu0 0
        %13001 = vmatmul.mubr.bf16.gmra.mxu0 %v12918
        %v13002 = vpop.f32.mrf.mxu0
        %v13003 = vadd.f32 0.0, %v13002
        %v13004 = vpop.f32.mrf.mxu0
        %v13005 = vpop.f32.mrf.mxu0
        %v13006 = vpop.f32.mrf.mxu0
        %13007 = vdwg.mxu0
        %v13008 = vadd.f32 %v12806, %v13003
        %v13009 = vld [vmem:[%s6] sm:$0x1]
        %v13011 = vlaneseq
        %v13012 = vshrl.u32 %v13011, 7
        %v13013 = vsub.s32 0, %v13012
        %v13014 = vrot.slane %v13009, %v13013
        %v13016 = vadd.f32 %v13008, %v13014
        %vm13017 = vcmask 80896
        %13018 = vst.msk [vmem:[%s304] sm:$0xff] %vm13017, %v13016
        %s13019 = sand.u32 %s183, 1
        %s13020 = scalar_lea.sflag [#allocation7], %s13019
        %s13021 = sand.u32 %s183, 1
        %s13022 = smul.addr %s13021, 8
        %s13023 = scalar_lea.vmem [#allocation10], %s13022
        // Predicated region
        $region57: #{cnn_forward.1} parent=47 // pred_check
          %p13024 = pneg %p193
        $region58: #{cnn_forward.1} parent=47 // pred_check_branch
          %13026 = sbr.rel (%p13024) target = $region60
        $region59: #{cnn_forward.1} parent=47 // pred_region
          %s13028 = ssub.s32 128, 128
          %13029 = vsyncadd %s13020, %s13028
          %s13030 = smul.addr %s23, 128
          %s13031 = scalar_lea.hbm %s7, %s13030
          %s13033 = sshll.u32 %s13023, 4
          %s13034 = int_to_ptr.vmem [resolvable:$true] %s13033
          %13036 = dma.vmem_to_hbm [thread:$0]  %s13034, 128, %s13031, %s13020
        $region60: #{cnn_forward.1} parent=47 // pred_fallthru
          _
      $region48: #{cnn_forward.1} parent=5 // pred_fallthru
        _
      %p13037 = scmp.le.s32.totalorder 2, %s18
      // Predicated region
      $region61: #{cnn_forward.1} parent=5 // pred_check
        %p13038 = pneg %p13037
      $region62: #{cnn_forward.1} parent=5 // pred_check_branch
        %13040 = sbr.rel (%p13038) target = $region64
      $region63: #{cnn_forward.1} parent=5 // pred_region
        %s13041 = ssub.s32 %s18, 2
        // Predicated region
        $region65: #{cnn_forward.1} parent=63 // pred_check
          %p13042 = pneg %p199
        $region66: #{cnn_forward.1} parent=63 // pred_check_branch
          %13044 = sbr.rel (%p13042) target = $region68
        $region67: #{cnn_forward.1} parent=63 // pred_region
          %s13045 = sand.u32 %s184, 1
          %s13046 = scalar_lea.sflag [#allocation7], %s13045
          %s13047 = sand.u32 %s184, 1
          %s13048 = smul.addr %s13047, 8
          %s13049 = scalar_lea.vmem [#allocation10], %s13048
          %13050 = dma.done %s13046, 128
        $region68: #{cnn_forward.1} parent=63 // pred_fallthru
          _
      $region64: #{cnn_forward.1} parent=5 // pred_fallthru
        _
    $region6: #{cnn_forward.1} parent=1 // loop_footer
      %s22 = sadd.s32 1, %s18
    $region7: #{cnn_forward.1} parent=1 // loop_footer_branch
      %17 = sbr.rel target = $region3
    $region8: #{cnn_forward.1} parent=1 // loop_exit
      _
    %13051 = vsyncpa [#allocation6], 1
    %s13052 = scalar_lea.sflag [#allocation6], 1
    %13053 = vsyncpa %s13052, 1
    %13054 = vsyncpa [#allocation9], 1
    %13055 = vsyncpa [#allocation7], 1
    %s13056 = scalar_lea.sflag [#allocation7], 1
    %13057 = vsyncpa %s13056, 1

</llo_original>
